<compile_context>
chip_gen: v5e
topology: v5e:2x2
jax: 0.10.0
libtpu: 0.0.40
codegen_flags: <defaults>
</compile_context>

<pallas_src>
import functools

import jax
import jax.numpy as jnp
from jax.experimental import pallas as pl
from jax.experimental.pallas import tpu as pltpu

EPS = 1e-5
_BIG = 1e30


# ----------------------------------------------------------------------------
# small helpers (traced inside the kernel)
# ----------------------------------------------------------------------------
def _lin_relu_bn(h, w_ref, b_ref, s_ref, t_ref):
    """Lin (bf16 weights, f32 acc) -> ReLU -> folded BatchNorm (scale/shift)."""
    pre = jnp.dot(h.astype(jnp.bfloat16), w_ref[...],
                  preferred_element_type=jnp.float32) + b_ref[...]
    return jnp.maximum(pre, 0.0) * s_ref[...] + t_ref[...]


def _topk_row_masks(score, k, row_ids, col_ids):
    """K stacked (N, N) one-hot bf16 masks selecting, per row, the k largest
    scores (score = -squared_distance).  The diagonal (self) is forced to be
    selected first — PyG knn(x, x, k) always includes the query point — and
    ties break toward the lowest column index.  Returns (k*N, N), k-major."""
    n = score.shape[0]
    score = jnp.where(row_ids == col_ids, jnp.float32(_BIG), score)
    masks = []
    for _ in range(k):                                   # unrolled, k small
        m = jnp.max(score, axis=1, keepdims=True)                    # (N, 1)
        first = jnp.min(jnp.where(score >= m, col_ids, n),
                        axis=1, keepdims=True)                       # (N, 1)
        sel = col_ids == first                                       # (N, N)
        masks.append(sel.astype(jnp.bfloat16))
        score = jnp.where(sel, jnp.float32(-_BIG), score)
    return jnp.concatenate(masks, axis=0)                            # (k*N, N)


# ----------------------------------------------------------------------------
# The fused kernel: one program per graph.
# ----------------------------------------------------------------------------
def _dgcnn_fused_kernel(pos_ref,
                        w1d_ref, w1b_ref, b1_ref, s1_ref, t1_ref,
                        w2_ref, b2_ref, s2_ref, t2_ref,
                        w3_ref, b3_ref, s3_ref, t3_ref,
                        c2d_ref, c2b_ref, c2bias_ref, c2s_ref, c2t_ref,
                        l1a_ref, l1b_ref, l1bias_ref, l1s_ref, l1t_ref,
                        hw1_ref, hb1_ref, hs1_ref, ht1_ref,
                        hw2_ref, hb2_ref, hs2_ref, ht2_ref,
                        hw3_ref, hb3_ref,
                        out_ref, *, k_nn):
    _, N, C = pos_ref.shape
    K = k_nn

    pos = pos_ref[0].astype(jnp.float32)                             # (N, C)
    row_ids = jax.lax.broadcasted_iota(jnp.int32, (N, N), 0)
    col_ids = jax.lax.broadcasted_iota(jnp.int32, (N, N), 1)

    # ---- kNN #1 in coordinate space: VPU pdist (C=3 unrolled; a 3-deep
    # contraction would waste a full MXU pass) + in-kernel top-k masks --------
    d1 = jnp.zeros((N, N), jnp.float32)
    for c in range(C):
        col = pos[:, c:c + 1]                                        # (N, 1)
        diff = col - col.T
        d1 = d1 + diff * diff
    sel1 = _topk_row_masks(-d1, K, row_ids, col_ids)                 # (K*N, N)

    # ---- conv1: DynamicEdgeConv(MLP([2C, 64, 64, 64]), aggr='max') ----------
    # Layer 1: cat([x_i, x_j - x_i]) @ W = x_i @ (Wa - Wb) + x_j @ Wb with
    # pre-split weights; neighbor gather = ONE stacked (K*N, N) one-hot matmul;
    # bias / ReLU / BN applied once on the (K*N, 64) slab.
    pos_bf = pos.astype(jnp.bfloat16)
    p1 = jnp.dot(pos_bf, w1d_ref[...],
                 preferred_element_type=jnp.float32) + b1_ref[...]   # (N, 64)
    q1 = jnp.dot(pos_bf, w1b_ref[...],
                 preferred_element_type=jnp.float32).astype(jnp.bfloat16)
    g1 = jnp.dot(sel1, q1, preferred_element_type=jnp.float32)       # (K*N, 64)
    h = jnp.maximum(g1 + jnp.tile(p1, (K, 1)), 0.0) * s1_ref[...] + t1_ref[...]
    h = _lin_relu_bn(h, w2_ref, b2_ref, s2_ref, t2_ref)              # (K*N, 64)
    h = _lin_relu_bn(h, w3_ref, b3_ref, s3_ref, t3_ref)              # (K*N, 64)
    x1 = jnp.max(h.reshape(K, N, h.shape[-1]), axis=0)               # (N, 64)

    # ---- kNN #2 in feature space (fused): pdist(x1), inner product via one
    # bf16 MXU pass, no explicit transpose (contract dim 1 vs dim 1) ----------
    x1_bf = x1.astype(jnp.bfloat16)
    sq = jnp.sum(x1 * x1, axis=1, keepdims=True)                     # (N, 1)
    inner = jax.lax.dot_general(x1_bf, x1_bf, (((1,), (1,)), ((), ())),
                                preferred_element_type=jnp.float32)  # (N, N)
    d2 = sq + sq.T - 2.0 * inner
    sel2 = _topk_row_masks(-d2, K, row_ids, col_ids)                 # (K*N, N)

    # ---- conv2: DynamicEdgeConv(MLP([2*64, 128]), aggr='max') ---------------
    p2 = jnp.dot(x1_bf, c2d_ref[...],
                 preferred_element_type=jnp.float32) + c2bias_ref[...]  # (N,128)
    q2 = jnp.dot(x1_bf, c2b_ref[...],
                 preferred_element_type=jnp.float32).astype(jnp.bfloat16)
    g2 = jnp.dot(sel2, q2, preferred_element_type=jnp.float32)       # (K*N,128)
    e = jnp.maximum(g2 + jnp.tile(p2, (K, 1)), 0.0) * c2s_ref[...] + c2t_ref[...]
    x2 = jnp.max(e.reshape(K, N, e.shape[-1]), axis=0)               # (N, 128)

    # ---- lin1 on cat([x1, x2], dim=-1) via pre-split weights + global max ---
    pre = (jnp.dot(x1_bf, l1a_ref[...], preferred_element_type=jnp.float32)
           + jnp.dot(x2.astype(jnp.bfloat16), l1b_ref[...],
                     preferred_element_type=jnp.float32)
           + l1bias_ref[...])
    feat = jnp.maximum(pre, 0.0) * l1s_ref[...] + l1t_ref[...]       # (N, 1024)
    hp = jnp.max(feat, axis=0, keepdims=True)                        # (1, 1024)

    # ---- head: MLP([1024,512]) -> Dropout(eval) -> MLP([512,256])
    #            -> Dropout(eval) -> Lin(256, OUT) -> log_softmax -------------
    hp = _lin_relu_bn(hp, hw1_ref, hb1_ref, hs1_ref, ht1_ref)        # (1, 512)
    # TODO(synk): Dropout(0.5) is eval-mode identity here.
    hp = _lin_relu_bn(hp, hw2_ref, hb2_ref, hs2_ref, ht2_ref)        # (1, 256)
    logits = jnp.dot(hp.astype(jnp.bfloat16), hw3_ref[...],
                     preferred_element_type=jnp.float32) + hb3_ref[...]
    z = logits - jnp.max(logits, axis=1, keepdims=True)
    out_ref[0] = z - jnp.log(jnp.sum(jnp.exp(z), axis=1, keepdims=True))


# ----------------------------------------------------------------------------
# Wrapper: single pallas_call, grid=(B,) "parallel" (one graph per program).
# ----------------------------------------------------------------------------
def net_forward(pos, params, k_nn):
    B, N, C = pos.shape
    c1 = params["conv1"]
    c2 = params["conv2"]
    l1 = params["lin1"]
    hd = params["head"]
    out_channels = hd["w3"].shape[1]

    flat = [c1["w1d"], c1["w1b"], c1["b1"], c1["s1"], c1["t1"],
            c1["w2"], c1["b2"], c1["s2"], c1["t2"],
            c1["w3"], c1["b3"], c1["s3"], c1["t3"],
            c2["wd"], c2["wb"], c2["b"], c2["s"], c2["t"],
            l1["wa"], l1["wb"], l1["b"], l1["s"], l1["t"],
            hd["w1"], hd["b1"], hd["s1"], hd["t1"],
            hd["w2"], hd["b2"], hd["s2"], hd["t2"],
            hd["w3"], hd["b3"]]

    out = pl.pallas_call(
        functools.partial(_dgcnn_fused_kernel, k_nn=k_nn),
        out_shape=jax.ShapeDtypeStruct((B, 1, out_channels), jnp.float32),
        grid=(B,),
        in_specs=[pl.BlockSpec((1, N, C), lambda b: (b, 0, 0))]
                 + [pl.BlockSpec(a.shape, lambda b: (0, 0)) for a in flat],
        out_specs=pl.BlockSpec((1, 1, out_channels), lambda b: (b, 0, 0)),
        compiler_params=pltpu.CompilerParams(
            dimension_semantics=("parallel",)),
    )(pos, *flat)
    return out.reshape(B, out_channels)


# ----------------------------------------------------------------------------
# Parameter init (deterministic synthetic, torch-like layout) and BN folding /
# concat-weight pre-splitting / bf16 casting into the kernel-ready form.
# ----------------------------------------------------------------------------
def _init_mlp_layer(key, cin, cout):
    kw, kb, kg, kbe, km, kv = jax.random.split(key, 6)
    w = jax.random.normal(kw, (cin, cout), jnp.float32) * jnp.sqrt(2.0 / cin)
    b = 0.01 * jax.random.normal(kb, (1, cout), jnp.float32)
    gamma = 1.0 + 0.1 * jax.random.normal(kg, (1, cout), jnp.float32)
    beta = 0.1 * jax.random.normal(kbe, (1, cout), jnp.float32)
    mean = 0.1 * jax.random.normal(km, (1, cout), jnp.float32)
    var = 1.0 + 0.1 * jax.random.uniform(kv, (1, cout), jnp.float32)
    return (w, b, gamma, beta, mean, var)


def _init_mlp(key, channels):
    keys = jax.random.split(key, len(channels) - 1)
    return [_init_mlp_layer(k, channels[i], channels[i + 1])
            for i, k in enumerate(keys)]


def init_net_params(key, out_channels):
    k1, k2, k3, k4, k5, k6 = jax.random.split(key, 6)
    input_features = 3  # normals=False, num_x_features=0
    return {
        "conv1": _init_mlp(k1, [2 * input_features, 64, 64, 64]),
        "conv2": _init_mlp(k2, [2 * 64, 128]),
        "lin1": _init_mlp(k3, [128 + 64, 1024])[0],
        "head": (
            _init_mlp(k4, [1024, 512])[0],
            _init_mlp(k5, [512, 256])[0],
            (jax.random.normal(k6, (256, out_channels), jnp.float32)
             * jnp.sqrt(1.0 / 256),
             jnp.zeros((1, out_channels), jnp.float32)),
        ),
    }


def _fold_bn(layer):
    """Lin -> ReLU -> BN(running stats)  ==>  (W, bias, scale, shift)."""
    W, b, g, be, m, v = layer
    s = g * jax.lax.rsqrt(v + EPS)
    t = be - m * s
    return W, b, s, t


def fold_params(raw):
    """Fold BN, pre-split concat weights, cast Lin weights to bf16."""
    # conv1 (3 layers), layer 0 split for cat([x_i, x_j - x_i])
    W0, b0, s0, t0 = _fold_bn(raw["conv1"][0])
    C = W0.shape[0] // 2
    conv1 = {"w1d": (W0[:C] - W0[C:]).astype(jnp.bfloat16),
             "w1b": W0[C:].astype(jnp.bfloat16),
             "b1": b0, "s1": s0, "t1": t0}
    for li, lay in enumerate(raw["conv1"][1:], start=2):
        W, b, s, t = _fold_bn(lay)
        conv1[f"w{li}"] = W.astype(jnp.bfloat16)
        conv1[f"b{li}"] = b
        conv1[f"s{li}"] = s
        conv1[f"t{li}"] = t

    Wc, bc, sc, tc = _fold_bn(raw["conv2"][0])
    C2 = Wc.shape[0] // 2
    conv2 = {"wd": (Wc[:C2] - Wc[C2:]).astype(jnp.bfloat16),
             "wb": Wc[C2:].astype(jnp.bfloat16),
             "b": bc, "s": sc, "t": tc}

    # lin1 consumes cat([x1(64), x2(128)]) -> split rows [0:64] / [64:192].
    Wl, bl, sl, tl = _fold_bn(raw["lin1"])
    lin1 = {"wa": Wl[:64].astype(jnp.bfloat16),     # x1 part (64)
            "wb": Wl[64:].astype(jnp.bfloat16),     # x2 part (128)
            "b": bl, "s": sl, "t": tl}

    Wh1, bh1, sh1, th1 = _fold_bn(raw["head"][0])
    Wh2, bh2, sh2, th2 = _fold_bn(raw["head"][1])
    Wh3, bh3 = raw["head"][2]
    head = {"w1": Wh1.astype(jnp.bfloat16), "b1": bh1, "s1": sh1, "t1": th1,
            "w2": Wh2.astype(jnp.bfloat16), "b2": bh2, "s2": sh2, "t2": th2,
            "w3": Wh3.astype(jnp.bfloat16), "b3": bh3}

    return {"conv1": conv1, "conv2": conv2, "lin1": lin1, "head": head}


if __name__ == "__main__":
    B, N, K, OUT = 2, 32, 4, 8   # 2 graphs, 32 points each, k=4 neighbors, 8 classes
    key = jax.random.PRNGKey(0)
    kpos, kparam = jax.random.split(key)
    pos = jax.random.normal(kpos, (B, N, 3), jnp.float32)
    params = fold_params(init_net_params(kparam, OUT))

    fwd = jax.jit(lambda p, prm: net_forward(p, prm, K))
    logp = jax.block_until_ready(fwd(pos, params))

    assert logp.shape == (B, OUT)
    assert bool(jnp.all(jnp.isfinite(logp)))
    # rows of log_softmax must sum to ~1 in probability space
    assert bool(jnp.allclose(jnp.sum(jnp.exp(logp), axis=1), 1.0, atol=1e-4))
    print("KERNEL_OK")
</pallas_src>

<mosaic_0001>
module attributes {stable_mosaic.version = 11 : i64} {
  func.func @_dgcnn_fused_kernel(%arg0: i32, %arg1: memref<1x32x3xf32, #tpu.memory_space<vmem>>, %arg2: memref<3x64xbf16, #tpu.memory_space<vmem>>, %arg3: memref<3x64xbf16, #tpu.memory_space<vmem>>, %arg4: memref<1x64xf32, #tpu.memory_space<vmem>>, %arg5: memref<1x64xf32, #tpu.memory_space<vmem>>, %arg6: memref<1x64xf32, #tpu.memory_space<vmem>>, %arg7: memref<64x64xbf16, #tpu.memory_space<vmem>>, %arg8: memref<1x64xf32, #tpu.memory_space<vmem>>, %arg9: memref<1x64xf32, #tpu.memory_space<vmem>>, %arg10: memref<1x64xf32, #tpu.memory_space<vmem>>, %arg11: memref<64x64xbf16, #tpu.memory_space<vmem>>, %arg12: memref<1x64xf32, #tpu.memory_space<vmem>>, %arg13: memref<1x64xf32, #tpu.memory_space<vmem>>, %arg14: memref<1x64xf32, #tpu.memory_space<vmem>>, %arg15: memref<64x128xbf16, #tpu.memory_space<vmem>>, %arg16: memref<64x128xbf16, #tpu.memory_space<vmem>>, %arg17: memref<1x128xf32, #tpu.memory_space<vmem>>, %arg18: memref<1x128xf32, #tpu.memory_space<vmem>>, %arg19: memref<1x128xf32, #tpu.memory_space<vmem>>, %arg20: memref<64x1024xbf16, #tpu.memory_space<vmem>>, %arg21: memref<128x1024xbf16, #tpu.memory_space<vmem>>, %arg22: memref<1x1024xf32, #tpu.memory_space<vmem>>, %arg23: memref<1x1024xf32, #tpu.memory_space<vmem>>, %arg24: memref<1x1024xf32, #tpu.memory_space<vmem>>, %arg25: memref<1024x512xbf16, #tpu.memory_space<vmem>>, %arg26: memref<1x512xf32, #tpu.memory_space<vmem>>, %arg27: memref<1x512xf32, #tpu.memory_space<vmem>>, %arg28: memref<1x512xf32, #tpu.memory_space<vmem>>, %arg29: memref<512x256xbf16, #tpu.memory_space<vmem>>, %arg30: memref<1x256xf32, #tpu.memory_space<vmem>>, %arg31: memref<1x256xf32, #tpu.memory_space<vmem>>, %arg32: memref<1x256xf32, #tpu.memory_space<vmem>>, %arg33: memref<256x8xbf16, #tpu.memory_space<vmem>>, %arg34: memref<1x8xf32, #tpu.memory_space<vmem>>, %arg35: memref<1x1x8xf32, #tpu.memory_space<vmem>>) attributes {dimension_semantics = [#tpu.dimension_semantics<parallel>], iteration_bounds = array<i64: 2>, scalar_prefetch = 0 : i64, scratch_operands = 0 : i64, tpu.core_type = #tpu.core_type<tc>, window_params = [{transform_indices = @transform_0, window_bounds = array<i64: 1, 32, 3>}, {pipeline_mode = #tpu.pipeline_mode<synchronous>, transform_indices = @transform_1, window_bounds = array<i64: 3, 64>}, {pipeline_mode = #tpu.pipeline_mode<synchronous>, transform_indices = @transform_2, window_bounds = array<i64: 3, 64>}, {pipeline_mode = #tpu.pipeline_mode<synchronous>, transform_indices = @transform_3, window_bounds = array<i64: 1, 64>}, {pipeline_mode = #tpu.pipeline_mode<synchronous>, transform_indices = @transform_4, window_bounds = array<i64: 1, 64>}, {pipeline_mode = #tpu.pipeline_mode<synchronous>, transform_indices = @transform_5, window_bounds = array<i64: 1, 64>}, {pipeline_mode = #tpu.pipeline_mode<synchronous>, transform_indices = @transform_6, window_bounds = array<i64: 64, 64>}, {pipeline_mode = #tpu.pipeline_mode<synchronous>, transform_indices = @transform_7, window_bounds = array<i64: 1, 64>}, {pipeline_mode = #tpu.pipeline_mode<synchronous>, transform_indices = @transform_8, window_bounds = array<i64: 1, 64>}, {pipeline_mode = #tpu.pipeline_mode<synchronous>, transform_indices = @transform_9, window_bounds = array<i64: 1, 64>}, {pipeline_mode = #tpu.pipeline_mode<synchronous>, transform_indices = @transform_10, window_bounds = array<i64: 64, 64>}, {pipeline_mode = #tpu.pipeline_mode<synchronous>, transform_indices = @transform_11, window_bounds = array<i64: 1, 64>}, {pipeline_mode = #tpu.pipeline_mode<synchronous>, transform_indices = @transform_12, window_bounds = array<i64: 1, 64>}, {pipeline_mode = #tpu.pipeline_mode<synchronous>, transform_indices = @transform_13, window_bounds = array<i64: 1, 64>}, {pipeline_mode = #tpu.pipeline_mode<synchronous>, transform_indices = @transform_14, window_bounds = array<i64: 64, 128>}, {pipeline_mode = #tpu.pipeline_mode<synchronous>, transform_indices = @transform_15, window_bounds = array<i64: 64, 128>}, {pipeline_mode = #tpu.pipeline_mode<synchronous>, transform_indices = @transform_16, window_bounds = array<i64: 1, 128>}, {pipeline_mode = #tpu.pipeline_mode<synchronous>, transform_indices = @transform_17, window_bounds = array<i64: 1, 128>}, {pipeline_mode = #tpu.pipeline_mode<synchronous>, transform_indices = @transform_18, window_bounds = array<i64: 1, 128>}, {pipeline_mode = #tpu.pipeline_mode<synchronous>, transform_indices = @transform_19, window_bounds = array<i64: 64, 1024>}, {pipeline_mode = #tpu.pipeline_mode<synchronous>, transform_indices = @transform_20, window_bounds = array<i64: 128, 1024>}, {pipeline_mode = #tpu.pipeline_mode<synchronous>, transform_indices = @transform_21, window_bounds = array<i64: 1, 1024>}, {pipeline_mode = #tpu.pipeline_mode<synchronous>, transform_indices = @transform_22, window_bounds = array<i64: 1, 1024>}, {pipeline_mode = #tpu.pipeline_mode<synchronous>, transform_indices = @transform_23, window_bounds = array<i64: 1, 1024>}, {pipeline_mode = #tpu.pipeline_mode<synchronous>, transform_indices = @transform_24, window_bounds = array<i64: 1024, 512>}, {pipeline_mode = #tpu.pipeline_mode<synchronous>, transform_indices = @transform_25, window_bounds = array<i64: 1, 512>}, {pipeline_mode = #tpu.pipeline_mode<synchronous>, transform_indices = @transform_26, window_bounds = array<i64: 1, 512>}, {pipeline_mode = #tpu.pipeline_mode<synchronous>, transform_indices = @transform_27, window_bounds = array<i64: 1, 512>}, {pipeline_mode = #tpu.pipeline_mode<synchronous>, transform_indices = @transform_28, window_bounds = array<i64: 512, 256>}, {pipeline_mode = #tpu.pipeline_mode<synchronous>, transform_indices = @transform_29, window_bounds = array<i64: 1, 256>}, {pipeline_mode = #tpu.pipeline_mode<synchronous>, transform_indices = @transform_30, window_bounds = array<i64: 1, 256>}, {pipeline_mode = #tpu.pipeline_mode<synchronous>, transform_indices = @transform_31, window_bounds = array<i64: 1, 256>}, {pipeline_mode = #tpu.pipeline_mode<synchronous>, transform_indices = @transform_32, window_bounds = array<i64: 256, 8>}, {pipeline_mode = #tpu.pipeline_mode<synchronous>, transform_indices = @transform_33, window_bounds = array<i64: 1, 8>}, {transform_indices = @transform_34, window_bounds = array<i64: 1, 1, 8>}]} {
    %c0 = arith.constant 0 : index
    %c0_0 = arith.constant 0 : index
    %c0_1 = arith.constant 0 : index
    %0 = vector.load %arg1[%c0, %c0_0, %c0_1] : memref<1x32x3xf32, #tpu.memory_space<vmem>>, vector<1x32x3xf32>
    %1 = vector.shape_cast %0 : vector<1x32x3xf32> to vector<32x3xf32>
    %2 = tpu.iota {dimensions = array<i32: 0>} : vector<32x32xi32>
    %3 = tpu.iota {dimensions = array<i32: 1>} : vector<32x32xi32>
    %cst = arith.constant 0.000000e+00 : f32
    %4 = vector.broadcast %cst : f32 to vector<32x32xf32>
    %5 = vector.extract_strided_slice %1 {offsets = [0, 0], sizes = [32, 1], strides = [1, 1]} : vector<32x3xf32> to vector<32x1xf32>
    %6 = tpu.transpose %5, [1, 0] : vector<32x1xf32> -> vector<1x32xf32>
    %7 = vector.broadcast %5 : vector<32x1xf32> to vector<32x32xf32>
    %8 = vector.broadcast %6 : vector<1x32xf32> to vector<32x32xf32>
    %9 = arith.subf %7, %8 : vector<32x32xf32>
    %10 = arith.mulf %9, %9 : vector<32x32xf32>
    %11 = arith.addf %4, %10 : vector<32x32xf32>
    %12 = vector.extract_strided_slice %1 {offsets = [0, 1], sizes = [32, 1], strides = [1, 1]} : vector<32x3xf32> to vector<32x1xf32>
    %13 = tpu.transpose %12, [1, 0] : vector<32x1xf32> -> vector<1x32xf32>
    %14 = vector.broadcast %12 : vector<32x1xf32> to vector<32x32xf32>
    %15 = vector.broadcast %13 : vector<1x32xf32> to vector<32x32xf32>
    %16 = arith.subf %14, %15 : vector<32x32xf32>
    %17 = arith.mulf %16, %16 : vector<32x32xf32>
    %18 = arith.addf %11, %17 : vector<32x32xf32>
    %19 = vector.extract_strided_slice %1 {offsets = [0, 2], sizes = [32, 1], strides = [1, 1]} : vector<32x3xf32> to vector<32x1xf32>
    %20 = tpu.transpose %19, [1, 0] : vector<32x1xf32> -> vector<1x32xf32>
    %21 = vector.broadcast %19 : vector<32x1xf32> to vector<32x32xf32>
    %22 = vector.broadcast %20 : vector<1x32xf32> to vector<32x32xf32>
    %23 = arith.subf %21, %22 : vector<32x32xf32>
    %24 = arith.mulf %23, %23 : vector<32x32xf32>
    %25 = arith.addf %18, %24 : vector<32x32xf32>
    %cst_2 = arith.constant 0.000000e+00 : f32
    %26 = vector.broadcast %cst_2 : f32 to vector<32x32xf32>
    %27 = arith.subf %26, %25 : vector<32x32xf32>
    %28 = arith.cmpi eq, %2, %3 : vector<32x32xi32>
    %cst_3 = arith.constant 1.000000e+30 : f32
    %29 = vector.broadcast %cst_3 : f32 to vector<32x32xf32>
    %30 = arith.select %28, %29, %27 : vector<32x32xi1>, vector<32x32xf32>
    %cst_4 = arith.constant dense<0xFF800000> : vector<32xf32>
    %31 = vector.multi_reduction <maximumf>, %30, %cst_4 [1] : vector<32x32xf32> to vector<32xf32>
    %32 = vector.shape_cast %31 : vector<32xf32> to vector<32x1xf32>
    %33 = vector.broadcast %32 : vector<32x1xf32> to vector<32x32xf32>
    %34 = arith.cmpf oge, %30, %33 : vector<32x32xf32>
    %c32_i32 = arith.constant 32 : i32
    %35 = vector.broadcast %c32_i32 : i32 to vector<32x32xi32>
    %36 = arith.select %34, %3, %35 : vector<32x32xi1>, vector<32x32xi32>
    %cst_5 = arith.constant dense<2147483647> : vector<32xi32>
    %37 = vector.multi_reduction <minsi>, %36, %cst_5 [1] : vector<32x32xi32> to vector<32xi32>
    %38 = vector.shape_cast %37 : vector<32xi32> to vector<32x1xi32>
    %39 = vector.broadcast %38 : vector<32x1xi32> to vector<32x32xi32>
    %40 = arith.cmpi eq, %3, %39 : vector<32x32xi32>
    %41 = arith.extui %40 : vector<32x32xi1> to vector<32x32xi32>
    %42 = arith.sitofp %41 : vector<32x32xi32> to vector<32x32xf32>
    %43 = arith.truncf %42 : vector<32x32xf32> to vector<32x32xbf16>
    %cst_6 = arith.constant -1.000000e+30 : f32
    %44 = vector.broadcast %cst_6 : f32 to vector<32x32xf32>
    %45 = arith.select %40, %44, %30 : vector<32x32xi1>, vector<32x32xf32>
    %cst_7 = arith.constant dense<0xFF800000> : vector<32xf32>
    %46 = vector.multi_reduction <maximumf>, %45, %cst_7 [1] : vector<32x32xf32> to vector<32xf32>
    %47 = vector.shape_cast %46 : vector<32xf32> to vector<32x1xf32>
    %48 = vector.broadcast %47 : vector<32x1xf32> to vector<32x32xf32>
    %49 = arith.cmpf oge, %45, %48 : vector<32x32xf32>
    %c32_i32_8 = arith.constant 32 : i32
    %50 = vector.broadcast %c32_i32_8 : i32 to vector<32x32xi32>
    %51 = arith.select %49, %3, %50 : vector<32x32xi1>, vector<32x32xi32>
    %cst_9 = arith.constant dense<2147483647> : vector<32xi32>
    %52 = vector.multi_reduction <minsi>, %51, %cst_9 [1] : vector<32x32xi32> to vector<32xi32>
    %53 = vector.shape_cast %52 : vector<32xi32> to vector<32x1xi32>
    %54 = vector.broadcast %53 : vector<32x1xi32> to vector<32x32xi32>
    %55 = arith.cmpi eq, %3, %54 : vector<32x32xi32>
    %56 = arith.extui %55 : vector<32x32xi1> to vector<32x32xi32>
    %57 = arith.sitofp %56 : vector<32x32xi32> to vector<32x32xf32>
    %58 = arith.truncf %57 : vector<32x32xf32> to vector<32x32xbf16>
    %cst_10 = arith.constant -1.000000e+30 : f32
    %59 = vector.broadcast %cst_10 : f32 to vector<32x32xf32>
    %60 = arith.select %55, %59, %45 : vector<32x32xi1>, vector<32x32xf32>
    %cst_11 = arith.constant dense<0xFF800000> : vector<32xf32>
    %61 = vector.multi_reduction <maximumf>, %60, %cst_11 [1] : vector<32x32xf32> to vector<32xf32>
    %62 = vector.shape_cast %61 : vector<32xf32> to vector<32x1xf32>
    %63 = vector.broadcast %62 : vector<32x1xf32> to vector<32x32xf32>
    %64 = arith.cmpf oge, %60, %63 : vector<32x32xf32>
    %c32_i32_12 = arith.constant 32 : i32
    %65 = vector.broadcast %c32_i32_12 : i32 to vector<32x32xi32>
    %66 = arith.select %64, %3, %65 : vector<32x32xi1>, vector<32x32xi32>
    %cst_13 = arith.constant dense<2147483647> : vector<32xi32>
    %67 = vector.multi_reduction <minsi>, %66, %cst_13 [1] : vector<32x32xi32> to vector<32xi32>
    %68 = vector.shape_cast %67 : vector<32xi32> to vector<32x1xi32>
    %69 = vector.broadcast %68 : vector<32x1xi32> to vector<32x32xi32>
    %70 = arith.cmpi eq, %3, %69 : vector<32x32xi32>
    %71 = arith.extui %70 : vector<32x32xi1> to vector<32x32xi32>
    %72 = arith.sitofp %71 : vector<32x32xi32> to vector<32x32xf32>
    %73 = arith.truncf %72 : vector<32x32xf32> to vector<32x32xbf16>
    %cst_14 = arith.constant -1.000000e+30 : f32
    %74 = vector.broadcast %cst_14 : f32 to vector<32x32xf32>
    %75 = arith.select %70, %74, %60 : vector<32x32xi1>, vector<32x32xf32>
    %cst_15 = arith.constant dense<0xFF800000> : vector<32xf32>
    %76 = vector.multi_reduction <maximumf>, %75, %cst_15 [1] : vector<32x32xf32> to vector<32xf32>
    %77 = vector.shape_cast %76 : vector<32xf32> to vector<32x1xf32>
    %78 = vector.broadcast %77 : vector<32x1xf32> to vector<32x32xf32>
    %79 = arith.cmpf oge, %75, %78 : vector<32x32xf32>
    %c32_i32_16 = arith.constant 32 : i32
    %80 = vector.broadcast %c32_i32_16 : i32 to vector<32x32xi32>
    %81 = arith.select %79, %3, %80 : vector<32x32xi1>, vector<32x32xi32>
    %cst_17 = arith.constant dense<2147483647> : vector<32xi32>
    %82 = vector.multi_reduction <minsi>, %81, %cst_17 [1] : vector<32x32xi32> to vector<32xi32>
    %83 = vector.shape_cast %82 : vector<32xi32> to vector<32x1xi32>
    %84 = vector.broadcast %83 : vector<32x1xi32> to vector<32x32xi32>
    %85 = arith.cmpi eq, %3, %84 : vector<32x32xi32>
    %86 = arith.extui %85 : vector<32x32xi1> to vector<32x32xi32>
    %87 = arith.sitofp %86 : vector<32x32xi32> to vector<32x32xf32>
    %88 = arith.truncf %87 : vector<32x32xf32> to vector<32x32xbf16>
    %89 = tpu.concatenate %43, %58, %73, %88 in 0 : vector<32x32xbf16>, vector<32x32xbf16>, vector<32x32xbf16>, vector<32x32xbf16> -> vector<128x32xbf16>
    %90 = arith.truncf %1 : vector<32x3xf32> to vector<32x3xbf16>
    %c0_18 = arith.constant 0 : index
    %c0_19 = arith.constant 0 : index
    %91 = vector.load %arg2[%c0_18, %c0_19] : memref<3x64xbf16, #tpu.memory_space<vmem>>, vector<3x64xbf16>
    %cst_20 = arith.constant dense<0.000000e+00> : vector<32x64xf32>
    %92 = tpu.matmul %90, %91, %cst_20 {dimension_numbers = #tpu.dot_dimension_numbers<[1], [0], [0], [1], [0, 0, 1, 1], [], []>} : vector<32x3xbf16>, vector<3x64xbf16>, vector<32x64xf32> -> vector<32x64xf32>
    %c0_21 = arith.constant 0 : index
    %c0_22 = arith.constant 0 : index
    %93 = vector.load %arg4[%c0_21, %c0_22] : memref<1x64xf32, #tpu.memory_space<vmem>>, vector<1x64xf32>
    %94 = vector.broadcast %93 : vector<1x64xf32> to vector<32x64xf32>
    %95 = arith.addf %92, %94 : vector<32x64xf32>
    %c0_23 = arith.constant 0 : index
    %c0_24 = arith.constant 0 : index
    %96 = vector.load %arg3[%c0_23, %c0_24] : memref<3x64xbf16, #tpu.memory_space<vmem>>, vector<3x64xbf16>
    %cst_25 = arith.constant dense<0.000000e+00> : vector<32x64xf32>
    %97 = tpu.matmul %90, %96, %cst_25 {dimension_numbers = #tpu.dot_dimension_numbers<[1], [0], [0], [1], [0, 0, 1, 1], [], []>} : vector<32x3xbf16>, vector<3x64xbf16>, vector<32x64xf32> -> vector<32x64xf32>
    %98 = arith.truncf %97 : vector<32x64xf32> to vector<32x64xbf16>
    %cst_26 = arith.constant dense<0.000000e+00> : vector<128x64xf32>
    %99 = tpu.matmul %89, %98, %cst_26 {dimension_numbers = #tpu.dot_dimension_numbers<[1], [0], [0], [1], [0, 0, 1, 1], [], []>} : vector<128x32xbf16>, vector<32x64xbf16>, vector<128x64xf32> -> vector<128x64xf32>
    %100 = tpu.concatenate %95, %95, %95, %95 in 0 : vector<32x64xf32>, vector<32x64xf32>, vector<32x64xf32>, vector<32x64xf32> -> vector<128x64xf32>
    %101 = arith.addf %99, %100 : vector<128x64xf32>
    %cst_27 = arith.constant 0.000000e+00 : f32
    %102 = vector.broadcast %cst_27 : f32 to vector<128x64xf32>
    %103 = arith.maximumf %101, %102 : vector<128x64xf32>
    %c0_28 = arith.constant 0 : index
    %c0_29 = arith.constant 0 : index
    %104 = vector.load %arg5[%c0_28, %c0_29] : memref<1x64xf32, #tpu.memory_space<vmem>>, vector<1x64xf32>
    %105 = vector.broadcast %104 : vector<1x64xf32> to vector<128x64xf32>
    %106 = arith.mulf %103, %105 : vector<128x64xf32>
    %c0_30 = arith.constant 0 : index
    %c0_31 = arith.constant 0 : index
    %107 = vector.load %arg6[%c0_30, %c0_31] : memref<1x64xf32, #tpu.memory_space<vmem>>, vector<1x64xf32>
    %108 = vector.broadcast %107 : vector<1x64xf32> to vector<128x64xf32>
    %109 = arith.addf %106, %108 : vector<128x64xf32>
    %110 = arith.truncf %109 : vector<128x64xf32> to vector<128x64xbf16>
    %c0_32 = arith.constant 0 : index
    %c0_33 = arith.constant 0 : index
    %111 = vector.load %arg7[%c0_32, %c0_33] : memref<64x64xbf16, #tpu.memory_space<vmem>>, vector<64x64xbf16>
    %cst_34 = arith.constant dense<0.000000e+00> : vector<128x64xf32>
    %112 = tpu.matmul %110, %111, %cst_34 {dimension_numbers = #tpu.dot_dimension_numbers<[1], [0], [0], [1], [0, 0, 1, 1], [], []>} : vector<128x64xbf16>, vector<64x64xbf16>, vector<128x64xf32> -> vector<128x64xf32>
    %c0_35 = arith.constant 0 : index
    %c0_36 = arith.constant 0 : index
    %113 = vector.load %arg8[%c0_35, %c0_36] : memref<1x64xf32, #tpu.memory_space<vmem>>, vector<1x64xf32>
    %114 = vector.broadcast %113 : vector<1x64xf32> to vector<128x64xf32>
    %115 = arith.addf %112, %114 : vector<128x64xf32>
    %cst_37 = arith.constant 0.000000e+00 : f32
    %116 = vector.broadcast %cst_37 : f32 to vector<128x64xf32>
    %117 = arith.maximumf %115, %116 : vector<128x64xf32>
    %c0_38 = arith.constant 0 : index
    %c0_39 = arith.constant 0 : index
    %118 = vector.load %arg9[%c0_38, %c0_39] : memref<1x64xf32, #tpu.memory_space<vmem>>, vector<1x64xf32>
    %119 = vector.broadcast %118 : vector<1x64xf32> to vector<128x64xf32>
    %120 = arith.mulf %117, %119 : vector<128x64xf32>
    %c0_40 = arith.constant 0 : index
    %c0_41 = arith.constant 0 : index
    %121 = vector.load %arg10[%c0_40, %c0_41] : memref<1x64xf32, #tpu.memory_space<vmem>>, vector<1x64xf32>
    %122 = vector.broadcast %121 : vector<1x64xf32> to vector<128x64xf32>
    %123 = arith.addf %120, %122 : vector<128x64xf32>
    %124 = arith.truncf %123 : vector<128x64xf32> to vector<128x64xbf16>
    %c0_42 = arith.constant 0 : index
    %c0_43 = arith.constant 0 : index
    %125 = vector.load %arg11[%c0_42, %c0_43] : memref<64x64xbf16, #tpu.memory_space<vmem>>, vector<64x64xbf16>
    %cst_44 = arith.constant dense<0.000000e+00> : vector<128x64xf32>
    %126 = tpu.matmul %124, %125, %cst_44 {dimension_numbers = #tpu.dot_dimension_numbers<[1], [0], [0], [1], [0, 0, 1, 1], [], []>} : vector<128x64xbf16>, vector<64x64xbf16>, vector<128x64xf32> -> vector<128x64xf32>
    %c0_45 = arith.constant 0 : index
    %c0_46 = arith.constant 0 : index
    %127 = vector.load %arg12[%c0_45, %c0_46] : memref<1x64xf32, #tpu.memory_space<vmem>>, vector<1x64xf32>
    %128 = vector.broadcast %127 : vector<1x64xf32> to vector<128x64xf32>
    %129 = arith.addf %126, %128 : vector<128x64xf32>
    %cst_47 = arith.constant 0.000000e+00 : f32
    %130 = vector.broadcast %cst_47 : f32 to vector<128x64xf32>
    %131 = arith.maximumf %129, %130 : vector<128x64xf32>
    %c0_48 = arith.constant 0 : index
    %c0_49 = arith.constant 0 : index
    %132 = vector.load %arg13[%c0_48, %c0_49] : memref<1x64xf32, #tpu.memory_space<vmem>>, vector<1x64xf32>
    %133 = vector.broadcast %132 : vector<1x64xf32> to vector<128x64xf32>
    %134 = arith.mulf %131, %133 : vector<128x64xf32>
    %c0_50 = arith.constant 0 : index
    %c0_51 = arith.constant 0 : index
    %135 = vector.load %arg14[%c0_50, %c0_51] : memref<1x64xf32, #tpu.memory_space<vmem>>, vector<1x64xf32>
    %136 = vector.broadcast %135 : vector<1x64xf32> to vector<128x64xf32>
    %137 = arith.addf %134, %136 : vector<128x64xf32>
    %138 = vector.shape_cast %137 : vector<128x64xf32> to vector<4x32x64xf32>
    %cst_52 = arith.constant dense<0xFF800000> : vector<32x64xf32>
    %139 = vector.multi_reduction <maximumf>, %138, %cst_52 [0] : vector<4x32x64xf32> to vector<32x64xf32>
    %140 = arith.truncf %139 : vector<32x64xf32> to vector<32x64xbf16>
    %141 = arith.mulf %139, %139 : vector<32x64xf32>
    %cst_53 = arith.constant dense<0.000000e+00> : vector<32xf32>
    %142 = vector.multi_reduction <add>, %141, %cst_53 [1] : vector<32x64xf32> to vector<32xf32>
    %143 = vector.shape_cast %142 : vector<32xf32> to vector<32x1xf32>
    %cst_54 = arith.constant dense<0.000000e+00> : vector<32x32xf32>
    %144 = tpu.matmul %140, %140, %cst_54 {dimension_numbers = #tpu.dot_dimension_numbers<[1], [1], [0], [0], [0, 0, 1, 0], [], []>} : vector<32x64xbf16>, vector<32x64xbf16>, vector<32x32xf32> -> vector<32x32xf32>
    %145 = tpu.transpose %143, [1, 0] : vector<32x1xf32> -> vector<1x32xf32>
    %146 = vector.broadcast %143 : vector<32x1xf32> to vector<32x32xf32>
    %147 = vector.broadcast %145 : vector<1x32xf32> to vector<32x32xf32>
    %148 = arith.addf %146, %147 : vector<32x32xf32>
    %cst_55 = arith.constant 2.000000e+00 : f32
    %149 = vector.broadcast %cst_55 : f32 to vector<32x32xf32>
    %150 = arith.mulf %149, %144 : vector<32x32xf32>
    %151 = arith.subf %148, %150 : vector<32x32xf32>
    %cst_56 = arith.constant 0.000000e+00 : f32
    %152 = vector.broadcast %cst_56 : f32 to vector<32x32xf32>
    %153 = arith.subf %152, %151 : vector<32x32xf32>
    %154 = arith.cmpi eq, %2, %3 : vector<32x32xi32>
    %cst_57 = arith.constant 1.000000e+30 : f32
    %155 = vector.broadcast %cst_57 : f32 to vector<32x32xf32>
    %156 = arith.select %154, %155, %153 : vector<32x32xi1>, vector<32x32xf32>
    %cst_58 = arith.constant dense<0xFF800000> : vector<32xf32>
    %157 = vector.multi_reduction <maximumf>, %156, %cst_58 [1] : vector<32x32xf32> to vector<32xf32>
    %158 = vector.shape_cast %157 : vector<32xf32> to vector<32x1xf32>
    %159 = vector.broadcast %158 : vector<32x1xf32> to vector<32x32xf32>
    %160 = arith.cmpf oge, %156, %159 : vector<32x32xf32>
    %c32_i32_59 = arith.constant 32 : i32
    %161 = vector.broadcast %c32_i32_59 : i32 to vector<32x32xi32>
    %162 = arith.select %160, %3, %161 : vector<32x32xi1>, vector<32x32xi32>
    %cst_60 = arith.constant dense<2147483647> : vector<32xi32>
    %163 = vector.multi_reduction <minsi>, %162, %cst_60 [1] : vector<32x32xi32> to vector<32xi32>
    %164 = vector.shape_cast %163 : vector<32xi32> to vector<32x1xi32>
    %165 = vector.broadcast %164 : vector<32x1xi32> to vector<32x32xi32>
    %166 = arith.cmpi eq, %3, %165 : vector<32x32xi32>
    %167 = arith.extui %166 : vector<32x32xi1> to vector<32x32xi32>
    %168 = arith.sitofp %167 : vector<32x32xi32> to vector<32x32xf32>
    %169 = arith.truncf %168 : vector<32x32xf32> to vector<32x32xbf16>
    %cst_61 = arith.constant -1.000000e+30 : f32
    %170 = vector.broadcast %cst_61 : f32 to vector<32x32xf32>
    %171 = arith.select %166, %170, %156 : vector<32x32xi1>, vector<32x32xf32>
    %cst_62 = arith.constant dense<0xFF800000> : vector<32xf32>
    %172 = vector.multi_reduction <maximumf>, %171, %cst_62 [1] : vector<32x32xf32> to vector<32xf32>
    %173 = vector.shape_cast %172 : vector<32xf32> to vector<32x1xf32>
    %174 = vector.broadcast %173 : vector<32x1xf32> to vector<32x32xf32>
    %175 = arith.cmpf oge, %171, %174 : vector<32x32xf32>
    %c32_i32_63 = arith.constant 32 : i32
    %176 = vector.broadcast %c32_i32_63 : i32 to vector<32x32xi32>
    %177 = arith.select %175, %3, %176 : vector<32x32xi1>, vector<32x32xi32>
    %cst_64 = arith.constant dense<2147483647> : vector<32xi32>
    %178 = vector.multi_reduction <minsi>, %177, %cst_64 [1] : vector<32x32xi32> to vector<32xi32>
    %179 = vector.shape_cast %178 : vector<32xi32> to vector<32x1xi32>
    %180 = vector.broadcast %179 : vector<32x1xi32> to vector<32x32xi32>
    %181 = arith.cmpi eq, %3, %180 : vector<32x32xi32>
    %182 = arith.extui %181 : vector<32x32xi1> to vector<32x32xi32>
    %183 = arith.sitofp %182 : vector<32x32xi32> to vector<32x32xf32>
    %184 = arith.truncf %183 : vector<32x32xf32> to vector<32x32xbf16>
    %cst_65 = arith.constant -1.000000e+30 : f32
    %185 = vector.broadcast %cst_65 : f32 to vector<32x32xf32>
    %186 = arith.select %181, %185, %171 : vector<32x32xi1>, vector<32x32xf32>
    %cst_66 = arith.constant dense<0xFF800000> : vector<32xf32>
    %187 = vector.multi_reduction <maximumf>, %186, %cst_66 [1] : vector<32x32xf32> to vector<32xf32>
    %188 = vector.shape_cast %187 : vector<32xf32> to vector<32x1xf32>
    %189 = vector.broadcast %188 : vector<32x1xf32> to vector<32x32xf32>
    %190 = arith.cmpf oge, %186, %189 : vector<32x32xf32>
    %c32_i32_67 = arith.constant 32 : i32
    %191 = vector.broadcast %c32_i32_67 : i32 to vector<32x32xi32>
    %192 = arith.select %190, %3, %191 : vector<32x32xi1>, vector<32x32xi32>
    %cst_68 = arith.constant dense<2147483647> : vector<32xi32>
    %193 = vector.multi_reduction <minsi>, %192, %cst_68 [1] : vector<32x32xi32> to vector<32xi32>
    %194 = vector.shape_cast %193 : vector<32xi32> to vector<32x1xi32>
    %195 = vector.broadcast %194 : vector<32x1xi32> to vector<32x32xi32>
    %196 = arith.cmpi eq, %3, %195 : vector<32x32xi32>
    %197 = arith.extui %196 : vector<32x32xi1> to vector<32x32xi32>
    %198 = arith.sitofp %197 : vector<32x32xi32> to vector<32x32xf32>
    %199 = arith.truncf %198 : vector<32x32xf32> to vector<32x32xbf16>
    %cst_69 = arith.constant -1.000000e+30 : f32
    %200 = vector.broadcast %cst_69 : f32 to vector<32x32xf32>
    %201 = arith.select %196, %200, %186 : vector<32x32xi1>, vector<32x32xf32>
    %cst_70 = arith.constant dense<0xFF800000> : vector<32xf32>
    %202 = vector.multi_reduction <maximumf>, %201, %cst_70 [1] : vector<32x32xf32> to vector<32xf32>
    %203 = vector.shape_cast %202 : vector<32xf32> to vector<32x1xf32>
    %204 = vector.broadcast %203 : vector<32x1xf32> to vector<32x32xf32>
    %205 = arith.cmpf oge, %201, %204 : vector<32x32xf32>
    %c32_i32_71 = arith.constant 32 : i32
    %206 = vector.broadcast %c32_i32_71 : i32 to vector<32x32xi32>
    %207 = arith.select %205, %3, %206 : vector<32x32xi1>, vector<32x32xi32>
    %cst_72 = arith.constant dense<2147483647> : vector<32xi32>
    %208 = vector.multi_reduction <minsi>, %207, %cst_72 [1] : vector<32x32xi32> to vector<32xi32>
    %209 = vector.shape_cast %208 : vector<32xi32> to vector<32x1xi32>
    %210 = vector.broadcast %209 : vector<32x1xi32> to vector<32x32xi32>
    %211 = arith.cmpi eq, %3, %210 : vector<32x32xi32>
    %212 = arith.extui %211 : vector<32x32xi1> to vector<32x32xi32>
    %213 = arith.sitofp %212 : vector<32x32xi32> to vector<32x32xf32>
    %214 = arith.truncf %213 : vector<32x32xf32> to vector<32x32xbf16>
    %215 = tpu.concatenate %169, %184, %199, %214 in 0 : vector<32x32xbf16>, vector<32x32xbf16>, vector<32x32xbf16>, vector<32x32xbf16> -> vector<128x32xbf16>
    %c0_73 = arith.constant 0 : index
    %c0_74 = arith.constant 0 : index
    %216 = vector.load %arg15[%c0_73, %c0_74] : memref<64x128xbf16, #tpu.memory_space<vmem>>, vector<64x128xbf16>
    %cst_75 = arith.constant dense<0.000000e+00> : vector<32x128xf32>
    %217 = tpu.matmul %140, %216, %cst_75 {dimension_numbers = #tpu.dot_dimension_numbers<[1], [0], [0], [1], [0, 0, 1, 1], [], []>} : vector<32x64xbf16>, vector<64x128xbf16>, vector<32x128xf32> -> vector<32x128xf32>
    %c0_76 = arith.constant 0 : index
    %c0_77 = arith.constant 0 : index
    %218 = vector.load %arg17[%c0_76, %c0_77] : memref<1x128xf32, #tpu.memory_space<vmem>>, vector<1x128xf32>
    %219 = vector.broadcast %218 : vector<1x128xf32> to vector<32x128xf32>
    %220 = arith.addf %217, %219 : vector<32x128xf32>
    %c0_78 = arith.constant 0 : index
    %c0_79 = arith.constant 0 : index
    %221 = vector.load %arg16[%c0_78, %c0_79] : memref<64x128xbf16, #tpu.memory_space<vmem>>, vector<64x128xbf16>
    %cst_80 = arith.constant dense<0.000000e+00> : vector<32x128xf32>
    %222 = tpu.matmul %140, %221, %cst_80 {dimension_numbers = #tpu.dot_dimension_numbers<[1], [0], [0], [1], [0, 0, 1, 1], [], []>} : vector<32x64xbf16>, vector<64x128xbf16>, vector<32x128xf32> -> vector<32x128xf32>
    %223 = arith.truncf %222 : vector<32x128xf32> to vector<32x128xbf16>
    %cst_81 = arith.constant dense<0.000000e+00> : vector<128x128xf32>
    %224 = tpu.matmul %215, %223, %cst_81 {dimension_numbers = #tpu.dot_dimension_numbers<[1], [0], [0], [1], [0, 0, 1, 1], [], []>} : vector<128x32xbf16>, vector<32x128xbf16>, vector<128x128xf32> -> vector<128x128xf32>
    %225 = tpu.concatenate %220, %220, %220, %220 in 0 : vector<32x128xf32>, vector<32x128xf32>, vector<32x128xf32>, vector<32x128xf32> -> vector<128x128xf32>
    %226 = arith.addf %224, %225 : vector<128x128xf32>
    %cst_82 = arith.constant 0.000000e+00 : f32
    %227 = vector.broadcast %cst_82 : f32 to vector<128x128xf32>
    %228 = arith.maximumf %226, %227 : vector<128x128xf32>
    %c0_83 = arith.constant 0 : index
    %c0_84 = arith.constant 0 : index
    %229 = vector.load %arg18[%c0_83, %c0_84] : memref<1x128xf32, #tpu.memory_space<vmem>>, vector<1x128xf32>
    %230 = vector.broadcast %229 : vector<1x128xf32> to vector<128x128xf32>
    %231 = arith.mulf %228, %230 : vector<128x128xf32>
    %c0_85 = arith.constant 0 : index
    %c0_86 = arith.constant 0 : index
    %232 = vector.load %arg19[%c0_85, %c0_86] : memref<1x128xf32, #tpu.memory_space<vmem>>, vector<1x128xf32>
    %233 = vector.broadcast %232 : vector<1x128xf32> to vector<128x128xf32>
    %234 = arith.addf %231, %233 : vector<128x128xf32>
    %235 = vector.shape_cast %234 : vector<128x128xf32> to vector<4x32x128xf32>
    %cst_87 = arith.constant dense<0xFF800000> : vector<32x128xf32>
    %236 = vector.multi_reduction <maximumf>, %235, %cst_87 [0] : vector<4x32x128xf32> to vector<32x128xf32>
    %c0_88 = arith.constant 0 : index
    %c0_89 = arith.constant 0 : index
    %237 = vector.load %arg20[%c0_88, %c0_89] : memref<64x1024xbf16, #tpu.memory_space<vmem>>, vector<64x1024xbf16>
    %cst_90 = arith.constant dense<0.000000e+00> : vector<32x1024xf32>
    %238 = tpu.matmul %140, %237, %cst_90 {dimension_numbers = #tpu.dot_dimension_numbers<[1], [0], [0], [1], [0, 0, 1, 1], [], []>} : vector<32x64xbf16>, vector<64x1024xbf16>, vector<32x1024xf32> -> vector<32x1024xf32>
    %239 = arith.truncf %236 : vector<32x128xf32> to vector<32x128xbf16>
    %c0_91 = arith.constant 0 : index
    %c0_92 = arith.constant 0 : index
    %240 = vector.load %arg21[%c0_91, %c0_92] : memref<128x1024xbf16, #tpu.memory_space<vmem>>, vector<128x1024xbf16>
    %cst_93 = arith.constant dense<0.000000e+00> : vector<32x1024xf32>
    %241 = tpu.matmul %239, %240, %cst_93 {dimension_numbers = #tpu.dot_dimension_numbers<[1], [0], [0], [1], [0, 0, 1, 1], [], []>} : vector<32x128xbf16>, vector<128x1024xbf16>, vector<32x1024xf32> -> vector<32x1024xf32>
    %242 = arith.addf %238, %241 : vector<32x1024xf32>
    %c0_94 = arith.constant 0 : index
    %c0_95 = arith.constant 0 : index
    %243 = vector.load %arg22[%c0_94, %c0_95] : memref<1x1024xf32, #tpu.memory_space<vmem>>, vector<1x1024xf32>
    %244 = vector.broadcast %243 : vector<1x1024xf32> to vector<32x1024xf32>
    %245 = arith.addf %242, %244 : vector<32x1024xf32>
    %cst_96 = arith.constant 0.000000e+00 : f32
    %246 = vector.broadcast %cst_96 : f32 to vector<32x1024xf32>
    %247 = arith.maximumf %245, %246 : vector<32x1024xf32>
    %c0_97 = arith.constant 0 : index
    %c0_98 = arith.constant 0 : index
    %248 = vector.load %arg23[%c0_97, %c0_98] : memref<1x1024xf32, #tpu.memory_space<vmem>>, vector<1x1024xf32>
    %249 = vector.broadcast %248 : vector<1x1024xf32> to vector<32x1024xf32>
    %250 = arith.mulf %247, %249 : vector<32x1024xf32>
    %c0_99 = arith.constant 0 : index
    %c0_100 = arith.constant 0 : index
    %251 = vector.load %arg24[%c0_99, %c0_100] : memref<1x1024xf32, #tpu.memory_space<vmem>>, vector<1x1024xf32>
    %252 = vector.broadcast %251 : vector<1x1024xf32> to vector<32x1024xf32>
    %253 = arith.addf %250, %252 : vector<32x1024xf32>
    %cst_101 = arith.constant dense<0xFF800000> : vector<1024xf32>
    %254 = vector.multi_reduction <maximumf>, %253, %cst_101 [0] : vector<32x1024xf32> to vector<1024xf32>
    %255 = vector.shape_cast %254 : vector<1024xf32> to vector<1x1024xf32>
    %256 = arith.truncf %255 : vector<1x1024xf32> to vector<1x1024xbf16>
    %c0_102 = arith.constant 0 : index
    %c0_103 = arith.constant 0 : index
    %257 = vector.load %arg25[%c0_102, %c0_103] : memref<1024x512xbf16, #tpu.memory_space<vmem>>, vector<1024x512xbf16>
    %cst_104 = arith.constant dense<0.000000e+00> : vector<1x512xf32>
    %258 = tpu.matmul %256, %257, %cst_104 {dimension_numbers = #tpu.dot_dimension_numbers<[1], [0], [0], [1], [0, 0, 1, 1], [], []>} : vector<1x1024xbf16>, vector<1024x512xbf16>, vector<1x512xf32> -> vector<1x512xf32>
    %c0_105 = arith.constant 0 : index
    %c0_106 = arith.constant 0 : index
    %259 = vector.load %arg26[%c0_105, %c0_106] : memref<1x512xf32, #tpu.memory_space<vmem>>, vector<1x512xf32>
    %260 = arith.addf %258, %259 : vector<1x512xf32>
    %cst_107 = arith.constant 0.000000e+00 : f32
    %261 = vector.broadcast %cst_107 : f32 to vector<1x512xf32>
    %262 = arith.maximumf %260, %261 : vector<1x512xf32>
    %c0_108 = arith.constant 0 : index
    %c0_109 = arith.constant 0 : index
    %263 = vector.load %arg27[%c0_108, %c0_109] : memref<1x512xf32, #tpu.memory_space<vmem>>, vector<1x512xf32>
    %264 = arith.mulf %262, %263 : vector<1x512xf32>
    %c0_110 = arith.constant 0 : index
    %c0_111 = arith.constant 0 : index
    %265 = vector.load %arg28[%c0_110, %c0_111] : memref<1x512xf32, #tpu.memory_space<vmem>>, vector<1x512xf32>
    %266 = arith.addf %264, %265 : vector<1x512xf32>
    %267 = arith.truncf %266 : vector<1x512xf32> to vector<1x512xbf16>
    %c0_112 = arith.constant 0 : index
    %c0_113 = arith.constant 0 : index
    %268 = vector.load %arg29[%c0_112, %c0_113] : memref<512x256xbf16, #tpu.memory_space<vmem>>, vector<512x256xbf16>
    %cst_114 = arith.constant dense<0.000000e+00> : vector<1x256xf32>
    %269 = tpu.matmul %267, %268, %cst_114 {dimension_numbers = #tpu.dot_dimension_numbers<[1], [0], [0], [1], [0, 0, 1, 1], [], []>} : vector<1x512xbf16>, vector<512x256xbf16>, vector<1x256xf32> -> vector<1x256xf32>
    %c0_115 = arith.constant 0 : index
    %c0_116 = arith.constant 0 : index
    %270 = vector.load %arg30[%c0_115, %c0_116] : memref<1x256xf32, #tpu.memory_space<vmem>>, vector<1x256xf32>
    %271 = arith.addf %269, %270 : vector<1x256xf32>
    %cst_117 = arith.constant 0.000000e+00 : f32
    %272 = vector.broadcast %cst_117 : f32 to vector<1x256xf32>
    %273 = arith.maximumf %271, %272 : vector<1x256xf32>
    %c0_118 = arith.constant 0 : index
    %c0_119 = arith.constant 0 : index
    %274 = vector.load %arg31[%c0_118, %c0_119] : memref<1x256xf32, #tpu.memory_space<vmem>>, vector<1x256xf32>
    %275 = arith.mulf %273, %274 : vector<1x256xf32>
    %c0_120 = arith.constant 0 : index
    %c0_121 = arith.constant 0 : index
    %276 = vector.load %arg32[%c0_120, %c0_121] : memref<1x256xf32, #tpu.memory_space<vmem>>, vector<1x256xf32>
    %277 = arith.addf %275, %276 : vector<1x256xf32>
    %278 = arith.truncf %277 : vector<1x256xf32> to vector<1x256xbf16>
    %c0_122 = arith.constant 0 : index
    %c0_123 = arith.constant 0 : index
    %279 = vector.load %arg33[%c0_122, %c0_123] : memref<256x8xbf16, #tpu.memory_space<vmem>>, vector<256x8xbf16>
    %cst_124 = arith.constant dense<0.000000e+00> : vector<1x8xf32>
    %280 = tpu.matmul %278, %279, %cst_124 {dimension_numbers = #tpu.dot_dimension_numbers<[1], [0], [0], [1], [0, 0, 1, 1], [], []>} : vector<1x256xbf16>, vector<256x8xbf16>, vector<1x8xf32> -> vector<1x8xf32>
    %c0_125 = arith.constant 0 : index
    %c0_126 = arith.constant 0 : index
    %281 = vector.load %arg34[%c0_125, %c0_126] : memref<1x8xf32, #tpu.memory_space<vmem>>, vector<1x8xf32>
    %282 = arith.addf %280, %281 : vector<1x8xf32>
    %cst_127 = arith.constant dense<0xFF800000> : vector<1xf32>
    %283 = vector.multi_reduction <maximumf>, %282, %cst_127 [1] : vector<1x8xf32> to vector<1xf32>
    %284 = vector.shape_cast %283 : vector<1xf32> to vector<1x1xf32>
    %285 = vector.broadcast %284 : vector<1x1xf32> to vector<1x8xf32>
    %286 = arith.subf %282, %285 : vector<1x8xf32>
    %287 = math.exp %286 : vector<1x8xf32>
    %cst_128 = arith.constant dense<0.000000e+00> : vector<1xf32>
    %288 = vector.multi_reduction <add>, %287, %cst_128 [1] : vector<1x8xf32> to vector<1xf32>
    %289 = vector.shape_cast %288 : vector<1xf32> to vector<1x1xf32>
    %290 = math.log %289 : vector<1x1xf32>
    %291 = vector.broadcast %290 : vector<1x1xf32> to vector<1x8xf32>
    %292 = arith.subf %286, %291 : vector<1x8xf32>
    %c0_129 = arith.constant 0 : index
    %c0_130 = arith.constant 0 : index
    %c0_131 = arith.constant 0 : index
    %293 = vector.load %arg35[%c0_129, %c0_130, %c0_131] : memref<1x1x8xf32, #tpu.memory_space<vmem>>, vector<1x1x8xf32>
    %294 = vector.shape_cast %293 : vector<1x1x8xf32> to vector<1x8xf32>
    %295 = vector.shape_cast %292 : vector<1x8xf32> to vector<1x1x8xf32>
    tpu.vector_store %arg35[%c0_129, %c0_130, %c0_131], %295 {strides = array<i32>} : memref<1x1x8xf32, #tpu.memory_space<vmem>>, vector<1x1x8xf32>,
    return
  }
  func.func @transform_0(%arg0: i32) -> (i32, i32, i32) {
    %c0_i32 = arith.constant 0 : i32
    %c0_i32_0 = arith.constant 0 : i32
    %c0_i32_1 = arith.constant 0 : i32
    return %arg0, %c0_i32, %c0_i32_0 : i32, i32, i32
  }
  func.func @transform_1(%arg0: i32) -> (i32, i32) {
    %c0_i32 = arith.constant 0 : i32
    %c0_i32_0 = arith.constant 0 : i32
    %c0_i32_1 = arith.constant 0 : i32
    return %c0_i32, %c0_i32_0 : i32, i32
  }
  func.func @transform_2(%arg0: i32) -> (i32, i32) {
    %c0_i32 = arith.constant 0 : i32
    %c0_i32_0 = arith.constant 0 : i32
    %c0_i32_1 = arith.constant 0 : i32
    return %c0_i32, %c0_i32_0 : i32, i32
  }
  func.func @transform_3(%arg0: i32) -> (i32, i32) {
    %c0_i32 = arith.constant 0 : i32
    %c0_i32_0 = arith.constant 0 : i32
    %c0_i32_1 = arith.constant 0 : i32
    return %c0_i32, %c0_i32_0 : i32, i32
  }
  func.func @transform_4(%arg0: i32) -> (i32, i32) {
    %c0_i32 = arith.constant 0 : i32
    %c0_i32_0 = arith.constant 0 : i32
    %c0_i32_1 = arith.constant 0 : i32
    return %c0_i32, %c0_i32_0 : i32, i32
  }
  func.func @transform_5(%arg0: i32) -> (i32, i32) {
    %c0_i32 = arith.constant 0 : i32
    %c0_i32_0 = arith.constant 0 : i32
    %c0_i32_1 = arith.constant 0 : i32
    return %c0_i32, %c0_i32_0 : i32, i32
  }
  func.func @transform_6(%arg0: i32) -> (i32, i32) {
    %c0_i32 = arith.constant 0 : i32
    %c0_i32_0 = arith.constant 0 : i32
    %c0_i32_1 = arith.constant 0 : i32
    return %c0_i32, %c0_i32_0 : i32, i32
  }
  func.func @transform_7(%arg0: i32) -> (i32, i32) {
    %c0_i32 = arith.constant 0 : i32
    %c0_i32_0 = arith.constant 0 : i32
    %c0_i32_1 = arith.constant 0 : i32
    return %c0_i32, %c0_i32_0 : i32, i32
  }
  func.func @transform_8(%arg0: i32) -> (i32, i32) {
    %c0_i32 = arith.constant 0 : i32
    %c0_i32_0 = arith.constant 0 : i32
    %c0_i32_1 = arith.constant 0 : i32
    return %c0_i32, %c0_i32_0 : i32, i32
  }
  func.func @transform_9(%arg0: i32) -> (i32, i32) {
    %c0_i32 = arith.constant 0 : i32
    %c0_i32_0 = arith.constant 0 : i32
    %c0_i32_1 = arith.constant 0 : i32
    return %c0_i32, %c0_i32_0 : i32, i32
  }
  func.func @transform_10(%arg0: i32) -> (i32, i32) {
    %c0_i32 = arith.constant 0 : i32
    %c0_i32_0 = arith.constant 0 : i32
    %c0_i32_1 = arith.constant 0 : i32
    return %c0_i32, %c0_i32_0 : i32, i32
  }
  func.func @transform_11(%arg0: i32) -> (i32, i32) {
    %c0_i32 = arith.constant 0 : i32
    %c0_i32_0 = arith.constant 0 : i32
    %c0_i32_1 = arith.constant 0 : i32
    return %c0_i32, %c0_i32_0 : i32, i32
  }
  func.func @transform_12(%arg0: i32) -> (i32, i32) {
    %c0_i32 = arith.constant 0 : i32
    %c0_i32_0 = arith.constant 0 : i32
    %c0_i32_1 = arith.constant 0 : i32
    return %c0_i32, %c0_i32_0 : i32, i32
  }
  func.func @transform_13(%arg0: i32) -> (i32, i32) {
    %c0_i32 = arith.constant 0 : i32
    %c0_i32_0 = arith.constant 0 : i32
    %c0_i32_1 = arith.constant 0 : i32
    return %c0_i32, %c0_i32_0 : i32, i32
  }
  func.func @transform_14(%arg0: i32) -> (i32, i32) {
    %c0_i32 = arith.constant 0 : i32
    %c0_i32_0 = arith.constant 0 : i32
    %c0_i32_1 = arith.constant 0 : i32
    return %c0_i32, %c0_i32_0 : i32, i32
  }
  func.func @transform_15(%arg0: i32) -> (i32, i32) {
    %c0_i32 = arith.constant 0 : i32
    %c0_i32_0 = arith.constant 0 : i32
    %c0_i32_1 = arith.constant 0 : i32
    return %c0_i32, %c0_i32_0 : i32, i32
  }
  func.func @transform_16(%arg0: i32) -> (i32, i32) {
    %c0_i32 = arith.constant 0 : i32
    %c0_i32_0 = arith.constant 0 : i32
    %c0_i32_1 = arith.constant 0 : i32
    return %c0_i32, %c0_i32_0 : i32, i32
  }
  func.func @transform_17(%arg0: i32) -> (i32, i32) {
    %c0_i32 = arith.constant 0 : i32
    %c0_i32_0 = arith.constant 0 : i32
    %c0_i32_1 = arith.constant 0 : i32
    return %c0_i32, %c0_i32_0 : i32, i32
  }
  func.func @transform_18(%arg0: i32) -> (i32, i32) {
    %c0_i32 = arith.constant 0 : i32
    %c0_i32_0 = arith.constant 0 : i32
    %c0_i32_1 = arith.constant 0 : i32
    return %c0_i32, %c0_i32_0 : i32, i32
  }
  func.func @transform_19(%arg0: i32) -> (i32, i32) {
    %c0_i32 = arith.constant 0 : i32
    %c0_i32_0 = arith.constant 0 : i32
    %c0_i32_1 = arith.constant 0 : i32
    return %c0_i32, %c0_i32_0 : i32, i32
  }
  func.func @transform_20(%arg0: i32) -> (i32, i32) {
    %c0_i32 = arith.constant 0 : i32
    %c0_i32_0 = arith.constant 0 : i32
    %c0_i32_1 = arith.constant 0 : i32
    return %c0_i32, %c0_i32_0 : i32, i32
  }
  func.func @transform_21(%arg0: i32) -> (i32, i32) {
    %c0_i32 = arith.constant 0 : i32
    %c0_i32_0 = arith.constant 0 : i32
    %c0_i32_1 = arith.constant 0 : i32
    return %c0_i32, %c0_i32_0 : i32, i32
  }
  func.func @transform_22(%arg0: i32) -> (i32, i32) {
    %c0_i32 = arith.constant 0 : i32
    %c0_i32_0 = arith.constant 0 : i32
    %c0_i32_1 = arith.constant 0 : i32
    return %c0_i32, %c0_i32_0 : i32, i32
  }
  func.func @transform_23(%arg0: i32) -> (i32, i32) {
    %c0_i32 = arith.constant 0 : i32
    %c0_i32_0 = arith.constant 0 : i32
    %c0_i32_1 = arith.constant 0 : i32
    return %c0_i32, %c0_i32_0 : i32, i32
  }
  func.func @transform_24(%arg0: i32) -> (i32, i32) {
    %c0_i32 = arith.constant 0 : i32
    %c0_i32_0 = arith.constant 0 : i32
    %c0_i32_1 = arith.constant 0 : i32
    return %c0_i32, %c0_i32_0 : i32, i32
  }
  func.func @transform_25(%arg0: i32) -> (i32, i32) {
    %c0_i32 = arith.constant 0 : i32
    %c0_i32_0 = arith.constant 0 : i32
    %c0_i32_1 = arith.constant 0 : i32
    return %c0_i32, %c0_i32_0 : i32, i32
  }
  func.func @transform_26(%arg0: i32) -> (i32, i32) {
    %c0_i32 = arith.constant 0 : i32
    %c0_i32_0 = arith.constant 0 : i32
    %c0_i32_1 = arith.constant 0 : i32
    return %c0_i32, %c0_i32_0 : i32, i32
  }
  func.func @transform_27(%arg0: i32) -> (i32, i32) {
    %c0_i32 = arith.constant 0 : i32
    %c0_i32_0 = arith.constant 0 : i32
    %c0_i32_1 = arith.constant 0 : i32
    return %c0_i32, %c0_i32_0 : i32, i32
  }
  func.func @transform_28(%arg0: i32) -> (i32, i32) {
    %c0_i32 = arith.constant 0 : i32
    %c0_i32_0 = arith.constant 0 : i32
    %c0_i32_1 = arith.constant 0 : i32
    return %c0_i32, %c0_i32_0 : i32, i32
  }
  func.func @transform_29(%arg0: i32) -> (i32, i32) {
    %c0_i32 = arith.constant 0 : i32
    %c0_i32_0 = arith.constant 0 : i32
    %c0_i32_1 = arith.constant 0 : i32
    return %c0_i32, %c0_i32_0 : i32, i32
  }
  func.func @transform_30(%arg0: i32) -> (i32, i32) {
    %c0_i32 = arith.constant 0 : i32
    %c0_i32_0 = arith.constant 0 : i32
    %c0_i32_1 = arith.constant 0 : i32
    return %c0_i32, %c0_i32_0 : i32, i32
  }
  func.func @transform_31(%arg0: i32) -> (i32, i32) {
    %c0_i32 = arith.constant 0 : i32
    %c0_i32_0 = arith.constant 0 : i32
    %c0_i32_1 = arith.constant 0 : i32
    return %c0_i32, %c0_i32_0 : i32, i32
  }
  func.func @transform_32(%arg0: i32) -> (i32, i32) {
    %c0_i32 = arith.constant 0 : i32
    %c0_i32_0 = arith.constant 0 : i32
    %c0_i32_1 = arith.constant 0 : i32
    return %c0_i32, %c0_i32_0 : i32, i32
  }
  func.func @transform_33(%arg0: i32) -> (i32, i32) {
    %c0_i32 = arith.constant 0 : i32
    %c0_i32_0 = arith.constant 0 : i32
    %c0_i32_1 = arith.constant 0 : i32
    return %c0_i32, %c0_i32_0 : i32, i32
  }
  func.func @transform_34(%arg0: i32) -> (i32, i32, i32) {
    %c0_i32 = arith.constant 0 : i32
    %c0_i32_0 = arith.constant 0 : i32
    %c0_i32_1 = arith.constant 0 : i32
    return %arg0, %c0_i32, %c0_i32_0 : i32, i32, i32
  }
}

</mosaic_0001>

<llo_original>
// kernel: _lambda_.1
$region0: #{_lambda_.1}
  #allocation0 [shape = 'u32[]', space=smem, size = 0x4, offset = 0x4, fixed_abs, tag = 'smem constant byte address 0x4 - core index']
  #allocation1 [shape = 'u32[72,128]{1,0:T(1,128)}', space=vmem, size = 0x9000, scoped, tag = 'internal scratch']
  %s0 = inlined_call_operand.smem [shape: u32[35], index: -1, kind: input, shape index: {}]
  %s1 = sld [smem:[%s0]]
  %s2 = scalar_lea.smem %s0, 1
  %s3 = sld [smem:[%s2]]
  %s4 = scalar_lea.smem %s0, 2
  %s5 = sld [smem:[%s4]]
  %s6 = scalar_lea.smem %s0, 3
  %s7 = sld [smem:[%s6]]
  %s8 = scalar_lea.smem %s0, 4
  %s9 = sld [smem:[%s8]]
  %s10 = scalar_lea.smem %s0, 5
  %s11 = sld [smem:[%s10]]
  %s12 = scalar_lea.smem %s0, 6
  %s13 = sld [smem:[%s12]]
  %s14 = scalar_lea.smem %s0, 7
  %s15 = sld [smem:[%s14]]
  %s16 = scalar_lea.smem %s0, 8
  %s17 = sld [smem:[%s16]]
  %s18 = scalar_lea.smem %s0, 9
  %s19 = sld [smem:[%s18]]
  %s20 = scalar_lea.smem %s0, 10
  %s21 = sld [smem:[%s20]]
  %s22 = scalar_lea.smem %s0, 11
  %s23 = sld [smem:[%s22]]
  %s24 = scalar_lea.smem %s0, 12
  %s25 = sld [smem:[%s24]]
  %s26 = scalar_lea.smem %s0, 13
  %s27 = sld [smem:[%s26]]
  %s28 = scalar_lea.smem %s0, 14
  %s29 = sld [smem:[%s28]]
  %s30 = scalar_lea.smem %s0, 15
  %s31 = sld [smem:[%s30]]
  %s32 = scalar_lea.smem %s0, 16
  %s33 = sld [smem:[%s32]]
  %s34 = scalar_lea.smem %s0, 17
  %s35 = sld [smem:[%s34]]
  %s36 = scalar_lea.smem %s0, 18
  %s37 = sld [smem:[%s36]]
  %s38 = scalar_lea.smem %s0, 19
  %s39 = sld [smem:[%s38]]
  %s40 = scalar_lea.smem %s0, 20
  %s41 = sld [smem:[%s40]]
  %s42 = scalar_lea.smem %s0, 21
  %s43 = sld [smem:[%s42]]
  %s44 = scalar_lea.smem %s0, 22
  %s45 = sld [smem:[%s44]]
  %s46 = scalar_lea.smem %s0, 23
  %s47 = sld [smem:[%s46]]
  %s48 = scalar_lea.smem %s0, 24
  %s49 = sld [smem:[%s48]]
  %s50 = scalar_lea.smem %s0, 25
  %s51 = sld [smem:[%s50]]
  %s52 = scalar_lea.smem %s0, 26
  %s53 = sld [smem:[%s52]]
  %s54 = scalar_lea.smem %s0, 27
  %s55 = sld [smem:[%s54]]
  %s56 = scalar_lea.smem %s0, 28
  %s57 = sld [smem:[%s56]]
  %s58 = scalar_lea.smem %s0, 29
  %s59 = sld [smem:[%s58]]
  %s60 = scalar_lea.smem %s0, 30
  %s61 = sld [smem:[%s60]]
  %s62 = scalar_lea.smem %s0, 31
  %s63 = sld [smem:[%s62]]
  %s64 = scalar_lea.smem %s0, 32
  %s65 = sld [smem:[%s64]]
  %s66 = scalar_lea.smem %s0, 33
  %s67 = sld [smem:[%s66]]
  %s68 = scalar_lea.smem %s0, 34
  %s69 = sld [smem:[%s68]]
  %s70 = sld [smem:[#allocation0]]
  $region185: #{_lambda_.1} parent=0
    _
  %s72 = ssub.s32 1, %s70
  %s73 = scalar_select 0, %s72, %s70
  $region1: #{_lambda_.1} parent=0
    #allocation2 [shape = 'u8[131072]{0}', space=vmem, size = 0x20000, scoped, tag = 'input window, operand 19, single buffered']
    #allocation3 [shape = 's32[2]{0}', space=sflag, size = 0x8, scoped, tag = 'scoped memory for _lambda_.1']
    #allocation4 [shape = 's32[2]{0}', space=sflag, size = 0x8, scoped, tag = 'scoped memory for _lambda_.1']
    #allocation5 [shape = 'u8[262144]{0}', space=vmem, size = 0x40000, scoped, tag = 'input window, operand 20, single buffered']
    #allocation6 [shape = 's32[1]{0}', space=sflag, size = 0x4, scoped, tag = 'scoped memory for _lambda_.1']
    #allocation7 [shape = 'u8[1048576]{0}', space=vmem, size = 0x100000, scoped, tag = 'input window, operand 24, single buffered']
    #allocation8 [shape = 'u8[262144]{0}', space=vmem, size = 0x40000, scoped, tag = 'input window, operand 28, single buffered']
    #allocation9 [shape = 's32[1]{0}', space=sflag, size = 0x4, scoped, tag = 'scoped memory for _lambda_.1']
    #allocation10 [shape = 'u8[1024]{0}', space=vmem, size = 0x400, scoped, tag = 'output window, operand 0']
    %74 = vsyncpa [#allocation3], 0
    %75 = vsyncpa [#allocation6], 0
    %76 = vsyncpa [#allocation9], 0
    %77 = vsyncpa [#allocation4], 0
    %s78 = scalar_lea.sflag [#allocation4], 1
    %79 = vsyncpa %s78, 0
    loop: start=0, step=1, limit=4
    $region2: #{_lambda_.1} parent=1 // loop_pre_header
      _
    $region3: #{_lambda_.1} parent=1 // loop_header
      %s81 = sphi 0, %s85
      %p82 = scmp.ge.s32.totalorder %s81, 4
      %s91 = sphi 0, %s93
      %s94 = sphi 0, %s91
      %s95 = sphi 0, %s94
      %s111 = sphi 0, %s95
      %s115 = sphi 0, %s115
      %s117 = sphi 0, %s115
      %s118 = sphi 0, %s117
      %s132 = sphi 0, %s118
      %s136 = sphi 0, %s136
      %s138 = sphi 0, %s136
      %s139 = sphi 0, %s138
      %s153 = sphi 0, %s139
      %s157 = sphi 0, %s157
      %s159 = sphi 0, %s157
      %s160 = sphi 0, %s159
      %s174 = sphi 0, %s160
      %s178 = sphi 0, %s178
      %s180 = sphi 0, %s178
      %s181 = sphi 0, %s180
      %s195 = sphi 0, %s181
      %s199 = sphi 0, %s199
      %s201 = sphi 0, %s199
      %s202 = sphi 0, %s201
      %s216 = sphi 0, %s202
      %s220 = sphi 0, %s220
      %s222 = sphi 0, %s220
      %s223 = sphi 0, %s222
      %s237 = sphi 0, %s223
      %s241 = sphi 0, %s241
      %s243 = sphi 0, %s241
      %s244 = sphi 0, %s243
      %s258 = sphi 0, %s244
      %s262 = sphi 0, %s262
      %s264 = sphi 0, %s262
      %s265 = sphi 0, %s264
      %s279 = sphi 0, %s265
      %s283 = sphi 0, %s283
      %s285 = sphi 0, %s283
      %s286 = sphi 0, %s285
      %s300 = sphi 0, %s286
      %s304 = sphi 0, %s304
      %s306 = sphi 0, %s304
      %s307 = sphi 0, %s306
      %s321 = sphi 0, %s307
      %s325 = sphi 0, %s325
      %s327 = sphi 0, %s325
      %s328 = sphi 0, %s327
      %s342 = sphi 0, %s328
      %s346 = sphi 0, %s346
      %s348 = sphi 0, %s346
      %s349 = sphi 0, %s348
      %s363 = sphi 0, %s349
      %s367 = sphi 0, %s367
      %s369 = sphi 0, %s367
      %s370 = sphi 0, %s369
      %s384 = sphi 0, %s370
      %s388 = sphi 0, %s388
      %s390 = sphi 0, %s388
      %s391 = sphi 0, %s390
      %s405 = sphi 0, %s391
      %s409 = sphi 0, %s409
      %s411 = sphi 0, %s409
      %s412 = sphi 0, %s411
      %s426 = sphi 0, %s412
      %s430 = sphi 0, %s430
      %s432 = sphi 0, %s430
      %s433 = sphi 0, %s432
      %s447 = sphi 0, %s433
      %s451 = sphi 0, %s451
      %s453 = sphi 0, %s451
      %s454 = sphi 0, %s453
      %s468 = sphi 0, %s454
      %s472 = sphi 0, %s472
      %s474 = sphi 0, %s472
      %s475 = sphi 0, %s474
      %s489 = sphi 0, %s475
      %s493 = sphi 0, %s493
      %s495 = sphi 0, %s493
      %s496 = sphi 0, %s495
      %s510 = sphi 0, %s496
      %s514 = sphi 0, %s514
      %s516 = sphi 0, %s514
      %s517 = sphi 0, %s516
      %s531 = sphi 0, %s517
      %s535 = sphi 0, %s535
      %s537 = sphi 0, %s535
      %s538 = sphi 0, %s537
      %s552 = sphi 0, %s538
      %s556 = sphi 0, %s556
      %s558 = sphi 0, %s556
      %s559 = sphi 0, %s558
      %s573 = sphi 0, %s559
      %s577 = sphi 0, %s577
      %s579 = sphi 0, %s577
      %s580 = sphi 0, %s579
      %s594 = sphi 0, %s580
      %s598 = sphi 0, %s598
      %s600 = sphi 0, %s598
      %s601 = sphi 0, %s600
      %s615 = sphi 0, %s601
      %s619 = sphi 0, %s619
      %s621 = sphi 0, %s619
      %s622 = sphi 0, %s621
      %s636 = sphi 0, %s622
      %s640 = sphi 0, %s640
      %s642 = sphi 0, %s640
      %s643 = sphi 0, %s642
      %s657 = sphi 0, %s643
      %s661 = sphi 0, %s661
      %s663 = sphi 0, %s661
      %s664 = sphi 0, %s663
      %s678 = sphi 0, %s664
      %s682 = sphi 0, %s682
      %s684 = sphi 0, %s682
      %s685 = sphi 0, %s684
      %s699 = sphi 0, %s685
      %s703 = sphi 0, %s703
      %s705 = sphi 0, %s703
      %s706 = sphi 0, %s705
      %s720 = sphi 0, %s706
      %s724 = sphi 0, %s724
      %s726 = sphi 0, %s724
      %s727 = sphi 0, %s726
      %s741 = sphi 0, %s727
      %s745 = sphi 0, %s745
      %s747 = sphi 0, %s745
      %s748 = sphi 0, %s747
      %s762 = sphi 0, %s748
      %s766 = sphi 0, %s766
      %s768 = sphi 0, %s766
      %s769 = sphi 0, %s768
      %s783 = sphi 0, %s769
      %s787 = sphi 0, %s787
      %s789 = sphi 0, %s787
      %s790 = sphi 0, %s789
      %s804 = sphi 0, %s790
      %s810 = sphi 0, %s812
      %s813 = sphi 0, %s810
      %s814 = sphi 0, %s813
      %s830 = sphi 0, %s814
    $region4: #{_lambda_.1} parent=1 // loop_header_branch
      %84 = sbr.rel (%p82) target = $region8
    $region5: #{_lambda_.1} parent=1 // loop_body
      %s86 = ssub.s32 %s81, 1
      %s87 = ssub.s32 %s81, 2
      %s88 = sadd.s32 %s81, 1
      %s89 = ssub.s32 %s81, %s88
      %p90 = scmp.eq.s32.totalorder %s89, 0
      %s92 = sadd.s32 %s91, 1
      %s93 = scalar_select %p90, %s91, %s92
      %p96 = pneg %p90
      %p97 = scmp.eq.s32.totalorder %s81, 1
      %p98 = por %p96, %p97
      %p99 = scmp.ne.s32.totalorder %s91, %s94
      %p100 = scmp.eq.s32.totalorder %s81, 0
      %p101 = por %p99, %p100
      %p102 = scmp.ne.s32.totalorder %s91, %s94
      %p103 = scmp.eq.s32.totalorder %s86, 1
      %p104 = por %p102, %p103
      %p105 = scmp.ne.s32.totalorder %s94, %s95
      %p106 = scmp.eq.s32.totalorder %s86, 0
      %p107 = por %p105, %p106
      %p108 = scmp.ne.s32.totalorder %s94, %s95
      %p109 = scmp.eq.s32.totalorder %s87, 1
      %p110 = por %p108, %p109
      %p112 = scmp.ne.s32.totalorder %s95, %s111
      %p113 = scmp.eq.s32.totalorder %s87, 0
      %p114 = por %p112, %p113
      %s116 = sadd.s32 %s115, 1
      %p119 = scmp.eq.s32.totalorder %s81, 1
      %p120 = scmp.ne.s32.totalorder %s115, %s117
      %p121 = scmp.eq.s32.totalorder %s81, 0
      %p122 = por %p120, %p121
      %p123 = scmp.ne.s32.totalorder %s115, %s117
      %p124 = scmp.eq.s32.totalorder %s86, 1
      %p125 = por %p123, %p124
      %p126 = scmp.ne.s32.totalorder %s117, %s118
      %p127 = scmp.eq.s32.totalorder %s86, 0
      %p128 = por %p126, %p127
      %p129 = scmp.ne.s32.totalorder %s117, %s118
      %p130 = scmp.eq.s32.totalorder %s87, 1
      %p131 = por %p129, %p130
      %p133 = scmp.ne.s32.totalorder %s118, %s132
      %p134 = scmp.eq.s32.totalorder %s87, 0
      %p135 = por %p133, %p134
      %s137 = sadd.s32 %s136, 1
      %p140 = scmp.eq.s32.totalorder %s81, 1
      %p141 = scmp.ne.s32.totalorder %s136, %s138
      %p142 = scmp.eq.s32.totalorder %s81, 0
      %p143 = por %p141, %p142
      %p144 = scmp.ne.s32.totalorder %s136, %s138
      %p145 = scmp.eq.s32.totalorder %s86, 1
      %p146 = por %p144, %p145
      %p147 = scmp.ne.s32.totalorder %s138, %s139
      %p148 = scmp.eq.s32.totalorder %s86, 0
      %p149 = por %p147, %p148
      %p150 = scmp.ne.s32.totalorder %s138, %s139
      %p151 = scmp.eq.s32.totalorder %s87, 1
      %p152 = por %p150, %p151
      %p154 = scmp.ne.s32.totalorder %s139, %s153
      %p155 = scmp.eq.s32.totalorder %s87, 0
      %p156 = por %p154, %p155
      %s158 = sadd.s32 %s157, 1
      %p161 = scmp.eq.s32.totalorder %s81, 1
      %p162 = scmp.ne.s32.totalorder %s157, %s159
      %p163 = scmp.eq.s32.totalorder %s81, 0
      %p164 = por %p162, %p163
      %p165 = scmp.ne.s32.totalorder %s157, %s159
      %p166 = scmp.eq.s32.totalorder %s86, 1
      %p167 = por %p165, %p166
      %p168 = scmp.ne.s32.totalorder %s159, %s160
      %p169 = scmp.eq.s32.totalorder %s86, 0
      %p170 = por %p168, %p169
      %p171 = scmp.ne.s32.totalorder %s159, %s160
      %p172 = scmp.eq.s32.totalorder %s87, 1
      %p173 = por %p171, %p172
      %p175 = scmp.ne.s32.totalorder %s160, %s174
      %p176 = scmp.eq.s32.totalorder %s87, 0
      %p177 = por %p175, %p176
      %s179 = sadd.s32 %s178, 1
      %p182 = scmp.eq.s32.totalorder %s81, 1
      %p183 = scmp.ne.s32.totalorder %s178, %s180
      %p184 = scmp.eq.s32.totalorder %s81, 0
      %p185 = por %p183, %p184
      %p186 = scmp.ne.s32.totalorder %s178, %s180
      %p187 = scmp.eq.s32.totalorder %s86, 1
      %p188 = por %p186, %p187
      %p189 = scmp.ne.s32.totalorder %s180, %s181
      %p190 = scmp.eq.s32.totalorder %s86, 0
      %p191 = por %p189, %p190
      %p192 = scmp.ne.s32.totalorder %s180, %s181
      %p193 = scmp.eq.s32.totalorder %s87, 1
      %p194 = por %p192, %p193
      %p196 = scmp.ne.s32.totalorder %s181, %s195
      %p197 = scmp.eq.s32.totalorder %s87, 0
      %p198 = por %p196, %p197
      %s200 = sadd.s32 %s199, 1
      %p203 = scmp.eq.s32.totalorder %s81, 1
      %p204 = scmp.ne.s32.totalorder %s199, %s201
      %p205 = scmp.eq.s32.totalorder %s81, 0
      %p206 = por %p204, %p205
      %p207 = scmp.ne.s32.totalorder %s199, %s201
      %p208 = scmp.eq.s32.totalorder %s86, 1
      %p209 = por %p207, %p208
      %p210 = scmp.ne.s32.totalorder %s201, %s202
      %p211 = scmp.eq.s32.totalorder %s86, 0
      %p212 = por %p210, %p211
      %p213 = scmp.ne.s32.totalorder %s201, %s202
      %p214 = scmp.eq.s32.totalorder %s87, 1
      %p215 = por %p213, %p214
      %p217 = scmp.ne.s32.totalorder %s202, %s216
      %p218 = scmp.eq.s32.totalorder %s87, 0
      %p219 = por %p217, %p218
      %s221 = sadd.s32 %s220, 1
      %p224 = scmp.eq.s32.totalorder %s81, 1
      %p225 = scmp.ne.s32.totalorder %s220, %s222
      %p226 = scmp.eq.s32.totalorder %s81, 0
      %p227 = por %p225, %p226
      %p228 = scmp.ne.s32.totalorder %s220, %s222
      %p229 = scmp.eq.s32.totalorder %s86, 1
      %p230 = por %p228, %p229
      %p231 = scmp.ne.s32.totalorder %s222, %s223
      %p232 = scmp.eq.s32.totalorder %s86, 0
      %p233 = por %p231, %p232
      %p234 = scmp.ne.s32.totalorder %s222, %s223
      %p235 = scmp.eq.s32.totalorder %s87, 1
      %p236 = por %p234, %p235
      %p238 = scmp.ne.s32.totalorder %s223, %s237
      %p239 = scmp.eq.s32.totalorder %s87, 0
      %p240 = por %p238, %p239
      %s242 = sadd.s32 %s241, 1
      %p245 = scmp.eq.s32.totalorder %s81, 1
      %p246 = scmp.ne.s32.totalorder %s241, %s243
      %p247 = scmp.eq.s32.totalorder %s81, 0
      %p248 = por %p246, %p247
      %p249 = scmp.ne.s32.totalorder %s241, %s243
      %p250 = scmp.eq.s32.totalorder %s86, 1
      %p251 = por %p249, %p250
      %p252 = scmp.ne.s32.totalorder %s243, %s244
      %p253 = scmp.eq.s32.totalorder %s86, 0
      %p254 = por %p252, %p253
      %p255 = scmp.ne.s32.totalorder %s243, %s244
      %p256 = scmp.eq.s32.totalorder %s87, 1
      %p257 = por %p255, %p256
      %p259 = scmp.ne.s32.totalorder %s244, %s258
      %p260 = scmp.eq.s32.totalorder %s87, 0
      %p261 = por %p259, %p260
      %s263 = sadd.s32 %s262, 1
      %p266 = scmp.eq.s32.totalorder %s81, 1
      %p267 = scmp.ne.s32.totalorder %s262, %s264
      %p268 = scmp.eq.s32.totalorder %s81, 0
      %p269 = por %p267, %p268
      %p270 = scmp.ne.s32.totalorder %s262, %s264
      %p271 = scmp.eq.s32.totalorder %s86, 1
      %p272 = por %p270, %p271
      %p273 = scmp.ne.s32.totalorder %s264, %s265
      %p274 = scmp.eq.s32.totalorder %s86, 0
      %p275 = por %p273, %p274
      %p276 = scmp.ne.s32.totalorder %s264, %s265
      %p277 = scmp.eq.s32.totalorder %s87, 1
      %p278 = por %p276, %p277
      %p280 = scmp.ne.s32.totalorder %s265, %s279
      %p281 = scmp.eq.s32.totalorder %s87, 0
      %p282 = por %p280, %p281
      %s284 = sadd.s32 %s283, 1
      %p287 = scmp.eq.s32.totalorder %s81, 1
      %p288 = scmp.ne.s32.totalorder %s283, %s285
      %p289 = scmp.eq.s32.totalorder %s81, 0
      %p290 = por %p288, %p289
      %p291 = scmp.ne.s32.totalorder %s283, %s285
      %p292 = scmp.eq.s32.totalorder %s86, 1
      %p293 = por %p291, %p292
      %p294 = scmp.ne.s32.totalorder %s285, %s286
      %p295 = scmp.eq.s32.totalorder %s86, 0
      %p296 = por %p294, %p295
      %p297 = scmp.ne.s32.totalorder %s285, %s286
      %p298 = scmp.eq.s32.totalorder %s87, 1
      %p299 = por %p297, %p298
      %p301 = scmp.ne.s32.totalorder %s286, %s300
      %p302 = scmp.eq.s32.totalorder %s87, 0
      %p303 = por %p301, %p302
      %s305 = sadd.s32 %s304, 1
      %p308 = scmp.eq.s32.totalorder %s81, 1
      %p309 = scmp.ne.s32.totalorder %s304, %s306
      %p310 = scmp.eq.s32.totalorder %s81, 0
      %p311 = por %p309, %p310
      %p312 = scmp.ne.s32.totalorder %s304, %s306
      %p313 = scmp.eq.s32.totalorder %s86, 1
      %p314 = por %p312, %p313
      %p315 = scmp.ne.s32.totalorder %s306, %s307
      %p316 = scmp.eq.s32.totalorder %s86, 0
      %p317 = por %p315, %p316
      %p318 = scmp.ne.s32.totalorder %s306, %s307
      %p319 = scmp.eq.s32.totalorder %s87, 1
      %p320 = por %p318, %p319
      %p322 = scmp.ne.s32.totalorder %s307, %s321
      %p323 = scmp.eq.s32.totalorder %s87, 0
      %p324 = por %p322, %p323
      %s326 = sadd.s32 %s325, 1
      %p329 = scmp.eq.s32.totalorder %s81, 1
      %p330 = scmp.ne.s32.totalorder %s325, %s327
      %p331 = scmp.eq.s32.totalorder %s81, 0
      %p332 = por %p330, %p331
      %p333 = scmp.ne.s32.totalorder %s325, %s327
      %p334 = scmp.eq.s32.totalorder %s86, 1
      %p335 = por %p333, %p334
      %p336 = scmp.ne.s32.totalorder %s327, %s328
      %p337 = scmp.eq.s32.totalorder %s86, 0
      %p338 = por %p336, %p337
      %p339 = scmp.ne.s32.totalorder %s327, %s328
      %p340 = scmp.eq.s32.totalorder %s87, 1
      %p341 = por %p339, %p340
      %p343 = scmp.ne.s32.totalorder %s328, %s342
      %p344 = scmp.eq.s32.totalorder %s87, 0
      %p345 = por %p343, %p344
      %s347 = sadd.s32 %s346, 1
      %p350 = scmp.eq.s32.totalorder %s81, 1
      %p351 = scmp.ne.s32.totalorder %s346, %s348
      %p352 = scmp.eq.s32.totalorder %s81, 0
      %p353 = por %p351, %p352
      %p354 = scmp.ne.s32.totalorder %s346, %s348
      %p355 = scmp.eq.s32.totalorder %s86, 1
      %p356 = por %p354, %p355
      %p357 = scmp.ne.s32.totalorder %s348, %s349
      %p358 = scmp.eq.s32.totalorder %s86, 0
      %p359 = por %p357, %p358
      %p360 = scmp.ne.s32.totalorder %s348, %s349
      %p361 = scmp.eq.s32.totalorder %s87, 1
      %p362 = por %p360, %p361
      %p364 = scmp.ne.s32.totalorder %s349, %s363
      %p365 = scmp.eq.s32.totalorder %s87, 0
      %p366 = por %p364, %p365
      %s368 = sadd.s32 %s367, 1
      %p371 = scmp.eq.s32.totalorder %s81, 1
      %p372 = scmp.ne.s32.totalorder %s367, %s369
      %p373 = scmp.eq.s32.totalorder %s81, 0
      %p374 = por %p372, %p373
      %p375 = scmp.ne.s32.totalorder %s367, %s369
      %p376 = scmp.eq.s32.totalorder %s86, 1
      %p377 = por %p375, %p376
      %p378 = scmp.ne.s32.totalorder %s369, %s370
      %p379 = scmp.eq.s32.totalorder %s86, 0
      %p380 = por %p378, %p379
      %p381 = scmp.ne.s32.totalorder %s369, %s370
      %p382 = scmp.eq.s32.totalorder %s87, 1
      %p383 = por %p381, %p382
      %p385 = scmp.ne.s32.totalorder %s370, %s384
      %p386 = scmp.eq.s32.totalorder %s87, 0
      %p387 = por %p385, %p386
      %s389 = sadd.s32 %s388, 1
      %p392 = scmp.eq.s32.totalorder %s81, 1
      %p393 = scmp.ne.s32.totalorder %s388, %s390
      %p394 = scmp.eq.s32.totalorder %s81, 0
      %p395 = por %p393, %p394
      %p396 = scmp.ne.s32.totalorder %s388, %s390
      %p397 = scmp.eq.s32.totalorder %s86, 1
      %p398 = por %p396, %p397
      %p399 = scmp.ne.s32.totalorder %s390, %s391
      %p400 = scmp.eq.s32.totalorder %s86, 0
      %p401 = por %p399, %p400
      %p402 = scmp.ne.s32.totalorder %s390, %s391
      %p403 = scmp.eq.s32.totalorder %s87, 1
      %p404 = por %p402, %p403
      %p406 = scmp.ne.s32.totalorder %s391, %s405
      %p407 = scmp.eq.s32.totalorder %s87, 0
      %p408 = por %p406, %p407
      %s410 = sadd.s32 %s409, 1
      %p413 = scmp.eq.s32.totalorder %s81, 1
      %p414 = scmp.ne.s32.totalorder %s409, %s411
      %p415 = scmp.eq.s32.totalorder %s81, 0
      %p416 = por %p414, %p415
      %p417 = scmp.ne.s32.totalorder %s409, %s411
      %p418 = scmp.eq.s32.totalorder %s86, 1
      %p419 = por %p417, %p418
      %p420 = scmp.ne.s32.totalorder %s411, %s412
      %p421 = scmp.eq.s32.totalorder %s86, 0
      %p422 = por %p420, %p421
      %p423 = scmp.ne.s32.totalorder %s411, %s412
      %p424 = scmp.eq.s32.totalorder %s87, 1
      %p425 = por %p423, %p424
      %p427 = scmp.ne.s32.totalorder %s412, %s426
      %p428 = scmp.eq.s32.totalorder %s87, 0
      %p429 = por %p427, %p428
      %s431 = sadd.s32 %s430, 1
      %p434 = scmp.eq.s32.totalorder %s81, 1
      %p435 = scmp.ne.s32.totalorder %s430, %s432
      %p436 = scmp.eq.s32.totalorder %s81, 0
      %p437 = por %p435, %p436
      %p438 = scmp.ne.s32.totalorder %s430, %s432
      %p439 = scmp.eq.s32.totalorder %s86, 1
      %p440 = por %p438, %p439
      %p441 = scmp.ne.s32.totalorder %s432, %s433
      %p442 = scmp.eq.s32.totalorder %s86, 0
      %p443 = por %p441, %p442
      %p444 = scmp.ne.s32.totalorder %s432, %s433
      %p445 = scmp.eq.s32.totalorder %s87, 1
      %p446 = por %p444, %p445
      %p448 = scmp.ne.s32.totalorder %s433, %s447
      %p449 = scmp.eq.s32.totalorder %s87, 0
      %p450 = por %p448, %p449
      %s452 = sadd.s32 %s451, 1
      %p455 = scmp.eq.s32.totalorder %s81, 1
      %p456 = scmp.ne.s32.totalorder %s451, %s453
      %p457 = scmp.eq.s32.totalorder %s81, 0
      %p458 = por %p456, %p457
      %p459 = scmp.ne.s32.totalorder %s451, %s453
      %p460 = scmp.eq.s32.totalorder %s86, 1
      %p461 = por %p459, %p460
      %p462 = scmp.ne.s32.totalorder %s453, %s454
      %p463 = scmp.eq.s32.totalorder %s86, 0
      %p464 = por %p462, %p463
      %p465 = scmp.ne.s32.totalorder %s453, %s454
      %p466 = scmp.eq.s32.totalorder %s87, 1
      %p467 = por %p465, %p466
      %p469 = scmp.ne.s32.totalorder %s454, %s468
      %p470 = scmp.eq.s32.totalorder %s87, 0
      %p471 = por %p469, %p470
      %s473 = sadd.s32 %s472, 1
      %p476 = scmp.eq.s32.totalorder %s81, 1
      %p477 = scmp.ne.s32.totalorder %s472, %s474
      %p478 = scmp.eq.s32.totalorder %s81, 0
      %p479 = por %p477, %p478
      %p480 = scmp.ne.s32.totalorder %s472, %s474
      %p481 = scmp.eq.s32.totalorder %s86, 1
      %p482 = por %p480, %p481
      %p483 = scmp.ne.s32.totalorder %s474, %s475
      %p484 = scmp.eq.s32.totalorder %s86, 0
      %p485 = por %p483, %p484
      %p486 = scmp.ne.s32.totalorder %s474, %s475
      %p487 = scmp.eq.s32.totalorder %s87, 1
      %p488 = por %p486, %p487
      %p490 = scmp.ne.s32.totalorder %s475, %s489
      %p491 = scmp.eq.s32.totalorder %s87, 0
      %p492 = por %p490, %p491
      %s494 = sadd.s32 %s493, 1
      %p497 = scmp.eq.s32.totalorder %s81, 1
      %p498 = scmp.ne.s32.totalorder %s493, %s495
      %p499 = scmp.eq.s32.totalorder %s81, 0
      %p500 = por %p498, %p499
      %p501 = scmp.ne.s32.totalorder %s493, %s495
      %p502 = scmp.eq.s32.totalorder %s86, 1
      %p503 = por %p501, %p502
      %p504 = scmp.ne.s32.totalorder %s495, %s496
      %p505 = scmp.eq.s32.totalorder %s86, 0
      %p506 = por %p504, %p505
      %p507 = scmp.ne.s32.totalorder %s495, %s496
      %p508 = scmp.eq.s32.totalorder %s87, 1
      %p509 = por %p507, %p508
      %p511 = scmp.ne.s32.totalorder %s496, %s510
      %p512 = scmp.eq.s32.totalorder %s87, 0
      %p513 = por %p511, %p512
      %s515 = sadd.s32 %s514, 1
      %p518 = scmp.eq.s32.totalorder %s81, 1
      %p519 = scmp.ne.s32.totalorder %s514, %s516
      %p520 = scmp.eq.s32.totalorder %s81, 0
      %p521 = por %p519, %p520
      %p522 = scmp.ne.s32.totalorder %s514, %s516
      %p523 = scmp.eq.s32.totalorder %s86, 1
      %p524 = por %p522, %p523
      %p525 = scmp.ne.s32.totalorder %s516, %s517
      %p526 = scmp.eq.s32.totalorder %s86, 0
      %p527 = por %p525, %p526
      %p528 = scmp.ne.s32.totalorder %s516, %s517
      %p529 = scmp.eq.s32.totalorder %s87, 1
      %p530 = por %p528, %p529
      %p532 = scmp.ne.s32.totalorder %s517, %s531
      %p533 = scmp.eq.s32.totalorder %s87, 0
      %p534 = por %p532, %p533
      %s536 = sadd.s32 %s535, 1
      %p539 = scmp.eq.s32.totalorder %s81, 1
      %p540 = scmp.ne.s32.totalorder %s535, %s537
      %p541 = scmp.eq.s32.totalorder %s81, 0
      %p542 = por %p540, %p541
      %p543 = scmp.ne.s32.totalorder %s535, %s537
      %p544 = scmp.eq.s32.totalorder %s86, 1
      %p545 = por %p543, %p544
      %p546 = scmp.ne.s32.totalorder %s537, %s538
      %p547 = scmp.eq.s32.totalorder %s86, 0
      %p548 = por %p546, %p547
      %p549 = scmp.ne.s32.totalorder %s537, %s538
      %p550 = scmp.eq.s32.totalorder %s87, 1
      %p551 = por %p549, %p550
      %p553 = scmp.ne.s32.totalorder %s538, %s552
      %p554 = scmp.eq.s32.totalorder %s87, 0
      %p555 = por %p553, %p554
      %s557 = sadd.s32 %s556, 1
      %p560 = scmp.eq.s32.totalorder %s81, 1
      %p561 = scmp.ne.s32.totalorder %s556, %s558
      %p562 = scmp.eq.s32.totalorder %s81, 0
      %p563 = por %p561, %p562
      %p564 = scmp.ne.s32.totalorder %s556, %s558
      %p565 = scmp.eq.s32.totalorder %s86, 1
      %p566 = por %p564, %p565
      %p567 = scmp.ne.s32.totalorder %s558, %s559
      %p568 = scmp.eq.s32.totalorder %s86, 0
      %p569 = por %p567, %p568
      %p570 = scmp.ne.s32.totalorder %s558, %s559
      %p571 = scmp.eq.s32.totalorder %s87, 1
      %p572 = por %p570, %p571
      %p574 = scmp.ne.s32.totalorder %s559, %s573
      %p575 = scmp.eq.s32.totalorder %s87, 0
      %p576 = por %p574, %p575
      %s578 = sadd.s32 %s577, 1
      %p581 = scmp.eq.s32.totalorder %s81, 1
      %p582 = scmp.ne.s32.totalorder %s577, %s579
      %p583 = scmp.eq.s32.totalorder %s81, 0
      %p584 = por %p582, %p583
      %p585 = scmp.ne.s32.totalorder %s577, %s579
      %p586 = scmp.eq.s32.totalorder %s86, 1
      %p587 = por %p585, %p586
      %p588 = scmp.ne.s32.totalorder %s579, %s580
      %p589 = scmp.eq.s32.totalorder %s86, 0
      %p590 = por %p588, %p589
      %p591 = scmp.ne.s32.totalorder %s579, %s580
      %p592 = scmp.eq.s32.totalorder %s87, 1
      %p593 = por %p591, %p592
      %p595 = scmp.ne.s32.totalorder %s580, %s594
      %p596 = scmp.eq.s32.totalorder %s87, 0
      %p597 = por %p595, %p596
      %s599 = sadd.s32 %s598, 1
      %p602 = scmp.eq.s32.totalorder %s81, 1
      %p603 = scmp.ne.s32.totalorder %s598, %s600
      %p604 = scmp.eq.s32.totalorder %s81, 0
      %p605 = por %p603, %p604
      %p606 = scmp.ne.s32.totalorder %s598, %s600
      %p607 = scmp.eq.s32.totalorder %s86, 1
      %p608 = por %p606, %p607
      %p609 = scmp.ne.s32.totalorder %s600, %s601
      %p610 = scmp.eq.s32.totalorder %s86, 0
      %p611 = por %p609, %p610
      %p612 = scmp.ne.s32.totalorder %s600, %s601
      %p613 = scmp.eq.s32.totalorder %s87, 1
      %p614 = por %p612, %p613
      %p616 = scmp.ne.s32.totalorder %s601, %s615
      %p617 = scmp.eq.s32.totalorder %s87, 0
      %p618 = por %p616, %p617
      %s620 = sadd.s32 %s619, 1
      %p623 = scmp.eq.s32.totalorder %s81, 1
      %p624 = scmp.ne.s32.totalorder %s619, %s621
      %p625 = scmp.eq.s32.totalorder %s81, 0
      %p626 = por %p624, %p625
      %p627 = scmp.ne.s32.totalorder %s619, %s621
      %p628 = scmp.eq.s32.totalorder %s86, 1
      %p629 = por %p627, %p628
      %p630 = scmp.ne.s32.totalorder %s621, %s622
      %p631 = scmp.eq.s32.totalorder %s86, 0
      %p632 = por %p630, %p631
      %p633 = scmp.ne.s32.totalorder %s621, %s622
      %p634 = scmp.eq.s32.totalorder %s87, 1
      %p635 = por %p633, %p634
      %p637 = scmp.ne.s32.totalorder %s622, %s636
      %p638 = scmp.eq.s32.totalorder %s87, 0
      %p639 = por %p637, %p638
      %s641 = sadd.s32 %s640, 1
      %p644 = scmp.eq.s32.totalorder %s81, 1
      %p645 = scmp.ne.s32.totalorder %s640, %s642
      %p646 = scmp.eq.s32.totalorder %s81, 0
      %p647 = por %p645, %p646
      %p648 = scmp.ne.s32.totalorder %s640, %s642
      %p649 = scmp.eq.s32.totalorder %s86, 1
      %p650 = por %p648, %p649
      %p651 = scmp.ne.s32.totalorder %s642, %s643
      %p652 = scmp.eq.s32.totalorder %s86, 0
      %p653 = por %p651, %p652
      %p654 = scmp.ne.s32.totalorder %s642, %s643
      %p655 = scmp.eq.s32.totalorder %s87, 1
      %p656 = por %p654, %p655
      %p658 = scmp.ne.s32.totalorder %s643, %s657
      %p659 = scmp.eq.s32.totalorder %s87, 0
      %p660 = por %p658, %p659
      %s662 = sadd.s32 %s661, 1
      %p665 = scmp.eq.s32.totalorder %s81, 1
      %p666 = scmp.ne.s32.totalorder %s661, %s663
      %p667 = scmp.eq.s32.totalorder %s81, 0
      %p668 = por %p666, %p667
      %p669 = scmp.ne.s32.totalorder %s661, %s663
      %p670 = scmp.eq.s32.totalorder %s86, 1
      %p671 = por %p669, %p670
      %p672 = scmp.ne.s32.totalorder %s663, %s664
      %p673 = scmp.eq.s32.totalorder %s86, 0
      %p674 = por %p672, %p673
      %p675 = scmp.ne.s32.totalorder %s663, %s664
      %p676 = scmp.eq.s32.totalorder %s87, 1
      %p677 = por %p675, %p676
      %p679 = scmp.ne.s32.totalorder %s664, %s678
      %p680 = scmp.eq.s32.totalorder %s87, 0
      %p681 = por %p679, %p680
      %s683 = sadd.s32 %s682, 1
      %p686 = scmp.eq.s32.totalorder %s81, 1
      %p687 = scmp.ne.s32.totalorder %s682, %s684
      %p688 = scmp.eq.s32.totalorder %s81, 0
      %p689 = por %p687, %p688
      %p690 = scmp.ne.s32.totalorder %s682, %s684
      %p691 = scmp.eq.s32.totalorder %s86, 1
      %p692 = por %p690, %p691
      %p693 = scmp.ne.s32.totalorder %s684, %s685
      %p694 = scmp.eq.s32.totalorder %s86, 0
      %p695 = por %p693, %p694
      %p696 = scmp.ne.s32.totalorder %s684, %s685
      %p697 = scmp.eq.s32.totalorder %s87, 1
      %p698 = por %p696, %p697
      %p700 = scmp.ne.s32.totalorder %s685, %s699
      %p701 = scmp.eq.s32.totalorder %s87, 0
      %p702 = por %p700, %p701
      %s704 = sadd.s32 %s703, 1
      %p707 = scmp.eq.s32.totalorder %s81, 1
      %p708 = scmp.ne.s32.totalorder %s703, %s705
      %p709 = scmp.eq.s32.totalorder %s81, 0
      %p710 = por %p708, %p709
      %p711 = scmp.ne.s32.totalorder %s703, %s705
      %p712 = scmp.eq.s32.totalorder %s86, 1
      %p713 = por %p711, %p712
      %p714 = scmp.ne.s32.totalorder %s705, %s706
      %p715 = scmp.eq.s32.totalorder %s86, 0
      %p716 = por %p714, %p715
      %p717 = scmp.ne.s32.totalorder %s705, %s706
      %p718 = scmp.eq.s32.totalorder %s87, 1
      %p719 = por %p717, %p718
      %p721 = scmp.ne.s32.totalorder %s706, %s720
      %p722 = scmp.eq.s32.totalorder %s87, 0
      %p723 = por %p721, %p722
      %s725 = sadd.s32 %s724, 1
      %p728 = scmp.eq.s32.totalorder %s81, 1
      %p729 = scmp.ne.s32.totalorder %s724, %s726
      %p730 = scmp.eq.s32.totalorder %s81, 0
      %p731 = por %p729, %p730
      %p732 = scmp.ne.s32.totalorder %s724, %s726
      %p733 = scmp.eq.s32.totalorder %s86, 1
      %p734 = por %p732, %p733
      %p735 = scmp.ne.s32.totalorder %s726, %s727
      %p736 = scmp.eq.s32.totalorder %s86, 0
      %p737 = por %p735, %p736
      %p738 = scmp.ne.s32.totalorder %s726, %s727
      %p739 = scmp.eq.s32.totalorder %s87, 1
      %p740 = por %p738, %p739
      %p742 = scmp.ne.s32.totalorder %s727, %s741
      %p743 = scmp.eq.s32.totalorder %s87, 0
      %p744 = por %p742, %p743
      %s746 = sadd.s32 %s745, 1
      %p749 = scmp.eq.s32.totalorder %s81, 1
      %p750 = scmp.ne.s32.totalorder %s745, %s747
      %p751 = scmp.eq.s32.totalorder %s81, 0
      %p752 = por %p750, %p751
      %p753 = scmp.ne.s32.totalorder %s745, %s747
      %p754 = scmp.eq.s32.totalorder %s86, 1
      %p755 = por %p753, %p754
      %p756 = scmp.ne.s32.totalorder %s747, %s748
      %p757 = scmp.eq.s32.totalorder %s86, 0
      %p758 = por %p756, %p757
      %p759 = scmp.ne.s32.totalorder %s747, %s748
      %p760 = scmp.eq.s32.totalorder %s87, 1
      %p761 = por %p759, %p760
      %p763 = scmp.ne.s32.totalorder %s748, %s762
      %p764 = scmp.eq.s32.totalorder %s87, 0
      %p765 = por %p763, %p764
      %s767 = sadd.s32 %s766, 1
      %p770 = scmp.eq.s32.totalorder %s81, 1
      %p771 = scmp.ne.s32.totalorder %s766, %s768
      %p772 = scmp.eq.s32.totalorder %s81, 0
      %p773 = por %p771, %p772
      %p774 = scmp.ne.s32.totalorder %s766, %s768
      %p775 = scmp.eq.s32.totalorder %s86, 1
      %p776 = por %p774, %p775
      %p777 = scmp.ne.s32.totalorder %s768, %s769
      %p778 = scmp.eq.s32.totalorder %s86, 0
      %p779 = por %p777, %p778
      %p780 = scmp.ne.s32.totalorder %s768, %s769
      %p781 = scmp.eq.s32.totalorder %s87, 1
      %p782 = por %p780, %p781
      %p784 = scmp.ne.s32.totalorder %s769, %s783
      %p785 = scmp.eq.s32.totalorder %s87, 0
      %p786 = por %p784, %p785
      %s788 = sadd.s32 %s787, 1
      %p791 = scmp.eq.s32.totalorder %s81, 1
      %p792 = scmp.ne.s32.totalorder %s787, %s789
      %p793 = scmp.eq.s32.totalorder %s81, 0
      %p794 = por %p792, %p793
      %p795 = scmp.ne.s32.totalorder %s787, %s789
      %p796 = scmp.eq.s32.totalorder %s86, 1
      %p797 = por %p795, %p796
      %p798 = scmp.ne.s32.totalorder %s789, %s790
      %p799 = scmp.eq.s32.totalorder %s86, 0
      %p800 = por %p798, %p799
      %p801 = scmp.ne.s32.totalorder %s789, %s790
      %p802 = scmp.eq.s32.totalorder %s87, 1
      %p803 = por %p801, %p802
      %p805 = scmp.ne.s32.totalorder %s790, %s804
      %p806 = scmp.eq.s32.totalorder %s87, 0
      %p807 = por %p805, %p806
      %s808 = ssub.s32 %s81, %s88
      %p809 = scmp.eq.s32.totalorder %s808, 0
      %s811 = sadd.s32 %s810, 1
      %s812 = scalar_select %p809, %s810, %s811
      %p815 = pneg %p809
      %p816 = scmp.eq.s32.totalorder %s81, 1
      %p817 = por %p815, %p816
      %p818 = scmp.ne.s32.totalorder %s810, %s813
      %p819 = scmp.eq.s32.totalorder %s81, 0
      %p820 = por %p818, %p819
      %p821 = scmp.ne.s32.totalorder %s810, %s813
      %p822 = scmp.eq.s32.totalorder %s86, 1
      %p823 = por %p821, %p822
      %p824 = scmp.ne.s32.totalorder %s813, %s814
      %p825 = scmp.eq.s32.totalorder %s86, 0
      %p826 = por %p824, %p825
      %p827 = scmp.ne.s32.totalorder %s813, %s814
      %p828 = scmp.eq.s32.totalorder %s87, 1
      %p829 = por %p827, %p828
      %p831 = scmp.ne.s32.totalorder %s814, %s830
      %p832 = scmp.eq.s32.totalorder %s87, 0
      %p833 = por %p831, %p832
      %p834 = scmp.le.s32.totalorder 1, %s81
      %p835 = scmp.lt.s32.totalorder %s81, 3
      %p836 = pnand %p834, %p835
      %p837 = pneg %p836
      // Predicated region
      $region9: #{_lambda_.1} parent=5 // pred_check
        _
      $region10: #{_lambda_.1} parent=5 // pred_check_branch
        %839 = sbr.rel (%p836) target = $region12
      $region11: #{_lambda_.1} parent=5 // pred_region
        %s840 = ssub.s32 %s81, 1
        // Predicated region
        $region13: #{_lambda_.1} parent=11 // pred_check
          %p841 = pneg %p128
        $region14: #{_lambda_.1} parent=11 // pred_check_branch
          %843 = sbr.rel (%p841) target = $region16
        $region15: #{_lambda_.1} parent=11 // pred_region
          _
        $region16: #{_lambda_.1} parent=11 // pred_fallthru
          _
        // Predicated region
        $region17: #{_lambda_.1} parent=11 // pred_check
          %p844 = pneg %p149
        $region18: #{_lambda_.1} parent=11 // pred_check_branch
          %846 = sbr.rel (%p844) target = $region20
        $region19: #{_lambda_.1} parent=11 // pred_region
          _
        $region20: #{_lambda_.1} parent=11 // pred_fallthru
          _
        // Predicated region
        $region21: #{_lambda_.1} parent=11 // pred_check
          %p847 = pneg %p170
        $region22: #{_lambda_.1} parent=11 // pred_check_branch
          %849 = sbr.rel (%p847) target = $region24
        $region23: #{_lambda_.1} parent=11 // pred_region
          _
        $region24: #{_lambda_.1} parent=11 // pred_fallthru
          _
        // Predicated region
        $region25: #{_lambda_.1} parent=11 // pred_check
          %p850 = pneg %p191
        $region26: #{_lambda_.1} parent=11 // pred_check_branch
          %852 = sbr.rel (%p850) target = $region28
        $region27: #{_lambda_.1} parent=11 // pred_region
          _
        $region28: #{_lambda_.1} parent=11 // pred_fallthru
          _
        // Predicated region
        $region29: #{_lambda_.1} parent=11 // pred_check
          %p853 = pneg %p212
        $region30: #{_lambda_.1} parent=11 // pred_check_branch
          %855 = sbr.rel (%p853) target = $region32
        $region31: #{_lambda_.1} parent=11 // pred_region
          _
        $region32: #{_lambda_.1} parent=11 // pred_fallthru
          _
        // Predicated region
        $region33: #{_lambda_.1} parent=11 // pred_check
          %p856 = pneg %p233
        $region34: #{_lambda_.1} parent=11 // pred_check_branch
          %858 = sbr.rel (%p856) target = $region36
        $region35: #{_lambda_.1} parent=11 // pred_region
          _
        $region36: #{_lambda_.1} parent=11 // pred_fallthru
          _
        // Predicated region
        $region37: #{_lambda_.1} parent=11 // pred_check
          %p859 = pneg %p254
        $region38: #{_lambda_.1} parent=11 // pred_check_branch
          %861 = sbr.rel (%p859) target = $region40
        $region39: #{_lambda_.1} parent=11 // pred_region
          _
        $region40: #{_lambda_.1} parent=11 // pred_fallthru
          _
        // Predicated region
        $region41: #{_lambda_.1} parent=11 // pred_check
          %p862 = pneg %p275
        $region42: #{_lambda_.1} parent=11 // pred_check_branch
          %864 = sbr.rel (%p862) target = $region44
        $region43: #{_lambda_.1} parent=11 // pred_region
          _
        $region44: #{_lambda_.1} parent=11 // pred_fallthru
          _
        // Predicated region
        $region45: #{_lambda_.1} parent=11 // pred_check
          %p865 = pneg %p296
        $region46: #{_lambda_.1} parent=11 // pred_check_branch
          %867 = sbr.rel (%p865) target = $region48
        $region47: #{_lambda_.1} parent=11 // pred_region
          _
        $region48: #{_lambda_.1} parent=11 // pred_fallthru
          _
        // Predicated region
        $region49: #{_lambda_.1} parent=11 // pred_check
          %p868 = pneg %p317
        $region50: #{_lambda_.1} parent=11 // pred_check_branch
          %870 = sbr.rel (%p868) target = $region52
        $region51: #{_lambda_.1} parent=11 // pred_region
          _
        $region52: #{_lambda_.1} parent=11 // pred_fallthru
          _
        // Predicated region
        $region53: #{_lambda_.1} parent=11 // pred_check
          %p871 = pneg %p338
        $region54: #{_lambda_.1} parent=11 // pred_check_branch
          %873 = sbr.rel (%p871) target = $region56
        $region55: #{_lambda_.1} parent=11 // pred_region
          _
        $region56: #{_lambda_.1} parent=11 // pred_fallthru
          _
        // Predicated region
        $region57: #{_lambda_.1} parent=11 // pred_check
          %p874 = pneg %p359
        $region58: #{_lambda_.1} parent=11 // pred_check_branch
          %876 = sbr.rel (%p874) target = $region60
        $region59: #{_lambda_.1} parent=11 // pred_region
          _
        $region60: #{_lambda_.1} parent=11 // pred_fallthru
          _
        // Predicated region
        $region61: #{_lambda_.1} parent=11 // pred_check
          %p877 = pneg %p380
        $region62: #{_lambda_.1} parent=11 // pred_check_branch
          %879 = sbr.rel (%p877) target = $region64
        $region63: #{_lambda_.1} parent=11 // pred_region
          _
        $region64: #{_lambda_.1} parent=11 // pred_fallthru
          _
        // Predicated region
        $region65: #{_lambda_.1} parent=11 // pred_check
          %p880 = pneg %p401
        $region66: #{_lambda_.1} parent=11 // pred_check_branch
          %882 = sbr.rel (%p880) target = $region68
        $region67: #{_lambda_.1} parent=11 // pred_region
          _
        $region68: #{_lambda_.1} parent=11 // pred_fallthru
          _
        // Predicated region
        $region69: #{_lambda_.1} parent=11 // pred_check
          %p883 = pneg %p422
        $region70: #{_lambda_.1} parent=11 // pred_check_branch
          %885 = sbr.rel (%p883) target = $region72
        $region71: #{_lambda_.1} parent=11 // pred_region
          _
        $region72: #{_lambda_.1} parent=11 // pred_fallthru
          _
        // Predicated region
        $region73: #{_lambda_.1} parent=11 // pred_check
          %p886 = pneg %p443
        $region74: #{_lambda_.1} parent=11 // pred_check_branch
          %888 = sbr.rel (%p886) target = $region76
        $region75: #{_lambda_.1} parent=11 // pred_region
          _
        $region76: #{_lambda_.1} parent=11 // pred_fallthru
          _
        // Predicated region
        $region77: #{_lambda_.1} parent=11 // pred_check
          %p889 = pneg %p464
        $region78: #{_lambda_.1} parent=11 // pred_check_branch
          %891 = sbr.rel (%p889) target = $region80
        $region79: #{_lambda_.1} parent=11 // pred_region
          _
        $region80: #{_lambda_.1} parent=11 // pred_fallthru
          _
        // Predicated region
        $region81: #{_lambda_.1} parent=11 // pred_check
          %p892 = pneg %p485
        $region82: #{_lambda_.1} parent=11 // pred_check_branch
          %894 = sbr.rel (%p892) target = $region84
        $region83: #{_lambda_.1} parent=11 // pred_region
          _
        $region84: #{_lambda_.1} parent=11 // pred_fallthru
          _
        // Predicated region
        $region85: #{_lambda_.1} parent=11 // pred_check
          %p895 = pneg %p506
        $region86: #{_lambda_.1} parent=11 // pred_check_branch
          %897 = sbr.rel (%p895) target = $region88
        $region87: #{_lambda_.1} parent=11 // pred_region
          %899 = vsyncadd [#allocation3], 0
          %s900 = sshll.u32 %s39, 4
          %s901 = int_to_ptr.hbm [resolvable:$true] %s900
          %s902 = sshll.u32 [#allocation2], 4
          %s903 = int_to_ptr.vmem [resolvable:$true] %s902
          %908 = dma.hbm_to_vmem [thread:$0]  %s901, 4096, %s903, [#allocation3], 512, 512, 32
        $region88: #{_lambda_.1} parent=11 // pred_fallthru
          _
        // Predicated region
        $region89: #{_lambda_.1} parent=11 // pred_check
          %p909 = pneg %p527
        $region90: #{_lambda_.1} parent=11 // pred_check_branch
          %911 = sbr.rel (%p909) target = $region92
        $region91: #{_lambda_.1} parent=11 // pred_region
          %913 = vsyncadd [#allocation6], 0
          %s914 = sshll.u32 %s41, 4
          %s915 = int_to_ptr.hbm [resolvable:$true] %s914
          %s916 = sshll.u32 [#allocation5], 4
          %s917 = int_to_ptr.vmem [resolvable:$true] %s916
          %922 = dma.hbm_to_vmem [thread:$0]  %s915, 8192, %s917, [#allocation6], 512, 512, 32
        $region92: #{_lambda_.1} parent=11 // pred_fallthru
          _
        // Predicated region
        $region93: #{_lambda_.1} parent=11 // pred_check
          %p923 = pneg %p548
        $region94: #{_lambda_.1} parent=11 // pred_check_branch
          %925 = sbr.rel (%p923) target = $region96
        $region95: #{_lambda_.1} parent=11 // pred_region
          _
        $region96: #{_lambda_.1} parent=11 // pred_fallthru
          _
        // Predicated region
        $region97: #{_lambda_.1} parent=11 // pred_check
          %p926 = pneg %p569
        $region98: #{_lambda_.1} parent=11 // pred_check_branch
          %928 = sbr.rel (%p926) target = $region100
        $region99: #{_lambda_.1} parent=11 // pred_region
          _
        $region100: #{_lambda_.1} parent=11 // pred_fallthru
          _
        // Predicated region
        $region101: #{_lambda_.1} parent=11 // pred_check
          %p929 = pneg %p590
        $region102: #{_lambda_.1} parent=11 // pred_check_branch
          %931 = sbr.rel (%p929) target = $region104
        $region103: #{_lambda_.1} parent=11 // pred_region
          _
        $region104: #{_lambda_.1} parent=11 // pred_fallthru
          _
        // Predicated region
        $region105: #{_lambda_.1} parent=11 // pred_check
          %p932 = pneg %p611
        $region106: #{_lambda_.1} parent=11 // pred_check_branch
          %934 = sbr.rel (%p932) target = $region108
        $region107: #{_lambda_.1} parent=11 // pred_region
          %936 = vsyncadd [#allocation6], 0
          %s937 = sshll.u32 %s49, 4
          %s938 = int_to_ptr.hbm [resolvable:$true] %s937
          %s939 = sshll.u32 [#allocation7], 4
          %s940 = int_to_ptr.vmem [resolvable:$true] %s939
          %945 = dma.hbm_to_vmem [thread:$0]  %s938, 32768, %s940, [#allocation6], 256, 256, 16
        $region108: #{_lambda_.1} parent=11 // pred_fallthru
          _
        // Predicated region
        $region109: #{_lambda_.1} parent=11 // pred_check
          %p946 = pneg %p632
        $region110: #{_lambda_.1} parent=11 // pred_check_branch
          %948 = sbr.rel (%p946) target = $region112
        $region111: #{_lambda_.1} parent=11 // pred_region
          _
        $region112: #{_lambda_.1} parent=11 // pred_fallthru
          _
        // Predicated region
        $region113: #{_lambda_.1} parent=11 // pred_check
          %p949 = pneg %p653
        $region114: #{_lambda_.1} parent=11 // pred_check_branch
          %951 = sbr.rel (%p949) target = $region116
        $region115: #{_lambda_.1} parent=11 // pred_region
          _
        $region116: #{_lambda_.1} parent=11 // pred_fallthru
          _
        // Predicated region
        $region117: #{_lambda_.1} parent=11 // pred_check
          %p952 = pneg %p674
        $region118: #{_lambda_.1} parent=11 // pred_check_branch
          %954 = sbr.rel (%p952) target = $region120
        $region119: #{_lambda_.1} parent=11 // pred_region
          _
        $region120: #{_lambda_.1} parent=11 // pred_fallthru
          _
        // Predicated region
        $region121: #{_lambda_.1} parent=11 // pred_check
          %p955 = pneg %p695
        $region122: #{_lambda_.1} parent=11 // pred_check_branch
          %957 = sbr.rel (%p955) target = $region124
        $region123: #{_lambda_.1} parent=11 // pred_region
          %959 = vsyncadd [#allocation9], 0
          %s960 = sshll.u32 %s57, 4
          %s961 = int_to_ptr.hbm [resolvable:$true] %s960
          %s962 = sshll.u32 [#allocation8], 4
          %s963 = int_to_ptr.vmem [resolvable:$true] %s962
          %968 = dma.hbm_to_vmem [thread:$0]  %s961, 8192, %s963, [#allocation9], 128, 128, 8
        $region124: #{_lambda_.1} parent=11 // pred_fallthru
          _
        // Predicated region
        $region125: #{_lambda_.1} parent=11 // pred_check
          %p969 = pneg %p716
        $region126: #{_lambda_.1} parent=11 // pred_check_branch
          %971 = sbr.rel (%p969) target = $region128
        $region127: #{_lambda_.1} parent=11 // pred_region
          _
        $region128: #{_lambda_.1} parent=11 // pred_fallthru
          _
        // Predicated region
        $region129: #{_lambda_.1} parent=11 // pred_check
          %p972 = pneg %p737
        $region130: #{_lambda_.1} parent=11 // pred_check_branch
          %974 = sbr.rel (%p972) target = $region132
        $region131: #{_lambda_.1} parent=11 // pred_region
          _
        $region132: #{_lambda_.1} parent=11 // pred_fallthru
          _
        // Predicated region
        $region133: #{_lambda_.1} parent=11 // pred_check
          %p975 = pneg %p758
        $region134: #{_lambda_.1} parent=11 // pred_check_branch
          %977 = sbr.rel (%p975) target = $region136
        $region135: #{_lambda_.1} parent=11 // pred_region
          _
        $region136: #{_lambda_.1} parent=11 // pred_fallthru
          _
        // Predicated region
        $region137: #{_lambda_.1} parent=11 // pred_check
          %p978 = pneg %p779
        $region138: #{_lambda_.1} parent=11 // pred_check_branch
          %980 = sbr.rel (%p978) target = $region140
        $region139: #{_lambda_.1} parent=11 // pred_region
          _
        $region140: #{_lambda_.1} parent=11 // pred_fallthru
          _
        // Predicated region
        $region141: #{_lambda_.1} parent=11 // pred_check
          %p981 = pneg %p800
        $region142: #{_lambda_.1} parent=11 // pred_check_branch
          %983 = sbr.rel (%p981) target = $region144
        $region143: #{_lambda_.1} parent=11 // pred_region
          _
        $region144: #{_lambda_.1} parent=11 // pred_fallthru
          _
      $region12: #{_lambda_.1} parent=5 // pred_fallthru
        _
      %p984 = scmp.lt.s32.totalorder %s81, 2
      // Predicated region
      $region145: #{_lambda_.1} parent=5 // pred_check
        %p985 = pneg %p984
      $region146: #{_lambda_.1} parent=5 // pred_check_branch
        %987 = sbr.rel (%p985) target = $region148
      $region147: #{_lambda_.1} parent=5 // pred_region
        // Predicated region
        $region149: #{_lambda_.1} parent=147 // pred_check
          %p988 = pneg %p101
        $region150: #{_lambda_.1} parent=147 // pred_check_branch
          %990 = sbr.rel (%p988) target = $region152
        $region151: #{_lambda_.1} parent=147 // pred_region
          %p991 = scmp.lt.s32.totalorder %s81, 1
          %s992 = scalar_select %p991, %s81, 1
          %s993 = smul.addr %s992, 4
          %s994 = smul.addr %s993, 8
          %s995 = scalar_lea.vmem %s1, %s994
        $region152: #{_lambda_.1} parent=147 // pred_fallthru
          _
      $region148: #{_lambda_.1} parent=5 // pred_fallthru
        _
      %p996 = scmp.le.s32.totalorder 1, %s81
      %p997 = scmp.lt.s32.totalorder %s81, 3
      %p998 = pnand %p996, %p997
      %p999 = pneg %p998
      // Predicated region
      $region153: #{_lambda_.1} parent=5 // pred_check
        _
      $region154: #{_lambda_.1} parent=5 // pred_check_branch
        %1001 = sbr.rel (%p998) target = $region156
      $region155: #{_lambda_.1} parent=5 // pred_region
        %s1002 = ssub.s32 %s81, 1
        // Predicated region
        $region157: #{_lambda_.1} parent=155 // pred_check
          %p1003 = pneg %p506
        $region158: #{_lambda_.1} parent=155 // pred_check_branch
          %1005 = sbr.rel (%p1003) target = $region160
        $region159: #{_lambda_.1} parent=155 // pred_region
          %1007 = dma.done [#allocation3], 4096
        $region160: #{_lambda_.1} parent=155 // pred_fallthru
          _
        // Predicated region
        $region161: #{_lambda_.1} parent=155 // pred_check
          %p1008 = pneg %p527
        $region162: #{_lambda_.1} parent=155 // pred_check_branch
          %1010 = sbr.rel (%p1008) target = $region164
        $region163: #{_lambda_.1} parent=155 // pred_region
          %1012 = dma.done [#allocation6], 8192
        $region164: #{_lambda_.1} parent=155 // pred_fallthru
          _
        // Predicated region
        $region165: #{_lambda_.1} parent=155 // pred_check
          %p1013 = pneg %p611
        $region166: #{_lambda_.1} parent=155 // pred_check_branch
          %1015 = sbr.rel (%p1013) target = $region168
        $region167: #{_lambda_.1} parent=155 // pred_region
          %1017 = dma.done [#allocation6], 32768
        $region168: #{_lambda_.1} parent=155 // pred_fallthru
          _
        // Predicated region
        $region169: #{_lambda_.1} parent=155 // pred_check
          %p1018 = pneg %p695
        $region170: #{_lambda_.1} parent=155 // pred_check_branch
          %1020 = sbr.rel (%p1018) target = $region172
        $region171: #{_lambda_.1} parent=155 // pred_region
          %1022 = dma.done [#allocation9], 8192
        $region172: #{_lambda_.1} parent=155 // pred_fallthru
          _
        %p1023 = scmp.lt.s32.totalorder %s86, 1
        %s1024 = scalar_select %p1023, %s86, 1
        %s1025 = smul.addr %s1024, 4
        %s1026 = smul.addr %s1025, 8
        %s1027 = scalar_lea.vmem %s1, %s1026
        %p1028 = pneg %p107
        %p1029 = pneg %p104
        %p1030 = pneg %p128
        %p1031 = pneg %p125
        %p1032 = pneg %p149
        %p1033 = pneg %p146
        %p1034 = pneg %p170
        %p1035 = pneg %p167
        %p1036 = pneg %p191
        %p1037 = pneg %p188
        %p1038 = pneg %p212
        %p1039 = pneg %p209
        %p1040 = pneg %p233
        %p1041 = pneg %p230
        %p1042 = pneg %p254
        %p1043 = pneg %p251
        %p1044 = pneg %p275
        %p1045 = pneg %p272
        %p1046 = pneg %p296
        %p1047 = pneg %p293
        %p1048 = pneg %p317
        %p1049 = pneg %p314
        %p1050 = pneg %p338
        %p1051 = pneg %p335
        %p1052 = pneg %p359
        %p1053 = pneg %p356
        %p1054 = pneg %p380
        %p1055 = pneg %p377
        %p1056 = pneg %p401
        %p1057 = pneg %p398
        %p1058 = pneg %p422
        %p1059 = pneg %p419
        %p1060 = pneg %p443
        %p1061 = pneg %p440
        %p1062 = pneg %p464
        %p1063 = pneg %p461
        %p1064 = pneg %p485
        %p1065 = pneg %p482
        %p1066 = pneg %p506
        %p1067 = pneg %p503
        %p1068 = pneg %p527
        %p1069 = pneg %p524
        %p1070 = pneg %p548
        %p1071 = pneg %p545
        %p1072 = pneg %p569
        %p1073 = pneg %p566
        %p1074 = pneg %p590
        %p1075 = pneg %p587
        %p1076 = pneg %p611
        %p1077 = pneg %p608
        %p1078 = pneg %p632
        %p1079 = pneg %p629
        %p1080 = pneg %p653
        %p1081 = pneg %p650
        %p1082 = pneg %p674
        %p1083 = pneg %p671
        %p1084 = pneg %p695
        %p1085 = pneg %p692
        %p1086 = pneg %p716
        %p1087 = pneg %p713
        %p1088 = pneg %p737
        %p1089 = pneg %p734
        %p1090 = pneg %p758
        %p1091 = pneg %p755
        %p1092 = pneg %p779
        %p1093 = pneg %p776
        %p1094 = pneg %p800
        %p1095 = pneg %p797
        %p1096 = pneg %p826
        %p1097 = pneg %p823
        %s1098 = sand.u32 %s813, 1
        %s1099 = scalar_lea.sflag [#allocation4], %s1098
        %s1100 = sand.u32 %s813, 1
        %s1101 = scalar_lea.vmem [#allocation10], %s1100
        %p1102 = scmp.lt.s32.totalorder %s86, 1
        %s1103 = scalar_select %p1102, %s86, 1
        %s1104 = smul.addr %s1103, 4
        %s1105 = smul.addr %s1104, 8
        %s1106 = scalar_lea.vmem %s1, %s1105
        %v1108 = vld [vmem:[%s1106] sm:$0xff]
        %v1109 = vld [vmem:[%s1106 + $0x8] sm:$0xff]
        %v1110 = vld [vmem:[%s1106 + $0x10] sm:$0xff]
        %v1111 = vld [vmem:[%s1106 + $0x18] sm:$0xff]
        %v1112 = vlaneseq
        %v1113 = vshrl.u32 %v1112, 7
        %v1114 = vadd.s32 %v1113, 8
        %v1115 = vadd.s32 %v1113, 16
        %v1116 = vadd.s32 %v1113, 24
        %v1117 = vlaneseq
        %v1118 = vand.u32 %v1117, 127
        %1119 = vxpose.xlu0.b32.start [1/16] %v1108, 128
        %1120 = vxpose.xlu0.b32.cont [2/16] %v1109, 128
        %1121 = vxpose.xlu0.b32.cont [3/16] %v1110, 128
        %1122 = vxpose.xlu0.b32.cont [4/16] %v1111, 128
        %1123 = vxpose.xlu0.b32.cont [5/16] 0.0, 128
        %1124 = vxpose.xlu0.b32.cont [6/16] 0.0, 128
        %1125 = vxpose.xlu0.b32.cont [7/16] 0.0, 128
        %1126 = vxpose.xlu0.b32.cont [8/16] 0.0, 128
        %1127 = vxpose.xlu0.b32.cont [9/16] 0.0, 128
        %1128 = vxpose.xlu0.b32.cont [10/16] 0.0, 128
        %1129 = vxpose.xlu0.b32.cont [11/16] 0.0, 128
        %1130 = vxpose.xlu0.b32.cont [12/16] 0.0, 128
        %1131 = vxpose.xlu0.b32.cont [13/16] 0.0, 128
        %1132 = vxpose.xlu0.b32.cont [14/16] 0.0, 128
        %1133 = vxpose.xlu0.b32.cont [15/16] 0.0, 128
        %1134 = vxpose.xlu0.b32.end [16/16] 0.0, 128
        %v1135 = vpop.trf.xlu0
        %v1136 = vpop.trf.xlu0
        %v1137 = vpop.trf.xlu0
        %v1138 = vpop.trf.xlu0
        %v1139 = vpop.trf.xlu0
        %v1140 = vpop.trf.xlu0
        %v1141 = vpop.trf.xlu0
        %v1142 = vpop.trf.xlu0
        %v1143 = vpop.trf.xlu0
        %v1144 = vpop.trf.xlu0
        %v1145 = vpop.trf.xlu0
        %v1146 = vpop.trf.xlu0
        %v1147 = vpop.trf.xlu0
        %v1148 = vpop.trf.xlu0
        %v1149 = vpop.trf.xlu0
        %v1150 = vpop.trf.xlu0
        %1152 = vset.pattern.permute.xlu0 0
        %1153 = vperm.xlu0 %1152, %v1108
        %v1154 = vpop.permute.xlu0 %1153
        %1157 = vset.pattern.permute.xlu0 0
        %1158 = vperm.xlu0 %1157, %v1109
        %v1159 = vpop.permute.xlu0 %1158
        %1162 = vset.pattern.permute.xlu0 0
        %1163 = vperm.xlu0 %1162, %v1110
        %v1164 = vpop.permute.xlu0 %1163
        %1167 = vset.pattern.permute.xlu0 0
        %1168 = vperm.xlu0 %1167, %v1111
        %v1169 = vpop.permute.xlu0 %1168
        %v1171 = vperm.slane %v1135, 0
        %v1172 = vsub.f32 %v1154, %v1171
        %v1173 = vsub.f32 %v1159, %v1171
        %v1174 = vsub.f32 %v1164, %v1171
        %v1175 = vsub.f32 %v1169, %v1171
        %v1176 = vmul.f32 %v1172, %v1172
        %v1177 = vmul.f32 %v1173, %v1173
        %v1178 = vmul.f32 %v1174, %v1174
        %v1179 = vmul.f32 %v1175, %v1175
        %v1180 = vadd.f32 %v1176, 0.0
        %v1181 = vadd.f32 %v1177, 0.0
        %v1182 = vadd.f32 %v1178, 0.0
        %v1183 = vadd.f32 %v1179, 0.0
        %1184 = vrot.lane.b32.xlu0 %v1108, 127
        %v1185 = vpop.permute.xlu0 %1184
        %1186 = vrot.lane.b32.xlu0 %v1109, 127
        %v1187 = vpop.permute.xlu0 %1186
        %1188 = vrot.lane.b32.xlu0 %v1110, 127
        %v1189 = vpop.permute.xlu0 %1188
        %1190 = vrot.lane.b32.xlu0 %v1111, 127
        %v1191 = vpop.permute.xlu0 %1190
        %1196 = vxpose.xlu0.b32.start [1/16] %v1185, 128
        %1197 = vxpose.xlu0.b32.cont [2/16] %v1187, 128
        %1198 = vxpose.xlu0.b32.cont [3/16] %v1189, 128
        %1199 = vxpose.xlu0.b32.cont [4/16] %v1191, 128
        %1200 = vxpose.xlu0.b32.cont [5/16] 0.0, 128
        %1201 = vxpose.xlu0.b32.cont [6/16] 0.0, 128
        %1202 = vxpose.xlu0.b32.cont [7/16] 0.0, 128
        %1203 = vxpose.xlu0.b32.cont [8/16] 0.0, 128
        %1204 = vxpose.xlu0.b32.cont [9/16] 0.0, 128
        %1205 = vxpose.xlu0.b32.cont [10/16] 0.0, 128
        %1206 = vxpose.xlu0.b32.cont [11/16] 0.0, 128
        %1207 = vxpose.xlu0.b32.cont [12/16] 0.0, 128
        %1208 = vxpose.xlu0.b32.cont [13/16] 0.0, 128
        %1209 = vxpose.xlu0.b32.cont [14/16] 0.0, 128
        %1210 = vxpose.xlu0.b32.cont [15/16] 0.0, 128
        %1211 = vxpose.xlu0.b32.end [16/16] 0.0, 128
        %v1212 = vpop.trf.xlu0
        %v1213 = vpop.trf.xlu0
        %v1214 = vpop.trf.xlu0
        %v1215 = vpop.trf.xlu0
        %v1216 = vpop.trf.xlu0
        %v1217 = vpop.trf.xlu0
        %v1218 = vpop.trf.xlu0
        %v1219 = vpop.trf.xlu0
        %v1220 = vpop.trf.xlu0
        %v1221 = vpop.trf.xlu0
        %v1222 = vpop.trf.xlu0
        %v1223 = vpop.trf.xlu0
        %v1224 = vpop.trf.xlu0
        %v1225 = vpop.trf.xlu0
        %v1226 = vpop.trf.xlu0
        %v1227 = vpop.trf.xlu0
        %1228 = vset.pattern.permute.xlu0 1
        %1229 = vperm.xlu0 %1228, %v1108
        %v1230 = vpop.permute.xlu0 %1229
        %1232 = vset.pattern.permute.xlu0 1
        %1233 = vperm.xlu0 %1232, %v1109
        %v1234 = vpop.permute.xlu0 %1233
        %1236 = vset.pattern.permute.xlu0 1
        %1237 = vperm.xlu0 %1236, %v1110
        %v1238 = vpop.permute.xlu0 %1237
        %1240 = vset.pattern.permute.xlu0 1
        %1241 = vperm.xlu0 %1240, %v1111
        %v1242 = vpop.permute.xlu0 %1241
        %v1244 = vperm.slane %v1212, 0
        %v1245 = vsub.f32 %v1230, %v1244
        %v1246 = vsub.f32 %v1234, %v1244
        %v1247 = vsub.f32 %v1238, %v1244
        %v1248 = vsub.f32 %v1242, %v1244
        %v1249 = vmul.f32 %v1245, %v1245
        %v1250 = vmul.f32 %v1246, %v1246
        %v1251 = vmul.f32 %v1247, %v1247
        %v1252 = vmul.f32 %v1248, %v1248
        %v1253 = vadd.f32 %v1180, %v1249
        %v1254 = vadd.f32 %v1181, %v1250
        %v1255 = vadd.f32 %v1182, %v1251
        %v1256 = vadd.f32 %v1183, %v1252
        %1257 = vrot.lane.b32.xlu0 %v1108, 126
        %v1258 = vpop.permute.xlu0 %1257
        %1259 = vrot.lane.b32.xlu0 %v1109, 126
        %v1260 = vpop.permute.xlu0 %1259
        %1261 = vrot.lane.b32.xlu0 %v1110, 126
        %v1262 = vpop.permute.xlu0 %1261
        %1263 = vrot.lane.b32.xlu0 %v1111, 126
        %v1264 = vpop.permute.xlu0 %1263
        %1269 = vxpose.xlu0.b32.start [1/16] %v1258, 128
        %1270 = vxpose.xlu0.b32.cont [2/16] %v1260, 128
        %1271 = vxpose.xlu0.b32.cont [3/16] %v1262, 128
        %1272 = vxpose.xlu0.b32.cont [4/16] %v1264, 128
        %1273 = vxpose.xlu0.b32.cont [5/16] 0.0, 128
        %1274 = vxpose.xlu0.b32.cont [6/16] 0.0, 128
        %1275 = vxpose.xlu0.b32.cont [7/16] 0.0, 128
        %1276 = vxpose.xlu0.b32.cont [8/16] 0.0, 128
        %1277 = vxpose.xlu0.b32.cont [9/16] 0.0, 128
        %1278 = vxpose.xlu0.b32.cont [10/16] 0.0, 128
        %1279 = vxpose.xlu0.b32.cont [11/16] 0.0, 128
        %1280 = vxpose.xlu0.b32.cont [12/16] 0.0, 128
        %1281 = vxpose.xlu0.b32.cont [13/16] 0.0, 128
        %1282 = vxpose.xlu0.b32.cont [14/16] 0.0, 128
        %1283 = vxpose.xlu0.b32.cont [15/16] 0.0, 128
        %1284 = vxpose.xlu0.b32.end [16/16] 0.0, 128
        %v1285 = vpop.trf.xlu0
        %v1286 = vpop.trf.xlu0
        %v1287 = vpop.trf.xlu0
        %v1288 = vpop.trf.xlu0
        %v1289 = vpop.trf.xlu0
        %v1290 = vpop.trf.xlu0
        %v1291 = vpop.trf.xlu0
        %v1292 = vpop.trf.xlu0
        %v1293 = vpop.trf.xlu0
        %v1294 = vpop.trf.xlu0
        %v1295 = vpop.trf.xlu0
        %v1296 = vpop.trf.xlu0
        %v1297 = vpop.trf.xlu0
        %v1298 = vpop.trf.xlu0
        %v1299 = vpop.trf.xlu0
        %v1300 = vpop.trf.xlu0
        %1301 = vset.pattern.permute.xlu0 2
        %1302 = vperm.xlu0 %1301, %v1108
        %v1303 = vpop.permute.xlu0 %1302
        %1305 = vset.pattern.permute.xlu0 2
        %1306 = vperm.xlu0 %1305, %v1109
        %v1307 = vpop.permute.xlu0 %1306
        %1309 = vset.pattern.permute.xlu0 2
        %1310 = vperm.xlu0 %1309, %v1110
        %v1311 = vpop.permute.xlu0 %1310
        %1313 = vset.pattern.permute.xlu0 2
        %1314 = vperm.xlu0 %1313, %v1111
        %v1315 = vpop.permute.xlu0 %1314
        %v1317 = vperm.slane %v1285, 0
        %v1318 = vsub.f32 %v1303, %v1317
        %v1319 = vsub.f32 %v1307, %v1317
        %v1320 = vsub.f32 %v1311, %v1317
        %v1321 = vsub.f32 %v1315, %v1317
        %v1322 = vmul.f32 %v1318, %v1318
        %v1323 = vmul.f32 %v1319, %v1319
        %v1324 = vmul.f32 %v1320, %v1320
        %v1325 = vmul.f32 %v1321, %v1321
        %v1326 = vadd.f32 %v1253, %v1322
        %v1327 = vadd.f32 %v1254, %v1323
        %v1328 = vadd.f32 %v1255, %v1324
        %v1329 = vadd.f32 %v1256, %v1325
        %v1330 = vsub.f32 0.0, %v1326
        %v1331 = vsub.f32 0.0, %v1327
        %v1332 = vsub.f32 0.0, %v1328
        %v1333 = vsub.f32 0.0, %v1329
        %vm1334 = vcmp.eq.s32.totalorder %v1113, %v1118
        %vm1335 = vcmp.eq.s32.totalorder %v1114, %v1118
        %vm1336 = vcmp.eq.s32.totalorder %v1115, %v1118
        %vm1337 = vcmp.eq.s32.totalorder %v1116, %v1118
        %v1338 = vsel %vm1334, 1e+30, %v1330
        %v1339 = vsel %vm1335, 1e+30, %v1331
        %v1340 = vsel %vm1336, 1e+30, %v1332
        %v1341 = vsel %vm1337, 1e+30, %v1333
        %vm1342 = vcmask 261120
        %v1343 = vsel %vm1342, %v1338, -inf
        %1344 = vmax.xlane.f32.xlu0 %v1343
        %v1345 = vpop.xlane.xlu0 %1344
        %v1346 = vsel %vm1342, %v1339, -inf
        %1347 = vmax.xlane.f32.xlu0 %v1346
        %v1348 = vpop.xlane.xlu0 %1347
        %v1349 = vsel %vm1342, %v1340, -inf
        %1350 = vmax.xlane.f32.xlu0 %v1349
        %v1351 = vpop.xlane.xlu0 %1350
        %v1352 = vsel %vm1342, %v1341, -inf
        %1353 = vmax.xlane.f32.xlu0 %v1352
        %v1354 = vpop.xlane.xlu0 %1353
        %vm1355 = vcmp.ge.f32.partialorder %v1338, %v1345
        %vm1356 = vcmp.ge.f32.partialorder %v1339, %v1348
        %vm1357 = vcmp.ge.f32.partialorder %v1340, %v1351
        %vm1358 = vcmp.ge.f32.partialorder %v1341, %v1354
        %v1359 = vsel %vm1355, %v1118, 32
        %v1360 = vsel %vm1356, %v1118, 32
        %v1361 = vsel %vm1357, %v1118, 32
        %v1362 = vsel %vm1358, %v1118, 32
        %v1363 = vsel %vm1342, %v1359, 2147483647
        %v1364 = vand.u32 %v1363, 65535
        %v1365 = vshra.s32 %v1363, 16
        %v1366 = vcvt.s32.f32 %v1364
        %v1367 = vcvt.s32.f32 %v1365
        %1368 = vmin.xlane.f32.xlu0 %v1367
        %v1369 = vpop.xlane.xlu0 %1368
        %vm1370 = vcmp.eq.f32.partialorder %v1367, %v1369
        %v1371 = vsel %vm1370, %v1366, inf
        %1372 = vmin.xlane.f32.xlu0 %v1371
        %v1373 = vpop.xlane.xlu0 %1372
        %v1374 = vcvt.f32.s32 %v1373
        %v1375 = vcvt.f32.s32 %v1369
        %v1376 = vshll.u32 %v1375, 16
        %v1377 = vadd.s32 %v1376, %v1374
        %v1378 = vsel %vm1342, %v1360, 2147483647
        %v1379 = vand.u32 %v1378, 65535
        %v1380 = vshra.s32 %v1378, 16
        %v1381 = vcvt.s32.f32 %v1379
        %v1382 = vcvt.s32.f32 %v1380
        %1383 = vmin.xlane.f32.xlu0 %v1382
        %v1384 = vpop.xlane.xlu0 %1383
        %vm1385 = vcmp.eq.f32.partialorder %v1382, %v1384
        %v1386 = vsel %vm1385, %v1381, inf
        %1387 = vmin.xlane.f32.xlu0 %v1386
        %v1388 = vpop.xlane.xlu0 %1387
        %v1389 = vcvt.f32.s32 %v1388
        %v1390 = vcvt.f32.s32 %v1384
        %v1391 = vshll.u32 %v1390, 16
        %v1392 = vadd.s32 %v1391, %v1389
        %v1393 = vsel %vm1342, %v1361, 2147483647
        %v1394 = vand.u32 %v1393, 65535
        %v1395 = vshra.s32 %v1393, 16
        %v1396 = vcvt.s32.f32 %v1394
        %v1397 = vcvt.s32.f32 %v1395
        %1398 = vmin.xlane.f32.xlu0 %v1397
        %v1399 = vpop.xlane.xlu0 %1398
        %vm1400 = vcmp.eq.f32.partialorder %v1397, %v1399
        %v1401 = vsel %vm1400, %v1396, inf
        %1402 = vmin.xlane.f32.xlu0 %v1401
        %v1403 = vpop.xlane.xlu0 %1402
        %v1404 = vcvt.f32.s32 %v1403
        %v1405 = vcvt.f32.s32 %v1399
        %v1406 = vshll.u32 %v1405, 16
        %v1407 = vadd.s32 %v1406, %v1404
        %v1408 = vsel %vm1342, %v1362, 2147483647
        %v1409 = vand.u32 %v1408, 65535
        %v1410 = vshra.s32 %v1408, 16
        %v1411 = vcvt.s32.f32 %v1409
        %v1412 = vcvt.s32.f32 %v1410
        %1413 = vmin.xlane.f32.xlu0 %v1412
        %v1414 = vpop.xlane.xlu0 %1413
        %vm1415 = vcmp.eq.f32.partialorder %v1412, %v1414
        %v1416 = vsel %vm1415, %v1411, inf
        %1417 = vmin.xlane.f32.xlu0 %v1416
        %v1418 = vpop.xlane.xlu0 %1417
        %v1419 = vcvt.f32.s32 %v1418
        %v1420 = vcvt.f32.s32 %v1414
        %v1421 = vshll.u32 %v1420, 16
        %v1422 = vadd.s32 %v1421, %v1419
        %vm1423 = vcmp.eq.s32.totalorder %v1118, %v1377
        %vm1424 = vcmp.eq.s32.totalorder %v1118, %v1392
        %vm1425 = vcmp.eq.s32.totalorder %v1118, %v1407
        %vm1426 = vcmp.eq.s32.totalorder %v1118, %v1422
        %v1427 = vsel %vm1423, 1, 0
        %v1428 = vsel %vm1424, 1, 0
        %v1429 = vsel %vm1425, 1, 0
        %v1430 = vsel %vm1426, 1, 0
        %v1431 = vcvt.s32.f32 %v1427
        %v1432 = vcvt.s32.f32 %v1428
        %v1433 = vcvt.s32.f32 %v1429
        %v1434 = vcvt.s32.f32 %v1430
        %v1435 = vpack.c.bf16 %v1431, %v1431
        %v1436 = vpack.c.bf16 %v1432, %v1432
        %v1437 = vpack.c.bf16 %v1433, %v1433
        %v1438 = vpack.c.bf16 %v1434, %v1434
        %v1439 = vsel %vm1423, -1e+30, %v1338
        %v1440 = vsel %vm1424, -1e+30, %v1339
        %v1441 = vsel %vm1425, -1e+30, %v1340
        %v1442 = vsel %vm1426, -1e+30, %v1341
        %v1443 = vsel %vm1342, %v1439, -inf
        %1444 = vmax.xlane.f32.xlu0 %v1443
        %v1445 = vpop.xlane.xlu0 %1444
        %v1446 = vsel %vm1342, %v1440, -inf
        %1447 = vmax.xlane.f32.xlu0 %v1446
        %v1448 = vpop.xlane.xlu0 %1447
        %v1449 = vsel %vm1342, %v1441, -inf
        %1450 = vmax.xlane.f32.xlu0 %v1449
        %v1451 = vpop.xlane.xlu0 %1450
        %v1452 = vsel %vm1342, %v1442, -inf
        %1453 = vmax.xlane.f32.xlu0 %v1452
        %v1454 = vpop.xlane.xlu0 %1453
        %vm1455 = vcmp.ge.f32.partialorder %v1439, %v1445
        %vm1456 = vcmp.ge.f32.partialorder %v1440, %v1448
        %vm1457 = vcmp.ge.f32.partialorder %v1441, %v1451
        %vm1458 = vcmp.ge.f32.partialorder %v1442, %v1454
        %v1459 = vsel %vm1455, %v1118, 32
        %v1460 = vsel %vm1456, %v1118, 32
        %v1461 = vsel %vm1457, %v1118, 32
        %v1462 = vsel %vm1458, %v1118, 32
        %v1463 = vsel %vm1342, %v1459, 2147483647
        %v1464 = vand.u32 %v1463, 65535
        %v1465 = vshra.s32 %v1463, 16
        %v1466 = vcvt.s32.f32 %v1464
        %v1467 = vcvt.s32.f32 %v1465
        %1468 = vmin.xlane.f32.xlu0 %v1467
        %v1469 = vpop.xlane.xlu0 %1468
        %vm1470 = vcmp.eq.f32.partialorder %v1467, %v1469
        %v1471 = vsel %vm1470, %v1466, inf
        %1472 = vmin.xlane.f32.xlu0 %v1471
        %v1473 = vpop.xlane.xlu0 %1472
        %v1474 = vcvt.f32.s32 %v1473
        %v1475 = vcvt.f32.s32 %v1469
        %v1476 = vshll.u32 %v1475, 16
        %v1477 = vadd.s32 %v1476, %v1474
        %v1478 = vsel %vm1342, %v1460, 2147483647
        %v1479 = vand.u32 %v1478, 65535
        %v1480 = vshra.s32 %v1478, 16
        %v1481 = vcvt.s32.f32 %v1479
        %v1482 = vcvt.s32.f32 %v1480
        %1483 = vmin.xlane.f32.xlu0 %v1482
        %v1484 = vpop.xlane.xlu0 %1483
        %vm1485 = vcmp.eq.f32.partialorder %v1482, %v1484
        %v1486 = vsel %vm1485, %v1481, inf
        %1487 = vmin.xlane.f32.xlu0 %v1486
        %v1488 = vpop.xlane.xlu0 %1487
        %v1489 = vcvt.f32.s32 %v1488
        %v1490 = vcvt.f32.s32 %v1484
        %v1491 = vshll.u32 %v1490, 16
        %v1492 = vadd.s32 %v1491, %v1489
        %v1493 = vsel %vm1342, %v1461, 2147483647
        %v1494 = vand.u32 %v1493, 65535
        %v1495 = vshra.s32 %v1493, 16
        %v1496 = vcvt.s32.f32 %v1494
        %v1497 = vcvt.s32.f32 %v1495
        %1498 = vmin.xlane.f32.xlu0 %v1497
        %v1499 = vpop.xlane.xlu0 %1498
        %vm1500 = vcmp.eq.f32.partialorder %v1497, %v1499
        %v1501 = vsel %vm1500, %v1496, inf
        %1502 = vmin.xlane.f32.xlu0 %v1501
        %v1503 = vpop.xlane.xlu0 %1502
        %v1504 = vcvt.f32.s32 %v1503
        %v1505 = vcvt.f32.s32 %v1499
        %v1506 = vshll.u32 %v1505, 16
        %v1507 = vadd.s32 %v1506, %v1504
        %v1508 = vsel %vm1342, %v1462, 2147483647
        %v1509 = vand.u32 %v1508, 65535
        %v1510 = vshra.s32 %v1508, 16
        %v1511 = vcvt.s32.f32 %v1509
        %v1512 = vcvt.s32.f32 %v1510
        %1513 = vmin.xlane.f32.xlu0 %v1512
        %v1514 = vpop.xlane.xlu0 %1513
        %vm1515 = vcmp.eq.f32.partialorder %v1512, %v1514
        %v1516 = vsel %vm1515, %v1511, inf
        %1517 = vmin.xlane.f32.xlu0 %v1516
        %v1518 = vpop.xlane.xlu0 %1517
        %v1519 = vcvt.f32.s32 %v1518
        %v1520 = vcvt.f32.s32 %v1514
        %v1521 = vshll.u32 %v1520, 16
        %v1522 = vadd.s32 %v1521, %v1519
        %vm1523 = vcmp.eq.s32.totalorder %v1118, %v1477
        %vm1524 = vcmp.eq.s32.totalorder %v1118, %v1492
        %vm1525 = vcmp.eq.s32.totalorder %v1118, %v1507
        %vm1526 = vcmp.eq.s32.totalorder %v1118, %v1522
        %v1527 = vsel %vm1523, 1, 0
        %v1528 = vsel %vm1524, 1, 0
        %v1529 = vsel %vm1525, 1, 0
        %v1530 = vsel %vm1526, 1, 0
        %v1531 = vcvt.s32.f32 %v1527
        %v1532 = vcvt.s32.f32 %v1528
        %v1533 = vcvt.s32.f32 %v1529
        %v1534 = vcvt.s32.f32 %v1530
        %v1535 = vpack.c.bf16 %v1531, %v1531
        %v1536 = vpack.c.bf16 %v1532, %v1532
        %v1537 = vpack.c.bf16 %v1533, %v1533
        %v1538 = vpack.c.bf16 %v1534, %v1534
        %v1539 = vsel %vm1523, -1e+30, %v1439
        %v1540 = vsel %vm1524, -1e+30, %v1440
        %v1541 = vsel %vm1525, -1e+30, %v1441
        %v1542 = vsel %vm1526, -1e+30, %v1442
        %v1543 = vsel %vm1342, %v1539, -inf
        %1544 = vmax.xlane.f32.xlu0 %v1543
        %v1545 = vpop.xlane.xlu0 %1544
        %v1546 = vsel %vm1342, %v1540, -inf
        %1547 = vmax.xlane.f32.xlu0 %v1546
        %v1548 = vpop.xlane.xlu0 %1547
        %v1549 = vsel %vm1342, %v1541, -inf
        %1550 = vmax.xlane.f32.xlu0 %v1549
        %v1551 = vpop.xlane.xlu0 %1550
        %v1552 = vsel %vm1342, %v1542, -inf
        %1553 = vmax.xlane.f32.xlu0 %v1552
        %v1554 = vpop.xlane.xlu0 %1553
        %vm1555 = vcmp.ge.f32.partialorder %v1539, %v1545
        %vm1556 = vcmp.ge.f32.partialorder %v1540, %v1548
        %vm1557 = vcmp.ge.f32.partialorder %v1541, %v1551
        %vm1558 = vcmp.ge.f32.partialorder %v1542, %v1554
        %v1559 = vsel %vm1555, %v1118, 32
        %v1560 = vsel %vm1556, %v1118, 32
        %v1561 = vsel %vm1557, %v1118, 32
        %v1562 = vsel %vm1558, %v1118, 32
        %v1563 = vsel %vm1342, %v1559, 2147483647
        %v1564 = vand.u32 %v1563, 65535
        %v1565 = vshra.s32 %v1563, 16
        %v1566 = vcvt.s32.f32 %v1564
        %v1567 = vcvt.s32.f32 %v1565
        %1568 = vmin.xlane.f32.xlu0 %v1567
        %v1569 = vpop.xlane.xlu0 %1568
        %vm1570 = vcmp.eq.f32.partialorder %v1567, %v1569
        %v1571 = vsel %vm1570, %v1566, inf
        %1572 = vmin.xlane.f32.xlu0 %v1571
        %v1573 = vpop.xlane.xlu0 %1572
        %v1574 = vcvt.f32.s32 %v1573
        %v1575 = vcvt.f32.s32 %v1569
        %v1576 = vshll.u32 %v1575, 16
        %v1577 = vadd.s32 %v1576, %v1574
        %v1578 = vsel %vm1342, %v1560, 2147483647
        %v1579 = vand.u32 %v1578, 65535
        %v1580 = vshra.s32 %v1578, 16
        %v1581 = vcvt.s32.f32 %v1579
        %v1582 = vcvt.s32.f32 %v1580
        %1583 = vmin.xlane.f32.xlu0 %v1582
        %v1584 = vpop.xlane.xlu0 %1583
        %vm1585 = vcmp.eq.f32.partialorder %v1582, %v1584
        %v1586 = vsel %vm1585, %v1581, inf
        %1587 = vmin.xlane.f32.xlu0 %v1586
        %v1588 = vpop.xlane.xlu0 %1587
        %v1589 = vcvt.f32.s32 %v1588
        %v1590 = vcvt.f32.s32 %v1584
        %v1591 = vshll.u32 %v1590, 16
        %v1592 = vadd.s32 %v1591, %v1589
        %v1593 = vsel %vm1342, %v1561, 2147483647
        %v1594 = vand.u32 %v1593, 65535
        %v1595 = vshra.s32 %v1593, 16
        %v1596 = vcvt.s32.f32 %v1594
        %v1597 = vcvt.s32.f32 %v1595
        %1598 = vmin.xlane.f32.xlu0 %v1597
        %v1599 = vpop.xlane.xlu0 %1598
        %vm1600 = vcmp.eq.f32.partialorder %v1597, %v1599
        %v1601 = vsel %vm1600, %v1596, inf
        %1602 = vmin.xlane.f32.xlu0 %v1601
        %v1603 = vpop.xlane.xlu0 %1602
        %v1604 = vcvt.f32.s32 %v1603
        %v1605 = vcvt.f32.s32 %v1599
        %v1606 = vshll.u32 %v1605, 16
        %v1607 = vadd.s32 %v1606, %v1604
        %v1608 = vsel %vm1342, %v1562, 2147483647
        %v1609 = vand.u32 %v1608, 65535
        %v1610 = vshra.s32 %v1608, 16
        %v1611 = vcvt.s32.f32 %v1609
        %v1612 = vcvt.s32.f32 %v1610
        %1613 = vmin.xlane.f32.xlu0 %v1612
        %v1614 = vpop.xlane.xlu0 %1613
        %vm1615 = vcmp.eq.f32.partialorder %v1612, %v1614
        %v1616 = vsel %vm1615, %v1611, inf
        %1617 = vmin.xlane.f32.xlu0 %v1616
        %v1618 = vpop.xlane.xlu0 %1617
        %v1619 = vcvt.f32.s32 %v1618
        %v1620 = vcvt.f32.s32 %v1614
        %v1621 = vshll.u32 %v1620, 16
        %v1622 = vadd.s32 %v1621, %v1619
        %vm1623 = vcmp.eq.s32.totalorder %v1118, %v1577
        %vm1624 = vcmp.eq.s32.totalorder %v1118, %v1592
        %vm1625 = vcmp.eq.s32.totalorder %v1118, %v1607
        %vm1626 = vcmp.eq.s32.totalorder %v1118, %v1622
        %v1627 = vsel %vm1623, 1, 0
        %v1628 = vsel %vm1624, 1, 0
        %v1629 = vsel %vm1625, 1, 0
        %v1630 = vsel %vm1626, 1, 0
        %v1631 = vcvt.s32.f32 %v1627
        %v1632 = vcvt.s32.f32 %v1628
        %v1633 = vcvt.s32.f32 %v1629
        %v1634 = vcvt.s32.f32 %v1630
        %v1635 = vpack.c.bf16 %v1631, %v1631
        %v1636 = vpack.c.bf16 %v1632, %v1632
        %v1637 = vpack.c.bf16 %v1633, %v1633
        %v1638 = vpack.c.bf16 %v1634, %v1634
        %v1639 = vsel %vm1623, -1e+30, %v1539
        %v1640 = vsel %vm1624, -1e+30, %v1540
        %v1641 = vsel %vm1625, -1e+30, %v1541
        %v1642 = vsel %vm1626, -1e+30, %v1542
        %v1643 = vsel %vm1342, %v1639, -inf
        %1644 = vmax.xlane.f32.xlu0 %v1643
        %v1645 = vpop.xlane.xlu0 %1644
        %v1646 = vsel %vm1342, %v1640, -inf
        %1647 = vmax.xlane.f32.xlu0 %v1646
        %v1648 = vpop.xlane.xlu0 %1647
        %v1649 = vsel %vm1342, %v1641, -inf
        %1650 = vmax.xlane.f32.xlu0 %v1649
        %v1651 = vpop.xlane.xlu0 %1650
        %v1652 = vsel %vm1342, %v1642, -inf
        %1653 = vmax.xlane.f32.xlu0 %v1652
        %v1654 = vpop.xlane.xlu0 %1653
        %vm1655 = vcmp.ge.f32.partialorder %v1639, %v1645
        %vm1656 = vcmp.ge.f32.partialorder %v1640, %v1648
        %vm1657 = vcmp.ge.f32.partialorder %v1641, %v1651
        %vm1658 = vcmp.ge.f32.partialorder %v1642, %v1654
        %v1659 = vsel %vm1655, %v1118, 32
        %v1660 = vsel %vm1656, %v1118, 32
        %v1661 = vsel %vm1657, %v1118, 32
        %v1662 = vsel %vm1658, %v1118, 32
        %v1663 = vsel %vm1342, %v1659, 2147483647
        %v1664 = vand.u32 %v1663, 65535
        %v1665 = vshra.s32 %v1663, 16
        %v1666 = vcvt.s32.f32 %v1664
        %v1667 = vcvt.s32.f32 %v1665
        %1668 = vmin.xlane.f32.xlu0 %v1667
        %v1669 = vpop.xlane.xlu0 %1668
        %vm1670 = vcmp.eq.f32.partialorder %v1667, %v1669
        %v1671 = vsel %vm1670, %v1666, inf
        %1672 = vmin.xlane.f32.xlu0 %v1671
        %v1673 = vpop.xlane.xlu0 %1672
        %v1674 = vcvt.f32.s32 %v1673
        %v1675 = vcvt.f32.s32 %v1669
        %v1676 = vshll.u32 %v1675, 16
        %v1677 = vadd.s32 %v1676, %v1674
        %v1678 = vsel %vm1342, %v1660, 2147483647
        %v1679 = vand.u32 %v1678, 65535
        %v1680 = vshra.s32 %v1678, 16
        %v1681 = vcvt.s32.f32 %v1679
        %v1682 = vcvt.s32.f32 %v1680
        %1683 = vmin.xlane.f32.xlu0 %v1682
        %v1684 = vpop.xlane.xlu0 %1683
        %vm1685 = vcmp.eq.f32.partialorder %v1682, %v1684
        %v1686 = vsel %vm1685, %v1681, inf
        %1687 = vmin.xlane.f32.xlu0 %v1686
        %v1688 = vpop.xlane.xlu0 %1687
        %v1689 = vcvt.f32.s32 %v1688
        %v1690 = vcvt.f32.s32 %v1684
        %v1691 = vshll.u32 %v1690, 16
        %v1692 = vadd.s32 %v1691, %v1689
        %v1693 = vsel %vm1342, %v1661, 2147483647
        %v1694 = vand.u32 %v1693, 65535
        %v1695 = vshra.s32 %v1693, 16
        %v1696 = vcvt.s32.f32 %v1694
        %v1697 = vcvt.s32.f32 %v1695
        %1698 = vmin.xlane.f32.xlu0 %v1697
        %v1699 = vpop.xlane.xlu0 %1698
        %vm1700 = vcmp.eq.f32.partialorder %v1697, %v1699
        %v1701 = vsel %vm1700, %v1696, inf
        %1702 = vmin.xlane.f32.xlu0 %v1701
        %v1703 = vpop.xlane.xlu0 %1702
        %v1704 = vcvt.f32.s32 %v1703
        %v1705 = vcvt.f32.s32 %v1699
        %v1706 = vshll.u32 %v1705, 16
        %v1707 = vadd.s32 %v1706, %v1704
        %v1708 = vsel %vm1342, %v1662, 2147483647
        %v1709 = vand.u32 %v1708, 65535
        %v1710 = vshra.s32 %v1708, 16
        %v1711 = vcvt.s32.f32 %v1709
        %v1712 = vcvt.s32.f32 %v1710
        %1713 = vmin.xlane.f32.xlu0 %v1712
        %v1714 = vpop.xlane.xlu0 %1713
        %vm1715 = vcmp.eq.f32.partialorder %v1712, %v1714
        %v1716 = vsel %vm1715, %v1711, inf
        %1717 = vmin.xlane.f32.xlu0 %v1716
        %v1718 = vpop.xlane.xlu0 %1717
        %v1719 = vcvt.f32.s32 %v1718
        %v1720 = vcvt.f32.s32 %v1714
        %v1721 = vshll.u32 %v1720, 16
        %v1722 = vadd.s32 %v1721, %v1719
        %vm1723 = vcmp.eq.s32.totalorder %v1118, %v1677
        %vm1724 = vcmp.eq.s32.totalorder %v1118, %v1692
        %vm1725 = vcmp.eq.s32.totalorder %v1118, %v1707
        %vm1726 = vcmp.eq.s32.totalorder %v1118, %v1722
        %v1727 = vsel %vm1723, 1, 0
        %v1728 = vsel %vm1724, 1, 0
        %v1729 = vsel %vm1725, 1, 0
        %v1730 = vsel %vm1726, 1, 0
        %v1731 = vcvt.s32.f32 %v1727
        %v1732 = vcvt.s32.f32 %v1728
        %v1733 = vcvt.s32.f32 %v1729
        %v1734 = vcvt.s32.f32 %v1730
        %v1735 = vpack.c.bf16 %v1731, %v1731
        %v1736 = vpack.c.bf16 %v1732, %v1732
        %v1737 = vpack.c.bf16 %v1733, %v1733
        %v1738 = vpack.c.bf16 %v1734, %v1734
        %v1743 = vunpack.c.l.b16 %v1435
        %v1744 = vunpack.c.l.b16 %v1436
        %v1745 = vunpack.c.l.b16 %v1437
        %v1746 = vunpack.c.l.b16 %v1438
        %v1747 = vpack.c.b16 %v1744, %v1743
        %v1748 = vpack.c.b16 %v1746, %v1745
        %v1753 = vunpack.c.l.b16 %v1535
        %v1754 = vunpack.c.l.b16 %v1536
        %v1755 = vunpack.c.l.b16 %v1537
        %v1756 = vunpack.c.l.b16 %v1538
        %v1757 = vpack.c.b16 %v1754, %v1753
        %v1758 = vpack.c.b16 %v1756, %v1755
        %v1763 = vunpack.c.l.b16 %v1635
        %v1764 = vunpack.c.l.b16 %v1636
        %v1765 = vunpack.c.l.b16 %v1637
        %v1766 = vunpack.c.l.b16 %v1638
        %v1767 = vpack.c.b16 %v1764, %v1763
        %v1768 = vpack.c.b16 %v1766, %v1765
        %v1773 = vunpack.c.l.b16 %v1735
        %v1774 = vunpack.c.l.b16 %v1736
        %v1775 = vunpack.c.l.b16 %v1737
        %v1776 = vunpack.c.l.b16 %v1738
        %v1777 = vpack.c.b16 %v1774, %v1773
        %v1778 = vpack.c.b16 %v1776, %v1775
        %v1779 = vpack.c.bf16 %v1109, %v1108
        %v1780 = vpack.c.bf16 %v1111, %v1110
        %v1781 = vld [vmem:[%s3] sm:$0x3]
        %v1782 = vld [vmem:[%s7] sm:$0x1]
        %v1784 = vperm.slane %v1782, 0
        %vm1786 = vcmask 23552
        %v1788 = vsel %vm1786, %v1779, 0
        %v1791 = vsel %vm1786, %v1780, 0
        %vm1793 = vcmask 1040384
        %vm1794 = vcmask 1041408
        %v1795 = vsel %vm1793, 4294967295, 65535
        %v1796 = vsel %vm1794, %v1795, 0
        %v1798 = vand.u32 %v1781, %v1796
        %1800 = vmatpush.bf16.msra.mxu0 0
        %1801 = vmatpush.bf16.msra.mxu0 0
        %1802 = vmatpush.bf16.msra.mxu0 0
        %1803 = vmatpush.bf16.msra.mxu0 0
        %1804 = vmatpush.bf16.msra.mxu0 0
        %1805 = vmatpush.bf16.msra.mxu0 0
        %1806 = vmatpush.bf16.msra.mxu0 0
        %1807 = vmatpush.bf16.msra.mxu0 %v1798
        %1808 = vmatmul.bf16.gmra.mxu0 %v1788
        %v1809 = vpop.f32.mrf.mxu0
        %v1810 = vadd.f32 %v1784, %v1809
        %v1811 = vpop.f32.mrf.mxu0
        %v1812 = vadd.f32 %v1784, %v1811
        %1813 = vmatmul.bf16.gmra.mxu0 %v1791
        %v1814 = vpop.f32.mrf.mxu0
        %v1815 = vadd.f32 %v1784, %v1814
        %v1816 = vpop.f32.mrf.mxu0
        %v1817 = vadd.f32 %v1784, %v1816
        %1818 = vdwg.mxu0
        %v1819 = vld [vmem:[%s5] sm:$0x3]
        %v1821 = vand.u32 %v1819, %v1796
        %1823 = vmatpush.bf16.msra.mxu0 0
        %1824 = vmatpush.bf16.msra.mxu0 0
        %1825 = vmatpush.bf16.msra.mxu0 0
        %1826 = vmatpush.bf16.msra.mxu0 0
        %1827 = vmatpush.bf16.msra.mxu0 0
        %1828 = vmatpush.bf16.msra.mxu0 0
        %1829 = vmatpush.bf16.msra.mxu0 0
        %1830 = vmatpush.bf16.msra.mxu0 %v1821
        %1831 = vmatmul.bf16.gmra.mxu0 %v1788
        %v1832 = vpop.f32.mrf.mxu0
        %v1833 = vadd.f32 0.0, %v1832
        %v1834 = vpop.f32.mrf.mxu0
        %v1835 = vadd.f32 0.0, %v1834
        %1836 = vmatmul.bf16.gmra.mxu0 %v1791
        %v1837 = vpop.f32.mrf.mxu0
        %v1838 = vadd.f32 0.0, %v1837
        %v1839 = vpop.f32.mrf.mxu0
        %v1840 = vadd.f32 0.0, %v1839
        %1841 = vdwg.mxu0
        %v1842 = vpack.c.bf16 %v1835, %v1833
        %v1843 = vpack.c.bf16 %v1840, %v1838
        %v1845 = vsel %vm1342, %v1747, 0
        %v1848 = vsel %vm1342, %v1748, 0
        %v1851 = vsel %vm1342, %v1757, 0
        %v1854 = vsel %vm1342, %v1758, 0
        %v1857 = vsel %vm1342, %v1767, 0
        %v1860 = vsel %vm1342, %v1768, 0
        %v1863 = vsel %vm1342, %v1777, 0
        %v1866 = vsel %vm1342, %v1778, 0
        %1868 = vmatpush.bf16.msra.mxu0 0
        %1869 = vmatpush.bf16.msra.mxu0 0
        %1870 = vmatpush.bf16.msra.mxu0 0
        %1871 = vmatpush.bf16.msra.mxu0 0
        %1872 = vmatpush.bf16.msra.mxu0 0
        %1873 = vmatpush.bf16.msra.mxu0 0
        %1874 = vmatpush.bf16.msra.mxu0 %v1843
        %1875 = vmatpush.bf16.msra.mxu0 %v1842
        %1876 = vmatmul.bf16.gmra.mxu0 %v1845
        %v1877 = vpop.f32.mrf.mxu0
        %v1878 = vadd.f32 %v1810, %v1877
        %v1879 = vpop.f32.mrf.mxu0
        %v1880 = vadd.f32 %v1812, %v1879
        %1881 = vmatmul.bf16.gmra.mxu0 %v1848
        %v1882 = vpop.f32.mrf.mxu0
        %v1883 = vadd.f32 %v1815, %v1882
        %v1884 = vpop.f32.mrf.mxu0
        %v1885 = vadd.f32 %v1817, %v1884
        %1886 = vmatmul.bf16.gmra.mxu0 %v1851
        %v1887 = vpop.f32.mrf.mxu0
        %v1888 = vadd.f32 %v1810, %v1887
        %v1889 = vpop.f32.mrf.mxu0
        %v1890 = vadd.f32 %v1812, %v1889
        %1891 = vmatmul.bf16.gmra.mxu0 %v1854
        %v1892 = vpop.f32.mrf.mxu0
        %v1893 = vadd.f32 %v1815, %v1892
        %v1894 = vpop.f32.mrf.mxu0
        %v1895 = vadd.f32 %v1817, %v1894
        %1896 = vmatmul.bf16.gmra.mxu0 %v1857
        %v1897 = vpop.f32.mrf.mxu0
        %v1898 = vadd.f32 %v1810, %v1897
        %v1899 = vpop.f32.mrf.mxu0
        %v1900 = vadd.f32 %v1812, %v1899
        %1901 = vmatmul.bf16.gmra.mxu0 %v1860
        %v1902 = vpop.f32.mrf.mxu0
        %v1903 = vadd.f32 %v1815, %v1902
        %v1904 = vpop.f32.mrf.mxu0
        %v1905 = vadd.f32 %v1817, %v1904
        %1906 = vmatmul.bf16.gmra.mxu0 %v1863
        %v1907 = vpop.f32.mrf.mxu0
        %v1908 = vadd.f32 %v1810, %v1907
        %v1909 = vpop.f32.mrf.mxu0
        %v1910 = vadd.f32 %v1812, %v1909
        %1911 = vmatmul.bf16.gmra.mxu0 %v1866
        %v1912 = vpop.f32.mrf.mxu0
        %v1913 = vadd.f32 %v1815, %v1912
        %v1914 = vpop.f32.mrf.mxu0
        %v1915 = vadd.f32 %v1817, %v1914
        %1916 = vdwg.mxu0
        %v1917 = vmax.f32 %v1878, 0.0
        %v1918 = vmax.f32 %v1880, 0.0
        %v1919 = vmax.f32 %v1883, 0.0
        %v1920 = vmax.f32 %v1885, 0.0
        %v1921 = vmax.f32 %v1888, 0.0
        %v1922 = vmax.f32 %v1890, 0.0
        %v1923 = vmax.f32 %v1893, 0.0
        %v1924 = vmax.f32 %v1895, 0.0
        %v1925 = vmax.f32 %v1898, 0.0
        %v1926 = vmax.f32 %v1900, 0.0
        %v1927 = vmax.f32 %v1903, 0.0
        %v1928 = vmax.f32 %v1905, 0.0
        %v1929 = vmax.f32 %v1908, 0.0
        %v1930 = vmax.f32 %v1910, 0.0
        %v1931 = vmax.f32 %v1913, 0.0
        %v1932 = vmax.f32 %v1915, 0.0
        %v1933 = vld [vmem:[%s9] sm:$0x1]
        %v1935 = vperm.slane %v1933, 0
        %v1937 = vmul.f32 %v1917, %v1935
        %v1938 = vmul.f32 %v1918, %v1935
        %v1939 = vmul.f32 %v1919, %v1935
        %v1940 = vmul.f32 %v1920, %v1935
        %v1941 = vmul.f32 %v1921, %v1935
        %v1942 = vmul.f32 %v1922, %v1935
        %v1943 = vmul.f32 %v1923, %v1935
        %v1944 = vmul.f32 %v1924, %v1935
        %v1945 = vmul.f32 %v1925, %v1935
        %v1946 = vmul.f32 %v1926, %v1935
        %v1947 = vmul.f32 %v1927, %v1935
        %v1948 = vmul.f32 %v1928, %v1935
        %v1949 = vmul.f32 %v1929, %v1935
        %v1950 = vmul.f32 %v1930, %v1935
        %v1951 = vmul.f32 %v1931, %v1935
        %v1952 = vmul.f32 %v1932, %v1935
        %v1953 = vld [vmem:[%s11] sm:$0x1]
        %v1955 = vperm.slane %v1953, 0
        %v1957 = vadd.f32 %v1937, %v1955
        %v1958 = vadd.f32 %v1938, %v1955
        %v1959 = vadd.f32 %v1939, %v1955
        %v1960 = vadd.f32 %v1940, %v1955
        %v1961 = vadd.f32 %v1941, %v1955
        %v1962 = vadd.f32 %v1942, %v1955
        %v1963 = vadd.f32 %v1943, %v1955
        %v1964 = vadd.f32 %v1944, %v1955
        %v1965 = vadd.f32 %v1945, %v1955
        %v1966 = vadd.f32 %v1946, %v1955
        %v1967 = vadd.f32 %v1947, %v1955
        %v1968 = vadd.f32 %v1948, %v1955
        %v1969 = vadd.f32 %v1949, %v1955
        %v1970 = vadd.f32 %v1950, %v1955
        %v1971 = vadd.f32 %v1951, %v1955
        %v1972 = vadd.f32 %v1952, %v1955
        %v1973 = vpack.c.bf16 %v1958, %v1957
        %v1974 = vpack.c.bf16 %v1960, %v1959
        %v1975 = vpack.c.bf16 %v1962, %v1961
        %v1976 = vpack.c.bf16 %v1964, %v1963
        %v1977 = vpack.c.bf16 %v1966, %v1965
        %v1978 = vpack.c.bf16 %v1968, %v1967
        %v1979 = vpack.c.bf16 %v1970, %v1969
        %v1980 = vpack.c.bf16 %v1972, %v1971
        %v1981 = vld [vmem:[%s13] sm:$0xf]
        %v1982 = vld [vmem:[%s13 + $0x4] sm:$0xf]
        %v1983 = vld [vmem:[%s13 + $0x8] sm:$0xf]
        %v1984 = vld [vmem:[%s13 + $0xc] sm:$0xf]
        %v1985 = vld [vmem:[%s13 + $0x10] sm:$0xf]
        %v1986 = vld [vmem:[%s13 + $0x14] sm:$0xf]
        %v1987 = vld [vmem:[%s13 + $0x18] sm:$0xf]
        %v1988 = vld [vmem:[%s13 + $0x1c] sm:$0xf]
        %v1989 = vld [vmem:[%s15] sm:$0x1]
        %v1991 = vperm.slane %v1989, 0
        %v2001 = vunpack.c.l.b16 %v1981
        %v2002 = vunpack.c.l.b16 %v1982
        %v2003 = vunpack.c.l.b16 %v1983
        %v2004 = vunpack.c.l.b16 %v1984
        %v2005 = vunpack.c.l.b16 %v1985
        %v2006 = vunpack.c.l.b16 %v1986
        %v2007 = vunpack.c.l.b16 %v1987
        %v2008 = vunpack.c.l.b16 %v1988
        %v2009 = vpack.c.b16 %v2002, %v2001
        %v2010 = vpack.c.b16 %v2004, %v2003
        %v2011 = vpack.c.b16 %v2006, %v2005
        %v2012 = vpack.c.b16 %v2008, %v2007
        %vm2017 = vcmask 523264
        %v2019 = vsel %vm2017, %v1973, 0
        %v2022 = vsel %vm2017, %v1974, 0
        %v2025 = vsel %vm2017, %v1975, 0
        %v2028 = vsel %vm2017, %v1976, 0
        %v2031 = vsel %vm2017, %v1977, 0
        %v2034 = vsel %vm2017, %v1978, 0
        %v2037 = vsel %vm2017, %v1979, 0
        %v2040 = vsel %vm2017, %v1980, 0
        %2042 = vmatpush.bf16.msra.mxu0 0
        %2043 = vmatpush.bf16.msra.mxu0 0
        %2044 = vmatpush.bf16.msra.mxu0 0
        %2045 = vmatpush.bf16.msra.mxu0 0
        %2046 = vmatpush.bf16.msra.mxu0 %v2012
        %2047 = vmatpush.bf16.msra.mxu0 %v2011
        %2048 = vmatpush.bf16.msra.mxu0 %v2010
        %2049 = vmatpush.bf16.msra.mxu0 %v2009
        %2050 = vmatmul.bf16.gmra.mxu0 %v2019
        %v2051 = vpop.f32.mrf.mxu0
        %v2052 = vadd.f32 %v1991, %v2051
        %v2053 = vpop.f32.mrf.mxu0
        %v2054 = vadd.f32 %v1991, %v2053
        %2055 = vmatmul.bf16.gmra.mxu0 %v2022
        %v2056 = vpop.f32.mrf.mxu0
        %v2057 = vadd.f32 %v1991, %v2056
        %v2058 = vpop.f32.mrf.mxu0
        %v2059 = vadd.f32 %v1991, %v2058
        %2060 = vmatmul.bf16.gmra.mxu0 %v2025
        %v2061 = vpop.f32.mrf.mxu0
        %v2062 = vadd.f32 %v1991, %v2061
        %v2063 = vpop.f32.mrf.mxu0
        %v2064 = vadd.f32 %v1991, %v2063
        %2065 = vmatmul.bf16.gmra.mxu0 %v2028
        %v2066 = vpop.f32.mrf.mxu0
        %v2067 = vadd.f32 %v1991, %v2066
        %v2068 = vpop.f32.mrf.mxu0
        %v2069 = vadd.f32 %v1991, %v2068
        %2070 = vmatmul.bf16.gmra.mxu0 %v2031
        %v2071 = vpop.f32.mrf.mxu0
        %v2072 = vadd.f32 %v1991, %v2071
        %v2073 = vpop.f32.mrf.mxu0
        %v2074 = vadd.f32 %v1991, %v2073
        %2075 = vmatmul.bf16.gmra.mxu0 %v2034
        %v2076 = vpop.f32.mrf.mxu0
        %v2077 = vadd.f32 %v1991, %v2076
        %v2078 = vpop.f32.mrf.mxu0
        %v2079 = vadd.f32 %v1991, %v2078
        %2080 = vmatmul.bf16.gmra.mxu0 %v2037
        %v2081 = vpop.f32.mrf.mxu0
        %v2082 = vadd.f32 %v1991, %v2081
        %v2083 = vpop.f32.mrf.mxu0
        %v2084 = vadd.f32 %v1991, %v2083
        %2085 = vmatmul.bf16.gmra.mxu0 %v2040
        %v2086 = vpop.f32.mrf.mxu0
        %v2087 = vadd.f32 %v1991, %v2086
        %v2088 = vpop.f32.mrf.mxu0
        %v2089 = vadd.f32 %v1991, %v2088
        %2090 = vdwg.mxu0
        %v2091 = vmax.f32 %v2052, 0.0
        %v2092 = vmax.f32 %v2054, 0.0
        %v2093 = vmax.f32 %v2057, 0.0
        %v2094 = vmax.f32 %v2059, 0.0
        %v2095 = vmax.f32 %v2062, 0.0
        %v2096 = vmax.f32 %v2064, 0.0
        %v2097 = vmax.f32 %v2067, 0.0
        %v2098 = vmax.f32 %v2069, 0.0
        %v2099 = vmax.f32 %v2072, 0.0
        %v2100 = vmax.f32 %v2074, 0.0
        %v2101 = vmax.f32 %v2077, 0.0
        %v2102 = vmax.f32 %v2079, 0.0
        %v2103 = vmax.f32 %v2082, 0.0
        %v2104 = vmax.f32 %v2084, 0.0
        %v2105 = vmax.f32 %v2087, 0.0
        %v2106 = vmax.f32 %v2089, 0.0
        %v2107 = vld [vmem:[%s17] sm:$0x1]
        %v2109 = vperm.slane %v2107, 0
        %v2111 = vmul.f32 %v2091, %v2109
        %v2112 = vmul.f32 %v2092, %v2109
        %v2113 = vmul.f32 %v2093, %v2109
        %v2114 = vmul.f32 %v2094, %v2109
        %v2115 = vmul.f32 %v2095, %v2109
        %v2116 = vmul.f32 %v2096, %v2109
        %v2117 = vmul.f32 %v2097, %v2109
        %v2118 = vmul.f32 %v2098, %v2109
        %v2119 = vmul.f32 %v2099, %v2109
        %v2120 = vmul.f32 %v2100, %v2109
        %v2121 = vmul.f32 %v2101, %v2109
        %v2122 = vmul.f32 %v2102, %v2109
        %v2123 = vmul.f32 %v2103, %v2109
        %v2124 = vmul.f32 %v2104, %v2109
        %v2125 = vmul.f32 %v2105, %v2109
        %v2126 = vmul.f32 %v2106, %v2109
        %v2127 = vld [vmem:[%s19] sm:$0x1]
        %v2129 = vperm.slane %v2127, 0
        %v2131 = vadd.f32 %v2111, %v2129
        %v2132 = vadd.f32 %v2112, %v2129
        %v2133 = vadd.f32 %v2113, %v2129
        %v2134 = vadd.f32 %v2114, %v2129
        %v2135 = vadd.f32 %v2115, %v2129
        %v2136 = vadd.f32 %v2116, %v2129
        %v2137 = vadd.f32 %v2117, %v2129
        %v2138 = vadd.f32 %v2118, %v2129
        %v2139 = vadd.f32 %v2119, %v2129
        %v2140 = vadd.f32 %v2120, %v2129
        %v2141 = vadd.f32 %v2121, %v2129
        %v2142 = vadd.f32 %v2122, %v2129
        %v2143 = vadd.f32 %v2123, %v2129
        %v2144 = vadd.f32 %v2124, %v2129
        %v2145 = vadd.f32 %v2125, %v2129
        %v2146 = vadd.f32 %v2126, %v2129
        %v2147 = vpack.c.bf16 %v2132, %v2131
        %v2148 = vpack.c.bf16 %v2134, %v2133
        %v2149 = vpack.c.bf16 %v2136, %v2135
        %v2150 = vpack.c.bf16 %v2138, %v2137
        %v2151 = vpack.c.bf16 %v2140, %v2139
        %v2152 = vpack.c.bf16 %v2142, %v2141
        %v2153 = vpack.c.bf16 %v2144, %v2143
        %v2154 = vpack.c.bf16 %v2146, %v2145
        %v2155 = vld [vmem:[%s21] sm:$0xf]
        %v2156 = vld [vmem:[%s21 + $0x4] sm:$0xf]
        %v2157 = vld [vmem:[%s21 + $0x8] sm:$0xf]
        %v2158 = vld [vmem:[%s21 + $0xc] sm:$0xf]
        %v2159 = vld [vmem:[%s21 + $0x10] sm:$0xf]
        %v2160 = vld [vmem:[%s21 + $0x14] sm:$0xf]
        %v2161 = vld [vmem:[%s21 + $0x18] sm:$0xf]
        %v2162 = vld [vmem:[%s21 + $0x1c] sm:$0xf]
        %v2163 = vld [vmem:[%s23] sm:$0x1]
        %v2165 = vperm.slane %v2163, 0
        %v2175 = vunpack.c.l.b16 %v2155
        %v2176 = vunpack.c.l.b16 %v2156
        %v2177 = vunpack.c.l.b16 %v2157
        %v2178 = vunpack.c.l.b16 %v2158
        %v2179 = vunpack.c.l.b16 %v2159
        %v2180 = vunpack.c.l.b16 %v2160
        %v2181 = vunpack.c.l.b16 %v2161
        %v2182 = vunpack.c.l.b16 %v2162
        %v2183 = vpack.c.b16 %v2176, %v2175
        %v2184 = vpack.c.b16 %v2178, %v2177
        %v2185 = vpack.c.b16 %v2180, %v2179
        %v2186 = vpack.c.b16 %v2182, %v2181
        %v2192 = vsel %vm2017, %v2147, 0
        %v2195 = vsel %vm2017, %v2148, 0
        %v2198 = vsel %vm2017, %v2149, 0
        %v2201 = vsel %vm2017, %v2150, 0
        %v2204 = vsel %vm2017, %v2151, 0
        %v2207 = vsel %vm2017, %v2152, 0
        %v2210 = vsel %vm2017, %v2153, 0
        %v2213 = vsel %vm2017, %v2154, 0
        %2215 = vmatpush.bf16.msra.mxu0 0
        %2216 = vmatpush.bf16.msra.mxu0 0
        %2217 = vmatpush.bf16.msra.mxu0 0
        %2218 = vmatpush.bf16.msra.mxu0 0
        %2219 = vmatpush.bf16.msra.mxu0 %v2186
        %2220 = vmatpush.bf16.msra.mxu0 %v2185
        %2221 = vmatpush.bf16.msra.mxu0 %v2184
        %2222 = vmatpush.bf16.msra.mxu0 %v2183
        %2223 = vmatmul.bf16.gmra.mxu0 %v2192
        %v2224 = vpop.f32.mrf.mxu0
        %v2225 = vadd.f32 %v2165, %v2224
        %v2226 = vpop.f32.mrf.mxu0
        %v2227 = vadd.f32 %v2165, %v2226
        %2228 = vmatmul.bf16.gmra.mxu0 %v2195
        %v2229 = vpop.f32.mrf.mxu0
        %v2230 = vadd.f32 %v2165, %v2229
        %v2231 = vpop.f32.mrf.mxu0
        %v2232 = vadd.f32 %v2165, %v2231
        %2233 = vmatmul.bf16.gmra.mxu0 %v2198
        %v2234 = vpop.f32.mrf.mxu0
        %v2235 = vadd.f32 %v2165, %v2234
        %v2236 = vpop.f32.mrf.mxu0
        %v2237 = vadd.f32 %v2165, %v2236
        %2238 = vmatmul.bf16.gmra.mxu0 %v2201
        %v2239 = vpop.f32.mrf.mxu0
        %v2240 = vadd.f32 %v2165, %v2239
        %v2241 = vpop.f32.mrf.mxu0
        %v2242 = vadd.f32 %v2165, %v2241
        %2243 = vmatmul.bf16.gmra.mxu0 %v2204
        %v2244 = vpop.f32.mrf.mxu0
        %v2245 = vadd.f32 %v2165, %v2244
        %v2246 = vpop.f32.mrf.mxu0
        %v2247 = vadd.f32 %v2165, %v2246
        %2248 = vmatmul.bf16.gmra.mxu0 %v2207
        %v2249 = vpop.f32.mrf.mxu0
        %v2250 = vadd.f32 %v2165, %v2249
        %v2251 = vpop.f32.mrf.mxu0
        %v2252 = vadd.f32 %v2165, %v2251
        %2253 = vmatmul.bf16.gmra.mxu0 %v2210
        %v2254 = vpop.f32.mrf.mxu0
        %v2255 = vadd.f32 %v2165, %v2254
        %v2256 = vpop.f32.mrf.mxu0
        %v2257 = vadd.f32 %v2165, %v2256
        %2258 = vmatmul.bf16.gmra.mxu0 %v2213
        %v2259 = vpop.f32.mrf.mxu0
        %v2260 = vadd.f32 %v2165, %v2259
        %v2261 = vpop.f32.mrf.mxu0
        %v2262 = vadd.f32 %v2165, %v2261
        %2263 = vdwg.mxu0
        %v2264 = vmax.f32 %v2225, 0.0
        %v2265 = vmax.f32 %v2227, 0.0
        %v2266 = vmax.f32 %v2230, 0.0
        %v2267 = vmax.f32 %v2232, 0.0
        %v2268 = vmax.f32 %v2235, 0.0
        %v2269 = vmax.f32 %v2237, 0.0
        %v2270 = vmax.f32 %v2240, 0.0
        %v2271 = vmax.f32 %v2242, 0.0
        %v2272 = vmax.f32 %v2245, 0.0
        %v2273 = vmax.f32 %v2247, 0.0
        %v2274 = vmax.f32 %v2250, 0.0
        %v2275 = vmax.f32 %v2252, 0.0
        %v2276 = vmax.f32 %v2255, 0.0
        %v2277 = vmax.f32 %v2257, 0.0
        %v2278 = vmax.f32 %v2260, 0.0
        %v2279 = vmax.f32 %v2262, 0.0
        %v2280 = vld [vmem:[%s25] sm:$0x1]
        %v2282 = vperm.slane %v2280, 0
        %v2284 = vmul.f32 %v2264, %v2282
        %v2285 = vmul.f32 %v2265, %v2282
        %v2286 = vmul.f32 %v2266, %v2282
        %v2287 = vmul.f32 %v2267, %v2282
        %v2288 = vmul.f32 %v2268, %v2282
        %v2289 = vmul.f32 %v2269, %v2282
        %v2290 = vmul.f32 %v2270, %v2282
        %v2291 = vmul.f32 %v2271, %v2282
        %v2292 = vmul.f32 %v2272, %v2282
        %v2293 = vmul.f32 %v2273, %v2282
        %v2294 = vmul.f32 %v2274, %v2282
        %v2295 = vmul.f32 %v2275, %v2282
        %v2296 = vmul.f32 %v2276, %v2282
        %v2297 = vmul.f32 %v2277, %v2282
        %v2298 = vmul.f32 %v2278, %v2282
        %v2299 = vmul.f32 %v2279, %v2282
        %v2300 = vld [vmem:[%s27] sm:$0x1]
        %v2302 = vperm.slane %v2300, 0
        %v2304 = vadd.f32 %v2284, %v2302
        %v2305 = vadd.f32 %v2285, %v2302
        %v2306 = vadd.f32 %v2286, %v2302
        %v2307 = vadd.f32 %v2287, %v2302
        %v2308 = vadd.f32 %v2288, %v2302
        %v2309 = vadd.f32 %v2289, %v2302
        %v2310 = vadd.f32 %v2290, %v2302
        %v2311 = vadd.f32 %v2291, %v2302
        %v2312 = vadd.f32 %v2292, %v2302
        %v2313 = vadd.f32 %v2293, %v2302
        %v2314 = vadd.f32 %v2294, %v2302
        %v2315 = vadd.f32 %v2295, %v2302
        %v2316 = vadd.f32 %v2296, %v2302
        %v2317 = vadd.f32 %v2297, %v2302
        %v2318 = vadd.f32 %v2298, %v2302
        %v2319 = vadd.f32 %v2299, %v2302
        %v2320 = vsel %vm2017, %v2304, -inf
        %v2321 = vsel %vm2017, %v2308, -inf
        %v2322 = vmax.f32 %v2320, %v2321
        %v2323 = vsel %vm2017, %v2312, -inf
        %v2324 = vmax.f32 %v2322, %v2323
        %v2325 = vsel %vm2017, %v2316, -inf
        %v2326 = vmax.f32 %v2324, %v2325
        %v2327 = vsel %vm2017, %v2305, -inf
        %v2328 = vsel %vm2017, %v2309, -inf
        %v2329 = vmax.f32 %v2327, %v2328
        %v2330 = vsel %vm2017, %v2313, -inf
        %v2331 = vmax.f32 %v2329, %v2330
        %v2332 = vsel %vm2017, %v2317, -inf
        %v2333 = vmax.f32 %v2331, %v2332
        %v2334 = vsel %vm2017, %v2306, -inf
        %v2335 = vsel %vm2017, %v2310, -inf
        %v2336 = vmax.f32 %v2334, %v2335
        %v2337 = vsel %vm2017, %v2314, -inf
        %v2338 = vmax.f32 %v2336, %v2337
        %v2339 = vsel %vm2017, %v2318, -inf
        %v2340 = vmax.f32 %v2338, %v2339
        %v2341 = vsel %vm2017, %v2307, -inf
        %v2342 = vsel %vm2017, %v2311, -inf
        %v2343 = vmax.f32 %v2341, %v2342
        %v2344 = vsel %vm2017, %v2315, -inf
        %v2345 = vmax.f32 %v2343, %v2344
        %v2346 = vsel %vm2017, %v2319, -inf
        %v2347 = vmax.f32 %v2345, %v2346
        %v2348 = vpack.c.bf16 %v2333, %v2326
        %v2349 = vpack.c.bf16 %v2347, %v2340
        %v2350 = vmul.f32 %v2326, %v2326
        %v2351 = vmul.f32 %v2333, %v2333
        %v2352 = vmul.f32 %v2340, %v2340
        %v2353 = vmul.f32 %v2347, %v2347
        %v2354 = vsel %vm2017, %v2350, 0.0
        %2355 = vadd.xlane.f32.xlu0 %v2354
        %v2356 = vpop.xlane.xlu0 %2355
        %v2357 = vsel %vm2017, %v2351, 0.0
        %2358 = vadd.xlane.f32.xlu0 %v2357
        %v2359 = vpop.xlane.xlu0 %2358
        %v2360 = vsel %vm2017, %v2352, 0.0
        %2361 = vadd.xlane.f32.xlu0 %v2360
        %v2362 = vpop.xlane.xlu0 %2361
        %v2363 = vsel %vm2017, %v2353, 0.0
        %2364 = vadd.xlane.f32.xlu0 %v2363
        %v2365 = vpop.xlane.xlu0 %2364
        %v2367 = vsel %vm2017, %v2348, 0
        %v2370 = vsel %vm2017, %v2349, 0
        %2372 = vmatpush.bf16.xpose.msra.mxu0 0
        %2373 = vmatpush.bf16.xpose.msra.mxu0 0
        %2374 = vmatpush.bf16.xpose.msra.mxu0 0
        %2375 = vmatpush.bf16.xpose.msra.mxu0 0
        %2376 = vmatpush.bf16.xpose.msra.mxu0 0
        %2377 = vmatpush.bf16.xpose.msra.mxu0 0
        %2378 = vmatpush.bf16.xpose.msra.mxu0 %v2370
        %2379 = vmatpush.bf16.xpose.msra.mxu0 %v2367
        %2380 = vmatmul.bf16.gmra.mxu0 %v2367
        %v2381 = vpop.f32.mrf.mxu0
        %v2382 = vadd.f32 0.0, %v2381
        %v2383 = vpop.f32.mrf.mxu0
        %v2384 = vadd.f32 0.0, %v2383
        %2385 = vmatmul.bf16.gmra.mxu0 %v2370
        %v2386 = vpop.f32.mrf.mxu0
        %v2387 = vadd.f32 0.0, %v2386
        %v2388 = vpop.f32.mrf.mxu0
        %v2389 = vadd.f32 0.0, %v2388
        %2390 = vdwg.mxu0
        %2391 = vxpose.xlu0.b32.start [1/16] %v2356, 128
        %2392 = vxpose.xlu0.b32.cont [2/16] %v2359, 128
        %2393 = vxpose.xlu0.b32.cont [3/16] %v2362, 128
        %2394 = vxpose.xlu0.b32.cont [4/16] %v2365, 128
        %2395 = vxpose.xlu0.b32.cont [5/16] 0.0, 128
        %2396 = vxpose.xlu0.b32.cont [6/16] 0.0, 128
        %2397 = vxpose.xlu0.b32.cont [7/16] 0.0, 128
        %2398 = vxpose.xlu0.b32.cont [8/16] 0.0, 128
        %2399 = vxpose.xlu0.b32.cont [9/16] 0.0, 128
        %2400 = vxpose.xlu0.b32.cont [10/16] 0.0, 128
        %2401 = vxpose.xlu0.b32.cont [11/16] 0.0, 128
        %2402 = vxpose.xlu0.b32.cont [12/16] 0.0, 128
        %2403 = vxpose.xlu0.b32.cont [13/16] 0.0, 128
        %2404 = vxpose.xlu0.b32.cont [14/16] 0.0, 128
        %2405 = vxpose.xlu0.b32.cont [15/16] 0.0, 128
        %2406 = vxpose.xlu0.b32.end [16/16] 0.0, 128
        %v2407 = vpop.trf.xlu0
        %v2408 = vpop.trf.xlu0
        %v2409 = vpop.trf.xlu0
        %v2410 = vpop.trf.xlu0
        %v2411 = vpop.trf.xlu0
        %v2412 = vpop.trf.xlu0
        %v2413 = vpop.trf.xlu0
        %v2414 = vpop.trf.xlu0
        %v2415 = vpop.trf.xlu0
        %v2416 = vpop.trf.xlu0
        %v2417 = vpop.trf.xlu0
        %v2418 = vpop.trf.xlu0
        %v2419 = vpop.trf.xlu0
        %v2420 = vpop.trf.xlu0
        %v2421 = vpop.trf.xlu0
        %v2422 = vpop.trf.xlu0
        %v2423 = vperm.slane %v2407, 0
        %v2424 = vadd.f32 %v2356, %v2423
        %v2425 = vadd.f32 %v2359, %v2423
        %v2426 = vadd.f32 %v2362, %v2423
        %v2427 = vadd.f32 %v2365, %v2423
        %v2428 = vmul.f32 %v2382, 2.0
        %v2429 = vmul.f32 %v2384, 2.0
        %v2430 = vmul.f32 %v2387, 2.0
        %v2431 = vmul.f32 %v2389, 2.0
        %v2432 = vsub.f32 %v2424, %v2428
        %v2433 = vsub.f32 %v2425, %v2429
        %v2434 = vsub.f32 %v2426, %v2430
        %v2435 = vsub.f32 %v2427, %v2431
        %v2436 = vsub.f32 0.0, %v2432
        %v2437 = vsub.f32 0.0, %v2433
        %v2438 = vsub.f32 0.0, %v2434
        %v2439 = vsub.f32 0.0, %v2435
        %v2440 = vsel %vm1334, 1e+30, %v2436
        %v2441 = vsel %vm1335, 1e+30, %v2437
        %v2442 = vsel %vm1336, 1e+30, %v2438
        %v2443 = vsel %vm1337, 1e+30, %v2439
        %v2444 = vsel %vm1342, %v2440, -inf
        %2445 = vmax.xlane.f32.xlu0 %v2444
        %v2446 = vpop.xlane.xlu0 %2445
        %v2447 = vsel %vm1342, %v2441, -inf
        %2448 = vmax.xlane.f32.xlu0 %v2447
        %v2449 = vpop.xlane.xlu0 %2448
        %v2450 = vsel %vm1342, %v2442, -inf
        %2451 = vmax.xlane.f32.xlu0 %v2450
        %v2452 = vpop.xlane.xlu0 %2451
        %v2453 = vsel %vm1342, %v2443, -inf
        %2454 = vmax.xlane.f32.xlu0 %v2453
        %v2455 = vpop.xlane.xlu0 %2454
        %vm2456 = vcmp.ge.f32.partialorder %v2440, %v2446
        %vm2457 = vcmp.ge.f32.partialorder %v2441, %v2449
        %vm2458 = vcmp.ge.f32.partialorder %v2442, %v2452
        %vm2459 = vcmp.ge.f32.partialorder %v2443, %v2455
        %v2460 = vsel %vm2456, %v1118, 32
        %v2461 = vsel %vm2457, %v1118, 32
        %v2462 = vsel %vm2458, %v1118, 32
        %v2463 = vsel %vm2459, %v1118, 32
        %v2464 = vsel %vm1342, %v2460, 2147483647
        %v2465 = vand.u32 %v2464, 65535
        %v2466 = vshra.s32 %v2464, 16
        %v2467 = vcvt.s32.f32 %v2465
        %v2468 = vcvt.s32.f32 %v2466
        %2469 = vmin.xlane.f32.xlu0 %v2468
        %v2470 = vpop.xlane.xlu0 %2469
        %vm2471 = vcmp.eq.f32.partialorder %v2468, %v2470
        %v2472 = vsel %vm2471, %v2467, inf
        %2473 = vmin.xlane.f32.xlu0 %v2472
        %v2474 = vpop.xlane.xlu0 %2473
        %v2475 = vcvt.f32.s32 %v2474
        %v2476 = vcvt.f32.s32 %v2470
        %v2477 = vshll.u32 %v2476, 16
        %v2478 = vadd.s32 %v2477, %v2475
        %v2479 = vsel %vm1342, %v2461, 2147483647
        %v2480 = vand.u32 %v2479, 65535
        %v2481 = vshra.s32 %v2479, 16
        %v2482 = vcvt.s32.f32 %v2480
        %v2483 = vcvt.s32.f32 %v2481
        %2484 = vmin.xlane.f32.xlu0 %v2483
        %v2485 = vpop.xlane.xlu0 %2484
        %vm2486 = vcmp.eq.f32.partialorder %v2483, %v2485
        %v2487 = vsel %vm2486, %v2482, inf
        %2488 = vmin.xlane.f32.xlu0 %v2487
        %v2489 = vpop.xlane.xlu0 %2488
        %v2490 = vcvt.f32.s32 %v2489
        %v2491 = vcvt.f32.s32 %v2485
        %v2492 = vshll.u32 %v2491, 16
        %v2493 = vadd.s32 %v2492, %v2490
        %v2494 = vsel %vm1342, %v2462, 2147483647
        %v2495 = vand.u32 %v2494, 65535
        %v2496 = vshra.s32 %v2494, 16
        %v2497 = vcvt.s32.f32 %v2495
        %v2498 = vcvt.s32.f32 %v2496
        %2499 = vmin.xlane.f32.xlu0 %v2498
        %v2500 = vpop.xlane.xlu0 %2499
        %vm2501 = vcmp.eq.f32.partialorder %v2498, %v2500
        %v2502 = vsel %vm2501, %v2497, inf
        %2503 = vmin.xlane.f32.xlu0 %v2502
        %v2504 = vpop.xlane.xlu0 %2503
        %v2505 = vcvt.f32.s32 %v2504
        %v2506 = vcvt.f32.s32 %v2500
        %v2507 = vshll.u32 %v2506, 16
        %v2508 = vadd.s32 %v2507, %v2505
        %v2509 = vsel %vm1342, %v2463, 2147483647
        %v2510 = vand.u32 %v2509, 65535
        %v2511 = vshra.s32 %v2509, 16
        %v2512 = vcvt.s32.f32 %v2510
        %v2513 = vcvt.s32.f32 %v2511
        %2514 = vmin.xlane.f32.xlu0 %v2513
        %v2515 = vpop.xlane.xlu0 %2514
        %vm2516 = vcmp.eq.f32.partialorder %v2513, %v2515
        %v2517 = vsel %vm2516, %v2512, inf
        %2518 = vmin.xlane.f32.xlu0 %v2517
        %v2519 = vpop.xlane.xlu0 %2518
        %v2520 = vcvt.f32.s32 %v2519
        %v2521 = vcvt.f32.s32 %v2515
        %v2522 = vshll.u32 %v2521, 16
        %v2523 = vadd.s32 %v2522, %v2520
        %vm2524 = vcmp.eq.s32.totalorder %v1118, %v2478
        %vm2525 = vcmp.eq.s32.totalorder %v1118, %v2493
        %vm2526 = vcmp.eq.s32.totalorder %v1118, %v2508
        %vm2527 = vcmp.eq.s32.totalorder %v1118, %v2523
        %v2528 = vsel %vm2524, 1, 0
        %v2529 = vsel %vm2525, 1, 0
        %v2530 = vsel %vm2526, 1, 0
        %v2531 = vsel %vm2527, 1, 0
        %v2532 = vcvt.s32.f32 %v2528
        %v2533 = vcvt.s32.f32 %v2529
        %v2534 = vcvt.s32.f32 %v2530
        %v2535 = vcvt.s32.f32 %v2531
        %v2536 = vpack.c.bf16 %v2532, %v2532
        %v2537 = vpack.c.bf16 %v2533, %v2533
        %v2538 = vpack.c.bf16 %v2534, %v2534
        %v2539 = vpack.c.bf16 %v2535, %v2535
        %v2540 = vsel %vm2524, -1e+30, %v2440
        %v2541 = vsel %vm2525, -1e+30, %v2441
        %v2542 = vsel %vm2526, -1e+30, %v2442
        %v2543 = vsel %vm2527, -1e+30, %v2443
        %v2544 = vsel %vm1342, %v2540, -inf
        %2545 = vmax.xlane.f32.xlu0 %v2544
        %v2546 = vpop.xlane.xlu0 %2545
        %v2547 = vsel %vm1342, %v2541, -inf
        %2548 = vmax.xlane.f32.xlu0 %v2547
        %v2549 = vpop.xlane.xlu0 %2548
        %v2550 = vsel %vm1342, %v2542, -inf
        %2551 = vmax.xlane.f32.xlu0 %v2550
        %v2552 = vpop.xlane.xlu0 %2551
        %v2553 = vsel %vm1342, %v2543, -inf
        %2554 = vmax.xlane.f32.xlu0 %v2553
        %v2555 = vpop.xlane.xlu0 %2554
        %vm2556 = vcmp.ge.f32.partialorder %v2540, %v2546
        %vm2557 = vcmp.ge.f32.partialorder %v2541, %v2549
        %vm2558 = vcmp.ge.f32.partialorder %v2542, %v2552
        %vm2559 = vcmp.ge.f32.partialorder %v2543, %v2555
        %v2560 = vsel %vm2556, %v1118, 32
        %v2561 = vsel %vm2557, %v1118, 32
        %v2562 = vsel %vm2558, %v1118, 32
        %v2563 = vsel %vm2559, %v1118, 32
        %v2564 = vsel %vm1342, %v2560, 2147483647
        %v2565 = vand.u32 %v2564, 65535
        %v2566 = vshra.s32 %v2564, 16
        %v2567 = vcvt.s32.f32 %v2565
        %v2568 = vcvt.s32.f32 %v2566
        %2569 = vmin.xlane.f32.xlu0 %v2568
        %v2570 = vpop.xlane.xlu0 %2569
        %vm2571 = vcmp.eq.f32.partialorder %v2568, %v2570
        %v2572 = vsel %vm2571, %v2567, inf
        %2573 = vmin.xlane.f32.xlu0 %v2572
        %v2574 = vpop.xlane.xlu0 %2573
        %v2575 = vcvt.f32.s32 %v2574
        %v2576 = vcvt.f32.s32 %v2570
        %v2577 = vshll.u32 %v2576, 16
        %v2578 = vadd.s32 %v2577, %v2575
        %v2579 = vsel %vm1342, %v2561, 2147483647
        %v2580 = vand.u32 %v2579, 65535
        %v2581 = vshra.s32 %v2579, 16
        %v2582 = vcvt.s32.f32 %v2580
        %v2583 = vcvt.s32.f32 %v2581
        %2584 = vmin.xlane.f32.xlu0 %v2583
        %v2585 = vpop.xlane.xlu0 %2584
        %vm2586 = vcmp.eq.f32.partialorder %v2583, %v2585
        %v2587 = vsel %vm2586, %v2582, inf
        %2588 = vmin.xlane.f32.xlu0 %v2587
        %v2589 = vpop.xlane.xlu0 %2588
        %v2590 = vcvt.f32.s32 %v2589
        %v2591 = vcvt.f32.s32 %v2585
        %v2592 = vshll.u32 %v2591, 16
        %v2593 = vadd.s32 %v2592, %v2590
        %v2594 = vsel %vm1342, %v2562, 2147483647
        %v2595 = vand.u32 %v2594, 65535
        %v2596 = vshra.s32 %v2594, 16
        %v2597 = vcvt.s32.f32 %v2595
        %v2598 = vcvt.s32.f32 %v2596
        %2599 = vmin.xlane.f32.xlu0 %v2598
        %v2600 = vpop.xlane.xlu0 %2599
        %vm2601 = vcmp.eq.f32.partialorder %v2598, %v2600
        %v2602 = vsel %vm2601, %v2597, inf
        %2603 = vmin.xlane.f32.xlu0 %v2602
        %v2604 = vpop.xlane.xlu0 %2603
        %v2605 = vcvt.f32.s32 %v2604
        %v2606 = vcvt.f32.s32 %v2600
        %v2607 = vshll.u32 %v2606, 16
        %v2608 = vadd.s32 %v2607, %v2605
        %v2609 = vsel %vm1342, %v2563, 2147483647
        %v2610 = vand.u32 %v2609, 65535
        %v2611 = vshra.s32 %v2609, 16
        %v2612 = vcvt.s32.f32 %v2610
        %v2613 = vcvt.s32.f32 %v2611
        %2614 = vmin.xlane.f32.xlu0 %v2613
        %v2615 = vpop.xlane.xlu0 %2614
        %vm2616 = vcmp.eq.f32.partialorder %v2613, %v2615
        %v2617 = vsel %vm2616, %v2612, inf
        %2618 = vmin.xlane.f32.xlu0 %v2617
        %v2619 = vpop.xlane.xlu0 %2618
        %v2620 = vcvt.f32.s32 %v2619
        %v2621 = vcvt.f32.s32 %v2615
        %v2622 = vshll.u32 %v2621, 16
        %v2623 = vadd.s32 %v2622, %v2620
        %vm2624 = vcmp.eq.s32.totalorder %v1118, %v2578
        %vm2625 = vcmp.eq.s32.totalorder %v1118, %v2593
        %vm2626 = vcmp.eq.s32.totalorder %v1118, %v2608
        %vm2627 = vcmp.eq.s32.totalorder %v1118, %v2623
        %v2628 = vsel %vm2624, 1, 0
        %v2629 = vsel %vm2625, 1, 0
        %v2630 = vsel %vm2626, 1, 0
        %v2631 = vsel %vm2627, 1, 0
        %v2632 = vcvt.s32.f32 %v2628
        %v2633 = vcvt.s32.f32 %v2629
        %v2634 = vcvt.s32.f32 %v2630
        %v2635 = vcvt.s32.f32 %v2631
        %v2636 = vpack.c.bf16 %v2632, %v2632
        %v2637 = vpack.c.bf16 %v2633, %v2633
        %v2638 = vpack.c.bf16 %v2634, %v2634
        %v2639 = vpack.c.bf16 %v2635, %v2635
        %v2640 = vsel %vm2624, -1e+30, %v2540
        %v2641 = vsel %vm2625, -1e+30, %v2541
        %v2642 = vsel %vm2626, -1e+30, %v2542
        %v2643 = vsel %vm2627, -1e+30, %v2543
        %v2644 = vsel %vm1342, %v2640, -inf
        %2645 = vmax.xlane.f32.xlu0 %v2644
        %v2646 = vpop.xlane.xlu0 %2645
        %v2647 = vsel %vm1342, %v2641, -inf
        %2648 = vmax.xlane.f32.xlu0 %v2647
        %v2649 = vpop.xlane.xlu0 %2648
        %v2650 = vsel %vm1342, %v2642, -inf
        %2651 = vmax.xlane.f32.xlu0 %v2650
        %v2652 = vpop.xlane.xlu0 %2651
        %v2653 = vsel %vm1342, %v2643, -inf
        %2654 = vmax.xlane.f32.xlu0 %v2653
        %v2655 = vpop.xlane.xlu0 %2654
        %vm2656 = vcmp.ge.f32.partialorder %v2640, %v2646
        %vm2657 = vcmp.ge.f32.partialorder %v2641, %v2649
        %vm2658 = vcmp.ge.f32.partialorder %v2642, %v2652
        %vm2659 = vcmp.ge.f32.partialorder %v2643, %v2655
        %v2660 = vsel %vm2656, %v1118, 32
        %v2661 = vsel %vm2657, %v1118, 32
        %v2662 = vsel %vm2658, %v1118, 32
        %v2663 = vsel %vm2659, %v1118, 32
        %v2664 = vsel %vm1342, %v2660, 2147483647
        %v2665 = vand.u32 %v2664, 65535
        %v2666 = vshra.s32 %v2664, 16
        %v2667 = vcvt.s32.f32 %v2665
        %v2668 = vcvt.s32.f32 %v2666
        %2669 = vmin.xlane.f32.xlu0 %v2668
        %v2670 = vpop.xlane.xlu0 %2669
        %vm2671 = vcmp.eq.f32.partialorder %v2668, %v2670
        %v2672 = vsel %vm2671, %v2667, inf
        %2673 = vmin.xlane.f32.xlu0 %v2672
        %v2674 = vpop.xlane.xlu0 %2673
        %v2675 = vcvt.f32.s32 %v2674
        %v2676 = vcvt.f32.s32 %v2670
        %v2677 = vshll.u32 %v2676, 16
        %v2678 = vadd.s32 %v2677, %v2675
        %v2679 = vsel %vm1342, %v2661, 2147483647
        %v2680 = vand.u32 %v2679, 65535
        %v2681 = vshra.s32 %v2679, 16
        %v2682 = vcvt.s32.f32 %v2680
        %v2683 = vcvt.s32.f32 %v2681
        %2684 = vmin.xlane.f32.xlu0 %v2683
        %v2685 = vpop.xlane.xlu0 %2684
        %vm2686 = vcmp.eq.f32.partialorder %v2683, %v2685
        %v2687 = vsel %vm2686, %v2682, inf
        %2688 = vmin.xlane.f32.xlu0 %v2687
        %v2689 = vpop.xlane.xlu0 %2688
        %v2690 = vcvt.f32.s32 %v2689
        %v2691 = vcvt.f32.s32 %v2685
        %v2692 = vshll.u32 %v2691, 16
        %v2693 = vadd.s32 %v2692, %v2690
        %v2694 = vsel %vm1342, %v2662, 2147483647
        %v2695 = vand.u32 %v2694, 65535
        %v2696 = vshra.s32 %v2694, 16
        %v2697 = vcvt.s32.f32 %v2695
        %v2698 = vcvt.s32.f32 %v2696
        %2699 = vmin.xlane.f32.xlu0 %v2698
        %v2700 = vpop.xlane.xlu0 %2699
        %vm2701 = vcmp.eq.f32.partialorder %v2698, %v2700
        %v2702 = vsel %vm2701, %v2697, inf
        %2703 = vmin.xlane.f32.xlu0 %v2702
        %v2704 = vpop.xlane.xlu0 %2703
        %v2705 = vcvt.f32.s32 %v2704
        %v2706 = vcvt.f32.s32 %v2700
        %v2707 = vshll.u32 %v2706, 16
        %v2708 = vadd.s32 %v2707, %v2705
        %v2709 = vsel %vm1342, %v2663, 2147483647
        %v2710 = vand.u32 %v2709, 65535
        %v2711 = vshra.s32 %v2709, 16
        %v2712 = vcvt.s32.f32 %v2710
        %v2713 = vcvt.s32.f32 %v2711
        %2714 = vmin.xlane.f32.xlu0 %v2713
        %v2715 = vpop.xlane.xlu0 %2714
        %vm2716 = vcmp.eq.f32.partialorder %v2713, %v2715
        %v2717 = vsel %vm2716, %v2712, inf
        %2718 = vmin.xlane.f32.xlu0 %v2717
        %v2719 = vpop.xlane.xlu0 %2718
        %v2720 = vcvt.f32.s32 %v2719
        %v2721 = vcvt.f32.s32 %v2715
        %v2722 = vshll.u32 %v2721, 16
        %v2723 = vadd.s32 %v2722, %v2720
        %vm2724 = vcmp.eq.s32.totalorder %v1118, %v2678
        %vm2725 = vcmp.eq.s32.totalorder %v1118, %v2693
        %vm2726 = vcmp.eq.s32.totalorder %v1118, %v2708
        %vm2727 = vcmp.eq.s32.totalorder %v1118, %v2723
        %v2728 = vsel %vm2724, 1, 0
        %v2729 = vsel %vm2725, 1, 0
        %v2730 = vsel %vm2726, 1, 0
        %v2731 = vsel %vm2727, 1, 0
        %v2732 = vcvt.s32.f32 %v2728
        %v2733 = vcvt.s32.f32 %v2729
        %v2734 = vcvt.s32.f32 %v2730
        %v2735 = vcvt.s32.f32 %v2731
        %v2736 = vpack.c.bf16 %v2732, %v2732
        %v2737 = vpack.c.bf16 %v2733, %v2733
        %v2738 = vpack.c.bf16 %v2734, %v2734
        %v2739 = vpack.c.bf16 %v2735, %v2735
        %v2740 = vsel %vm2724, -1e+30, %v2640
        %v2741 = vsel %vm2725, -1e+30, %v2641
        %v2742 = vsel %vm2726, -1e+30, %v2642
        %v2743 = vsel %vm2727, -1e+30, %v2643
        %v2744 = vsel %vm1342, %v2740, -inf
        %2745 = vmax.xlane.f32.xlu0 %v2744
        %v2746 = vpop.xlane.xlu0 %2745
        %v2747 = vsel %vm1342, %v2741, -inf
        %2748 = vmax.xlane.f32.xlu0 %v2747
        %v2749 = vpop.xlane.xlu0 %2748
        %v2750 = vsel %vm1342, %v2742, -inf
        %2751 = vmax.xlane.f32.xlu0 %v2750
        %v2752 = vpop.xlane.xlu0 %2751
        %v2753 = vsel %vm1342, %v2743, -inf
        %2754 = vmax.xlane.f32.xlu0 %v2753
        %v2755 = vpop.xlane.xlu0 %2754
        %vm2756 = vcmp.ge.f32.partialorder %v2740, %v2746
        %vm2757 = vcmp.ge.f32.partialorder %v2741, %v2749
        %vm2758 = vcmp.ge.f32.partialorder %v2742, %v2752
        %vm2759 = vcmp.ge.f32.partialorder %v2743, %v2755
        %v2760 = vsel %vm2756, %v1118, 32
        %v2761 = vsel %vm2757, %v1118, 32
        %v2762 = vsel %vm2758, %v1118, 32
        %v2763 = vsel %vm2759, %v1118, 32
        %v2764 = vsel %vm1342, %v2760, 2147483647
        %v2765 = vand.u32 %v2764, 65535
        %v2766 = vshra.s32 %v2764, 16
        %v2767 = vcvt.s32.f32 %v2765
        %v2768 = vcvt.s32.f32 %v2766
        %2769 = vmin.xlane.f32.xlu0 %v2768
        %v2770 = vpop.xlane.xlu0 %2769
        %vm2771 = vcmp.eq.f32.partialorder %v2768, %v2770
        %v2772 = vsel %vm2771, %v2767, inf
        %2773 = vmin.xlane.f32.xlu0 %v2772
        %v2774 = vpop.xlane.xlu0 %2773
        %v2775 = vcvt.f32.s32 %v2774
        %v2776 = vcvt.f32.s32 %v2770
        %v2777 = vshll.u32 %v2776, 16
        %v2778 = vadd.s32 %v2777, %v2775
        %v2779 = vsel %vm1342, %v2761, 2147483647
        %v2780 = vand.u32 %v2779, 65535
        %v2781 = vshra.s32 %v2779, 16
        %v2782 = vcvt.s32.f32 %v2780
        %v2783 = vcvt.s32.f32 %v2781
        %2784 = vmin.xlane.f32.xlu0 %v2783
        %v2785 = vpop.xlane.xlu0 %2784
        %vm2786 = vcmp.eq.f32.partialorder %v2783, %v2785
        %v2787 = vsel %vm2786, %v2782, inf
        %2788 = vmin.xlane.f32.xlu0 %v2787
        %v2789 = vpop.xlane.xlu0 %2788
        %v2790 = vcvt.f32.s32 %v2789
        %v2791 = vcvt.f32.s32 %v2785
        %v2792 = vshll.u32 %v2791, 16
        %v2793 = vadd.s32 %v2792, %v2790
        %v2794 = vsel %vm1342, %v2762, 2147483647
        %v2795 = vand.u32 %v2794, 65535
        %v2796 = vshra.s32 %v2794, 16
        %v2797 = vcvt.s32.f32 %v2795
        %v2798 = vcvt.s32.f32 %v2796
        %2799 = vmin.xlane.f32.xlu0 %v2798
        %v2800 = vpop.xlane.xlu0 %2799
        %vm2801 = vcmp.eq.f32.partialorder %v2798, %v2800
        %v2802 = vsel %vm2801, %v2797, inf
        %2803 = vmin.xlane.f32.xlu0 %v2802
        %v2804 = vpop.xlane.xlu0 %2803
        %v2805 = vcvt.f32.s32 %v2804
        %v2806 = vcvt.f32.s32 %v2800
        %v2807 = vshll.u32 %v2806, 16
        %v2808 = vadd.s32 %v2807, %v2805
        %v2809 = vsel %vm1342, %v2763, 2147483647
        %v2810 = vand.u32 %v2809, 65535
        %v2811 = vshra.s32 %v2809, 16
        %v2812 = vcvt.s32.f32 %v2810
        %v2813 = vcvt.s32.f32 %v2811
        %2814 = vmin.xlane.f32.xlu0 %v2813
        %v2815 = vpop.xlane.xlu0 %2814
        %vm2816 = vcmp.eq.f32.partialorder %v2813, %v2815
        %v2817 = vsel %vm2816, %v2812, inf
        %2818 = vmin.xlane.f32.xlu0 %v2817
        %v2819 = vpop.xlane.xlu0 %2818
        %v2820 = vcvt.f32.s32 %v2819
        %v2821 = vcvt.f32.s32 %v2815
        %v2822 = vshll.u32 %v2821, 16
        %v2823 = vadd.s32 %v2822, %v2820
        %vm2824 = vcmp.eq.s32.totalorder %v1118, %v2778
        %vm2825 = vcmp.eq.s32.totalorder %v1118, %v2793
        %vm2826 = vcmp.eq.s32.totalorder %v1118, %v2808
        %vm2827 = vcmp.eq.s32.totalorder %v1118, %v2823
        %v2828 = vsel %vm2824, 1, 0
        %v2829 = vsel %vm2825, 1, 0
        %v2830 = vsel %vm2826, 1, 0
        %v2831 = vsel %vm2827, 1, 0
        %v2832 = vcvt.s32.f32 %v2828
        %v2833 = vcvt.s32.f32 %v2829
        %v2834 = vcvt.s32.f32 %v2830
        %v2835 = vcvt.s32.f32 %v2831
        %v2836 = vpack.c.bf16 %v2832, %v2832
        %v2837 = vpack.c.bf16 %v2833, %v2833
        %v2838 = vpack.c.bf16 %v2834, %v2834
        %v2839 = vpack.c.bf16 %v2835, %v2835
        %v2844 = vunpack.c.l.b16 %v2536
        %v2845 = vunpack.c.l.b16 %v2537
        %v2846 = vunpack.c.l.b16 %v2538
        %v2847 = vunpack.c.l.b16 %v2539
        %v2848 = vpack.c.b16 %v2845, %v2844
        %v2849 = vpack.c.b16 %v2847, %v2846
        %v2854 = vunpack.c.l.b16 %v2636
        %v2855 = vunpack.c.l.b16 %v2637
        %v2856 = vunpack.c.l.b16 %v2638
        %v2857 = vunpack.c.l.b16 %v2639
        %v2858 = vpack.c.b16 %v2855, %v2854
        %v2859 = vpack.c.b16 %v2857, %v2856
        %v2864 = vunpack.c.l.b16 %v2736
        %v2865 = vunpack.c.l.b16 %v2737
        %v2866 = vunpack.c.l.b16 %v2738
        %v2867 = vunpack.c.l.b16 %v2739
        %v2868 = vpack.c.b16 %v2865, %v2864
        %v2869 = vpack.c.b16 %v2867, %v2866
        %v2874 = vunpack.c.l.b16 %v2836
        %v2875 = vunpack.c.l.b16 %v2837
        %v2876 = vunpack.c.l.b16 %v2838
        %v2877 = vunpack.c.l.b16 %v2839
        %v2878 = vpack.c.b16 %v2875, %v2874
        %v2879 = vpack.c.b16 %v2877, %v2876
        %v2880 = vld [vmem:[%s29] sm:$0xf]
        %v2881 = vld [vmem:[%s29 + $0x4] sm:$0xf]
        %v2882 = vld [vmem:[%s29 + $0x8] sm:$0xf]
        %v2883 = vld [vmem:[%s29 + $0xc] sm:$0xf]
        %v2884 = vld [vmem:[%s29 + $0x10] sm:$0xf]
        %v2885 = vld [vmem:[%s29 + $0x14] sm:$0xf]
        %v2886 = vld [vmem:[%s29 + $0x18] sm:$0xf]
        %v2887 = vld [vmem:[%s29 + $0x1c] sm:$0xf]
        %v2888 = vld [vmem:[%s33] sm:$0x1]
        %v2890 = vperm.slane %v2888, 0
        %v2900 = vunpack.c.l.b16 %v2880
        %v2901 = vunpack.c.l.b16 %v2881
        %v2902 = vunpack.c.l.b16 %v2882
        %v2903 = vunpack.c.l.b16 %v2883
        %v2904 = vunpack.c.l.b16 %v2884
        %v2905 = vunpack.c.l.b16 %v2885
        %v2906 = vunpack.c.l.b16 %v2886
        %v2907 = vunpack.c.l.b16 %v2887
        %v2908 = vpack.c.b16 %v2901, %v2900
        %v2909 = vpack.c.b16 %v2903, %v2902
        %v2910 = vpack.c.b16 %v2905, %v2904
        %v2911 = vpack.c.b16 %v2907, %v2906
        %2916 = vmatpush.bf16.msra.mxu0 0
        %2917 = vmatpush.bf16.msra.mxu0 0
        %2918 = vmatpush.bf16.msra.mxu0 0
        %2919 = vmatpush.bf16.msra.mxu0 0
        %2920 = vmatpush.bf16.msra.mxu0 %v2911
        %2921 = vmatpush.bf16.msra.mxu0 %v2910
        %2922 = vmatpush.bf16.msra.mxu0 %v2909
        %2923 = vmatpush.bf16.msra.mxu0 %v2908
        %2924 = vmatmul.bf16.gmra.mxu0 %v2367
        %v2925 = vpop.f32.mrf.mxu0
        %v2926 = vadd.f32 %v2890, %v2925
        %v2927 = vpop.f32.mrf.mxu0
        %v2928 = vadd.f32 %v2890, %v2927
        %2929 = vmatmul.bf16.gmra.mxu0 %v2370
        %v2930 = vpop.f32.mrf.mxu0
        %v2931 = vadd.f32 %v2890, %v2930
        %v2932 = vpop.f32.mrf.mxu0
        %v2933 = vadd.f32 %v2890, %v2932
        %2934 = vdwg.mxu0
        %v2935 = vld [vmem:[%s31] sm:$0xf]
        %v2936 = vld [vmem:[%s31 + $0x4] sm:$0xf]
        %v2937 = vld [vmem:[%s31 + $0x8] sm:$0xf]
        %v2938 = vld [vmem:[%s31 + $0xc] sm:$0xf]
        %v2939 = vld [vmem:[%s31 + $0x10] sm:$0xf]
        %v2940 = vld [vmem:[%s31 + $0x14] sm:$0xf]
        %v2941 = vld [vmem:[%s31 + $0x18] sm:$0xf]
        %v2942 = vld [vmem:[%s31 + $0x1c] sm:$0xf]
        %v2951 = vunpack.c.l.b16 %v2935
        %v2952 = vunpack.c.l.b16 %v2936
        %v2953 = vunpack.c.l.b16 %v2937
        %v2954 = vunpack.c.l.b16 %v2938
        %v2955 = vunpack.c.l.b16 %v2939
        %v2956 = vunpack.c.l.b16 %v2940
        %v2957 = vunpack.c.l.b16 %v2941
        %v2958 = vunpack.c.l.b16 %v2942
        %v2959 = vpack.c.b16 %v2952, %v2951
        %v2960 = vpack.c.b16 %v2954, %v2953
        %v2961 = vpack.c.b16 %v2956, %v2955
        %v2962 = vpack.c.b16 %v2958, %v2957
        %2967 = vmatpush.bf16.msra.mxu0 0
        %2968 = vmatpush.bf16.msra.mxu0 0
        %2969 = vmatpush.bf16.msra.mxu0 0
        %2970 = vmatpush.bf16.msra.mxu0 0
        %2971 = vmatpush.bf16.msra.mxu0 %v2962
        %2972 = vmatpush.bf16.msra.mxu0 %v2961
        %2973 = vmatpush.bf16.msra.mxu0 %v2960
        %2974 = vmatpush.bf16.msra.mxu0 %v2959
        %2975 = vmatmul.bf16.gmra.mxu0 %v2367
        %v2976 = vpop.f32.mrf.mxu0
        %v2977 = vadd.f32 0.0, %v2976
        %v2978 = vpop.f32.mrf.mxu0
        %v2979 = vadd.f32 0.0, %v2978
        %2980 = vmatmul.bf16.gmra.mxu0 %v2370
        %v2981 = vpop.f32.mrf.mxu0
        %v2982 = vadd.f32 0.0, %v2981
        %v2983 = vpop.f32.mrf.mxu0
        %v2984 = vadd.f32 0.0, %v2983
        %2985 = vdwg.mxu0
        %v2986 = vpack.c.bf16 %v2979, %v2977
        %v2987 = vpack.c.bf16 %v2984, %v2982
        %v2989 = vsel %vm1342, %v2848, 0
        %v2992 = vsel %vm1342, %v2849, 0
        %v2995 = vsel %vm1342, %v2858, 0
        %v2998 = vsel %vm1342, %v2859, 0
        %v3001 = vsel %vm1342, %v2868, 0
        %v3004 = vsel %vm1342, %v2869, 0
        %v3007 = vsel %vm1342, %v2878, 0
        %v3010 = vsel %vm1342, %v2879, 0
        %3012 = vmatpush.bf16.msra.mxu0 0
        %3013 = vmatpush.bf16.msra.mxu0 0
        %3014 = vmatpush.bf16.msra.mxu0 0
        %3015 = vmatpush.bf16.msra.mxu0 0
        %3016 = vmatpush.bf16.msra.mxu0 0
        %3017 = vmatpush.bf16.msra.mxu0 0
        %3018 = vmatpush.bf16.msra.mxu0 %v2987
        %3019 = vmatpush.bf16.msra.mxu0 %v2986
        %3020 = vmatmul.bf16.gmra.mxu0 %v2989
        %v3021 = vpop.f32.mrf.mxu0
        %v3022 = vadd.f32 %v2926, %v3021
        %v3023 = vpop.f32.mrf.mxu0
        %v3024 = vadd.f32 %v2928, %v3023
        %3025 = vmatmul.bf16.gmra.mxu0 %v2992
        %v3026 = vpop.f32.mrf.mxu0
        %v3027 = vadd.f32 %v2931, %v3026
        %v3028 = vpop.f32.mrf.mxu0
        %v3029 = vadd.f32 %v2933, %v3028
        %3030 = vmatmul.bf16.gmra.mxu0 %v2995
        %v3031 = vpop.f32.mrf.mxu0
        %v3032 = vadd.f32 %v2926, %v3031
        %v3033 = vpop.f32.mrf.mxu0
        %v3034 = vadd.f32 %v2928, %v3033
        %3035 = vmatmul.bf16.gmra.mxu0 %v2998
        %v3036 = vpop.f32.mrf.mxu0
        %v3037 = vadd.f32 %v2931, %v3036
        %v3038 = vpop.f32.mrf.mxu0
        %v3039 = vadd.f32 %v2933, %v3038
        %3040 = vmatmul.bf16.gmra.mxu0 %v3001
        %v3041 = vpop.f32.mrf.mxu0
        %v3042 = vadd.f32 %v2926, %v3041
        %v3043 = vpop.f32.mrf.mxu0
        %v3044 = vadd.f32 %v2928, %v3043
        %3045 = vmatmul.bf16.gmra.mxu0 %v3004
        %v3046 = vpop.f32.mrf.mxu0
        %v3047 = vadd.f32 %v2931, %v3046
        %v3048 = vpop.f32.mrf.mxu0
        %v3049 = vadd.f32 %v2933, %v3048
        %3050 = vmatmul.bf16.gmra.mxu0 %v3007
        %v3051 = vpop.f32.mrf.mxu0
        %v3052 = vadd.f32 %v2926, %v3051
        %v3053 = vpop.f32.mrf.mxu0
        %v3054 = vadd.f32 %v2928, %v3053
        %3055 = vmatmul.bf16.gmra.mxu0 %v3010
        %v3056 = vpop.f32.mrf.mxu0
        %v3057 = vadd.f32 %v2931, %v3056
        %v3058 = vpop.f32.mrf.mxu0
        %v3059 = vadd.f32 %v2933, %v3058
        %3060 = vdwg.mxu0
        %v3061 = vmax.f32 %v3022, 0.0
        %v3062 = vmax.f32 %v3024, 0.0
        %v3063 = vmax.f32 %v3027, 0.0
        %v3064 = vmax.f32 %v3029, 0.0
        %v3065 = vmax.f32 %v3032, 0.0
        %v3066 = vmax.f32 %v3034, 0.0
        %v3067 = vmax.f32 %v3037, 0.0
        %v3068 = vmax.f32 %v3039, 0.0
        %v3069 = vmax.f32 %v3042, 0.0
        %v3070 = vmax.f32 %v3044, 0.0
        %v3071 = vmax.f32 %v3047, 0.0
        %v3072 = vmax.f32 %v3049, 0.0
        %v3073 = vmax.f32 %v3052, 0.0
        %v3074 = vmax.f32 %v3054, 0.0
        %v3075 = vmax.f32 %v3057, 0.0
        %v3076 = vmax.f32 %v3059, 0.0
        %v3077 = vld [vmem:[%s35] sm:$0x1]
        %v3079 = vperm.slane %v3077, 0
        %v3081 = vmul.f32 %v3061, %v3079
        %v3082 = vmul.f32 %v3062, %v3079
        %v3083 = vmul.f32 %v3063, %v3079
        %v3084 = vmul.f32 %v3064, %v3079
        %v3085 = vmul.f32 %v3065, %v3079
        %v3086 = vmul.f32 %v3066, %v3079
        %v3087 = vmul.f32 %v3067, %v3079
        %v3088 = vmul.f32 %v3068, %v3079
        %v3089 = vmul.f32 %v3069, %v3079
        %v3090 = vmul.f32 %v3070, %v3079
        %v3091 = vmul.f32 %v3071, %v3079
        %v3092 = vmul.f32 %v3072, %v3079
        %v3093 = vmul.f32 %v3073, %v3079
        %v3094 = vmul.f32 %v3074, %v3079
        %v3095 = vmul.f32 %v3075, %v3079
        %v3096 = vmul.f32 %v3076, %v3079
        %v3097 = vld [vmem:[%s37] sm:$0x1]
        %v3099 = vperm.slane %v3097, 0
        %v3101 = vadd.f32 %v3081, %v3099
        %v3102 = vadd.f32 %v3082, %v3099
        %v3103 = vadd.f32 %v3083, %v3099
        %v3104 = vadd.f32 %v3084, %v3099
        %v3105 = vadd.f32 %v3085, %v3099
        %v3106 = vadd.f32 %v3086, %v3099
        %v3107 = vadd.f32 %v3087, %v3099
        %v3108 = vadd.f32 %v3088, %v3099
        %v3109 = vadd.f32 %v3089, %v3099
        %v3110 = vadd.f32 %v3090, %v3099
        %v3111 = vadd.f32 %v3091, %v3099
        %v3112 = vadd.f32 %v3092, %v3099
        %v3113 = vadd.f32 %v3093, %v3099
        %v3114 = vadd.f32 %v3094, %v3099
        %v3115 = vadd.f32 %v3095, %v3099
        %v3116 = vadd.f32 %v3096, %v3099
        %v3117 = vmax.f32 %v3101, %v3105
        %v3118 = vmax.f32 %v3117, %v3109
        %v3119 = vmax.f32 %v3118, %v3113
        %v3120 = vmax.f32 %v3102, %v3106
        %v3121 = vmax.f32 %v3120, %v3110
        %v3122 = vmax.f32 %v3121, %v3114
        %v3123 = vmax.f32 %v3103, %v3107
        %v3124 = vmax.f32 %v3123, %v3111
        %v3125 = vmax.f32 %v3124, %v3115
        %v3126 = vmax.f32 %v3104, %v3108
        %v3127 = vmax.f32 %v3126, %v3112
        %v3128 = vmax.f32 %v3127, %v3116
        %v3129 = vld [vmem:[#allocation2] sm:$0xff]
        %v3130 = vld [vmem:[#allocation2 + $0x8] sm:$0xff]
        %v3131 = vld [vmem:[#allocation2 + $0x10] sm:$0xff]
        %v3132 = vld [vmem:[#allocation2 + $0x18] sm:$0xff]
        %v3133 = vld [vmem:[#allocation2 + $0x20] sm:$0xff]
        %v3134 = vld [vmem:[#allocation2 + $0x28] sm:$0xff]
        %v3135 = vld [vmem:[#allocation2 + $0x30] sm:$0xff]
        %v3136 = vld [vmem:[#allocation2 + $0x38] sm:$0xff]
        %v3137 = vld [vmem:[#allocation2 + $0x40] sm:$0xff]
        %v3138 = vld [vmem:[#allocation2 + $0x48] sm:$0xff]
        %v3139 = vld [vmem:[#allocation2 + $0x50] sm:$0xff]
        %v3140 = vld [vmem:[#allocation2 + $0x58] sm:$0xff]
        %v3141 = vld [vmem:[#allocation2 + $0x60] sm:$0xff]
        %v3142 = vld [vmem:[#allocation2 + $0x68] sm:$0xff]
        %v3143 = vld [vmem:[#allocation2 + $0x70] sm:$0xff]
        %v3144 = vld [vmem:[#allocation2 + $0x78] sm:$0xff]
        %v3145 = vld [vmem:[#allocation2 + $0x80] sm:$0xff]
        %v3146 = vld [vmem:[#allocation2 + $0x88] sm:$0xff]
        %v3147 = vld [vmem:[#allocation2 + $0x90] sm:$0xff]
        %v3148 = vld [vmem:[#allocation2 + $0x98] sm:$0xff]
        %v3149 = vld [vmem:[#allocation2 + $0xa0] sm:$0xff]
        %v3150 = vld [vmem:[#allocation2 + $0xa8] sm:$0xff]
        %v3151 = vld [vmem:[#allocation2 + $0xb0] sm:$0xff]
        %v3152 = vld [vmem:[#allocation2 + $0xb8] sm:$0xff]
        %v3153 = vld [vmem:[#allocation2 + $0xc0] sm:$0xff]
        %v3154 = vld [vmem:[#allocation2 + $0xc8] sm:$0xff]
        %v3155 = vld [vmem:[#allocation2 + $0xd0] sm:$0xff]
        %v3156 = vld [vmem:[#allocation2 + $0xd8] sm:$0xff]
        %v3157 = vld [vmem:[#allocation2 + $0xe0] sm:$0xff]
        %v3158 = vld [vmem:[#allocation2 + $0xe8] sm:$0xff]
        %v3159 = vld [vmem:[#allocation2 + $0xf0] sm:$0xff]
        %v3160 = vld [vmem:[#allocation2 + $0xf8] sm:$0xff]
        %v3161 = vpack.c.bf16 %v3122, %v3119
        %v3162 = vpack.c.bf16 %v3128, %v3125
        %v3163 = vld [vmem:[#allocation5] sm:$0xff]
        %v3164 = vld [vmem:[#allocation5 + $0x8] sm:$0xff]
        %v3165 = vld [vmem:[#allocation5 + $0x10] sm:$0xff]
        %v3166 = vld [vmem:[#allocation5 + $0x18] sm:$0xff]
        %v3167 = vld [vmem:[#allocation5 + $0x20] sm:$0xff]
        %v3168 = vld [vmem:[#allocation5 + $0x28] sm:$0xff]
        %v3169 = vld [vmem:[#allocation5 + $0x30] sm:$0xff]
        %v3170 = vld [vmem:[#allocation5 + $0x38] sm:$0xff]
        %v3171 = vld [vmem:[#allocation5 + $0x40] sm:$0xff]
        %v3172 = vld [vmem:[#allocation5 + $0x48] sm:$0xff]
        %v3173 = vld [vmem:[#allocation5 + $0x50] sm:$0xff]
        %v3174 = vld [vmem:[#allocation5 + $0x58] sm:$0xff]
        %v3175 = vld [vmem:[#allocation5 + $0x60] sm:$0xff]
        %v3176 = vld [vmem:[#allocation5 + $0x68] sm:$0xff]
        %v3177 = vld [vmem:[#allocation5 + $0x70] sm:$0xff]
        %v3178 = vld [vmem:[#allocation5 + $0x78] sm:$0xff]
        %v3179 = vld [vmem:[#allocation5 + $0x80] sm:$0xff]
        %v3180 = vld [vmem:[#allocation5 + $0x88] sm:$0xff]
        %v3181 = vld [vmem:[#allocation5 + $0x90] sm:$0xff]
        %v3182 = vld [vmem:[#allocation5 + $0x98] sm:$0xff]
        %v3183 = vld [vmem:[#allocation5 + $0xa0] sm:$0xff]
        %v3184 = vld [vmem:[#allocation5 + $0xa8] sm:$0xff]
        %v3185 = vld [vmem:[#allocation5 + $0xb0] sm:$0xff]
        %v3186 = vld [vmem:[#allocation5 + $0xb8] sm:$0xff]
        %v3187 = vld [vmem:[#allocation5 + $0xc0] sm:$0xff]
        %v3188 = vld [vmem:[#allocation5 + $0xc8] sm:$0xff]
        %v3189 = vld [vmem:[#allocation5 + $0xd0] sm:$0xff]
        %v3190 = vld [vmem:[#allocation5 + $0xd8] sm:$0xff]
        %v3191 = vld [vmem:[#allocation5 + $0xe0] sm:$0xff]
        %v3192 = vld [vmem:[#allocation5 + $0xe8] sm:$0xff]
        %v3193 = vld [vmem:[#allocation5 + $0xf0] sm:$0xff]
        %v3194 = vld [vmem:[#allocation5 + $0xf8] sm:$0xff]
        %v3195 = vld [vmem:[#allocation5 + $0x100] sm:$0xff]
        %v3196 = vld [vmem:[#allocation5 + $0x108] sm:$0xff]
        %v3197 = vld [vmem:[#allocation5 + $0x110] sm:$0xff]
        %v3198 = vld [vmem:[#allocation5 + $0x118] sm:$0xff]
        %v3199 = vld [vmem:[#allocation5 + $0x120] sm:$0xff]
        %v3200 = vld [vmem:[#allocation5 + $0x128] sm:$0xff]
        %v3201 = vld [vmem:[#allocation5 + $0x130] sm:$0xff]
        %v3202 = vld [vmem:[#allocation5 + $0x138] sm:$0xff]
        %v3203 = vld [vmem:[#allocation5 + $0x140] sm:$0xff]
        %v3204 = vld [vmem:[#allocation5 + $0x148] sm:$0xff]
        %v3205 = vld [vmem:[#allocation5 + $0x150] sm:$0xff]
        %v3206 = vld [vmem:[#allocation5 + $0x158] sm:$0xff]
        %v3207 = vld [vmem:[#allocation5 + $0x160] sm:$0xff]
        %v3208 = vld [vmem:[#allocation5 + $0x168] sm:$0xff]
        %v3209 = vld [vmem:[#allocation5 + $0x170] sm:$0xff]
        %v3210 = vld [vmem:[#allocation5 + $0x178] sm:$0xff]
        %v3211 = vld [vmem:[#allocation5 + $0x180] sm:$0xff]
        %v3212 = vld [vmem:[#allocation5 + $0x188] sm:$0xff]
        %v3213 = vld [vmem:[#allocation5 + $0x190] sm:$0xff]
        %v3214 = vld [vmem:[#allocation5 + $0x198] sm:$0xff]
        %v3215 = vld [vmem:[#allocation5 + $0x1a0] sm:$0xff]
        %v3216 = vld [vmem:[#allocation5 + $0x1a8] sm:$0xff]
        %v3217 = vld [vmem:[#allocation5 + $0x1b0] sm:$0xff]
        %v3218 = vld [vmem:[#allocation5 + $0x1b8] sm:$0xff]
        %v3219 = vld [vmem:[#allocation5 + $0x1c0] sm:$0xff]
        %v3220 = vld [vmem:[#allocation5 + $0x1c8] sm:$0xff]
        %v3221 = vld [vmem:[#allocation5 + $0x1d0] sm:$0xff]
        %v3222 = vld [vmem:[#allocation5 + $0x1d8] sm:$0xff]
        %v3223 = vld [vmem:[#allocation5 + $0x1e0] sm:$0xff]
        %v3224 = vld [vmem:[#allocation5 + $0x1e8] sm:$0xff]
        %v3225 = vld [vmem:[#allocation5 + $0x1f0] sm:$0xff]
        %v3226 = vld [vmem:[#allocation5 + $0x1f8] sm:$0xff]
        %v3291 = vunpack.c.l.b16 %v3163
        %v3292 = vunpack.c.h.b16 %v3163
        %v3293 = vunpack.c.l.b16 %v3164
        %v3294 = vunpack.c.h.b16 %v3164
        %v3295 = vunpack.c.l.b16 %v3165
        %v3296 = vunpack.c.h.b16 %v3165
        %v3297 = vunpack.c.l.b16 %v3166
        %v3298 = vunpack.c.h.b16 %v3166
        %v3299 = vunpack.c.l.b16 %v3167
        %v3300 = vunpack.c.h.b16 %v3167
        %v3301 = vunpack.c.l.b16 %v3168
        %v3302 = vunpack.c.h.b16 %v3168
        %v3303 = vunpack.c.l.b16 %v3169
        %v3304 = vunpack.c.h.b16 %v3169
        %v3305 = vunpack.c.l.b16 %v3170
        %v3306 = vunpack.c.h.b16 %v3170
        %v3307 = vunpack.c.l.b16 %v3171
        %v3308 = vunpack.c.h.b16 %v3171
        %v3309 = vunpack.c.l.b16 %v3172
        %v3310 = vunpack.c.h.b16 %v3172
        %v3311 = vunpack.c.l.b16 %v3173
        %v3312 = vunpack.c.h.b16 %v3173
        %v3313 = vunpack.c.l.b16 %v3174
        %v3314 = vunpack.c.h.b16 %v3174
        %v3315 = vunpack.c.l.b16 %v3175
        %v3316 = vunpack.c.h.b16 %v3175
        %v3317 = vunpack.c.l.b16 %v3176
        %v3318 = vunpack.c.h.b16 %v3176
        %v3319 = vunpack.c.l.b16 %v3177
        %v3320 = vunpack.c.h.b16 %v3177
        %v3321 = vunpack.c.l.b16 %v3178
        %v3322 = vunpack.c.h.b16 %v3178
        %v3323 = vunpack.c.l.b16 %v3179
        %v3324 = vunpack.c.h.b16 %v3179
        %v3325 = vunpack.c.l.b16 %v3180
        %v3326 = vunpack.c.h.b16 %v3180
        %v3327 = vunpack.c.l.b16 %v3181
        %v3328 = vunpack.c.h.b16 %v3181
        %v3329 = vunpack.c.l.b16 %v3182
        %v3330 = vunpack.c.h.b16 %v3182
        %v3331 = vunpack.c.l.b16 %v3183
        %v3332 = vunpack.c.h.b16 %v3183
        %v3333 = vunpack.c.l.b16 %v3184
        %v3334 = vunpack.c.h.b16 %v3184
        %v3335 = vunpack.c.l.b16 %v3185
        %v3336 = vunpack.c.h.b16 %v3185
        %v3337 = vunpack.c.l.b16 %v3186
        %v3338 = vunpack.c.h.b16 %v3186
        %v3339 = vunpack.c.l.b16 %v3187
        %v3340 = vunpack.c.h.b16 %v3187
        %v3341 = vunpack.c.l.b16 %v3188
        %v3342 = vunpack.c.h.b16 %v3188
        %v3343 = vunpack.c.l.b16 %v3189
        %v3344 = vunpack.c.h.b16 %v3189
        %v3345 = vunpack.c.l.b16 %v3190
        %v3346 = vunpack.c.h.b16 %v3190
        %v3347 = vunpack.c.l.b16 %v3191
        %v3348 = vunpack.c.h.b16 %v3191
        %v3349 = vunpack.c.l.b16 %v3192
        %v3350 = vunpack.c.h.b16 %v3192
        %v3351 = vunpack.c.l.b16 %v3193
        %v3352 = vunpack.c.h.b16 %v3193
        %v3353 = vunpack.c.l.b16 %v3194
        %v3354 = vunpack.c.h.b16 %v3194
        %v3355 = vunpack.c.l.b16 %v3195
        %v3356 = vunpack.c.h.b16 %v3195
        %v3357 = vunpack.c.l.b16 %v3196
        %v3358 = vunpack.c.h.b16 %v3196
        %v3359 = vunpack.c.l.b16 %v3197
        %v3360 = vunpack.c.h.b16 %v3197
        %v3361 = vunpack.c.l.b16 %v3198
        %v3362 = vunpack.c.h.b16 %v3198
        %v3363 = vunpack.c.l.b16 %v3199
        %v3364 = vunpack.c.h.b16 %v3199
        %v3365 = vunpack.c.l.b16 %v3200
        %v3366 = vunpack.c.h.b16 %v3200
        %v3367 = vunpack.c.l.b16 %v3201
        %v3368 = vunpack.c.h.b16 %v3201
        %v3369 = vunpack.c.l.b16 %v3202
        %v3370 = vunpack.c.h.b16 %v3202
        %v3371 = vunpack.c.l.b16 %v3203
        %v3372 = vunpack.c.h.b16 %v3203
        %v3373 = vunpack.c.l.b16 %v3204
        %v3374 = vunpack.c.h.b16 %v3204
        %v3375 = vunpack.c.l.b16 %v3205
        %v3376 = vunpack.c.h.b16 %v3205
        %v3377 = vunpack.c.l.b16 %v3206
        %v3378 = vunpack.c.h.b16 %v3206
        %v3379 = vunpack.c.l.b16 %v3207
        %v3380 = vunpack.c.h.b16 %v3207
        %v3381 = vunpack.c.l.b16 %v3208
        %v3382 = vunpack.c.h.b16 %v3208
        %v3383 = vunpack.c.l.b16 %v3209
        %v3384 = vunpack.c.h.b16 %v3209
        %v3385 = vunpack.c.l.b16 %v3210
        %v3386 = vunpack.c.h.b16 %v3210
        %v3387 = vunpack.c.l.b16 %v3211
        %v3388 = vunpack.c.h.b16 %v3211
        %v3389 = vunpack.c.l.b16 %v3212
        %v3390 = vunpack.c.h.b16 %v3212
        %v3391 = vunpack.c.l.b16 %v3213
        %v3392 = vunpack.c.h.b16 %v3213
        %v3393 = vunpack.c.l.b16 %v3214
        %v3394 = vunpack.c.h.b16 %v3214
        %v3395 = vunpack.c.l.b16 %v3215
        %v3396 = vunpack.c.h.b16 %v3215
        %v3397 = vunpack.c.l.b16 %v3216
        %v3398 = vunpack.c.h.b16 %v3216
        %v3399 = vunpack.c.l.b16 %v3217
        %v3400 = vunpack.c.h.b16 %v3217
        %v3401 = vunpack.c.l.b16 %v3218
        %v3402 = vunpack.c.h.b16 %v3218
        %v3403 = vunpack.c.l.b16 %v3219
        %v3404 = vunpack.c.h.b16 %v3219
        %v3405 = vunpack.c.l.b16 %v3220
        %v3406 = vunpack.c.h.b16 %v3220
        %v3407 = vunpack.c.l.b16 %v3221
        %v3408 = vunpack.c.h.b16 %v3221
        %v3409 = vunpack.c.l.b16 %v3222
        %v3410 = vunpack.c.h.b16 %v3222
        %v3411 = vunpack.c.l.b16 %v3223
        %v3412 = vunpack.c.h.b16 %v3223
        %v3413 = vunpack.c.l.b16 %v3224
        %v3414 = vunpack.c.h.b16 %v3224
        %v3415 = vunpack.c.l.b16 %v3225
        %v3416 = vunpack.c.h.b16 %v3225
        %v3417 = vunpack.c.l.b16 %v3226
        %v3418 = vunpack.c.h.b16 %v3226
        %v3419 = vpack.c.b16 %v3299, %v3291
        %v3420 = vpack.c.b16 %v3300, %v3292
        %v3421 = vpack.c.b16 %v3301, %v3293
        %v3422 = vpack.c.b16 %v3302, %v3294
        %v3423 = vpack.c.b16 %v3303, %v3295
        %v3424 = vpack.c.b16 %v3304, %v3296
        %v3425 = vpack.c.b16 %v3305, %v3297
        %v3426 = vpack.c.b16 %v3306, %v3298
        %v3427 = vpack.c.b16 %v3315, %v3307
        %v3428 = vpack.c.b16 %v3316, %v3308
        %v3429 = vpack.c.b16 %v3317, %v3309
        %v3430 = vpack.c.b16 %v3318, %v3310
        %v3431 = vpack.c.b16 %v3319, %v3311
        %v3432 = vpack.c.b16 %v3320, %v3312
        %v3433 = vpack.c.b16 %v3321, %v3313
        %v3434 = vpack.c.b16 %v3322, %v3314
        %v3435 = vpack.c.b16 %v3331, %v3323
        %v3436 = vpack.c.b16 %v3332, %v3324
        %v3437 = vpack.c.b16 %v3333, %v3325
        %v3438 = vpack.c.b16 %v3334, %v3326
        %v3439 = vpack.c.b16 %v3335, %v3327
        %v3440 = vpack.c.b16 %v3336, %v3328
        %v3441 = vpack.c.b16 %v3337, %v3329
        %v3442 = vpack.c.b16 %v3338, %v3330
        %v3443 = vpack.c.b16 %v3347, %v3339
        %v3444 = vpack.c.b16 %v3348, %v3340
        %v3445 = vpack.c.b16 %v3349, %v3341
        %v3446 = vpack.c.b16 %v3350, %v3342
        %v3447 = vpack.c.b16 %v3351, %v3343
        %v3448 = vpack.c.b16 %v3352, %v3344
        %v3449 = vpack.c.b16 %v3353, %v3345
        %v3450 = vpack.c.b16 %v3354, %v3346
        %v3451 = vpack.c.b16 %v3363, %v3355
        %v3452 = vpack.c.b16 %v3364, %v3356
        %v3453 = vpack.c.b16 %v3365, %v3357
        %v3454 = vpack.c.b16 %v3366, %v3358
        %v3455 = vpack.c.b16 %v3367, %v3359
        %v3456 = vpack.c.b16 %v3368, %v3360
        %v3457 = vpack.c.b16 %v3369, %v3361
        %v3458 = vpack.c.b16 %v3370, %v3362
        %v3459 = vpack.c.b16 %v3379, %v3371
        %v3460 = vpack.c.b16 %v3380, %v3372
        %v3461 = vpack.c.b16 %v3381, %v3373
        %v3462 = vpack.c.b16 %v3382, %v3374
        %v3463 = vpack.c.b16 %v3383, %v3375
        %v3464 = vpack.c.b16 %v3384, %v3376
        %v3465 = vpack.c.b16 %v3385, %v3377
        %v3466 = vpack.c.b16 %v3386, %v3378
        %v3467 = vpack.c.b16 %v3395, %v3387
        %v3468 = vpack.c.b16 %v3396, %v3388
        %v3469 = vpack.c.b16 %v3397, %v3389
        %v3470 = vpack.c.b16 %v3398, %v3390
        %v3471 = vpack.c.b16 %v3399, %v3391
        %v3472 = vpack.c.b16 %v3400, %v3392
        %v3473 = vpack.c.b16 %v3401, %v3393
        %v3474 = vpack.c.b16 %v3402, %v3394
        %v3475 = vpack.c.b16 %v3411, %v3403
        %v3476 = vpack.c.b16 %v3412, %v3404
        %v3477 = vpack.c.b16 %v3413, %v3405
        %v3478 = vpack.c.b16 %v3414, %v3406
        %v3479 = vpack.c.b16 %v3415, %v3407
        %v3480 = vpack.c.b16 %v3416, %v3408
        %v3481 = vpack.c.b16 %v3417, %v3409
        %v3482 = vpack.c.b16 %v3418, %v3410
        %3547 = vmatpush.bf16.msra.mxu0 %v3475
        %3548 = vmatpush.bf16.msra.mxu0 %v3467
        %3549 = vmatpush.bf16.msra.mxu0 %v3459
        %3550 = vmatpush.bf16.msra.mxu0 %v3451
        %3551 = vmatpush.bf16.msra.mxu0 %v3443
        %3552 = vmatpush.bf16.msra.mxu0 %v3435
        %3553 = vmatpush.bf16.msra.mxu0 %v3427
        %3554 = vmatpush.bf16.msra.mxu0 %v3419
        %3555 = vmatmul.bf16.gmra.mxu0 %v3161
        %v3556 = vpop.f32.mrf.mxu0
        %v3557 = vadd.f32 0.0, %v3556
        %v3558 = vpop.f32.mrf.mxu0
        %v3559 = vadd.f32 0.0, %v3558
        %3560 = vmatmul.bf16.gmra.mxu0 %v3162
        %v3561 = vpop.f32.mrf.mxu0
        %v3562 = vadd.f32 0.0, %v3561
        %v3563 = vpop.f32.mrf.mxu0
        %v3564 = vadd.f32 0.0, %v3563
        %3565 = vdwg.mxu0
        %3566 = vmatpush.bf16.msra.mxu0 %v3476
        %3567 = vmatpush.bf16.msra.mxu0 %v3468
        %3568 = vmatpush.bf16.msra.mxu0 %v3460
        %3569 = vmatpush.bf16.msra.mxu0 %v3452
        %3570 = vmatpush.bf16.msra.mxu0 %v3444
        %3571 = vmatpush.bf16.msra.mxu0 %v3436
        %3572 = vmatpush.bf16.msra.mxu0 %v3428
        %3573 = vmatpush.bf16.msra.mxu0 %v3420
        %3574 = vmatmul.bf16.gmra.mxu0 %v3161
        %v3575 = vpop.f32.mrf.mxu0
        %v3576 = vadd.f32 0.0, %v3575
        %v3577 = vpop.f32.mrf.mxu0
        %v3578 = vadd.f32 0.0, %v3577
        %3579 = vmatmul.bf16.gmra.mxu0 %v3162
        %v3580 = vpop.f32.mrf.mxu0
        %v3581 = vadd.f32 0.0, %v3580
        %v3582 = vpop.f32.mrf.mxu0
        %v3583 = vadd.f32 0.0, %v3582
        %3584 = vdwg.mxu0
        %3585 = vmatpush.bf16.msra.mxu0 %v3477
        %3586 = vmatpush.bf16.msra.mxu0 %v3469
        %3587 = vmatpush.bf16.msra.mxu0 %v3461
        %3588 = vmatpush.bf16.msra.mxu0 %v3453
        %3589 = vmatpush.bf16.msra.mxu0 %v3445
        %3590 = vmatpush.bf16.msra.mxu0 %v3437
        %3591 = vmatpush.bf16.msra.mxu0 %v3429
        %3592 = vmatpush.bf16.msra.mxu0 %v3421
        %3593 = vmatmul.bf16.gmra.mxu0 %v3161
        %v3594 = vpop.f32.mrf.mxu0
        %v3595 = vadd.f32 0.0, %v3594
        %v3596 = vpop.f32.mrf.mxu0
        %v3597 = vadd.f32 0.0, %v3596
        %3598 = vmatmul.bf16.gmra.mxu0 %v3162
        %v3599 = vpop.f32.mrf.mxu0
        %v3600 = vadd.f32 0.0, %v3599
        %v3601 = vpop.f32.mrf.mxu0
        %v3602 = vadd.f32 0.0, %v3601
        %3603 = vdwg.mxu0
        %3604 = vmatpush.bf16.msra.mxu0 %v3478
        %3605 = vmatpush.bf16.msra.mxu0 %v3470
        %3606 = vmatpush.bf16.msra.mxu0 %v3462
        %3607 = vmatpush.bf16.msra.mxu0 %v3454
        %3608 = vmatpush.bf16.msra.mxu0 %v3446
        %3609 = vmatpush.bf16.msra.mxu0 %v3438
        %3610 = vmatpush.bf16.msra.mxu0 %v3430
        %3611 = vmatpush.bf16.msra.mxu0 %v3422
        %3612 = vmatmul.bf16.gmra.mxu0 %v3161
        %v3613 = vpop.f32.mrf.mxu0
        %v3614 = vadd.f32 0.0, %v3613
        %v3615 = vpop.f32.mrf.mxu0
        %v3616 = vadd.f32 0.0, %v3615
        %3617 = vmatmul.bf16.gmra.mxu0 %v3162
        %v3618 = vpop.f32.mrf.mxu0
        %v3619 = vadd.f32 0.0, %v3618
        %v3620 = vpop.f32.mrf.mxu0
        %v3621 = vadd.f32 0.0, %v3620
        %3622 = vdwg.mxu0
        %3623 = vmatpush.bf16.msra.mxu0 %v3479
        %3624 = vmatpush.bf16.msra.mxu0 %v3471
        %3625 = vmatpush.bf16.msra.mxu0 %v3463
        %3626 = vmatpush.bf16.msra.mxu0 %v3455
        %3627 = vmatpush.bf16.msra.mxu0 %v3447
        %3628 = vmatpush.bf16.msra.mxu0 %v3439
        %3629 = vmatpush.bf16.msra.mxu0 %v3431
        %3630 = vmatpush.bf16.msra.mxu0 %v3423
        %3631 = vmatmul.bf16.gmra.mxu0 %v3161
        %v3632 = vpop.f32.mrf.mxu0
        %v3633 = vadd.f32 0.0, %v3632
        %v3634 = vpop.f32.mrf.mxu0
        %v3635 = vadd.f32 0.0, %v3634
        %3636 = vmatmul.bf16.gmra.mxu0 %v3162
        %v3637 = vpop.f32.mrf.mxu0
        %v3638 = vadd.f32 0.0, %v3637
        %v3639 = vpop.f32.mrf.mxu0
        %v3640 = vadd.f32 0.0, %v3639
        %3641 = vdwg.mxu0
        %3642 = vmatpush.bf16.msra.mxu0 %v3480
        %3643 = vmatpush.bf16.msra.mxu0 %v3472
        %3644 = vmatpush.bf16.msra.mxu0 %v3464
        %3645 = vmatpush.bf16.msra.mxu0 %v3456
        %3646 = vmatpush.bf16.msra.mxu0 %v3448
        %3647 = vmatpush.bf16.msra.mxu0 %v3440
        %3648 = vmatpush.bf16.msra.mxu0 %v3432
        %3649 = vmatpush.bf16.msra.mxu0 %v3424
        %3650 = vmatmul.bf16.gmra.mxu0 %v3161
        %v3651 = vpop.f32.mrf.mxu0
        %v3652 = vadd.f32 0.0, %v3651
        %v3653 = vpop.f32.mrf.mxu0
        %v3654 = vadd.f32 0.0, %v3653
        %3655 = vmatmul.bf16.gmra.mxu0 %v3162
        %v3656 = vpop.f32.mrf.mxu0
        %v3657 = vadd.f32 0.0, %v3656
        %v3658 = vpop.f32.mrf.mxu0
        %v3659 = vadd.f32 0.0, %v3658
        %3660 = vdwg.mxu0
        %3661 = vmatpush.bf16.msra.mxu0 %v3481
        %3662 = vmatpush.bf16.msra.mxu0 %v3473
        %3663 = vmatpush.bf16.msra.mxu0 %v3465
        %3664 = vmatpush.bf16.msra.mxu0 %v3457
        %3665 = vmatpush.bf16.msra.mxu0 %v3449
        %3666 = vmatpush.bf16.msra.mxu0 %v3441
        %3667 = vmatpush.bf16.msra.mxu0 %v3433
        %3668 = vmatpush.bf16.msra.mxu0 %v3425
        %3669 = vmatmul.bf16.gmra.mxu0 %v3161
        %v3670 = vpop.f32.mrf.mxu0
        %v3671 = vadd.f32 0.0, %v3670
        %v3672 = vpop.f32.mrf.mxu0
        %v3673 = vadd.f32 0.0, %v3672
        %3674 = vmatmul.bf16.gmra.mxu0 %v3162
        %v3675 = vpop.f32.mrf.mxu0
        %v3676 = vadd.f32 0.0, %v3675
        %v3677 = vpop.f32.mrf.mxu0
        %v3678 = vadd.f32 0.0, %v3677
        %3679 = vdwg.mxu0
        %3680 = vmatpush.bf16.msra.mxu0 %v3482
        %3681 = vmatpush.bf16.msra.mxu0 %v3474
        %3682 = vmatpush.bf16.msra.mxu0 %v3466
        %3683 = vmatpush.bf16.msra.mxu0 %v3458
        %3684 = vmatpush.bf16.msra.mxu0 %v3450
        %3685 = vmatpush.bf16.msra.mxu0 %v3442
        %3686 = vmatpush.bf16.msra.mxu0 %v3434
        %3687 = vmatpush.bf16.msra.mxu0 %v3426
        %3688 = vmatmul.bf16.gmra.mxu0 %v3161
        %v3689 = vpop.f32.mrf.mxu0
        %v3690 = vadd.f32 0.0, %v3689
        %v3691 = vpop.f32.mrf.mxu0
        %v3692 = vadd.f32 0.0, %v3691
        %3693 = vmatmul.bf16.gmra.mxu0 %v3162
        %v3694 = vpop.f32.mrf.mxu0
        %v3695 = vadd.f32 0.0, %v3694
        %v3696 = vpop.f32.mrf.mxu0
        %v3697 = vadd.f32 0.0, %v3696
        %3698 = vdwg.mxu0
        %v3731 = vunpack.c.l.b16 %v3129
        %v3732 = vunpack.c.h.b16 %v3129
        %v3733 = vunpack.c.l.b16 %v3130
        %v3734 = vunpack.c.h.b16 %v3130
        %v3735 = vunpack.c.l.b16 %v3131
        %v3736 = vunpack.c.h.b16 %v3131
        %v3737 = vunpack.c.l.b16 %v3132
        %v3738 = vunpack.c.h.b16 %v3132
        %v3739 = vunpack.c.l.b16 %v3133
        %v3740 = vunpack.c.h.b16 %v3133
        %v3741 = vunpack.c.l.b16 %v3134
        %v3742 = vunpack.c.h.b16 %v3134
        %v3743 = vunpack.c.l.b16 %v3135
        %v3744 = vunpack.c.h.b16 %v3135
        %v3745 = vunpack.c.l.b16 %v3136
        %v3746 = vunpack.c.h.b16 %v3136
        %v3747 = vunpack.c.l.b16 %v3137
        %v3748 = vunpack.c.h.b16 %v3137
        %v3749 = vunpack.c.l.b16 %v3138
        %v3750 = vunpack.c.h.b16 %v3138
        %v3751 = vunpack.c.l.b16 %v3139
        %v3752 = vunpack.c.h.b16 %v3139
        %v3753 = vunpack.c.l.b16 %v3140
        %v3754 = vunpack.c.h.b16 %v3140
        %v3755 = vunpack.c.l.b16 %v3141
        %v3756 = vunpack.c.h.b16 %v3141
        %v3757 = vunpack.c.l.b16 %v3142
        %v3758 = vunpack.c.h.b16 %v3142
        %v3759 = vunpack.c.l.b16 %v3143
        %v3760 = vunpack.c.h.b16 %v3143
        %v3761 = vunpack.c.l.b16 %v3144
        %v3762 = vunpack.c.h.b16 %v3144
        %v3763 = vunpack.c.l.b16 %v3145
        %v3764 = vunpack.c.h.b16 %v3145
        %v3765 = vunpack.c.l.b16 %v3146
        %v3766 = vunpack.c.h.b16 %v3146
        %v3767 = vunpack.c.l.b16 %v3147
        %v3768 = vunpack.c.h.b16 %v3147
        %v3769 = vunpack.c.l.b16 %v3148
        %v3770 = vunpack.c.h.b16 %v3148
        %v3771 = vunpack.c.l.b16 %v3149
        %v3772 = vunpack.c.h.b16 %v3149
        %v3773 = vunpack.c.l.b16 %v3150
        %v3774 = vunpack.c.h.b16 %v3150
        %v3775 = vunpack.c.l.b16 %v3151
        %v3776 = vunpack.c.h.b16 %v3151
        %v3777 = vunpack.c.l.b16 %v3152
        %v3778 = vunpack.c.h.b16 %v3152
        %v3779 = vunpack.c.l.b16 %v3153
        %v3780 = vunpack.c.h.b16 %v3153
        %v3781 = vunpack.c.l.b16 %v3154
        %v3782 = vunpack.c.h.b16 %v3154
        %v3783 = vunpack.c.l.b16 %v3155
        %v3784 = vunpack.c.h.b16 %v3155
        %v3785 = vunpack.c.l.b16 %v3156
        %v3786 = vunpack.c.h.b16 %v3156
        %v3787 = vunpack.c.l.b16 %v3157
        %v3788 = vunpack.c.h.b16 %v3157
        %v3789 = vunpack.c.l.b16 %v3158
        %v3790 = vunpack.c.h.b16 %v3158
        %v3791 = vunpack.c.l.b16 %v3159
        %v3792 = vunpack.c.h.b16 %v3159
        %v3793 = vunpack.c.l.b16 %v3160
        %v3794 = vunpack.c.h.b16 %v3160
        %v3795 = vpack.c.b16 %v3739, %v3731
        %v3796 = vpack.c.b16 %v3740, %v3732
        %v3797 = vpack.c.b16 %v3741, %v3733
        %v3798 = vpack.c.b16 %v3742, %v3734
        %v3799 = vpack.c.b16 %v3743, %v3735
        %v3800 = vpack.c.b16 %v3744, %v3736
        %v3801 = vpack.c.b16 %v3745, %v3737
        %v3802 = vpack.c.b16 %v3746, %v3738
        %v3803 = vpack.c.b16 %v3755, %v3747
        %v3804 = vpack.c.b16 %v3756, %v3748
        %v3805 = vpack.c.b16 %v3757, %v3749
        %v3806 = vpack.c.b16 %v3758, %v3750
        %v3807 = vpack.c.b16 %v3759, %v3751
        %v3808 = vpack.c.b16 %v3760, %v3752
        %v3809 = vpack.c.b16 %v3761, %v3753
        %v3810 = vpack.c.b16 %v3762, %v3754
        %v3811 = vpack.c.b16 %v3771, %v3763
        %v3812 = vpack.c.b16 %v3772, %v3764
        %v3813 = vpack.c.b16 %v3773, %v3765
        %v3814 = vpack.c.b16 %v3774, %v3766
        %v3815 = vpack.c.b16 %v3775, %v3767
        %v3816 = vpack.c.b16 %v3776, %v3768
        %v3817 = vpack.c.b16 %v3777, %v3769
        %v3818 = vpack.c.b16 %v3778, %v3770
        %v3819 = vpack.c.b16 %v3787, %v3779
        %v3820 = vpack.c.b16 %v3788, %v3780
        %v3821 = vpack.c.b16 %v3789, %v3781
        %v3822 = vpack.c.b16 %v3790, %v3782
        %v3823 = vpack.c.b16 %v3791, %v3783
        %v3824 = vpack.c.b16 %v3792, %v3784
        %v3825 = vpack.c.b16 %v3793, %v3785
        %v3826 = vpack.c.b16 %v3794, %v3786
        %3859 = vmatpush.bf16.msra.mxu0 0
        %3860 = vmatpush.bf16.msra.mxu0 0
        %3861 = vmatpush.bf16.msra.mxu0 0
        %3862 = vmatpush.bf16.msra.mxu0 0
        %3863 = vmatpush.bf16.msra.mxu0 %v3819
        %3864 = vmatpush.bf16.msra.mxu0 %v3811
        %3865 = vmatpush.bf16.msra.mxu0 %v3803
        %3866 = vmatpush.bf16.msra.mxu0 %v3795
        %3867 = vmatmul.bf16.gmra.mxu0 %v2367
        %v3868 = vpop.f32.mrf.mxu0
        %v3869 = vadd.f32 %v3557, %v3868
        %v3870 = vpop.f32.mrf.mxu0
        %v3871 = vadd.f32 %v3559, %v3870
        %3872 = vmatmul.bf16.gmra.mxu0 %v2370
        %v3873 = vpop.f32.mrf.mxu0
        %v3874 = vadd.f32 %v3562, %v3873
        %v3875 = vpop.f32.mrf.mxu0
        %v3876 = vadd.f32 %v3564, %v3875
        %3877 = vdwg.mxu0
        %3878 = vmatpush.bf16.msra.mxu0 0
        %3879 = vmatpush.bf16.msra.mxu0 0
        %3880 = vmatpush.bf16.msra.mxu0 0
        %3881 = vmatpush.bf16.msra.mxu0 0
        %3882 = vmatpush.bf16.msra.mxu0 %v3820
        %3883 = vmatpush.bf16.msra.mxu0 %v3812
        %3884 = vmatpush.bf16.msra.mxu0 %v3804
        %3885 = vmatpush.bf16.msra.mxu0 %v3796
        %3886 = vmatmul.bf16.gmra.mxu0 %v2367
        %v3887 = vpop.f32.mrf.mxu0
        %v3888 = vadd.f32 %v3576, %v3887
        %v3889 = vpop.f32.mrf.mxu0
        %v3890 = vadd.f32 %v3578, %v3889
        %3891 = vmatmul.bf16.gmra.mxu0 %v2370
        %v3892 = vpop.f32.mrf.mxu0
        %v3893 = vadd.f32 %v3581, %v3892
        %v3894 = vpop.f32.mrf.mxu0
        %v3895 = vadd.f32 %v3583, %v3894
        %3896 = vdwg.mxu0
        %3897 = vmatpush.bf16.msra.mxu0 0
        %3898 = vmatpush.bf16.msra.mxu0 0
        %3899 = vmatpush.bf16.msra.mxu0 0
        %3900 = vmatpush.bf16.msra.mxu0 0
        %3901 = vmatpush.bf16.msra.mxu0 %v3821
        %3902 = vmatpush.bf16.msra.mxu0 %v3813
        %3903 = vmatpush.bf16.msra.mxu0 %v3805
        %3904 = vmatpush.bf16.msra.mxu0 %v3797
        %3905 = vmatmul.bf16.gmra.mxu0 %v2367
        %v3906 = vpop.f32.mrf.mxu0
        %v3907 = vadd.f32 %v3595, %v3906
        %v3908 = vpop.f32.mrf.mxu0
        %v3909 = vadd.f32 %v3597, %v3908
        %3910 = vmatmul.bf16.gmra.mxu0 %v2370
        %v3911 = vpop.f32.mrf.mxu0
        %v3912 = vadd.f32 %v3600, %v3911
        %v3913 = vpop.f32.mrf.mxu0
        %v3914 = vadd.f32 %v3602, %v3913
        %3915 = vdwg.mxu0
        %3916 = vmatpush.bf16.msra.mxu0 0
        %3917 = vmatpush.bf16.msra.mxu0 0
        %3918 = vmatpush.bf16.msra.mxu0 0
        %3919 = vmatpush.bf16.msra.mxu0 0
        %3920 = vmatpush.bf16.msra.mxu0 %v3822
        %3921 = vmatpush.bf16.msra.mxu0 %v3814
        %3922 = vmatpush.bf16.msra.mxu0 %v3806
        %3923 = vmatpush.bf16.msra.mxu0 %v3798
        %3924 = vmatmul.bf16.gmra.mxu0 %v2367
        %v3925 = vpop.f32.mrf.mxu0
        %v3926 = vadd.f32 %v3614, %v3925
        %v3927 = vpop.f32.mrf.mxu0
        %v3928 = vadd.f32 %v3616, %v3927
        %3929 = vmatmul.bf16.gmra.mxu0 %v2370
        %v3930 = vpop.f32.mrf.mxu0
        %v3931 = vadd.f32 %v3619, %v3930
        %v3932 = vpop.f32.mrf.mxu0
        %v3933 = vadd.f32 %v3621, %v3932
        %3934 = vdwg.mxu0
        %3935 = vmatpush.bf16.msra.mxu0 0
        %3936 = vmatpush.bf16.msra.mxu0 0
        %3937 = vmatpush.bf16.msra.mxu0 0
        %3938 = vmatpush.bf16.msra.mxu0 0
        %3939 = vmatpush.bf16.msra.mxu0 %v3823
        %3940 = vmatpush.bf16.msra.mxu0 %v3815
        %3941 = vmatpush.bf16.msra.mxu0 %v3807
        %3942 = vmatpush.bf16.msra.mxu0 %v3799
        %3943 = vmatmul.bf16.gmra.mxu0 %v2367
        %v3944 = vpop.f32.mrf.mxu0
        %v3945 = vadd.f32 %v3633, %v3944
        %v3946 = vpop.f32.mrf.mxu0
        %v3947 = vadd.f32 %v3635, %v3946
        %3948 = vmatmul.bf16.gmra.mxu0 %v2370
        %v3949 = vpop.f32.mrf.mxu0
        %v3950 = vadd.f32 %v3638, %v3949
        %v3951 = vpop.f32.mrf.mxu0
        %v3952 = vadd.f32 %v3640, %v3951
        %3953 = vdwg.mxu0
        %3954 = vmatpush.bf16.msra.mxu0 0
        %3955 = vmatpush.bf16.msra.mxu0 0
        %3956 = vmatpush.bf16.msra.mxu0 0
        %3957 = vmatpush.bf16.msra.mxu0 0
        %3958 = vmatpush.bf16.msra.mxu0 %v3824
        %3959 = vmatpush.bf16.msra.mxu0 %v3816
        %3960 = vmatpush.bf16.msra.mxu0 %v3808
        %3961 = vmatpush.bf16.msra.mxu0 %v3800
        %3962 = vmatmul.bf16.gmra.mxu0 %v2367
        %v3963 = vpop.f32.mrf.mxu0
        %v3964 = vadd.f32 %v3652, %v3963
        %v3965 = vpop.f32.mrf.mxu0
        %v3966 = vadd.f32 %v3654, %v3965
        %3967 = vmatmul.bf16.gmra.mxu0 %v2370
        %v3968 = vpop.f32.mrf.mxu0
        %v3969 = vadd.f32 %v3657, %v3968
        %v3970 = vpop.f32.mrf.mxu0
        %v3971 = vadd.f32 %v3659, %v3970
        %3972 = vdwg.mxu0
        %3973 = vmatpush.bf16.msra.mxu0 0
        %3974 = vmatpush.bf16.msra.mxu0 0
        %3975 = vmatpush.bf16.msra.mxu0 0
        %3976 = vmatpush.bf16.msra.mxu0 0
        %3977 = vmatpush.bf16.msra.mxu0 %v3825
        %3978 = vmatpush.bf16.msra.mxu0 %v3817
        %3979 = vmatpush.bf16.msra.mxu0 %v3809
        %3980 = vmatpush.bf16.msra.mxu0 %v3801
        %3981 = vmatmul.bf16.gmra.mxu0 %v2367
        %v3982 = vpop.f32.mrf.mxu0
        %v3983 = vadd.f32 %v3671, %v3982
        %v3984 = vpop.f32.mrf.mxu0
        %v3985 = vadd.f32 %v3673, %v3984
        %3986 = vmatmul.bf16.gmra.mxu0 %v2370
        %v3987 = vpop.f32.mrf.mxu0
        %v3988 = vadd.f32 %v3676, %v3987
        %v3989 = vpop.f32.mrf.mxu0
        %v3990 = vadd.f32 %v3678, %v3989
        %3991 = vdwg.mxu0
        %3992 = vmatpush.bf16.msra.mxu0 0
        %3993 = vmatpush.bf16.msra.mxu0 0
        %3994 = vmatpush.bf16.msra.mxu0 0
        %3995 = vmatpush.bf16.msra.mxu0 0
        %3996 = vmatpush.bf16.msra.mxu0 %v3826
        %3997 = vmatpush.bf16.msra.mxu0 %v3818
        %3998 = vmatpush.bf16.msra.mxu0 %v3810
        %3999 = vmatpush.bf16.msra.mxu0 %v3802
        %4000 = vmatmul.bf16.gmra.mxu0 %v2367
        %v4001 = vpop.f32.mrf.mxu0
        %v4002 = vadd.f32 %v3690, %v4001
        %v4003 = vpop.f32.mrf.mxu0
        %v4004 = vadd.f32 %v3692, %v4003
        %4005 = vmatmul.bf16.gmra.mxu0 %v2370
        %v4006 = vpop.f32.mrf.mxu0
        %v4007 = vadd.f32 %v3695, %v4006
        %v4008 = vpop.f32.mrf.mxu0
        %v4009 = vadd.f32 %v3697, %v4008
        %4010 = vdwg.mxu0
        %v4011 = vld [vmem:[%s43] sm:$0xff]
        %v4013 = vperm.slane %v4011, 0
        %v4014 = vperm.slane %v4011, 1
        %v4015 = vperm.slane %v4011, 2
        %v4016 = vperm.slane %v4011, 3
        %v4017 = vperm.slane %v4011, 4
        %v4018 = vperm.slane %v4011, 5
        %v4019 = vperm.slane %v4011, 6
        %v4020 = vperm.slane %v4011, 7
        %v4029 = vadd.f32 %v3869, %v4013
        %v4030 = vadd.f32 %v3888, %v4014
        %v4031 = vadd.f32 %v3907, %v4015
        %v4032 = vadd.f32 %v3926, %v4016
        %v4033 = vadd.f32 %v3945, %v4017
        %v4034 = vadd.f32 %v3964, %v4018
        %v4035 = vadd.f32 %v3983, %v4019
        %v4036 = vadd.f32 %v4002, %v4020
        %v4037 = vadd.f32 %v3871, %v4013
        %v4038 = vadd.f32 %v3890, %v4014
        %v4039 = vadd.f32 %v3909, %v4015
        %v4040 = vadd.f32 %v3928, %v4016
        %v4041 = vadd.f32 %v3947, %v4017
        %v4042 = vadd.f32 %v3966, %v4018
        %v4043 = vadd.f32 %v3985, %v4019
        %v4044 = vadd.f32 %v4004, %v4020
        %v4045 = vadd.f32 %v3874, %v4013
        %v4046 = vadd.f32 %v3893, %v4014
        %v4047 = vadd.f32 %v3912, %v4015
        %v4048 = vadd.f32 %v3931, %v4016
        %v4049 = vadd.f32 %v3950, %v4017
        %v4050 = vadd.f32 %v3969, %v4018
        %v4051 = vadd.f32 %v3988, %v4019
        %v4052 = vadd.f32 %v4007, %v4020
        %v4053 = vadd.f32 %v3876, %v4013
        %v4054 = vadd.f32 %v3895, %v4014
        %v4055 = vadd.f32 %v3914, %v4015
        %v4056 = vadd.f32 %v3933, %v4016
        %v4057 = vadd.f32 %v3952, %v4017
        %v4058 = vadd.f32 %v3971, %v4018
        %v4059 = vadd.f32 %v3990, %v4019
        %v4060 = vadd.f32 %v4009, %v4020
        %v4061 = vmax.f32 %v4029, 0.0
        %v4062 = vmax.f32 %v4030, 0.0
        %v4063 = vmax.f32 %v4031, 0.0
        %v4064 = vmax.f32 %v4032, 0.0
        %v4065 = vmax.f32 %v4033, 0.0
        %v4066 = vmax.f32 %v4034, 0.0
        %v4067 = vmax.f32 %v4035, 0.0
        %v4068 = vmax.f32 %v4036, 0.0
        %v4069 = vmax.f32 %v4037, 0.0
        %v4070 = vmax.f32 %v4038, 0.0
        %v4071 = vmax.f32 %v4039, 0.0
        %v4072 = vmax.f32 %v4040, 0.0
        %v4073 = vmax.f32 %v4041, 0.0
        %v4074 = vmax.f32 %v4042, 0.0
        %v4075 = vmax.f32 %v4043, 0.0
        %v4076 = vmax.f32 %v4044, 0.0
        %v4077 = vmax.f32 %v4045, 0.0
        %v4078 = vmax.f32 %v4046, 0.0
        %v4079 = vmax.f32 %v4047, 0.0
        %v4080 = vmax.f32 %v4048, 0.0
        %v4081 = vmax.f32 %v4049, 0.0
        %v4082 = vmax.f32 %v4050, 0.0
        %v4083 = vmax.f32 %v4051, 0.0
        %v4084 = vmax.f32 %v4052, 0.0
        %v4085 = vmax.f32 %v4053, 0.0
        %v4086 = vmax.f32 %v4054, 0.0
        %v4087 = vmax.f32 %v4055, 0.0
        %v4088 = vmax.f32 %v4056, 0.0
        %v4089 = vmax.f32 %v4057, 0.0
        %v4090 = vmax.f32 %v4058, 0.0
        %v4091 = vmax.f32 %v4059, 0.0
        %v4092 = vmax.f32 %v4060, 0.0
        %v4093 = vld [vmem:[%s45] sm:$0xff]
        %v4095 = vperm.slane %v4093, 0
        %v4096 = vperm.slane %v4093, 1
        %v4097 = vperm.slane %v4093, 2
        %v4098 = vperm.slane %v4093, 3
        %v4099 = vperm.slane %v4093, 4
        %v4100 = vperm.slane %v4093, 5
        %v4101 = vperm.slane %v4093, 6
        %v4102 = vperm.slane %v4093, 7
        %v4111 = vmul.f32 %v4061, %v4095
        %v4112 = vmul.f32 %v4062, %v4096
        %v4113 = vmul.f32 %v4063, %v4097
        %v4114 = vmul.f32 %v4064, %v4098
        %v4115 = vmul.f32 %v4065, %v4099
        %v4116 = vmul.f32 %v4066, %v4100
        %v4117 = vmul.f32 %v4067, %v4101
        %v4118 = vmul.f32 %v4068, %v4102
        %v4119 = vmul.f32 %v4069, %v4095
        %v4120 = vmul.f32 %v4070, %v4096
        %v4121 = vmul.f32 %v4071, %v4097
        %v4122 = vmul.f32 %v4072, %v4098
        %v4123 = vmul.f32 %v4073, %v4099
        %v4124 = vmul.f32 %v4074, %v4100
        %v4125 = vmul.f32 %v4075, %v4101
        %v4126 = vmul.f32 %v4076, %v4102
        %v4127 = vmul.f32 %v4077, %v4095
        %v4128 = vmul.f32 %v4078, %v4096
        %v4129 = vmul.f32 %v4079, %v4097
        %v4130 = vmul.f32 %v4080, %v4098
        %v4131 = vmul.f32 %v4081, %v4099
        %v4132 = vmul.f32 %v4082, %v4100
        %v4133 = vmul.f32 %v4083, %v4101
        %v4134 = vmul.f32 %v4084, %v4102
        %v4135 = vmul.f32 %v4085, %v4095
        %v4136 = vmul.f32 %v4086, %v4096
        %v4137 = vmul.f32 %v4087, %v4097
        %v4138 = vmul.f32 %v4088, %v4098
        %v4139 = vmul.f32 %v4089, %v4099
        %v4140 = vmul.f32 %v4090, %v4100
        %v4141 = vmul.f32 %v4091, %v4101
        %v4142 = vmul.f32 %v4092, %v4102
        %v4143 = vld [vmem:[%s47] sm:$0xff]
        %v4145 = vperm.slane %v4143, 0
        %v4146 = vperm.slane %v4143, 1
        %v4147 = vperm.slane %v4143, 2
        %v4148 = vperm.slane %v4143, 3
        %v4149 = vperm.slane %v4143, 4
        %v4150 = vperm.slane %v4143, 5
        %v4151 = vperm.slane %v4143, 6
        %v4152 = vperm.slane %v4143, 7
        %v4161 = vadd.f32 %v4111, %v4145
        %v4162 = vadd.f32 %v4112, %v4146
        %v4163 = vadd.f32 %v4113, %v4147
        %v4164 = vadd.f32 %v4114, %v4148
        %v4165 = vadd.f32 %v4115, %v4149
        %v4166 = vadd.f32 %v4116, %v4150
        %v4167 = vadd.f32 %v4117, %v4151
        %v4168 = vadd.f32 %v4118, %v4152
        %v4169 = vadd.f32 %v4119, %v4145
        %v4170 = vadd.f32 %v4120, %v4146
        %v4171 = vadd.f32 %v4121, %v4147
        %v4172 = vadd.f32 %v4122, %v4148
        %v4173 = vadd.f32 %v4123, %v4149
        %v4174 = vadd.f32 %v4124, %v4150
        %v4175 = vadd.f32 %v4125, %v4151
        %v4176 = vadd.f32 %v4126, %v4152
        %v4177 = vadd.f32 %v4127, %v4145
        %v4178 = vadd.f32 %v4128, %v4146
        %v4179 = vadd.f32 %v4129, %v4147
        %v4180 = vadd.f32 %v4130, %v4148
        %v4181 = vadd.f32 %v4131, %v4149
        %v4182 = vadd.f32 %v4132, %v4150
        %v4183 = vadd.f32 %v4133, %v4151
        %v4184 = vadd.f32 %v4134, %v4152
        %v4185 = vadd.f32 %v4135, %v4145
        %v4186 = vadd.f32 %v4136, %v4146
        %v4187 = vadd.f32 %v4137, %v4147
        %v4188 = vadd.f32 %v4138, %v4148
        %v4189 = vadd.f32 %v4139, %v4149
        %v4190 = vadd.f32 %v4140, %v4150
        %v4191 = vadd.f32 %v4141, %v4151
        %v4192 = vadd.f32 %v4142, %v4152
        %v4193 = vmax.f32 %v4161, %v4169
        %v4194 = vmax.f32 %v4193, %v4177
        %v4195 = vmax.f32 %v4194, %v4185
        %v4196 = vrot.slane %v4195, 4
        %v4197 = vmax.f32 %v4195, %v4196
        %v4198 = vrot.slane %v4197, 2
        %v4199 = vmax.f32 %v4197, %v4198
        %v4200 = vrot.slane %v4199, 1
        %v4201 = vmax.f32 %v4199, %v4200
        %v4202 = vmax.f32 %v4162, %v4170
        %v4203 = vmax.f32 %v4202, %v4178
        %v4204 = vmax.f32 %v4203, %v4186
        %v4205 = vrot.slane %v4204, 4
        %v4206 = vmax.f32 %v4204, %v4205
        %v4207 = vrot.slane %v4206, 2
        %v4208 = vmax.f32 %v4206, %v4207
        %v4209 = vrot.slane %v4208, 1
        %v4210 = vmax.f32 %v4208, %v4209
        %v4211 = vmax.f32 %v4163, %v4171
        %v4212 = vmax.f32 %v4211, %v4179
        %v4213 = vmax.f32 %v4212, %v4187
        %v4214 = vrot.slane %v4213, 4
        %v4215 = vmax.f32 %v4213, %v4214
        %v4216 = vrot.slane %v4215, 2
        %v4217 = vmax.f32 %v4215, %v4216
        %v4218 = vrot.slane %v4217, 1
        %v4219 = vmax.f32 %v4217, %v4218
        %v4220 = vmax.f32 %v4164, %v4172
        %v4221 = vmax.f32 %v4220, %v4180
        %v4222 = vmax.f32 %v4221, %v4188
        %v4223 = vrot.slane %v4222, 4
        %v4224 = vmax.f32 %v4222, %v4223
        %v4225 = vrot.slane %v4224, 2
        %v4226 = vmax.f32 %v4224, %v4225
        %v4227 = vrot.slane %v4226, 1
        %v4228 = vmax.f32 %v4226, %v4227
        %v4229 = vmax.f32 %v4165, %v4173
        %v4230 = vmax.f32 %v4229, %v4181
        %v4231 = vmax.f32 %v4230, %v4189
        %v4232 = vrot.slane %v4231, 4
        %v4233 = vmax.f32 %v4231, %v4232
        %v4234 = vrot.slane %v4233, 2
        %v4235 = vmax.f32 %v4233, %v4234
        %v4236 = vrot.slane %v4235, 1
        %v4237 = vmax.f32 %v4235, %v4236
        %v4238 = vmax.f32 %v4166, %v4174
        %v4239 = vmax.f32 %v4238, %v4182
        %v4240 = vmax.f32 %v4239, %v4190
        %v4241 = vrot.slane %v4240, 4
        %v4242 = vmax.f32 %v4240, %v4241
        %v4243 = vrot.slane %v4242, 2
        %v4244 = vmax.f32 %v4242, %v4243
        %v4245 = vrot.slane %v4244, 1
        %v4246 = vmax.f32 %v4244, %v4245
        %v4247 = vmax.f32 %v4167, %v4175
        %v4248 = vmax.f32 %v4247, %v4183
        %v4249 = vmax.f32 %v4248, %v4191
        %v4250 = vrot.slane %v4249, 4
        %v4251 = vmax.f32 %v4249, %v4250
        %v4252 = vrot.slane %v4251, 2
        %v4253 = vmax.f32 %v4251, %v4252
        %v4254 = vrot.slane %v4253, 1
        %v4255 = vmax.f32 %v4253, %v4254
        %v4256 = vmax.f32 %v4168, %v4176
        %v4257 = vmax.f32 %v4256, %v4184
        %v4258 = vmax.f32 %v4257, %v4192
        %v4259 = vrot.slane %v4258, 4
        %v4260 = vmax.f32 %v4258, %v4259
        %v4261 = vrot.slane %v4260, 2
        %v4262 = vmax.f32 %v4260, %v4261
        %v4263 = vrot.slane %v4262, 1
        %v4264 = vmax.f32 %v4262, %v4263
        %v4265 = vpack.c.bf16 %v4201, %v4201
        %v4266 = vpack.c.bf16 %v4210, %v4210
        %v4267 = vpack.c.bf16 %v4219, %v4219
        %v4268 = vpack.c.bf16 %v4228, %v4228
        %v4269 = vpack.c.bf16 %v4237, %v4237
        %v4270 = vpack.c.bf16 %v4246, %v4246
        %v4271 = vpack.c.bf16 %v4255, %v4255
        %v4272 = vpack.c.bf16 %v4264, %v4264
        %v4273 = vld [vmem:[#allocation7] sm:$0xff]
        %v4274 = vld [vmem:[#allocation7 + $0x8] sm:$0xff]
        %v4275 = vld [vmem:[#allocation7 + $0x10] sm:$0xff]
        %v4276 = vld [vmem:[#allocation7 + $0x18] sm:$0xff]
        %v4277 = vld [vmem:[#allocation7 + $0x20] sm:$0xff]
        %v4278 = vld [vmem:[#allocation7 + $0x28] sm:$0xff]
        %v4279 = vld [vmem:[#allocation7 + $0x30] sm:$0xff]
        %v4280 = vld [vmem:[#allocation7 + $0x38] sm:$0xff]
        %v4281 = vld [vmem:[#allocation7 + $0x40] sm:$0xff]
        %v4282 = vld [vmem:[#allocation7 + $0x48] sm:$0xff]
        %v4283 = vld [vmem:[#allocation7 + $0x50] sm:$0xff]
        %v4284 = vld [vmem:[#allocation7 + $0x58] sm:$0xff]
        %v4285 = vld [vmem:[#allocation7 + $0x60] sm:$0xff]
        %v4286 = vld [vmem:[#allocation7 + $0x68] sm:$0xff]
        %v4287 = vld [vmem:[#allocation7 + $0x70] sm:$0xff]
        %v4288 = vld [vmem:[#allocation7 + $0x78] sm:$0xff]
        %v4289 = vld [vmem:[#allocation7 + $0x80] sm:$0xff]
        %v4290 = vld [vmem:[#allocation7 + $0x88] sm:$0xff]
        %v4291 = vld [vmem:[#allocation7 + $0x90] sm:$0xff]
        %v4292 = vld [vmem:[#allocation7 + $0x98] sm:$0xff]
        %v4293 = vld [vmem:[#allocation7 + $0xa0] sm:$0xff]
        %v4294 = vld [vmem:[#allocation7 + $0xa8] sm:$0xff]
        %v4295 = vld [vmem:[#allocation7 + $0xb0] sm:$0xff]
        %v4296 = vld [vmem:[#allocation7 + $0xb8] sm:$0xff]
        %v4297 = vld [vmem:[#allocation7 + $0xc0] sm:$0xff]
        %v4298 = vld [vmem:[#allocation7 + $0xc8] sm:$0xff]
        %v4299 = vld [vmem:[#allocation7 + $0xd0] sm:$0xff]
        %v4300 = vld [vmem:[#allocation7 + $0xd8] sm:$0xff]
        %v4301 = vld [vmem:[#allocation7 + $0xe0] sm:$0xff]
        %v4302 = vld [vmem:[#allocation7 + $0xe8] sm:$0xff]
        %v4303 = vld [vmem:[#allocation7 + $0xf0] sm:$0xff]
        %v4304 = vld [vmem:[#allocation7 + $0xf8] sm:$0xff]
        %v4305 = vld [vmem:[#allocation7 + $0x100] sm:$0xff]
        %v4306 = vld [vmem:[#allocation7 + $0x108] sm:$0xff]
        %v4307 = vld [vmem:[#allocation7 + $0x110] sm:$0xff]
        %v4308 = vld [vmem:[#allocation7 + $0x118] sm:$0xff]
        %v4309 = vld [vmem:[#allocation7 + $0x120] sm:$0xff]
        %v4310 = vld [vmem:[#allocation7 + $0x128] sm:$0xff]
        %v4311 = vld [vmem:[#allocation7 + $0x130] sm:$0xff]
        %v4312 = vld [vmem:[#allocation7 + $0x138] sm:$0xff]
        %v4313 = vld [vmem:[#allocation7 + $0x140] sm:$0xff]
        %v4314 = vld [vmem:[#allocation7 + $0x148] sm:$0xff]
        %v4315 = vld [vmem:[#allocation7 + $0x150] sm:$0xff]
        %v4316 = vld [vmem:[#allocation7 + $0x158] sm:$0xff]
        %v4317 = vld [vmem:[#allocation7 + $0x160] sm:$0xff]
        %v4318 = vld [vmem:[#allocation7 + $0x168] sm:$0xff]
        %v4319 = vld [vmem:[#allocation7 + $0x170] sm:$0xff]
        %v4320 = vld [vmem:[#allocation7 + $0x178] sm:$0xff]
        %v4321 = vld [vmem:[#allocation7 + $0x180] sm:$0xff]
        %v4322 = vld [vmem:[#allocation7 + $0x188] sm:$0xff]
        %v4323 = vld [vmem:[#allocation7 + $0x190] sm:$0xff]
        %v4324 = vld [vmem:[#allocation7 + $0x198] sm:$0xff]
        %v4325 = vld [vmem:[#allocation7 + $0x1a0] sm:$0xff]
        %v4326 = vld [vmem:[#allocation7 + $0x1a8] sm:$0xff]
        %v4327 = vld [vmem:[#allocation7 + $0x1b0] sm:$0xff]
        %v4328 = vld [vmem:[#allocation7 + $0x1b8] sm:$0xff]
        %v4329 = vld [vmem:[#allocation7 + $0x1c0] sm:$0xff]
        %v4330 = vld [vmem:[#allocation7 + $0x1c8] sm:$0xff]
        %v4331 = vld [vmem:[#allocation7 + $0x1d0] sm:$0xff]
        %v4332 = vld [vmem:[#allocation7 + $0x1d8] sm:$0xff]
        %v4333 = vld [vmem:[#allocation7 + $0x1e0] sm:$0xff]
        %v4334 = vld [vmem:[#allocation7 + $0x1e8] sm:$0xff]
        %v4335 = vld [vmem:[#allocation7 + $0x1f0] sm:$0xff]
        %v4336 = vld [vmem:[#allocation7 + $0x1f8] sm:$0xff]
        %v4337 = vld [vmem:[#allocation7 + $0x200] sm:$0xff]
        %v4338 = vld [vmem:[#allocation7 + $0x208] sm:$0xff]
        %v4339 = vld [vmem:[#allocation7 + $0x210] sm:$0xff]
        %v4340 = vld [vmem:[#allocation7 + $0x218] sm:$0xff]
        %v4341 = vld [vmem:[#allocation7 + $0x220] sm:$0xff]
        %v4342 = vld [vmem:[#allocation7 + $0x228] sm:$0xff]
        %v4343 = vld [vmem:[#allocation7 + $0x230] sm:$0xff]
        %v4344 = vld [vmem:[#allocation7 + $0x238] sm:$0xff]
        %v4345 = vld [vmem:[#allocation7 + $0x240] sm:$0xff]
        %v4346 = vld [vmem:[#allocation7 + $0x248] sm:$0xff]
        %v4347 = vld [vmem:[#allocation7 + $0x250] sm:$0xff]
        %v4348 = vld [vmem:[#allocation7 + $0x258] sm:$0xff]
        %v4349 = vld [vmem:[#allocation7 + $0x260] sm:$0xff]
        %v4350 = vld [vmem:[#allocation7 + $0x268] sm:$0xff]
        %v4351 = vld [vmem:[#allocation7 + $0x270] sm:$0xff]
        %v4352 = vld [vmem:[#allocation7 + $0x278] sm:$0xff]
        %v4353 = vld [vmem:[#allocation7 + $0x280] sm:$0xff]
        %v4354 = vld [vmem:[#allocation7 + $0x288] sm:$0xff]
        %v4355 = vld [vmem:[#allocation7 + $0x290] sm:$0xff]
        %v4356 = vld [vmem:[#allocation7 + $0x298] sm:$0xff]
        %v4357 = vld [vmem:[#allocation7 + $0x2a0] sm:$0xff]
        %v4358 = vld [vmem:[#allocation7 + $0x2a8] sm:$0xff]
        %v4359 = vld [vmem:[#allocation7 + $0x2b0] sm:$0xff]
        %v4360 = vld [vmem:[#allocation7 + $0x2b8] sm:$0xff]
        %v4361 = vld [vmem:[#allocation7 + $0x2c0] sm:$0xff]
        %v4362 = vld [vmem:[#allocation7 + $0x2c8] sm:$0xff]
        %v4363 = vld [vmem:[#allocation7 + $0x2d0] sm:$0xff]
        %v4364 = vld [vmem:[#allocation7 + $0x2d8] sm:$0xff]
        %v4365 = vld [vmem:[#allocation7 + $0x2e0] sm:$0xff]
        %v4366 = vld [vmem:[#allocation7 + $0x2e8] sm:$0xff]
        %v4367 = vld [vmem:[#allocation7 + $0x2f0] sm:$0xff]
        %v4368 = vld [vmem:[#allocation7 + $0x2f8] sm:$0xff]
        %v4369 = vld [vmem:[#allocation7 + $0x300] sm:$0xff]
        %v4370 = vld [vmem:[#allocation7 + $0x308] sm:$0xff]
        %v4371 = vld [vmem:[#allocation7 + $0x310] sm:$0xff]
        %v4372 = vld [vmem:[#allocation7 + $0x318] sm:$0xff]
        %v4373 = vld [vmem:[#allocation7 + $0x320] sm:$0xff]
        %v4374 = vld [vmem:[#allocation7 + $0x328] sm:$0xff]
        %v4375 = vld [vmem:[#allocation7 + $0x330] sm:$0xff]
        %v4376 = vld [vmem:[#allocation7 + $0x338] sm:$0xff]
        %v4377 = vld [vmem:[#allocation7 + $0x340] sm:$0xff]
        %v4378 = vld [vmem:[#allocation7 + $0x348] sm:$0xff]
        %v4379 = vld [vmem:[#allocation7 + $0x350] sm:$0xff]
        %v4380 = vld [vmem:[#allocation7 + $0x358] sm:$0xff]
        %v4381 = vld [vmem:[#allocation7 + $0x360] sm:$0xff]
        %v4382 = vld [vmem:[#allocation7 + $0x368] sm:$0xff]
        %v4383 = vld [vmem:[#allocation7 + $0x370] sm:$0xff]
        %v4384 = vld [vmem:[#allocation7 + $0x378] sm:$0xff]
        %v4385 = vld [vmem:[#allocation7 + $0x380] sm:$0xff]
        %v4386 = vld [vmem:[#allocation7 + $0x388] sm:$0xff]
        %v4387 = vld [vmem:[#allocation7 + $0x390] sm:$0xff]
        %v4388 = vld [vmem:[#allocation7 + $0x398] sm:$0xff]
        %v4389 = vld [vmem:[#allocation7 + $0x3a0] sm:$0xff]
        %v4390 = vld [vmem:[#allocation7 + $0x3a8] sm:$0xff]
        %v4391 = vld [vmem:[#allocation7 + $0x3b0] sm:$0xff]
        %v4392 = vld [vmem:[#allocation7 + $0x3b8] sm:$0xff]
        %v4393 = vld [vmem:[#allocation7 + $0x3c0] sm:$0xff]
        %v4394 = vld [vmem:[#allocation7 + $0x3c8] sm:$0xff]
        %v4395 = vld [vmem:[#allocation7 + $0x3d0] sm:$0xff]
        %v4396 = vld [vmem:[#allocation7 + $0x3d8] sm:$0xff]
        %v4397 = vld [vmem:[#allocation7 + $0x3e0] sm:$0xff]
        %v4398 = vld [vmem:[#allocation7 + $0x3e8] sm:$0xff]
        %v4399 = vld [vmem:[#allocation7 + $0x3f0] sm:$0xff]
        %v4400 = vld [vmem:[#allocation7 + $0x3f8] sm:$0xff]
        %v4401 = vld [vmem:[#allocation7 + $0x400] sm:$0xff]
        %v4402 = vld [vmem:[#allocation7 + $0x408] sm:$0xff]
        %v4403 = vld [vmem:[#allocation7 + $0x410] sm:$0xff]
        %v4404 = vld [vmem:[#allocation7 + $0x418] sm:$0xff]
        %v4405 = vld [vmem:[#allocation7 + $0x420] sm:$0xff]
        %v4406 = vld [vmem:[#allocation7 + $0x428] sm:$0xff]
        %v4407 = vld [vmem:[#allocation7 + $0x430] sm:$0xff]
        %v4408 = vld [vmem:[#allocation7 + $0x438] sm:$0xff]
        %v4409 = vld [vmem:[#allocation7 + $0x440] sm:$0xff]
        %v4410 = vld [vmem:[#allocation7 + $0x448] sm:$0xff]
        %v4411 = vld [vmem:[#allocation7 + $0x450] sm:$0xff]
        %v4412 = vld [vmem:[#allocation7 + $0x458] sm:$0xff]
        %v4413 = vld [vmem:[#allocation7 + $0x460] sm:$0xff]
        %v4414 = vld [vmem:[#allocation7 + $0x468] sm:$0xff]
        %v4415 = vld [vmem:[#allocation7 + $0x470] sm:$0xff]
        %v4416 = vld [vmem:[#allocation7 + $0x478] sm:$0xff]
        %v4417 = vld [vmem:[#allocation7 + $0x480] sm:$0xff]
        %v4418 = vld [vmem:[#allocation7 + $0x488] sm:$0xff]
        %v4419 = vld [vmem:[#allocation7 + $0x490] sm:$0xff]
        %v4420 = vld [vmem:[#allocation7 + $0x498] sm:$0xff]
        %v4421 = vld [vmem:[#allocation7 + $0x4a0] sm:$0xff]
        %v4422 = vld [vmem:[#allocation7 + $0x4a8] sm:$0xff]
        %v4423 = vld [vmem:[#allocation7 + $0x4b0] sm:$0xff]
        %v4424 = vld [vmem:[#allocation7 + $0x4b8] sm:$0xff]
        %v4425 = vld [vmem:[#allocation7 + $0x4c0] sm:$0xff]
        %v4426 = vld [vmem:[#allocation7 + $0x4c8] sm:$0xff]
        %v4427 = vld [vmem:[#allocation7 + $0x4d0] sm:$0xff]
        %v4428 = vld [vmem:[#allocation7 + $0x4d8] sm:$0xff]
        %v4429 = vld [vmem:[#allocation7 + $0x4e0] sm:$0xff]
        %v4430 = vld [vmem:[#allocation7 + $0x4e8] sm:$0xff]
        %v4431 = vld [vmem:[#allocation7 + $0x4f0] sm:$0xff]
        %v4432 = vld [vmem:[#allocation7 + $0x4f8] sm:$0xff]
        %v4433 = vld [vmem:[#allocation7 + $0x500] sm:$0xff]
        %v4434 = vld [vmem:[#allocation7 + $0x508] sm:$0xff]
        %v4435 = vld [vmem:[#allocation7 + $0x510] sm:$0xff]
        %v4436 = vld [vmem:[#allocation7 + $0x518] sm:$0xff]
        %v4437 = vld [vmem:[#allocation7 + $0x520] sm:$0xff]
        %v4438 = vld [vmem:[#allocation7 + $0x528] sm:$0xff]
        %v4439 = vld [vmem:[#allocation7 + $0x530] sm:$0xff]
        %v4440 = vld [vmem:[#allocation7 + $0x538] sm:$0xff]
        %v4441 = vld [vmem:[#allocation7 + $0x540] sm:$0xff]
        %v4442 = vld [vmem:[#allocation7 + $0x548] sm:$0xff]
        %v4443 = vld [vmem:[#allocation7 + $0x550] sm:$0xff]
        %v4444 = vld [vmem:[#allocation7 + $0x558] sm:$0xff]
        %v4445 = vld [vmem:[#allocation7 + $0x560] sm:$0xff]
        %v4446 = vld [vmem:[#allocation7 + $0x568] sm:$0xff]
        %v4447 = vld [vmem:[#allocation7 + $0x570] sm:$0xff]
        %v4448 = vld [vmem:[#allocation7 + $0x578] sm:$0xff]
        %v4449 = vld [vmem:[#allocation7 + $0x580] sm:$0xff]
        %v4450 = vld [vmem:[#allocation7 + $0x588] sm:$0xff]
        %v4451 = vld [vmem:[#allocation7 + $0x590] sm:$0xff]
        %v4452 = vld [vmem:[#allocation7 + $0x598] sm:$0xff]
        %v4453 = vld [vmem:[#allocation7 + $0x5a0] sm:$0xff]
        %v4454 = vld [vmem:[#allocation7 + $0x5a8] sm:$0xff]
        %v4455 = vld [vmem:[#allocation7 + $0x5b0] sm:$0xff]
        %v4456 = vld [vmem:[#allocation7 + $0x5b8] sm:$0xff]
        %v4457 = vld [vmem:[#allocation7 + $0x5c0] sm:$0xff]
        %v4458 = vld [vmem:[#allocation7 + $0x5c8] sm:$0xff]
        %v4459 = vld [vmem:[#allocation7 + $0x5d0] sm:$0xff]
        %v4460 = vld [vmem:[#allocation7 + $0x5d8] sm:$0xff]
        %v4461 = vld [vmem:[#allocation7 + $0x5e0] sm:$0xff]
        %v4462 = vld [vmem:[#allocation7 + $0x5e8] sm:$0xff]
        %v4463 = vld [vmem:[#allocation7 + $0x5f0] sm:$0xff]
        %v4464 = vld [vmem:[#allocation7 + $0x5f8] sm:$0xff]
        %v4465 = vld [vmem:[#allocation7 + $0x600] sm:$0xff]
        %v4466 = vld [vmem:[#allocation7 + $0x608] sm:$0xff]
        %v4467 = vld [vmem:[#allocation7 + $0x610] sm:$0xff]
        %v4468 = vld [vmem:[#allocation7 + $0x618] sm:$0xff]
        %v4469 = vld [vmem:[#allocation7 + $0x620] sm:$0xff]
        %v4470 = vld [vmem:[#allocation7 + $0x628] sm:$0xff]
        %v4471 = vld [vmem:[#allocation7 + $0x630] sm:$0xff]
        %v4472 = vld [vmem:[#allocation7 + $0x638] sm:$0xff]
        %v4473 = vld [vmem:[#allocation7 + $0x640] sm:$0xff]
        %v4474 = vld [vmem:[#allocation7 + $0x648] sm:$0xff]
        %v4475 = vld [vmem:[#allocation7 + $0x650] sm:$0xff]
        %v4476 = vld [vmem:[#allocation7 + $0x658] sm:$0xff]
        %v4477 = vld [vmem:[#allocation7 + $0x660] sm:$0xff]
        %v4478 = vld [vmem:[#allocation7 + $0x668] sm:$0xff]
        %v4479 = vld [vmem:[#allocation7 + $0x670] sm:$0xff]
        %v4480 = vld [vmem:[#allocation7 + $0x678] sm:$0xff]
        %v4481 = vld [vmem:[#allocation7 + $0x680] sm:$0xff]
        %v4482 = vld [vmem:[#allocation7 + $0x688] sm:$0xff]
        %v4483 = vld [vmem:[#allocation7 + $0x690] sm:$0xff]
        %v4484 = vld [vmem:[#allocation7 + $0x698] sm:$0xff]
        %v4485 = vld [vmem:[#allocation7 + $0x6a0] sm:$0xff]
        %v4486 = vld [vmem:[#allocation7 + $0x6a8] sm:$0xff]
        %v4487 = vld [vmem:[#allocation7 + $0x6b0] sm:$0xff]
        %v4488 = vld [vmem:[#allocation7 + $0x6b8] sm:$0xff]
        %v4489 = vld [vmem:[#allocation7 + $0x6c0] sm:$0xff]
        %v4490 = vld [vmem:[#allocation7 + $0x6c8] sm:$0xff]
        %v4491 = vld [vmem:[#allocation7 + $0x6d0] sm:$0xff]
        %v4492 = vld [vmem:[#allocation7 + $0x6d8] sm:$0xff]
        %v4493 = vld [vmem:[#allocation7 + $0x6e0] sm:$0xff]
        %v4494 = vld [vmem:[#allocation7 + $0x6e8] sm:$0xff]
        %v4495 = vld [vmem:[#allocation7 + $0x6f0] sm:$0xff]
        %v4496 = vld [vmem:[#allocation7 + $0x6f8] sm:$0xff]
        %v4497 = vld [vmem:[#allocation7 + $0x700] sm:$0xff]
        %v4498 = vld [vmem:[#allocation7 + $0x708] sm:$0xff]
        %v4499 = vld [vmem:[#allocation7 + $0x710] sm:$0xff]
        %v4500 = vld [vmem:[#allocation7 + $0x718] sm:$0xff]
        %v4501 = vld [vmem:[#allocation7 + $0x720] sm:$0xff]
        %v4502 = vld [vmem:[#allocation7 + $0x728] sm:$0xff]
        %v4503 = vld [vmem:[#allocation7 + $0x730] sm:$0xff]
        %v4504 = vld [vmem:[#allocation7 + $0x738] sm:$0xff]
        %v4505 = vld [vmem:[#allocation7 + $0x740] sm:$0xff]
        %v4506 = vld [vmem:[#allocation7 + $0x748] sm:$0xff]
        %v4507 = vld [vmem:[#allocation7 + $0x750] sm:$0xff]
        %v4508 = vld [vmem:[#allocation7 + $0x758] sm:$0xff]
        %v4509 = vld [vmem:[#allocation7 + $0x760] sm:$0xff]
        %v4510 = vld [vmem:[#allocation7 + $0x768] sm:$0xff]
        %v4511 = vld [vmem:[#allocation7 + $0x770] sm:$0xff]
        %v4512 = vld [vmem:[#allocation7 + $0x778] sm:$0xff]
        %v4513 = vld [vmem:[#allocation7 + $0x780] sm:$0xff]
        %v4514 = vld [vmem:[#allocation7 + $0x788] sm:$0xff]
        %v4515 = vld [vmem:[#allocation7 + $0x790] sm:$0xff]
        %v4516 = vld [vmem:[#allocation7 + $0x798] sm:$0xff]
        %v4517 = vld [vmem:[#allocation7 + $0x7a0] sm:$0xff]
        %v4518 = vld [vmem:[#allocation7 + $0x7a8] sm:$0xff]
        %v4519 = vld [vmem:[#allocation7 + $0x7b0] sm:$0xff]
        %v4520 = vld [vmem:[#allocation7 + $0x7b8] sm:$0xff]
        %v4521 = vld [vmem:[#allocation7 + $0x7c0] sm:$0xff]
        %v4522 = vld [vmem:[#allocation7 + $0x7c8] sm:$0xff]
        %v4523 = vld [vmem:[#allocation7 + $0x7d0] sm:$0xff]
        %v4524 = vld [vmem:[#allocation7 + $0x7d8] sm:$0xff]
        %v4525 = vld [vmem:[#allocation7 + $0x7e0] sm:$0xff]
        %v4526 = vld [vmem:[#allocation7 + $0x7e8] sm:$0xff]
        %v4527 = vld [vmem:[#allocation7 + $0x7f0] sm:$0xff]
        %v4528 = vld [vmem:[#allocation7 + $0x7f8] sm:$0xff]
        %v4529 = vld [vmem:[%s51] sm:$0xf]
        %v4786 = vunpack.c.l.b16 %v4273
        %v4787 = vunpack.c.h.b16 %v4273
        %v4788 = vunpack.c.l.b16 %v4274
        %v4789 = vunpack.c.h.b16 %v4274
        %v4790 = vunpack.c.l.b16 %v4275
        %v4791 = vunpack.c.h.b16 %v4275
        %v4792 = vunpack.c.l.b16 %v4276
        %v4793 = vunpack.c.h.b16 %v4276
        %v4794 = vunpack.c.l.b16 %v4277
        %v4795 = vunpack.c.h.b16 %v4277
        %v4796 = vunpack.c.l.b16 %v4278
        %v4797 = vunpack.c.h.b16 %v4278
        %v4798 = vunpack.c.l.b16 %v4279
        %v4799 = vunpack.c.h.b16 %v4279
        %v4800 = vunpack.c.l.b16 %v4280
        %v4801 = vunpack.c.h.b16 %v4280
        %v4802 = vunpack.c.l.b16 %v4281
        %v4803 = vunpack.c.h.b16 %v4281
        %v4804 = vunpack.c.l.b16 %v4282
        %v4805 = vunpack.c.h.b16 %v4282
        %v4806 = vunpack.c.l.b16 %v4283
        %v4807 = vunpack.c.h.b16 %v4283
        %v4808 = vunpack.c.l.b16 %v4284
        %v4809 = vunpack.c.h.b16 %v4284
        %v4810 = vunpack.c.l.b16 %v4285
        %v4811 = vunpack.c.h.b16 %v4285
        %v4812 = vunpack.c.l.b16 %v4286
        %v4813 = vunpack.c.h.b16 %v4286
        %v4814 = vunpack.c.l.b16 %v4287
        %v4815 = vunpack.c.h.b16 %v4287
        %v4816 = vunpack.c.l.b16 %v4288
        %v4817 = vunpack.c.h.b16 %v4288
        %v4818 = vunpack.c.l.b16 %v4289
        %v4819 = vunpack.c.h.b16 %v4289
        %v4820 = vunpack.c.l.b16 %v4290
        %v4821 = vunpack.c.h.b16 %v4290
        %v4822 = vunpack.c.l.b16 %v4291
        %v4823 = vunpack.c.h.b16 %v4291
        %v4824 = vunpack.c.l.b16 %v4292
        %v4825 = vunpack.c.h.b16 %v4292
        %v4826 = vunpack.c.l.b16 %v4293
        %v4827 = vunpack.c.h.b16 %v4293
        %v4828 = vunpack.c.l.b16 %v4294
        %v4829 = vunpack.c.h.b16 %v4294
        %v4830 = vunpack.c.l.b16 %v4295
        %v4831 = vunpack.c.h.b16 %v4295
        %v4832 = vunpack.c.l.b16 %v4296
        %v4833 = vunpack.c.h.b16 %v4296
        %v4834 = vunpack.c.l.b16 %v4297
        %v4835 = vunpack.c.h.b16 %v4297
        %v4836 = vunpack.c.l.b16 %v4298
        %v4837 = vunpack.c.h.b16 %v4298
        %v4838 = vunpack.c.l.b16 %v4299
        %v4839 = vunpack.c.h.b16 %v4299
        %v4840 = vunpack.c.l.b16 %v4300
        %v4841 = vunpack.c.h.b16 %v4300
        %v4842 = vunpack.c.l.b16 %v4301
        %v4843 = vunpack.c.h.b16 %v4301
        %v4844 = vunpack.c.l.b16 %v4302
        %v4845 = vunpack.c.h.b16 %v4302
        %v4846 = vunpack.c.l.b16 %v4303
        %v4847 = vunpack.c.h.b16 %v4303
        %v4848 = vunpack.c.l.b16 %v4304
        %v4849 = vunpack.c.h.b16 %v4304
        %v4850 = vunpack.c.l.b16 %v4305
        %v4851 = vunpack.c.h.b16 %v4305
        %v4852 = vunpack.c.l.b16 %v4306
        %v4853 = vunpack.c.h.b16 %v4306
        %v4854 = vunpack.c.l.b16 %v4307
        %v4855 = vunpack.c.h.b16 %v4307
        %v4856 = vunpack.c.l.b16 %v4308
        %v4857 = vunpack.c.h.b16 %v4308
        %v4858 = vunpack.c.l.b16 %v4309
        %v4859 = vunpack.c.h.b16 %v4309
        %v4860 = vunpack.c.l.b16 %v4310
        %v4861 = vunpack.c.h.b16 %v4310
        %v4862 = vunpack.c.l.b16 %v4311
        %v4863 = vunpack.c.h.b16 %v4311
        %v4864 = vunpack.c.l.b16 %v4312
        %v4865 = vunpack.c.h.b16 %v4312
        %v4866 = vunpack.c.l.b16 %v4313
        %v4867 = vunpack.c.h.b16 %v4313
        %v4868 = vunpack.c.l.b16 %v4314
        %v4869 = vunpack.c.h.b16 %v4314
        %v4870 = vunpack.c.l.b16 %v4315
        %v4871 = vunpack.c.h.b16 %v4315
        %v4872 = vunpack.c.l.b16 %v4316
        %v4873 = vunpack.c.h.b16 %v4316
        %v4874 = vunpack.c.l.b16 %v4317
        %v4875 = vunpack.c.h.b16 %v4317
        %v4876 = vunpack.c.l.b16 %v4318
        %v4877 = vunpack.c.h.b16 %v4318
        %v4878 = vunpack.c.l.b16 %v4319
        %v4879 = vunpack.c.h.b16 %v4319
        %v4880 = vunpack.c.l.b16 %v4320
        %v4881 = vunpack.c.h.b16 %v4320
        %v4882 = vunpack.c.l.b16 %v4321
        %v4883 = vunpack.c.h.b16 %v4321
        %v4884 = vunpack.c.l.b16 %v4322
        %v4885 = vunpack.c.h.b16 %v4322
        %v4886 = vunpack.c.l.b16 %v4323
        %v4887 = vunpack.c.h.b16 %v4323
        %v4888 = vunpack.c.l.b16 %v4324
        %v4889 = vunpack.c.h.b16 %v4324
        %v4890 = vunpack.c.l.b16 %v4325
        %v4891 = vunpack.c.h.b16 %v4325
        %v4892 = vunpack.c.l.b16 %v4326
        %v4893 = vunpack.c.h.b16 %v4326
        %v4894 = vunpack.c.l.b16 %v4327
        %v4895 = vunpack.c.h.b16 %v4327
        %v4896 = vunpack.c.l.b16 %v4328
        %v4897 = vunpack.c.h.b16 %v4328
        %v4898 = vunpack.c.l.b16 %v4329
        %v4899 = vunpack.c.h.b16 %v4329
        %v4900 = vunpack.c.l.b16 %v4330
        %v4901 = vunpack.c.h.b16 %v4330
        %v4902 = vunpack.c.l.b16 %v4331
        %v4903 = vunpack.c.h.b16 %v4331
        %v4904 = vunpack.c.l.b16 %v4332
        %v4905 = vunpack.c.h.b16 %v4332
        %v4906 = vunpack.c.l.b16 %v4333
        %v4907 = vunpack.c.h.b16 %v4333
        %v4908 = vunpack.c.l.b16 %v4334
        %v4909 = vunpack.c.h.b16 %v4334
        %v4910 = vunpack.c.l.b16 %v4335
        %v4911 = vunpack.c.h.b16 %v4335
        %v4912 = vunpack.c.l.b16 %v4336
        %v4913 = vunpack.c.h.b16 %v4336
        %v4914 = vunpack.c.l.b16 %v4337
        %v4915 = vunpack.c.h.b16 %v4337
        %v4916 = vunpack.c.l.b16 %v4338
        %v4917 = vunpack.c.h.b16 %v4338
        %v4918 = vunpack.c.l.b16 %v4339
        %v4919 = vunpack.c.h.b16 %v4339
        %v4920 = vunpack.c.l.b16 %v4340
        %v4921 = vunpack.c.h.b16 %v4340
        %v4922 = vunpack.c.l.b16 %v4341
        %v4923 = vunpack.c.h.b16 %v4341
        %v4924 = vunpack.c.l.b16 %v4342
        %v4925 = vunpack.c.h.b16 %v4342
        %v4926 = vunpack.c.l.b16 %v4343
        %v4927 = vunpack.c.h.b16 %v4343
        %v4928 = vunpack.c.l.b16 %v4344
        %v4929 = vunpack.c.h.b16 %v4344
        %v4930 = vunpack.c.l.b16 %v4345
        %v4931 = vunpack.c.h.b16 %v4345
        %v4932 = vunpack.c.l.b16 %v4346
        %v4933 = vunpack.c.h.b16 %v4346
        %v4934 = vunpack.c.l.b16 %v4347
        %v4935 = vunpack.c.h.b16 %v4347
        %v4936 = vunpack.c.l.b16 %v4348
        %v4937 = vunpack.c.h.b16 %v4348
        %v4938 = vunpack.c.l.b16 %v4349
        %v4939 = vunpack.c.h.b16 %v4349
        %v4940 = vunpack.c.l.b16 %v4350
        %v4941 = vunpack.c.h.b16 %v4350
        %v4942 = vunpack.c.l.b16 %v4351
        %v4943 = vunpack.c.h.b16 %v4351
        %v4944 = vunpack.c.l.b16 %v4352
        %v4945 = vunpack.c.h.b16 %v4352
        %v4946 = vunpack.c.l.b16 %v4353
        %v4947 = vunpack.c.h.b16 %v4353
        %v4948 = vunpack.c.l.b16 %v4354
        %v4949 = vunpack.c.h.b16 %v4354
        %v4950 = vunpack.c.l.b16 %v4355
        %v4951 = vunpack.c.h.b16 %v4355
        %v4952 = vunpack.c.l.b16 %v4356
        %v4953 = vunpack.c.h.b16 %v4356
        %v4954 = vunpack.c.l.b16 %v4357
        %v4955 = vunpack.c.h.b16 %v4357
        %v4956 = vunpack.c.l.b16 %v4358
        %v4957 = vunpack.c.h.b16 %v4358
        %v4958 = vunpack.c.l.b16 %v4359
        %v4959 = vunpack.c.h.b16 %v4359
        %v4960 = vunpack.c.l.b16 %v4360
        %v4961 = vunpack.c.h.b16 %v4360
        %v4962 = vunpack.c.l.b16 %v4361
        %v4963 = vunpack.c.h.b16 %v4361
        %v4964 = vunpack.c.l.b16 %v4362
        %v4965 = vunpack.c.h.b16 %v4362
        %v4966 = vunpack.c.l.b16 %v4363
        %v4967 = vunpack.c.h.b16 %v4363
        %v4968 = vunpack.c.l.b16 %v4364
        %v4969 = vunpack.c.h.b16 %v4364
        %v4970 = vunpack.c.l.b16 %v4365
        %v4971 = vunpack.c.h.b16 %v4365
        %v4972 = vunpack.c.l.b16 %v4366
        %v4973 = vunpack.c.h.b16 %v4366
        %v4974 = vunpack.c.l.b16 %v4367
        %v4975 = vunpack.c.h.b16 %v4367
        %v4976 = vunpack.c.l.b16 %v4368
        %v4977 = vunpack.c.h.b16 %v4368
        %v4978 = vunpack.c.l.b16 %v4369
        %v4979 = vunpack.c.h.b16 %v4369
        %v4980 = vunpack.c.l.b16 %v4370
        %v4981 = vunpack.c.h.b16 %v4370
        %v4982 = vunpack.c.l.b16 %v4371
        %v4983 = vunpack.c.h.b16 %v4371
        %v4984 = vunpack.c.l.b16 %v4372
        %v4985 = vunpack.c.h.b16 %v4372
        %v4986 = vunpack.c.l.b16 %v4373
        %v4987 = vunpack.c.h.b16 %v4373
        %v4988 = vunpack.c.l.b16 %v4374
        %v4989 = vunpack.c.h.b16 %v4374
        %v4990 = vunpack.c.l.b16 %v4375
        %v4991 = vunpack.c.h.b16 %v4375
        %v4992 = vunpack.c.l.b16 %v4376
        %v4993 = vunpack.c.h.b16 %v4376
        %v4994 = vunpack.c.l.b16 %v4377
        %v4995 = vunpack.c.h.b16 %v4377
        %v4996 = vunpack.c.l.b16 %v4378
        %v4997 = vunpack.c.h.b16 %v4378
        %v4998 = vunpack.c.l.b16 %v4379
        %v4999 = vunpack.c.h.b16 %v4379
        %v5000 = vunpack.c.l.b16 %v4380
        %v5001 = vunpack.c.h.b16 %v4380
        %v5002 = vunpack.c.l.b16 %v4381
        %v5003 = vunpack.c.h.b16 %v4381
        %v5004 = vunpack.c.l.b16 %v4382
        %v5005 = vunpack.c.h.b16 %v4382
        %v5006 = vunpack.c.l.b16 %v4383
        %v5007 = vunpack.c.h.b16 %v4383
        %v5008 = vunpack.c.l.b16 %v4384
        %v5009 = vunpack.c.h.b16 %v4384
        %v5010 = vunpack.c.l.b16 %v4385
        %v5011 = vunpack.c.h.b16 %v4385
        %v5012 = vunpack.c.l.b16 %v4386
        %v5013 = vunpack.c.h.b16 %v4386
        %v5014 = vunpack.c.l.b16 %v4387
        %v5015 = vunpack.c.h.b16 %v4387
        %v5016 = vunpack.c.l.b16 %v4388
        %v5017 = vunpack.c.h.b16 %v4388
        %v5018 = vunpack.c.l.b16 %v4389
        %v5019 = vunpack.c.h.b16 %v4389
        %v5020 = vunpack.c.l.b16 %v4390
        %v5021 = vunpack.c.h.b16 %v4390
        %v5022 = vunpack.c.l.b16 %v4391
        %v5023 = vunpack.c.h.b16 %v4391
        %v5024 = vunpack.c.l.b16 %v4392
        %v5025 = vunpack.c.h.b16 %v4392
        %v5026 = vunpack.c.l.b16 %v4393
        %v5027 = vunpack.c.h.b16 %v4393
        %v5028 = vunpack.c.l.b16 %v4394
        %v5029 = vunpack.c.h.b16 %v4394
        %v5030 = vunpack.c.l.b16 %v4395
        %v5031 = vunpack.c.h.b16 %v4395
        %v5032 = vunpack.c.l.b16 %v4396
        %v5033 = vunpack.c.h.b16 %v4396
        %v5034 = vunpack.c.l.b16 %v4397
        %v5035 = vunpack.c.h.b16 %v4397
        %v5036 = vunpack.c.l.b16 %v4398
        %v5037 = vunpack.c.h.b16 %v4398
        %v5038 = vunpack.c.l.b16 %v4399
        %v5039 = vunpack.c.h.b16 %v4399
        %v5040 = vunpack.c.l.b16 %v4400
        %v5041 = vunpack.c.h.b16 %v4400
        %v5042 = vunpack.c.l.b16 %v4401
        %v5043 = vunpack.c.h.b16 %v4401
        %v5044 = vunpack.c.l.b16 %v4402
        %v5045 = vunpack.c.h.b16 %v4402
        %v5046 = vunpack.c.l.b16 %v4403
        %v5047 = vunpack.c.h.b16 %v4403
        %v5048 = vunpack.c.l.b16 %v4404
        %v5049 = vunpack.c.h.b16 %v4404
        %v5050 = vunpack.c.l.b16 %v4405
        %v5051 = vunpack.c.h.b16 %v4405
        %v5052 = vunpack.c.l.b16 %v4406
        %v5053 = vunpack.c.h.b16 %v4406
        %v5054 = vunpack.c.l.b16 %v4407
        %v5055 = vunpack.c.h.b16 %v4407
        %v5056 = vunpack.c.l.b16 %v4408
        %v5057 = vunpack.c.h.b16 %v4408
        %v5058 = vunpack.c.l.b16 %v4409
        %v5059 = vunpack.c.h.b16 %v4409
        %v5060 = vunpack.c.l.b16 %v4410
        %v5061 = vunpack.c.h.b16 %v4410
        %v5062 = vunpack.c.l.b16 %v4411
        %v5063 = vunpack.c.h.b16 %v4411
        %v5064 = vunpack.c.l.b16 %v4412
        %v5065 = vunpack.c.h.b16 %v4412
        %v5066 = vunpack.c.l.b16 %v4413
        %v5067 = vunpack.c.h.b16 %v4413
        %v5068 = vunpack.c.l.b16 %v4414
        %v5069 = vunpack.c.h.b16 %v4414
        %v5070 = vunpack.c.l.b16 %v4415
        %v5071 = vunpack.c.h.b16 %v4415
        %v5072 = vunpack.c.l.b16 %v4416
        %v5073 = vunpack.c.h.b16 %v4416
        %v5074 = vunpack.c.l.b16 %v4417
        %v5075 = vunpack.c.h.b16 %v4417
        %v5076 = vunpack.c.l.b16 %v4418
        %v5077 = vunpack.c.h.b16 %v4418
        %v5078 = vunpack.c.l.b16 %v4419
        %v5079 = vunpack.c.h.b16 %v4419
        %v5080 = vunpack.c.l.b16 %v4420
        %v5081 = vunpack.c.h.b16 %v4420
        %v5082 = vunpack.c.l.b16 %v4421
        %v5083 = vunpack.c.h.b16 %v4421
        %v5084 = vunpack.c.l.b16 %v4422
        %v5085 = vunpack.c.h.b16 %v4422
        %v5086 = vunpack.c.l.b16 %v4423
        %v5087 = vunpack.c.h.b16 %v4423
        %v5088 = vunpack.c.l.b16 %v4424
        %v5089 = vunpack.c.h.b16 %v4424
        %v5090 = vunpack.c.l.b16 %v4425
        %v5091 = vunpack.c.h.b16 %v4425
        %v5092 = vunpack.c.l.b16 %v4426
        %v5093 = vunpack.c.h.b16 %v4426
        %v5094 = vunpack.c.l.b16 %v4427
        %v5095 = vunpack.c.h.b16 %v4427
        %v5096 = vunpack.c.l.b16 %v4428
        %v5097 = vunpack.c.h.b16 %v4428
        %v5098 = vunpack.c.l.b16 %v4429
        %v5099 = vunpack.c.h.b16 %v4429
        %v5100 = vunpack.c.l.b16 %v4430
        %v5101 = vunpack.c.h.b16 %v4430
        %v5102 = vunpack.c.l.b16 %v4431
        %v5103 = vunpack.c.h.b16 %v4431
        %v5104 = vunpack.c.l.b16 %v4432
        %v5105 = vunpack.c.h.b16 %v4432
        %v5106 = vunpack.c.l.b16 %v4433
        %v5107 = vunpack.c.h.b16 %v4433
        %v5108 = vunpack.c.l.b16 %v4434
        %v5109 = vunpack.c.h.b16 %v4434
        %v5110 = vunpack.c.l.b16 %v4435
        %v5111 = vunpack.c.h.b16 %v4435
        %v5112 = vunpack.c.l.b16 %v4436
        %v5113 = vunpack.c.h.b16 %v4436
        %v5114 = vunpack.c.l.b16 %v4437
        %v5115 = vunpack.c.h.b16 %v4437
        %v5116 = vunpack.c.l.b16 %v4438
        %v5117 = vunpack.c.h.b16 %v4438
        %v5118 = vunpack.c.l.b16 %v4439
        %v5119 = vunpack.c.h.b16 %v4439
        %v5120 = vunpack.c.l.b16 %v4440
        %v5121 = vunpack.c.h.b16 %v4440
        %v5122 = vunpack.c.l.b16 %v4441
        %v5123 = vunpack.c.h.b16 %v4441
        %v5124 = vunpack.c.l.b16 %v4442
        %v5125 = vunpack.c.h.b16 %v4442
        %v5126 = vunpack.c.l.b16 %v4443
        %v5127 = vunpack.c.h.b16 %v4443
        %v5128 = vunpack.c.l.b16 %v4444
        %v5129 = vunpack.c.h.b16 %v4444
        %v5130 = vunpack.c.l.b16 %v4445
        %v5131 = vunpack.c.h.b16 %v4445
        %v5132 = vunpack.c.l.b16 %v4446
        %v5133 = vunpack.c.h.b16 %v4446
        %v5134 = vunpack.c.l.b16 %v4447
        %v5135 = vunpack.c.h.b16 %v4447
        %v5136 = vunpack.c.l.b16 %v4448
        %v5137 = vunpack.c.h.b16 %v4448
        %v5138 = vunpack.c.l.b16 %v4449
        %v5139 = vunpack.c.h.b16 %v4449
        %v5140 = vunpack.c.l.b16 %v4450
        %v5141 = vunpack.c.h.b16 %v4450
        %v5142 = vunpack.c.l.b16 %v4451
        %v5143 = vunpack.c.h.b16 %v4451
        %v5144 = vunpack.c.l.b16 %v4452
        %v5145 = vunpack.c.h.b16 %v4452
        %v5146 = vunpack.c.l.b16 %v4453
        %v5147 = vunpack.c.h.b16 %v4453
        %v5148 = vunpack.c.l.b16 %v4454
        %v5149 = vunpack.c.h.b16 %v4454
        %v5150 = vunpack.c.l.b16 %v4455
        %v5151 = vunpack.c.h.b16 %v4455
        %v5152 = vunpack.c.l.b16 %v4456
        %v5153 = vunpack.c.h.b16 %v4456
        %v5154 = vunpack.c.l.b16 %v4457
        %v5155 = vunpack.c.h.b16 %v4457
        %v5156 = vunpack.c.l.b16 %v4458
        %v5157 = vunpack.c.h.b16 %v4458
        %v5158 = vunpack.c.l.b16 %v4459
        %v5159 = vunpack.c.h.b16 %v4459
        %v5160 = vunpack.c.l.b16 %v4460
        %v5161 = vunpack.c.h.b16 %v4460
        %v5162 = vunpack.c.l.b16 %v4461
        %v5163 = vunpack.c.h.b16 %v4461
        %v5164 = vunpack.c.l.b16 %v4462
        %v5165 = vunpack.c.h.b16 %v4462
        %v5166 = vunpack.c.l.b16 %v4463
        %v5167 = vunpack.c.h.b16 %v4463
        %v5168 = vunpack.c.l.b16 %v4464
        %v5169 = vunpack.c.h.b16 %v4464
        %v5170 = vunpack.c.l.b16 %v4465
        %v5171 = vunpack.c.h.b16 %v4465
        %v5172 = vunpack.c.l.b16 %v4466
        %v5173 = vunpack.c.h.b16 %v4466
        %v5174 = vunpack.c.l.b16 %v4467
        %v5175 = vunpack.c.h.b16 %v4467
        %v5176 = vunpack.c.l.b16 %v4468
        %v5177 = vunpack.c.h.b16 %v4468
        %v5178 = vunpack.c.l.b16 %v4469
        %v5179 = vunpack.c.h.b16 %v4469
        %v5180 = vunpack.c.l.b16 %v4470
        %v5181 = vunpack.c.h.b16 %v4470
        %v5182 = vunpack.c.l.b16 %v4471
        %v5183 = vunpack.c.h.b16 %v4471
        %v5184 = vunpack.c.l.b16 %v4472
        %v5185 = vunpack.c.h.b16 %v4472
        %v5186 = vunpack.c.l.b16 %v4473
        %v5187 = vunpack.c.h.b16 %v4473
        %v5188 = vunpack.c.l.b16 %v4474
        %v5189 = vunpack.c.h.b16 %v4474
        %v5190 = vunpack.c.l.b16 %v4475
        %v5191 = vunpack.c.h.b16 %v4475
        %v5192 = vunpack.c.l.b16 %v4476
        %v5193 = vunpack.c.h.b16 %v4476
        %v5194 = vunpack.c.l.b16 %v4477
        %v5195 = vunpack.c.h.b16 %v4477
        %v5196 = vunpack.c.l.b16 %v4478
        %v5197 = vunpack.c.h.b16 %v4478
        %v5198 = vunpack.c.l.b16 %v4479
        %v5199 = vunpack.c.h.b16 %v4479
        %v5200 = vunpack.c.l.b16 %v4480
        %v5201 = vunpack.c.h.b16 %v4480
        %v5202 = vunpack.c.l.b16 %v4481
        %v5203 = vunpack.c.h.b16 %v4481
        %v5204 = vunpack.c.l.b16 %v4482
        %v5205 = vunpack.c.h.b16 %v4482
        %v5206 = vunpack.c.l.b16 %v4483
        %v5207 = vunpack.c.h.b16 %v4483
        %v5208 = vunpack.c.l.b16 %v4484
        %v5209 = vunpack.c.h.b16 %v4484
        %v5210 = vunpack.c.l.b16 %v4485
        %v5211 = vunpack.c.h.b16 %v4485
        %v5212 = vunpack.c.l.b16 %v4486
        %v5213 = vunpack.c.h.b16 %v4486
        %v5214 = vunpack.c.l.b16 %v4487
        %v5215 = vunpack.c.h.b16 %v4487
        %v5216 = vunpack.c.l.b16 %v4488
        %v5217 = vunpack.c.h.b16 %v4488
        %v5218 = vunpack.c.l.b16 %v4489
        %v5219 = vunpack.c.h.b16 %v4489
        %v5220 = vunpack.c.l.b16 %v4490
        %v5221 = vunpack.c.h.b16 %v4490
        %v5222 = vunpack.c.l.b16 %v4491
        %v5223 = vunpack.c.h.b16 %v4491
        %v5224 = vunpack.c.l.b16 %v4492
        %v5225 = vunpack.c.h.b16 %v4492
        %v5226 = vunpack.c.l.b16 %v4493
        %v5227 = vunpack.c.h.b16 %v4493
        %v5228 = vunpack.c.l.b16 %v4494
        %v5229 = vunpack.c.h.b16 %v4494
        %v5230 = vunpack.c.l.b16 %v4495
        %v5231 = vunpack.c.h.b16 %v4495
        %v5232 = vunpack.c.l.b16 %v4496
        %v5233 = vunpack.c.h.b16 %v4496
        %v5234 = vunpack.c.l.b16 %v4497
        %v5235 = vunpack.c.h.b16 %v4497
        %v5236 = vunpack.c.l.b16 %v4498
        %v5237 = vunpack.c.h.b16 %v4498
        %v5238 = vunpack.c.l.b16 %v4499
        %v5239 = vunpack.c.h.b16 %v4499
        %v5240 = vunpack.c.l.b16 %v4500
        %v5241 = vunpack.c.h.b16 %v4500
        %v5242 = vunpack.c.l.b16 %v4501
        %v5243 = vunpack.c.h.b16 %v4501
        %v5244 = vunpack.c.l.b16 %v4502
        %v5245 = vunpack.c.h.b16 %v4502
        %v5246 = vunpack.c.l.b16 %v4503
        %v5247 = vunpack.c.h.b16 %v4503
        %v5248 = vunpack.c.l.b16 %v4504
        %v5249 = vunpack.c.h.b16 %v4504
        %v5250 = vunpack.c.l.b16 %v4505
        %v5251 = vunpack.c.h.b16 %v4505
        %v5252 = vunpack.c.l.b16 %v4506
        %v5253 = vunpack.c.h.b16 %v4506
        %v5254 = vunpack.c.l.b16 %v4507
        %v5255 = vunpack.c.h.b16 %v4507
        %v5256 = vunpack.c.l.b16 %v4508
        %v5257 = vunpack.c.h.b16 %v4508
        %v5258 = vunpack.c.l.b16 %v4509
        %v5259 = vunpack.c.h.b16 %v4509
        %v5260 = vunpack.c.l.b16 %v4510
        %v5261 = vunpack.c.h.b16 %v4510
        %v5262 = vunpack.c.l.b16 %v4511
        %v5263 = vunpack.c.h.b16 %v4511
        %v5264 = vunpack.c.l.b16 %v4512
        %v5265 = vunpack.c.h.b16 %v4512
        %v5266 = vunpack.c.l.b16 %v4513
        %v5267 = vunpack.c.h.b16 %v4513
        %v5268 = vunpack.c.l.b16 %v4514
        %v5269 = vunpack.c.h.b16 %v4514
        %v5270 = vunpack.c.l.b16 %v4515
        %v5271 = vunpack.c.h.b16 %v4515
        %v5272 = vunpack.c.l.b16 %v4516
        %v5273 = vunpack.c.h.b16 %v4516
        %v5274 = vunpack.c.l.b16 %v4517
        %v5275 = vunpack.c.h.b16 %v4517
        %v5276 = vunpack.c.l.b16 %v4518
        %v5277 = vunpack.c.h.b16 %v4518
        %v5278 = vunpack.c.l.b16 %v4519
        %v5279 = vunpack.c.h.b16 %v4519
        %v5280 = vunpack.c.l.b16 %v4520
        %v5281 = vunpack.c.h.b16 %v4520
        %v5282 = vunpack.c.l.b16 %v4521
        %v5283 = vunpack.c.h.b16 %v4521
        %v5284 = vunpack.c.l.b16 %v4522
        %v5285 = vunpack.c.h.b16 %v4522
        %v5286 = vunpack.c.l.b16 %v4523
        %v5287 = vunpack.c.h.b16 %v4523
        %v5288 = vunpack.c.l.b16 %v4524
        %v5289 = vunpack.c.h.b16 %v4524
        %v5290 = vunpack.c.l.b16 %v4525
        %v5291 = vunpack.c.h.b16 %v4525
        %v5292 = vunpack.c.l.b16 %v4526
        %v5293 = vunpack.c.h.b16 %v4526
        %v5294 = vunpack.c.l.b16 %v4527
        %v5295 = vunpack.c.h.b16 %v4527
        %v5296 = vunpack.c.l.b16 %v4528
        %v5297 = vunpack.c.h.b16 %v4528
        %v5298 = vpack.c.b16 %v4790, %v4786
        %v5299 = vpack.c.b16 %v4791, %v4787
        %v5300 = vpack.c.b16 %v4792, %v4788
        %v5301 = vpack.c.b16 %v4793, %v4789
        %v5302 = vpack.c.b16 %v4798, %v4794
        %v5303 = vpack.c.b16 %v4799, %v4795
        %v5304 = vpack.c.b16 %v4800, %v4796
        %v5305 = vpack.c.b16 %v4801, %v4797
        %v5306 = vpack.c.b16 %v4806, %v4802
        %v5307 = vpack.c.b16 %v4807, %v4803
        %v5308 = vpack.c.b16 %v4808, %v4804
        %v5309 = vpack.c.b16 %v4809, %v4805
        %v5310 = vpack.c.b16 %v4814, %v4810
        %v5311 = vpack.c.b16 %v4815, %v4811
        %v5312 = vpack.c.b16 %v4816, %v4812
        %v5313 = vpack.c.b16 %v4817, %v4813
        %v5314 = vpack.c.b16 %v4822, %v4818
        %v5315 = vpack.c.b16 %v4823, %v4819
        %v5316 = vpack.c.b16 %v4824, %v4820
        %v5317 = vpack.c.b16 %v4825, %v4821
        %v5318 = vpack.c.b16 %v4830, %v4826
        %v5319 = vpack.c.b16 %v4831, %v4827
        %v5320 = vpack.c.b16 %v4832, %v4828
        %v5321 = vpack.c.b16 %v4833, %v4829
        %v5322 = vpack.c.b16 %v4838, %v4834
        %v5323 = vpack.c.b16 %v4839, %v4835
        %v5324 = vpack.c.b16 %v4840, %v4836
        %v5325 = vpack.c.b16 %v4841, %v4837
        %v5326 = vpack.c.b16 %v4846, %v4842
        %v5327 = vpack.c.b16 %v4847, %v4843
        %v5328 = vpack.c.b16 %v4848, %v4844
        %v5329 = vpack.c.b16 %v4849, %v4845
        %v5330 = vpack.c.b16 %v4854, %v4850
        %v5331 = vpack.c.b16 %v4855, %v4851
        %v5332 = vpack.c.b16 %v4856, %v4852
        %v5333 = vpack.c.b16 %v4857, %v4853
        %v5334 = vpack.c.b16 %v4862, %v4858
        %v5335 = vpack.c.b16 %v4863, %v4859
        %v5336 = vpack.c.b16 %v4864, %v4860
        %v5337 = vpack.c.b16 %v4865, %v4861
        %v5338 = vpack.c.b16 %v4870, %v4866
        %v5339 = vpack.c.b16 %v4871, %v4867
        %v5340 = vpack.c.b16 %v4872, %v4868
        %v5341 = vpack.c.b16 %v4873, %v4869
        %v5342 = vpack.c.b16 %v4878, %v4874
        %v5343 = vpack.c.b16 %v4879, %v4875
        %v5344 = vpack.c.b16 %v4880, %v4876
        %v5345 = vpack.c.b16 %v4881, %v4877
        %v5346 = vpack.c.b16 %v4886, %v4882
        %v5347 = vpack.c.b16 %v4887, %v4883
        %v5348 = vpack.c.b16 %v4888, %v4884
        %v5349 = vpack.c.b16 %v4889, %v4885
        %v5350 = vpack.c.b16 %v4894, %v4890
        %v5351 = vpack.c.b16 %v4895, %v4891
        %v5352 = vpack.c.b16 %v4896, %v4892
        %v5353 = vpack.c.b16 %v4897, %v4893
        %v5354 = vpack.c.b16 %v4902, %v4898
        %v5355 = vpack.c.b16 %v4903, %v4899
        %v5356 = vpack.c.b16 %v4904, %v4900
        %v5357 = vpack.c.b16 %v4905, %v4901
        %v5358 = vpack.c.b16 %v4910, %v4906
        %v5359 = vpack.c.b16 %v4911, %v4907
        %v5360 = vpack.c.b16 %v4912, %v4908
        %v5361 = vpack.c.b16 %v4913, %v4909
        %v5362 = vpack.c.b16 %v4918, %v4914
        %v5363 = vpack.c.b16 %v4919, %v4915
        %v5364 = vpack.c.b16 %v4920, %v4916
        %v5365 = vpack.c.b16 %v4921, %v4917
        %v5366 = vpack.c.b16 %v4926, %v4922
        %v5367 = vpack.c.b16 %v4927, %v4923
        %v5368 = vpack.c.b16 %v4928, %v4924
        %v5369 = vpack.c.b16 %v4929, %v4925
        %v5370 = vpack.c.b16 %v4934, %v4930
        %v5371 = vpack.c.b16 %v4935, %v4931
        %v5372 = vpack.c.b16 %v4936, %v4932
        %v5373 = vpack.c.b16 %v4937, %v4933
        %v5374 = vpack.c.b16 %v4942, %v4938
        %v5375 = vpack.c.b16 %v4943, %v4939
        %v5376 = vpack.c.b16 %v4944, %v4940
        %v5377 = vpack.c.b16 %v4945, %v4941
        %v5378 = vpack.c.b16 %v4950, %v4946
        %v5379 = vpack.c.b16 %v4951, %v4947
        %v5380 = vpack.c.b16 %v4952, %v4948
        %v5381 = vpack.c.b16 %v4953, %v4949
        %v5382 = vpack.c.b16 %v4958, %v4954
        %v5383 = vpack.c.b16 %v4959, %v4955
        %v5384 = vpack.c.b16 %v4960, %v4956
        %v5385 = vpack.c.b16 %v4961, %v4957
        %v5386 = vpack.c.b16 %v4966, %v4962
        %v5387 = vpack.c.b16 %v4967, %v4963
        %v5388 = vpack.c.b16 %v4968, %v4964
        %v5389 = vpack.c.b16 %v4969, %v4965
        %v5390 = vpack.c.b16 %v4974, %v4970
        %v5391 = vpack.c.b16 %v4975, %v4971
        %v5392 = vpack.c.b16 %v4976, %v4972
        %v5393 = vpack.c.b16 %v4977, %v4973
        %v5394 = vpack.c.b16 %v4982, %v4978
        %v5395 = vpack.c.b16 %v4983, %v4979
        %v5396 = vpack.c.b16 %v4984, %v4980
        %v5397 = vpack.c.b16 %v4985, %v4981
        %v5398 = vpack.c.b16 %v4990, %v4986
        %v5399 = vpack.c.b16 %v4991, %v4987
        %v5400 = vpack.c.b16 %v4992, %v4988
        %v5401 = vpack.c.b16 %v4993, %v4989
        %v5402 = vpack.c.b16 %v4998, %v4994
        %v5403 = vpack.c.b16 %v4999, %v4995
        %v5404 = vpack.c.b16 %v5000, %v4996
        %v5405 = vpack.c.b16 %v5001, %v4997
        %v5406 = vpack.c.b16 %v5006, %v5002
        %v5407 = vpack.c.b16 %v5007, %v5003
        %v5408 = vpack.c.b16 %v5008, %v5004
        %v5409 = vpack.c.b16 %v5009, %v5005
        %v5410 = vpack.c.b16 %v5014, %v5010
        %v5411 = vpack.c.b16 %v5015, %v5011
        %v5412 = vpack.c.b16 %v5016, %v5012
        %v5413 = vpack.c.b16 %v5017, %v5013
        %v5414 = vpack.c.b16 %v5022, %v5018
        %v5415 = vpack.c.b16 %v5023, %v5019
        %v5416 = vpack.c.b16 %v5024, %v5020
        %v5417 = vpack.c.b16 %v5025, %v5021
        %v5418 = vpack.c.b16 %v5030, %v5026
        %v5419 = vpack.c.b16 %v5031, %v5027
        %v5420 = vpack.c.b16 %v5032, %v5028
        %v5421 = vpack.c.b16 %v5033, %v5029
        %v5422 = vpack.c.b16 %v5038, %v5034
        %v5423 = vpack.c.b16 %v5039, %v5035
        %v5424 = vpack.c.b16 %v5040, %v5036
        %v5425 = vpack.c.b16 %v5041, %v5037
        %v5426 = vpack.c.b16 %v5046, %v5042
        %v5427 = vpack.c.b16 %v5047, %v5043
        %v5428 = vpack.c.b16 %v5048, %v5044
        %v5429 = vpack.c.b16 %v5049, %v5045
        %v5430 = vpack.c.b16 %v5054, %v5050
        %v5431 = vpack.c.b16 %v5055, %v5051
        %v5432 = vpack.c.b16 %v5056, %v5052
        %v5433 = vpack.c.b16 %v5057, %v5053
        %v5434 = vpack.c.b16 %v5062, %v5058
        %v5435 = vpack.c.b16 %v5063, %v5059
        %v5436 = vpack.c.b16 %v5064, %v5060
        %v5437 = vpack.c.b16 %v5065, %v5061
        %v5438 = vpack.c.b16 %v5070, %v5066
        %v5439 = vpack.c.b16 %v5071, %v5067
        %v5440 = vpack.c.b16 %v5072, %v5068
        %v5441 = vpack.c.b16 %v5073, %v5069
        %v5442 = vpack.c.b16 %v5078, %v5074
        %v5443 = vpack.c.b16 %v5079, %v5075
        %v5444 = vpack.c.b16 %v5080, %v5076
        %v5445 = vpack.c.b16 %v5081, %v5077
        %v5446 = vpack.c.b16 %v5086, %v5082
        %v5447 = vpack.c.b16 %v5087, %v5083
        %v5448 = vpack.c.b16 %v5088, %v5084
        %v5449 = vpack.c.b16 %v5089, %v5085
        %v5450 = vpack.c.b16 %v5094, %v5090
        %v5451 = vpack.c.b16 %v5095, %v5091
        %v5452 = vpack.c.b16 %v5096, %v5092
        %v5453 = vpack.c.b16 %v5097, %v5093
        %v5454 = vpack.c.b16 %v5102, %v5098
        %v5455 = vpack.c.b16 %v5103, %v5099
        %v5456 = vpack.c.b16 %v5104, %v5100
        %v5457 = vpack.c.b16 %v5105, %v5101
        %v5458 = vpack.c.b16 %v5110, %v5106
        %v5459 = vpack.c.b16 %v5111, %v5107
        %v5460 = vpack.c.b16 %v5112, %v5108
        %v5461 = vpack.c.b16 %v5113, %v5109
        %v5462 = vpack.c.b16 %v5118, %v5114
        %v5463 = vpack.c.b16 %v5119, %v5115
        %v5464 = vpack.c.b16 %v5120, %v5116
        %v5465 = vpack.c.b16 %v5121, %v5117
        %v5466 = vpack.c.b16 %v5126, %v5122
        %v5467 = vpack.c.b16 %v5127, %v5123
        %v5468 = vpack.c.b16 %v5128, %v5124
        %v5469 = vpack.c.b16 %v5129, %v5125
        %v5470 = vpack.c.b16 %v5134, %v5130
        %v5471 = vpack.c.b16 %v5135, %v5131
        %v5472 = vpack.c.b16 %v5136, %v5132
        %v5473 = vpack.c.b16 %v5137, %v5133
        %v5474 = vpack.c.b16 %v5142, %v5138
        %v5475 = vpack.c.b16 %v5143, %v5139
        %v5476 = vpack.c.b16 %v5144, %v5140
        %v5477 = vpack.c.b16 %v5145, %v5141
        %v5478 = vpack.c.b16 %v5150, %v5146
        %v5479 = vpack.c.b16 %v5151, %v5147
        %v5480 = vpack.c.b16 %v5152, %v5148
        %v5481 = vpack.c.b16 %v5153, %v5149
        %v5482 = vpack.c.b16 %v5158, %v5154
        %v5483 = vpack.c.b16 %v5159, %v5155
        %v5484 = vpack.c.b16 %v5160, %v5156
        %v5485 = vpack.c.b16 %v5161, %v5157
        %v5486 = vpack.c.b16 %v5166, %v5162
        %v5487 = vpack.c.b16 %v5167, %v5163
        %v5488 = vpack.c.b16 %v5168, %v5164
        %v5489 = vpack.c.b16 %v5169, %v5165
        %v5490 = vpack.c.b16 %v5174, %v5170
        %v5491 = vpack.c.b16 %v5175, %v5171
        %v5492 = vpack.c.b16 %v5176, %v5172
        %v5493 = vpack.c.b16 %v5177, %v5173
        %v5494 = vpack.c.b16 %v5182, %v5178
        %v5495 = vpack.c.b16 %v5183, %v5179
        %v5496 = vpack.c.b16 %v5184, %v5180
        %v5497 = vpack.c.b16 %v5185, %v5181
        %v5498 = vpack.c.b16 %v5190, %v5186
        %v5499 = vpack.c.b16 %v5191, %v5187
        %v5500 = vpack.c.b16 %v5192, %v5188
        %v5501 = vpack.c.b16 %v5193, %v5189
        %v5502 = vpack.c.b16 %v5198, %v5194
        %v5503 = vpack.c.b16 %v5199, %v5195
        %v5504 = vpack.c.b16 %v5200, %v5196
        %v5505 = vpack.c.b16 %v5201, %v5197
        %v5506 = vpack.c.b16 %v5206, %v5202
        %v5507 = vpack.c.b16 %v5207, %v5203
        %v5508 = vpack.c.b16 %v5208, %v5204
        %v5509 = vpack.c.b16 %v5209, %v5205
        %v5510 = vpack.c.b16 %v5214, %v5210
        %v5511 = vpack.c.b16 %v5215, %v5211
        %v5512 = vpack.c.b16 %v5216, %v5212
        %v5513 = vpack.c.b16 %v5217, %v5213
        %v5514 = vpack.c.b16 %v5222, %v5218
        %v5515 = vpack.c.b16 %v5223, %v5219
        %v5516 = vpack.c.b16 %v5224, %v5220
        %v5517 = vpack.c.b16 %v5225, %v5221
        %v5518 = vpack.c.b16 %v5230, %v5226
        %v5519 = vpack.c.b16 %v5231, %v5227
        %v5520 = vpack.c.b16 %v5232, %v5228
        %v5521 = vpack.c.b16 %v5233, %v5229
        %v5522 = vpack.c.b16 %v5238, %v5234
        %v5523 = vpack.c.b16 %v5239, %v5235
        %v5524 = vpack.c.b16 %v5240, %v5236
        %v5525 = vpack.c.b16 %v5241, %v5237
        %v5526 = vpack.c.b16 %v5246, %v5242
        %v5527 = vpack.c.b16 %v5247, %v5243
        %v5528 = vpack.c.b16 %v5248, %v5244
        %v5529 = vpack.c.b16 %v5249, %v5245
        %v5530 = vpack.c.b16 %v5254, %v5250
        %v5531 = vpack.c.b16 %v5255, %v5251
        %v5532 = vpack.c.b16 %v5256, %v5252
        %v5533 = vpack.c.b16 %v5257, %v5253
        %v5534 = vpack.c.b16 %v5262, %v5258
        %v5535 = vpack.c.b16 %v5263, %v5259
        %v5536 = vpack.c.b16 %v5264, %v5260
        %v5537 = vpack.c.b16 %v5265, %v5261
        %v5538 = vpack.c.b16 %v5270, %v5266
        %v5539 = vpack.c.b16 %v5271, %v5267
        %v5540 = vpack.c.b16 %v5272, %v5268
        %v5541 = vpack.c.b16 %v5273, %v5269
        %v5542 = vpack.c.b16 %v5278, %v5274
        %v5543 = vpack.c.b16 %v5279, %v5275
        %v5544 = vpack.c.b16 %v5280, %v5276
        %v5545 = vpack.c.b16 %v5281, %v5277
        %v5546 = vpack.c.b16 %v5286, %v5282
        %v5547 = vpack.c.b16 %v5287, %v5283
        %v5548 = vpack.c.b16 %v5288, %v5284
        %v5549 = vpack.c.b16 %v5289, %v5285
        %v5550 = vpack.c.b16 %v5294, %v5290
        %v5551 = vpack.c.b16 %v5295, %v5291
        %v5552 = vpack.c.b16 %v5296, %v5292
        %v5553 = vpack.c.b16 %v5297, %v5293
        %v5811 = vperm.slane %v4529, 0
        %v5812 = vperm.slane %v4529, 1
        %v5813 = vperm.slane %v4529, 2
        %v5814 = vperm.slane %v4529, 3
        %5819 = vmatpush.bf16.msra.mxu0 %v5326
        %5820 = vmatpush.bf16.msra.mxu0 %v5322
        %5821 = vmatpush.bf16.msra.mxu0 %v5318
        %5822 = vmatpush.bf16.msra.mxu0 %v5314
        %5823 = vmatpush.bf16.msra.mxu0 %v5310
        %5824 = vmatpush.bf16.msra.mxu0 %v5306
        %5825 = vmatpush.bf16.msra.mxu0 %v5302
        %5826 = vmatpush.bf16.msra.mxu0 %v5298
        %5827 = vmatmul.bf16.gmra.mxu0 %v4265
        %v5828 = vpop.f32.mrf.mxu0
        %v5829 = vadd.f32 %v5811, %v5828
        %v5830 = vpop.f32.mrf.mxu0
        %5831 = vdwg.mxu0
        %5832 = vmatpush.bf16.msra.mxu0 %v5358
        %5833 = vmatpush.bf16.msra.mxu0 %v5354
        %5834 = vmatpush.bf16.msra.mxu0 %v5350
        %5835 = vmatpush.bf16.msra.mxu0 %v5346
        %5836 = vmatpush.bf16.msra.mxu0 %v5342
        %5837 = vmatpush.bf16.msra.mxu0 %v5338
        %5838 = vmatpush.bf16.msra.mxu0 %v5334
        %5839 = vmatpush.bf16.msra.mxu0 %v5330
        %5840 = vmatmul.bf16.gmra.mxu0 %v4266
        %v5841 = vpop.f32.mrf.mxu0
        %v5842 = vadd.f32 %v5829, %v5841
        %v5843 = vpop.f32.mrf.mxu0
        %5844 = vdwg.mxu0
        %5845 = vmatpush.bf16.msra.mxu0 %v5390
        %5846 = vmatpush.bf16.msra.mxu0 %v5386
        %5847 = vmatpush.bf16.msra.mxu0 %v5382
        %5848 = vmatpush.bf16.msra.mxu0 %v5378
        %5849 = vmatpush.bf16.msra.mxu0 %v5374
        %5850 = vmatpush.bf16.msra.mxu0 %v5370
        %5851 = vmatpush.bf16.msra.mxu0 %v5366
        %5852 = vmatpush.bf16.msra.mxu0 %v5362
        %5853 = vmatmul.bf16.gmra.mxu0 %v4267
        %v5854 = vpop.f32.mrf.mxu0
        %v5855 = vadd.f32 %v5842, %v5854
        %v5856 = vpop.f32.mrf.mxu0
        %5857 = vdwg.mxu0
        %5858 = vmatpush.bf16.msra.mxu0 %v5422
        %5859 = vmatpush.bf16.msra.mxu0 %v5418
        %5860 = vmatpush.bf16.msra.mxu0 %v5414
        %5861 = vmatpush.bf16.msra.mxu0 %v5410
        %5862 = vmatpush.bf16.msra.mxu0 %v5406
        %5863 = vmatpush.bf16.msra.mxu0 %v5402
        %5864 = vmatpush.bf16.msra.mxu0 %v5398
        %5865 = vmatpush.bf16.msra.mxu0 %v5394
        %5866 = vmatmul.bf16.gmra.mxu0 %v4268
        %v5867 = vpop.f32.mrf.mxu0
        %v5868 = vadd.f32 %v5855, %v5867
        %v5869 = vpop.f32.mrf.mxu0
        %5870 = vdwg.mxu0
        %5871 = vmatpush.bf16.msra.mxu0 %v5454
        %5872 = vmatpush.bf16.msra.mxu0 %v5450
        %5873 = vmatpush.bf16.msra.mxu0 %v5446
        %5874 = vmatpush.bf16.msra.mxu0 %v5442
        %5875 = vmatpush.bf16.msra.mxu0 %v5438
        %5876 = vmatpush.bf16.msra.mxu0 %v5434
        %5877 = vmatpush.bf16.msra.mxu0 %v5430
        %5878 = vmatpush.bf16.msra.mxu0 %v5426
        %5879 = vmatmul.bf16.gmra.mxu0 %v4269
        %v5880 = vpop.f32.mrf.mxu0
        %v5881 = vadd.f32 %v5868, %v5880
        %v5882 = vpop.f32.mrf.mxu0
        %5883 = vdwg.mxu0
        %5884 = vmatpush.bf16.msra.mxu0 %v5486
        %5885 = vmatpush.bf16.msra.mxu0 %v5482
        %5886 = vmatpush.bf16.msra.mxu0 %v5478
        %5887 = vmatpush.bf16.msra.mxu0 %v5474
        %5888 = vmatpush.bf16.msra.mxu0 %v5470
        %5889 = vmatpush.bf16.msra.mxu0 %v5466
        %5890 = vmatpush.bf16.msra.mxu0 %v5462
        %5891 = vmatpush.bf16.msra.mxu0 %v5458
        %5892 = vmatmul.bf16.gmra.mxu0 %v4270
        %v5893 = vpop.f32.mrf.mxu0
        %v5894 = vadd.f32 %v5881, %v5893
        %v5895 = vpop.f32.mrf.mxu0
        %5896 = vdwg.mxu0
        %5897 = vmatpush.bf16.msra.mxu0 %v5518
        %5898 = vmatpush.bf16.msra.mxu0 %v5514
        %5899 = vmatpush.bf16.msra.mxu0 %v5510
        %5900 = vmatpush.bf16.msra.mxu0 %v5506
        %5901 = vmatpush.bf16.msra.mxu0 %v5502
        %5902 = vmatpush.bf16.msra.mxu0 %v5498
        %5903 = vmatpush.bf16.msra.mxu0 %v5494
        %5904 = vmatpush.bf16.msra.mxu0 %v5490
        %5905 = vmatmul.bf16.gmra.mxu0 %v4271
        %v5906 = vpop.f32.mrf.mxu0
        %v5907 = vadd.f32 %v5894, %v5906
        %v5908 = vpop.f32.mrf.mxu0
        %5909 = vdwg.mxu0
        %5910 = vmatpush.bf16.msra.mxu0 %v5550
        %5911 = vmatpush.bf16.msra.mxu0 %v5546
        %5912 = vmatpush.bf16.msra.mxu0 %v5542
        %5913 = vmatpush.bf16.msra.mxu0 %v5538
        %5914 = vmatpush.bf16.msra.mxu0 %v5534
        %5915 = vmatpush.bf16.msra.mxu0 %v5530
        %5916 = vmatpush.bf16.msra.mxu0 %v5526
        %5917 = vmatpush.bf16.msra.mxu0 %v5522
        %5918 = vmatmul.bf16.gmra.mxu0 %v4272
        %v5919 = vpop.f32.mrf.mxu0
        %v5920 = vadd.f32 %v5907, %v5919
        %v5921 = vpop.f32.mrf.mxu0
        %5922 = vdwg.mxu0
        %5923 = vmatpush.bf16.msra.mxu0 %v5327
        %5924 = vmatpush.bf16.msra.mxu0 %v5323
        %5925 = vmatpush.bf16.msra.mxu0 %v5319
        %5926 = vmatpush.bf16.msra.mxu0 %v5315
        %5927 = vmatpush.bf16.msra.mxu0 %v5311
        %5928 = vmatpush.bf16.msra.mxu0 %v5307
        %5929 = vmatpush.bf16.msra.mxu0 %v5303
        %5930 = vmatpush.bf16.msra.mxu0 %v5299
        %5931 = vmatmul.bf16.gmra.mxu0 %v4265
        %v5932 = vpop.f32.mrf.mxu0
        %v5933 = vadd.f32 %v5812, %v5932
        %v5934 = vpop.f32.mrf.mxu0
        %5935 = vdwg.mxu0
        %5936 = vmatpush.bf16.msra.mxu0 %v5359
        %5937 = vmatpush.bf16.msra.mxu0 %v5355
        %5938 = vmatpush.bf16.msra.mxu0 %v5351
        %5939 = vmatpush.bf16.msra.mxu0 %v5347
        %5940 = vmatpush.bf16.msra.mxu0 %v5343
        %5941 = vmatpush.bf16.msra.mxu0 %v5339
        %5942 = vmatpush.bf16.msra.mxu0 %v5335
        %5943 = vmatpush.bf16.msra.mxu0 %v5331
        %5944 = vmatmul.bf16.gmra.mxu0 %v4266
        %v5945 = vpop.f32.mrf.mxu0
        %v5946 = vadd.f32 %v5933, %v5945
        %v5947 = vpop.f32.mrf.mxu0
        %5948 = vdwg.mxu0
        %5949 = vmatpush.bf16.msra.mxu0 %v5391
        %5950 = vmatpush.bf16.msra.mxu0 %v5387
        %5951 = vmatpush.bf16.msra.mxu0 %v5383
        %5952 = vmatpush.bf16.msra.mxu0 %v5379
        %5953 = vmatpush.bf16.msra.mxu0 %v5375
        %5954 = vmatpush.bf16.msra.mxu0 %v5371
        %5955 = vmatpush.bf16.msra.mxu0 %v5367
        %5956 = vmatpush.bf16.msra.mxu0 %v5363
        %5957 = vmatmul.bf16.gmra.mxu0 %v4267
        %v5958 = vpop.f32.mrf.mxu0
        %v5959 = vadd.f32 %v5946, %v5958
        %v5960 = vpop.f32.mrf.mxu0
        %5961 = vdwg.mxu0
        %5962 = vmatpush.bf16.msra.mxu0 %v5423
        %5963 = vmatpush.bf16.msra.mxu0 %v5419
        %5964 = vmatpush.bf16.msra.mxu0 %v5415
        %5965 = vmatpush.bf16.msra.mxu0 %v5411
        %5966 = vmatpush.bf16.msra.mxu0 %v5407
        %5967 = vmatpush.bf16.msra.mxu0 %v5403
        %5968 = vmatpush.bf16.msra.mxu0 %v5399
        %5969 = vmatpush.bf16.msra.mxu0 %v5395
        %5970 = vmatmul.bf16.gmra.mxu0 %v4268
        %v5971 = vpop.f32.mrf.mxu0
        %v5972 = vadd.f32 %v5959, %v5971
        %v5973 = vpop.f32.mrf.mxu0
        %5974 = vdwg.mxu0
        %5975 = vmatpush.bf16.msra.mxu0 %v5455
        %5976 = vmatpush.bf16.msra.mxu0 %v5451
        %5977 = vmatpush.bf16.msra.mxu0 %v5447
        %5978 = vmatpush.bf16.msra.mxu0 %v5443
        %5979 = vmatpush.bf16.msra.mxu0 %v5439
        %5980 = vmatpush.bf16.msra.mxu0 %v5435
        %5981 = vmatpush.bf16.msra.mxu0 %v5431
        %5982 = vmatpush.bf16.msra.mxu0 %v5427
        %5983 = vmatmul.bf16.gmra.mxu0 %v4269
        %v5984 = vpop.f32.mrf.mxu0
        %v5985 = vadd.f32 %v5972, %v5984
        %v5986 = vpop.f32.mrf.mxu0
        %5987 = vdwg.mxu0
        %5988 = vmatpush.bf16.msra.mxu0 %v5487
        %5989 = vmatpush.bf16.msra.mxu0 %v5483
        %5990 = vmatpush.bf16.msra.mxu0 %v5479
        %5991 = vmatpush.bf16.msra.mxu0 %v5475
        %5992 = vmatpush.bf16.msra.mxu0 %v5471
        %5993 = vmatpush.bf16.msra.mxu0 %v5467
        %5994 = vmatpush.bf16.msra.mxu0 %v5463
        %5995 = vmatpush.bf16.msra.mxu0 %v5459
        %5996 = vmatmul.bf16.gmra.mxu0 %v4270
        %v5997 = vpop.f32.mrf.mxu0
        %v5998 = vadd.f32 %v5985, %v5997
        %v5999 = vpop.f32.mrf.mxu0
        %6000 = vdwg.mxu0
        %6001 = vmatpush.bf16.msra.mxu0 %v5519
        %6002 = vmatpush.bf16.msra.mxu0 %v5515
        %6003 = vmatpush.bf16.msra.mxu0 %v5511
        %6004 = vmatpush.bf16.msra.mxu0 %v5507
        %6005 = vmatpush.bf16.msra.mxu0 %v5503
        %6006 = vmatpush.bf16.msra.mxu0 %v5499
        %6007 = vmatpush.bf16.msra.mxu0 %v5495
        %6008 = vmatpush.bf16.msra.mxu0 %v5491
        %6009 = vmatmul.bf16.gmra.mxu0 %v4271
        %v6010 = vpop.f32.mrf.mxu0
        %v6011 = vadd.f32 %v5998, %v6010
        %v6012 = vpop.f32.mrf.mxu0
        %6013 = vdwg.mxu0
        %6014 = vmatpush.bf16.msra.mxu0 %v5551
        %6015 = vmatpush.bf16.msra.mxu0 %v5547
        %6016 = vmatpush.bf16.msra.mxu0 %v5543
        %6017 = vmatpush.bf16.msra.mxu0 %v5539
        %6018 = vmatpush.bf16.msra.mxu0 %v5535
        %6019 = vmatpush.bf16.msra.mxu0 %v5531
        %6020 = vmatpush.bf16.msra.mxu0 %v5527
        %6021 = vmatpush.bf16.msra.mxu0 %v5523
        %6022 = vmatmul.bf16.gmra.mxu0 %v4272
        %v6023 = vpop.f32.mrf.mxu0
        %v6024 = vadd.f32 %v6011, %v6023
        %v6025 = vpop.f32.mrf.mxu0
        %6026 = vdwg.mxu0
        %6027 = vmatpush.bf16.msra.mxu0 %v5328
        %6028 = vmatpush.bf16.msra.mxu0 %v5324
        %6029 = vmatpush.bf16.msra.mxu0 %v5320
        %6030 = vmatpush.bf16.msra.mxu0 %v5316
        %6031 = vmatpush.bf16.msra.mxu0 %v5312
        %6032 = vmatpush.bf16.msra.mxu0 %v5308
        %6033 = vmatpush.bf16.msra.mxu0 %v5304
        %6034 = vmatpush.bf16.msra.mxu0 %v5300
        %6035 = vmatmul.bf16.gmra.mxu0 %v4265
        %v6036 = vpop.f32.mrf.mxu0
        %v6037 = vadd.f32 %v5813, %v6036
        %v6038 = vpop.f32.mrf.mxu0
        %6039 = vdwg.mxu0
        %6040 = vmatpush.bf16.msra.mxu0 %v5360
        %6041 = vmatpush.bf16.msra.mxu0 %v5356
        %6042 = vmatpush.bf16.msra.mxu0 %v5352
        %6043 = vmatpush.bf16.msra.mxu0 %v5348
        %6044 = vmatpush.bf16.msra.mxu0 %v5344
        %6045 = vmatpush.bf16.msra.mxu0 %v5340
        %6046 = vmatpush.bf16.msra.mxu0 %v5336
        %6047 = vmatpush.bf16.msra.mxu0 %v5332
        %6048 = vmatmul.bf16.gmra.mxu0 %v4266
        %v6049 = vpop.f32.mrf.mxu0
        %v6050 = vadd.f32 %v6037, %v6049
        %v6051 = vpop.f32.mrf.mxu0
        %6052 = vdwg.mxu0
        %6053 = vmatpush.bf16.msra.mxu0 %v5392
        %6054 = vmatpush.bf16.msra.mxu0 %v5388
        %6055 = vmatpush.bf16.msra.mxu0 %v5384
        %6056 = vmatpush.bf16.msra.mxu0 %v5380
        %6057 = vmatpush.bf16.msra.mxu0 %v5376
        %6058 = vmatpush.bf16.msra.mxu0 %v5372
        %6059 = vmatpush.bf16.msra.mxu0 %v5368
        %6060 = vmatpush.bf16.msra.mxu0 %v5364
        %6061 = vmatmul.bf16.gmra.mxu0 %v4267
        %v6062 = vpop.f32.mrf.mxu0
        %v6063 = vadd.f32 %v6050, %v6062
        %v6064 = vpop.f32.mrf.mxu0
        %6065 = vdwg.mxu0
        %6066 = vmatpush.bf16.msra.mxu0 %v5424
        %6067 = vmatpush.bf16.msra.mxu0 %v5420
        %6068 = vmatpush.bf16.msra.mxu0 %v5416
        %6069 = vmatpush.bf16.msra.mxu0 %v5412
        %6070 = vmatpush.bf16.msra.mxu0 %v5408
        %6071 = vmatpush.bf16.msra.mxu0 %v5404
        %6072 = vmatpush.bf16.msra.mxu0 %v5400
        %6073 = vmatpush.bf16.msra.mxu0 %v5396
        %6074 = vmatmul.bf16.gmra.mxu0 %v4268
        %v6075 = vpop.f32.mrf.mxu0
        %v6076 = vadd.f32 %v6063, %v6075
        %v6077 = vpop.f32.mrf.mxu0
        %6078 = vdwg.mxu0
        %6079 = vmatpush.bf16.msra.mxu0 %v5456
        %6080 = vmatpush.bf16.msra.mxu0 %v5452
        %6081 = vmatpush.bf16.msra.mxu0 %v5448
        %6082 = vmatpush.bf16.msra.mxu0 %v5444
        %6083 = vmatpush.bf16.msra.mxu0 %v5440
        %6084 = vmatpush.bf16.msra.mxu0 %v5436
        %6085 = vmatpush.bf16.msra.mxu0 %v5432
        %6086 = vmatpush.bf16.msra.mxu0 %v5428
        %6087 = vmatmul.bf16.gmra.mxu0 %v4269
        %v6088 = vpop.f32.mrf.mxu0
        %v6089 = vadd.f32 %v6076, %v6088
        %v6090 = vpop.f32.mrf.mxu0
        %6091 = vdwg.mxu0
        %6092 = vmatpush.bf16.msra.mxu0 %v5488
        %6093 = vmatpush.bf16.msra.mxu0 %v5484
        %6094 = vmatpush.bf16.msra.mxu0 %v5480
        %6095 = vmatpush.bf16.msra.mxu0 %v5476
        %6096 = vmatpush.bf16.msra.mxu0 %v5472
        %6097 = vmatpush.bf16.msra.mxu0 %v5468
        %6098 = vmatpush.bf16.msra.mxu0 %v5464
        %6099 = vmatpush.bf16.msra.mxu0 %v5460
        %6100 = vmatmul.bf16.gmra.mxu0 %v4270
        %v6101 = vpop.f32.mrf.mxu0
        %v6102 = vadd.f32 %v6089, %v6101
        %v6103 = vpop.f32.mrf.mxu0
        %6104 = vdwg.mxu0
        %6105 = vmatpush.bf16.msra.mxu0 %v5520
        %6106 = vmatpush.bf16.msra.mxu0 %v5516
        %6107 = vmatpush.bf16.msra.mxu0 %v5512
        %6108 = vmatpush.bf16.msra.mxu0 %v5508
        %6109 = vmatpush.bf16.msra.mxu0 %v5504
        %6110 = vmatpush.bf16.msra.mxu0 %v5500
        %6111 = vmatpush.bf16.msra.mxu0 %v5496
        %6112 = vmatpush.bf16.msra.mxu0 %v5492
        %6113 = vmatmul.bf16.gmra.mxu0 %v4271
        %v6114 = vpop.f32.mrf.mxu0
        %v6115 = vadd.f32 %v6102, %v6114
        %v6116 = vpop.f32.mrf.mxu0
        %6117 = vdwg.mxu0
        %6118 = vmatpush.bf16.msra.mxu0 %v5552
        %6119 = vmatpush.bf16.msra.mxu0 %v5548
        %6120 = vmatpush.bf16.msra.mxu0 %v5544
        %6121 = vmatpush.bf16.msra.mxu0 %v5540
        %6122 = vmatpush.bf16.msra.mxu0 %v5536
        %6123 = vmatpush.bf16.msra.mxu0 %v5532
        %6124 = vmatpush.bf16.msra.mxu0 %v5528
        %6125 = vmatpush.bf16.msra.mxu0 %v5524
        %6126 = vmatmul.bf16.gmra.mxu0 %v4272
        %v6127 = vpop.f32.mrf.mxu0
        %v6128 = vadd.f32 %v6115, %v6127
        %v6129 = vpop.f32.mrf.mxu0
        %6130 = vdwg.mxu0
        %6131 = vmatpush.bf16.msra.mxu0 %v5329
        %6132 = vmatpush.bf16.msra.mxu0 %v5325
        %6133 = vmatpush.bf16.msra.mxu0 %v5321
        %6134 = vmatpush.bf16.msra.mxu0 %v5317
        %6135 = vmatpush.bf16.msra.mxu0 %v5313
        %6136 = vmatpush.bf16.msra.mxu0 %v5309
        %6137 = vmatpush.bf16.msra.mxu0 %v5305
        %6138 = vmatpush.bf16.msra.mxu0 %v5301
        %6139 = vmatmul.bf16.gmra.mxu0 %v4265
        %v6140 = vpop.f32.mrf.mxu0
        %v6141 = vadd.f32 %v5814, %v6140
        %v6142 = vpop.f32.mrf.mxu0
        %6143 = vdwg.mxu0
        %6144 = vmatpush.bf16.msra.mxu0 %v5361
        %6145 = vmatpush.bf16.msra.mxu0 %v5357
        %6146 = vmatpush.bf16.msra.mxu0 %v5353
        %6147 = vmatpush.bf16.msra.mxu0 %v5349
        %6148 = vmatpush.bf16.msra.mxu0 %v5345
        %6149 = vmatpush.bf16.msra.mxu0 %v5341
        %6150 = vmatpush.bf16.msra.mxu0 %v5337
        %6151 = vmatpush.bf16.msra.mxu0 %v5333
        %6152 = vmatmul.bf16.gmra.mxu0 %v4266
        %v6153 = vpop.f32.mrf.mxu0
        %v6154 = vadd.f32 %v6141, %v6153
        %v6155 = vpop.f32.mrf.mxu0
        %6156 = vdwg.mxu0
        %6157 = vmatpush.bf16.msra.mxu0 %v5393
        %6158 = vmatpush.bf16.msra.mxu0 %v5389
        %6159 = vmatpush.bf16.msra.mxu0 %v5385
        %6160 = vmatpush.bf16.msra.mxu0 %v5381
        %6161 = vmatpush.bf16.msra.mxu0 %v5377
        %6162 = vmatpush.bf16.msra.mxu0 %v5373
        %6163 = vmatpush.bf16.msra.mxu0 %v5369
        %6164 = vmatpush.bf16.msra.mxu0 %v5365
        %6165 = vmatmul.bf16.gmra.mxu0 %v4267
        %v6166 = vpop.f32.mrf.mxu0
        %v6167 = vadd.f32 %v6154, %v6166
        %v6168 = vpop.f32.mrf.mxu0
        %6169 = vdwg.mxu0
        %6170 = vmatpush.bf16.msra.mxu0 %v5425
        %6171 = vmatpush.bf16.msra.mxu0 %v5421
        %6172 = vmatpush.bf16.msra.mxu0 %v5417
        %6173 = vmatpush.bf16.msra.mxu0 %v5413
        %6174 = vmatpush.bf16.msra.mxu0 %v5409
        %6175 = vmatpush.bf16.msra.mxu0 %v5405
        %6176 = vmatpush.bf16.msra.mxu0 %v5401
        %6177 = vmatpush.bf16.msra.mxu0 %v5397
        %6178 = vmatmul.bf16.gmra.mxu0 %v4268
        %v6179 = vpop.f32.mrf.mxu0
        %v6180 = vadd.f32 %v6167, %v6179
        %v6181 = vpop.f32.mrf.mxu0
        %6182 = vdwg.mxu0
        %6183 = vmatpush.bf16.msra.mxu0 %v5457
        %6184 = vmatpush.bf16.msra.mxu0 %v5453
        %6185 = vmatpush.bf16.msra.mxu0 %v5449
        %6186 = vmatpush.bf16.msra.mxu0 %v5445
        %6187 = vmatpush.bf16.msra.mxu0 %v5441
        %6188 = vmatpush.bf16.msra.mxu0 %v5437
        %6189 = vmatpush.bf16.msra.mxu0 %v5433
        %6190 = vmatpush.bf16.msra.mxu0 %v5429
        %6191 = vmatmul.bf16.gmra.mxu0 %v4269
        %v6192 = vpop.f32.mrf.mxu0
        %v6193 = vadd.f32 %v6180, %v6192
        %v6194 = vpop.f32.mrf.mxu0
        %6195 = vdwg.mxu0
        %6196 = vmatpush.bf16.msra.mxu0 %v5489
        %6197 = vmatpush.bf16.msra.mxu0 %v5485
        %6198 = vmatpush.bf16.msra.mxu0 %v5481
        %6199 = vmatpush.bf16.msra.mxu0 %v5477
        %6200 = vmatpush.bf16.msra.mxu0 %v5473
        %6201 = vmatpush.bf16.msra.mxu0 %v5469
        %6202 = vmatpush.bf16.msra.mxu0 %v5465
        %6203 = vmatpush.bf16.msra.mxu0 %v5461
        %6204 = vmatmul.bf16.gmra.mxu0 %v4270
        %v6205 = vpop.f32.mrf.mxu0
        %v6206 = vadd.f32 %v6193, %v6205
        %v6207 = vpop.f32.mrf.mxu0
        %6208 = vdwg.mxu0
        %6209 = vmatpush.bf16.msra.mxu0 %v5521
        %6210 = vmatpush.bf16.msra.mxu0 %v5517
        %6211 = vmatpush.bf16.msra.mxu0 %v5513
        %6212 = vmatpush.bf16.msra.mxu0 %v5509
        %6213 = vmatpush.bf16.msra.mxu0 %v5505
        %6214 = vmatpush.bf16.msra.mxu0 %v5501
        %6215 = vmatpush.bf16.msra.mxu0 %v5497
        %6216 = vmatpush.bf16.msra.mxu0 %v5493
        %6217 = vmatmul.bf16.gmra.mxu0 %v4271
        %v6218 = vpop.f32.mrf.mxu0
        %v6219 = vadd.f32 %v6206, %v6218
        %v6220 = vpop.f32.mrf.mxu0
        %6221 = vdwg.mxu0
        %6222 = vmatpush.bf16.msra.mxu0 %v5553
        %6223 = vmatpush.bf16.msra.mxu0 %v5549
        %6224 = vmatpush.bf16.msra.mxu0 %v5545
        %6225 = vmatpush.bf16.msra.mxu0 %v5541
        %6226 = vmatpush.bf16.msra.mxu0 %v5537
        %6227 = vmatpush.bf16.msra.mxu0 %v5533
        %6228 = vmatpush.bf16.msra.mxu0 %v5529
        %6229 = vmatpush.bf16.msra.mxu0 %v5525
        %6230 = vmatmul.bf16.gmra.mxu0 %v4272
        %v6231 = vpop.f32.mrf.mxu0
        %v6232 = vadd.f32 %v6219, %v6231
        %v6233 = vpop.f32.mrf.mxu0
        %6234 = vdwg.mxu0
        %v6235 = vmax.f32 %v5920, 0.0
        %v6236 = vmax.f32 %v6024, 0.0
        %v6237 = vmax.f32 %v6128, 0.0
        %v6238 = vmax.f32 %v6232, 0.0
        %v6239 = vld [vmem:[%s53] sm:$0xf]
        %v6241 = vperm.slane %v6239, 0
        %v6242 = vperm.slane %v6239, 1
        %v6243 = vperm.slane %v6239, 2
        %v6244 = vperm.slane %v6239, 3
        %v6249 = vmul.f32 %v6235, %v6241
        %v6250 = vmul.f32 %v6236, %v6242
        %v6251 = vmul.f32 %v6237, %v6243
        %v6252 = vmul.f32 %v6238, %v6244
        %v6253 = vld [vmem:[%s55] sm:$0xf]
        %v6255 = vperm.slane %v6253, 0
        %v6256 = vperm.slane %v6253, 1
        %v6257 = vperm.slane %v6253, 2
        %v6258 = vperm.slane %v6253, 3
        %v6263 = vadd.f32 %v6249, %v6255
        %v6264 = vadd.f32 %v6250, %v6256
        %v6265 = vadd.f32 %v6251, %v6257
        %v6266 = vadd.f32 %v6252, %v6258
        %v6267 = vpack.c.bf16 %v6263, %v6263
        %v6268 = vpack.c.bf16 %v6264, %v6264
        %v6269 = vpack.c.bf16 %v6265, %v6265
        %v6270 = vpack.c.bf16 %v6266, %v6266
        %v6271 = vld [vmem:[#allocation8] sm:$0xff]
        %v6272 = vld [vmem:[#allocation8 + $0x8] sm:$0xff]
        %v6273 = vld [vmem:[#allocation8 + $0x10] sm:$0xff]
        %v6274 = vld [vmem:[#allocation8 + $0x18] sm:$0xff]
        %v6275 = vld [vmem:[#allocation8 + $0x20] sm:$0xff]
        %v6276 = vld [vmem:[#allocation8 + $0x28] sm:$0xff]
        %v6277 = vld [vmem:[#allocation8 + $0x30] sm:$0xff]
        %v6278 = vld [vmem:[#allocation8 + $0x38] sm:$0xff]
        %v6279 = vld [vmem:[#allocation8 + $0x40] sm:$0xff]
        %v6280 = vld [vmem:[#allocation8 + $0x48] sm:$0xff]
        %v6281 = vld [vmem:[#allocation8 + $0x50] sm:$0xff]
        %v6282 = vld [vmem:[#allocation8 + $0x58] sm:$0xff]
        %v6283 = vld [vmem:[#allocation8 + $0x60] sm:$0xff]
        %v6284 = vld [vmem:[#allocation8 + $0x68] sm:$0xff]
        %v6285 = vld [vmem:[#allocation8 + $0x70] sm:$0xff]
        %v6286 = vld [vmem:[#allocation8 + $0x78] sm:$0xff]
        %v6287 = vld [vmem:[#allocation8 + $0x80] sm:$0xff]
        %v6288 = vld [vmem:[#allocation8 + $0x88] sm:$0xff]
        %v6289 = vld [vmem:[#allocation8 + $0x90] sm:$0xff]
        %v6290 = vld [vmem:[#allocation8 + $0x98] sm:$0xff]
        %v6291 = vld [vmem:[#allocation8 + $0xa0] sm:$0xff]
        %v6292 = vld [vmem:[#allocation8 + $0xa8] sm:$0xff]
        %v6293 = vld [vmem:[#allocation8 + $0xb0] sm:$0xff]
        %v6294 = vld [vmem:[#allocation8 + $0xb8] sm:$0xff]
        %v6295 = vld [vmem:[#allocation8 + $0xc0] sm:$0xff]
        %v6296 = vld [vmem:[#allocation8 + $0xc8] sm:$0xff]
        %v6297 = vld [vmem:[#allocation8 + $0xd0] sm:$0xff]
        %v6298 = vld [vmem:[#allocation8 + $0xd8] sm:$0xff]
        %v6299 = vld [vmem:[#allocation8 + $0xe0] sm:$0xff]
        %v6300 = vld [vmem:[#allocation8 + $0xe8] sm:$0xff]
        %v6301 = vld [vmem:[#allocation8 + $0xf0] sm:$0xff]
        %v6302 = vld [vmem:[#allocation8 + $0xf8] sm:$0xff]
        %v6303 = vld [vmem:[#allocation8 + $0x100] sm:$0xff]
        %v6304 = vld [vmem:[#allocation8 + $0x108] sm:$0xff]
        %v6305 = vld [vmem:[#allocation8 + $0x110] sm:$0xff]
        %v6306 = vld [vmem:[#allocation8 + $0x118] sm:$0xff]
        %v6307 = vld [vmem:[#allocation8 + $0x120] sm:$0xff]
        %v6308 = vld [vmem:[#allocation8 + $0x128] sm:$0xff]
        %v6309 = vld [vmem:[#allocation8 + $0x130] sm:$0xff]
        %v6310 = vld [vmem:[#allocation8 + $0x138] sm:$0xff]
        %v6311 = vld [vmem:[#allocation8 + $0x140] sm:$0xff]
        %v6312 = vld [vmem:[#allocation8 + $0x148] sm:$0xff]
        %v6313 = vld [vmem:[#allocation8 + $0x150] sm:$0xff]
        %v6314 = vld [vmem:[#allocation8 + $0x158] sm:$0xff]
        %v6315 = vld [vmem:[#allocation8 + $0x160] sm:$0xff]
        %v6316 = vld [vmem:[#allocation8 + $0x168] sm:$0xff]
        %v6317 = vld [vmem:[#allocation8 + $0x170] sm:$0xff]
        %v6318 = vld [vmem:[#allocation8 + $0x178] sm:$0xff]
        %v6319 = vld [vmem:[#allocation8 + $0x180] sm:$0xff]
        %v6320 = vld [vmem:[#allocation8 + $0x188] sm:$0xff]
        %v6321 = vld [vmem:[#allocation8 + $0x190] sm:$0xff]
        %v6322 = vld [vmem:[#allocation8 + $0x198] sm:$0xff]
        %v6323 = vld [vmem:[#allocation8 + $0x1a0] sm:$0xff]
        %v6324 = vld [vmem:[#allocation8 + $0x1a8] sm:$0xff]
        %v6325 = vld [vmem:[#allocation8 + $0x1b0] sm:$0xff]
        %v6326 = vld [vmem:[#allocation8 + $0x1b8] sm:$0xff]
        %v6327 = vld [vmem:[#allocation8 + $0x1c0] sm:$0xff]
        %v6328 = vld [vmem:[#allocation8 + $0x1c8] sm:$0xff]
        %v6329 = vld [vmem:[#allocation8 + $0x1d0] sm:$0xff]
        %v6330 = vld [vmem:[#allocation8 + $0x1d8] sm:$0xff]
        %v6331 = vld [vmem:[#allocation8 + $0x1e0] sm:$0xff]
        %v6332 = vld [vmem:[#allocation8 + $0x1e8] sm:$0xff]
        %v6333 = vld [vmem:[#allocation8 + $0x1f0] sm:$0xff]
        %v6334 = vld [vmem:[#allocation8 + $0x1f8] sm:$0xff]
        %v6335 = vld [vmem:[%s59] sm:$0x3]
        %v6400 = vunpack.c.l.b16 %v6271
        %v6401 = vunpack.c.h.b16 %v6271
        %v6402 = vunpack.c.l.b16 %v6272
        %v6403 = vunpack.c.h.b16 %v6272
        %v6404 = vunpack.c.l.b16 %v6273
        %v6405 = vunpack.c.h.b16 %v6273
        %v6406 = vunpack.c.l.b16 %v6274
        %v6407 = vunpack.c.h.b16 %v6274
        %v6408 = vunpack.c.l.b16 %v6275
        %v6409 = vunpack.c.h.b16 %v6275
        %v6410 = vunpack.c.l.b16 %v6276
        %v6411 = vunpack.c.h.b16 %v6276
        %v6412 = vunpack.c.l.b16 %v6277
        %v6413 = vunpack.c.h.b16 %v6277
        %v6414 = vunpack.c.l.b16 %v6278
        %v6415 = vunpack.c.h.b16 %v6278
        %v6416 = vunpack.c.l.b16 %v6279
        %v6417 = vunpack.c.h.b16 %v6279
        %v6418 = vunpack.c.l.b16 %v6280
        %v6419 = vunpack.c.h.b16 %v6280
        %v6420 = vunpack.c.l.b16 %v6281
        %v6421 = vunpack.c.h.b16 %v6281
        %v6422 = vunpack.c.l.b16 %v6282
        %v6423 = vunpack.c.h.b16 %v6282
        %v6424 = vunpack.c.l.b16 %v6283
        %v6425 = vunpack.c.h.b16 %v6283
        %v6426 = vunpack.c.l.b16 %v6284
        %v6427 = vunpack.c.h.b16 %v6284
        %v6428 = vunpack.c.l.b16 %v6285
        %v6429 = vunpack.c.h.b16 %v6285
        %v6430 = vunpack.c.l.b16 %v6286
        %v6431 = vunpack.c.h.b16 %v6286
        %v6432 = vunpack.c.l.b16 %v6287
        %v6433 = vunpack.c.h.b16 %v6287
        %v6434 = vunpack.c.l.b16 %v6288
        %v6435 = vunpack.c.h.b16 %v6288
        %v6436 = vunpack.c.l.b16 %v6289
        %v6437 = vunpack.c.h.b16 %v6289
        %v6438 = vunpack.c.l.b16 %v6290
        %v6439 = vunpack.c.h.b16 %v6290
        %v6440 = vunpack.c.l.b16 %v6291
        %v6441 = vunpack.c.h.b16 %v6291
        %v6442 = vunpack.c.l.b16 %v6292
        %v6443 = vunpack.c.h.b16 %v6292
        %v6444 = vunpack.c.l.b16 %v6293
        %v6445 = vunpack.c.h.b16 %v6293
        %v6446 = vunpack.c.l.b16 %v6294
        %v6447 = vunpack.c.h.b16 %v6294
        %v6448 = vunpack.c.l.b16 %v6295
        %v6449 = vunpack.c.h.b16 %v6295
        %v6450 = vunpack.c.l.b16 %v6296
        %v6451 = vunpack.c.h.b16 %v6296
        %v6452 = vunpack.c.l.b16 %v6297
        %v6453 = vunpack.c.h.b16 %v6297
        %v6454 = vunpack.c.l.b16 %v6298
        %v6455 = vunpack.c.h.b16 %v6298
        %v6456 = vunpack.c.l.b16 %v6299
        %v6457 = vunpack.c.h.b16 %v6299
        %v6458 = vunpack.c.l.b16 %v6300
        %v6459 = vunpack.c.h.b16 %v6300
        %v6460 = vunpack.c.l.b16 %v6301
        %v6461 = vunpack.c.h.b16 %v6301
        %v6462 = vunpack.c.l.b16 %v6302
        %v6463 = vunpack.c.h.b16 %v6302
        %v6464 = vunpack.c.l.b16 %v6303
        %v6465 = vunpack.c.h.b16 %v6303
        %v6466 = vunpack.c.l.b16 %v6304
        %v6467 = vunpack.c.h.b16 %v6304
        %v6468 = vunpack.c.l.b16 %v6305
        %v6469 = vunpack.c.h.b16 %v6305
        %v6470 = vunpack.c.l.b16 %v6306
        %v6471 = vunpack.c.h.b16 %v6306
        %v6472 = vunpack.c.l.b16 %v6307
        %v6473 = vunpack.c.h.b16 %v6307
        %v6474 = vunpack.c.l.b16 %v6308
        %v6475 = vunpack.c.h.b16 %v6308
        %v6476 = vunpack.c.l.b16 %v6309
        %v6477 = vunpack.c.h.b16 %v6309
        %v6478 = vunpack.c.l.b16 %v6310
        %v6479 = vunpack.c.h.b16 %v6310
        %v6480 = vunpack.c.l.b16 %v6311
        %v6481 = vunpack.c.h.b16 %v6311
        %v6482 = vunpack.c.l.b16 %v6312
        %v6483 = vunpack.c.h.b16 %v6312
        %v6484 = vunpack.c.l.b16 %v6313
        %v6485 = vunpack.c.h.b16 %v6313
        %v6486 = vunpack.c.l.b16 %v6314
        %v6487 = vunpack.c.h.b16 %v6314
        %v6488 = vunpack.c.l.b16 %v6315
        %v6489 = vunpack.c.h.b16 %v6315
        %v6490 = vunpack.c.l.b16 %v6316
        %v6491 = vunpack.c.h.b16 %v6316
        %v6492 = vunpack.c.l.b16 %v6317
        %v6493 = vunpack.c.h.b16 %v6317
        %v6494 = vunpack.c.l.b16 %v6318
        %v6495 = vunpack.c.h.b16 %v6318
        %v6496 = vunpack.c.l.b16 %v6319
        %v6497 = vunpack.c.h.b16 %v6319
        %v6498 = vunpack.c.l.b16 %v6320
        %v6499 = vunpack.c.h.b16 %v6320
        %v6500 = vunpack.c.l.b16 %v6321
        %v6501 = vunpack.c.h.b16 %v6321
        %v6502 = vunpack.c.l.b16 %v6322
        %v6503 = vunpack.c.h.b16 %v6322
        %v6504 = vunpack.c.l.b16 %v6323
        %v6505 = vunpack.c.h.b16 %v6323
        %v6506 = vunpack.c.l.b16 %v6324
        %v6507 = vunpack.c.h.b16 %v6324
        %v6508 = vunpack.c.l.b16 %v6325
        %v6509 = vunpack.c.h.b16 %v6325
        %v6510 = vunpack.c.l.b16 %v6326
        %v6511 = vunpack.c.h.b16 %v6326
        %v6512 = vunpack.c.l.b16 %v6327
        %v6513 = vunpack.c.h.b16 %v6327
        %v6514 = vunpack.c.l.b16 %v6328
        %v6515 = vunpack.c.h.b16 %v6328
        %v6516 = vunpack.c.l.b16 %v6329
        %v6517 = vunpack.c.h.b16 %v6329
        %v6518 = vunpack.c.l.b16 %v6330
        %v6519 = vunpack.c.h.b16 %v6330
        %v6520 = vunpack.c.l.b16 %v6331
        %v6521 = vunpack.c.h.b16 %v6331
        %v6522 = vunpack.c.l.b16 %v6332
        %v6523 = vunpack.c.h.b16 %v6332
        %v6524 = vunpack.c.l.b16 %v6333
        %v6525 = vunpack.c.h.b16 %v6333
        %v6526 = vunpack.c.l.b16 %v6334
        %v6527 = vunpack.c.h.b16 %v6334
        %v6528 = vpack.c.b16 %v6402, %v6400
        %v6529 = vpack.c.b16 %v6403, %v6401
        %v6530 = vpack.c.b16 %v6406, %v6404
        %v6531 = vpack.c.b16 %v6407, %v6405
        %v6532 = vpack.c.b16 %v6410, %v6408
        %v6533 = vpack.c.b16 %v6411, %v6409
        %v6534 = vpack.c.b16 %v6414, %v6412
        %v6535 = vpack.c.b16 %v6415, %v6413
        %v6536 = vpack.c.b16 %v6418, %v6416
        %v6537 = vpack.c.b16 %v6419, %v6417
        %v6538 = vpack.c.b16 %v6422, %v6420
        %v6539 = vpack.c.b16 %v6423, %v6421
        %v6540 = vpack.c.b16 %v6426, %v6424
        %v6541 = vpack.c.b16 %v6427, %v6425
        %v6542 = vpack.c.b16 %v6430, %v6428
        %v6543 = vpack.c.b16 %v6431, %v6429
        %v6544 = vpack.c.b16 %v6434, %v6432
        %v6545 = vpack.c.b16 %v6435, %v6433
        %v6546 = vpack.c.b16 %v6438, %v6436
        %v6547 = vpack.c.b16 %v6439, %v6437
        %v6548 = vpack.c.b16 %v6442, %v6440
        %v6549 = vpack.c.b16 %v6443, %v6441
        %v6550 = vpack.c.b16 %v6446, %v6444
        %v6551 = vpack.c.b16 %v6447, %v6445
        %v6552 = vpack.c.b16 %v6450, %v6448
        %v6553 = vpack.c.b16 %v6451, %v6449
        %v6554 = vpack.c.b16 %v6454, %v6452
        %v6555 = vpack.c.b16 %v6455, %v6453
        %v6556 = vpack.c.b16 %v6458, %v6456
        %v6557 = vpack.c.b16 %v6459, %v6457
        %v6558 = vpack.c.b16 %v6462, %v6460
        %v6559 = vpack.c.b16 %v6463, %v6461
        %v6560 = vpack.c.b16 %v6466, %v6464
        %v6561 = vpack.c.b16 %v6467, %v6465
        %v6562 = vpack.c.b16 %v6470, %v6468
        %v6563 = vpack.c.b16 %v6471, %v6469
        %v6564 = vpack.c.b16 %v6474, %v6472
        %v6565 = vpack.c.b16 %v6475, %v6473
        %v6566 = vpack.c.b16 %v6478, %v6476
        %v6567 = vpack.c.b16 %v6479, %v6477
        %v6568 = vpack.c.b16 %v6482, %v6480
        %v6569 = vpack.c.b16 %v6483, %v6481
        %v6570 = vpack.c.b16 %v6486, %v6484
        %v6571 = vpack.c.b16 %v6487, %v6485
        %v6572 = vpack.c.b16 %v6490, %v6488
        %v6573 = vpack.c.b16 %v6491, %v6489
        %v6574 = vpack.c.b16 %v6494, %v6492
        %v6575 = vpack.c.b16 %v6495, %v6493
        %v6576 = vpack.c.b16 %v6498, %v6496
        %v6577 = vpack.c.b16 %v6499, %v6497
        %v6578 = vpack.c.b16 %v6502, %v6500
        %v6579 = vpack.c.b16 %v6503, %v6501
        %v6580 = vpack.c.b16 %v6506, %v6504
        %v6581 = vpack.c.b16 %v6507, %v6505
        %v6582 = vpack.c.b16 %v6510, %v6508
        %v6583 = vpack.c.b16 %v6511, %v6509
        %v6584 = vpack.c.b16 %v6514, %v6512
        %v6585 = vpack.c.b16 %v6515, %v6513
        %v6586 = vpack.c.b16 %v6518, %v6516
        %v6587 = vpack.c.b16 %v6519, %v6517
        %v6588 = vpack.c.b16 %v6522, %v6520
        %v6589 = vpack.c.b16 %v6523, %v6521
        %v6590 = vpack.c.b16 %v6526, %v6524
        %v6591 = vpack.c.b16 %v6527, %v6525
        %v6657 = vperm.slane %v6335, 0
        %v6658 = vperm.slane %v6335, 1
        %6661 = vmatpush.bf16.msra.mxu0 %v6542
        %6662 = vmatpush.bf16.msra.mxu0 %v6540
        %6663 = vmatpush.bf16.msra.mxu0 %v6538
        %6664 = vmatpush.bf16.msra.mxu0 %v6536
        %6665 = vmatpush.bf16.msra.mxu0 %v6534
        %6666 = vmatpush.bf16.msra.mxu0 %v6532
        %6667 = vmatpush.bf16.msra.mxu0 %v6530
        %6668 = vmatpush.bf16.msra.mxu0 %v6528
        %6669 = vmatmul.bf16.gmra.mxu0 %v6267
        %v6670 = vpop.f32.mrf.mxu0
        %v6671 = vadd.f32 %v6657, %v6670
        %v6672 = vpop.f32.mrf.mxu0
        %6673 = vdwg.mxu0
        %6674 = vmatpush.bf16.msra.mxu0 %v6558
        %6675 = vmatpush.bf16.msra.mxu0 %v6556
        %6676 = vmatpush.bf16.msra.mxu0 %v6554
        %6677 = vmatpush.bf16.msra.mxu0 %v6552
        %6678 = vmatpush.bf16.msra.mxu0 %v6550
        %6679 = vmatpush.bf16.msra.mxu0 %v6548
        %6680 = vmatpush.bf16.msra.mxu0 %v6546
        %6681 = vmatpush.bf16.msra.mxu0 %v6544
        %6682 = vmatmul.bf16.gmra.mxu0 %v6268
        %v6683 = vpop.f32.mrf.mxu0
        %v6684 = vadd.f32 %v6671, %v6683
        %v6685 = vpop.f32.mrf.mxu0
        %6686 = vdwg.mxu0
        %6687 = vmatpush.bf16.msra.mxu0 %v6574
        %6688 = vmatpush.bf16.msra.mxu0 %v6572
        %6689 = vmatpush.bf16.msra.mxu0 %v6570
        %6690 = vmatpush.bf16.msra.mxu0 %v6568
        %6691 = vmatpush.bf16.msra.mxu0 %v6566
        %6692 = vmatpush.bf16.msra.mxu0 %v6564
        %6693 = vmatpush.bf16.msra.mxu0 %v6562
        %6694 = vmatpush.bf16.msra.mxu0 %v6560
        %6695 = vmatmul.bf16.gmra.mxu0 %v6269
        %v6696 = vpop.f32.mrf.mxu0
        %v6697 = vadd.f32 %v6684, %v6696
        %v6698 = vpop.f32.mrf.mxu0
        %6699 = vdwg.mxu0
        %6700 = vmatpush.bf16.msra.mxu0 %v6590
        %6701 = vmatpush.bf16.msra.mxu0 %v6588
        %6702 = vmatpush.bf16.msra.mxu0 %v6586
        %6703 = vmatpush.bf16.msra.mxu0 %v6584
        %6704 = vmatpush.bf16.msra.mxu0 %v6582
        %6705 = vmatpush.bf16.msra.mxu0 %v6580
        %6706 = vmatpush.bf16.msra.mxu0 %v6578
        %6707 = vmatpush.bf16.msra.mxu0 %v6576
        %6708 = vmatmul.bf16.gmra.mxu0 %v6270
        %v6709 = vpop.f32.mrf.mxu0
        %v6710 = vadd.f32 %v6697, %v6709
        %v6711 = vpop.f32.mrf.mxu0
        %6712 = vdwg.mxu0
        %6713 = vmatpush.bf16.msra.mxu0 %v6543
        %6714 = vmatpush.bf16.msra.mxu0 %v6541
        %6715 = vmatpush.bf16.msra.mxu0 %v6539
        %6716 = vmatpush.bf16.msra.mxu0 %v6537
        %6717 = vmatpush.bf16.msra.mxu0 %v6535
        %6718 = vmatpush.bf16.msra.mxu0 %v6533
        %6719 = vmatpush.bf16.msra.mxu0 %v6531
        %6720 = vmatpush.bf16.msra.mxu0 %v6529
        %6721 = vmatmul.bf16.gmra.mxu0 %v6267
        %v6722 = vpop.f32.mrf.mxu0
        %v6723 = vadd.f32 %v6658, %v6722
        %v6724 = vpop.f32.mrf.mxu0
        %6725 = vdwg.mxu0
        %6726 = vmatpush.bf16.msra.mxu0 %v6559
        %6727 = vmatpush.bf16.msra.mxu0 %v6557
        %6728 = vmatpush.bf16.msra.mxu0 %v6555
        %6729 = vmatpush.bf16.msra.mxu0 %v6553
        %6730 = vmatpush.bf16.msra.mxu0 %v6551
        %6731 = vmatpush.bf16.msra.mxu0 %v6549
        %6732 = vmatpush.bf16.msra.mxu0 %v6547
        %6733 = vmatpush.bf16.msra.mxu0 %v6545
        %6734 = vmatmul.bf16.gmra.mxu0 %v6268
        %v6735 = vpop.f32.mrf.mxu0
        %v6736 = vadd.f32 %v6723, %v6735
        %v6737 = vpop.f32.mrf.mxu0
        %6738 = vdwg.mxu0
        %6739 = vmatpush.bf16.msra.mxu0 %v6575
        %6740 = vmatpush.bf16.msra.mxu0 %v6573
        %6741 = vmatpush.bf16.msra.mxu0 %v6571
        %6742 = vmatpush.bf16.msra.mxu0 %v6569
        %6743 = vmatpush.bf16.msra.mxu0 %v6567
        %6744 = vmatpush.bf16.msra.mxu0 %v6565
        %6745 = vmatpush.bf16.msra.mxu0 %v6563
        %6746 = vmatpush.bf16.msra.mxu0 %v6561
        %6747 = vmatmul.bf16.gmra.mxu0 %v6269
        %v6748 = vpop.f32.mrf.mxu0
        %v6749 = vadd.f32 %v6736, %v6748
        %v6750 = vpop.f32.mrf.mxu0
        %6751 = vdwg.mxu0
        %6752 = vmatpush.bf16.msra.mxu0 %v6591
        %6753 = vmatpush.bf16.msra.mxu0 %v6589
        %6754 = vmatpush.bf16.msra.mxu0 %v6587
        %6755 = vmatpush.bf16.msra.mxu0 %v6585
        %6756 = vmatpush.bf16.msra.mxu0 %v6583
        %6757 = vmatpush.bf16.msra.mxu0 %v6581
        %6758 = vmatpush.bf16.msra.mxu0 %v6579
        %6759 = vmatpush.bf16.msra.mxu0 %v6577
        %6760 = vmatmul.bf16.gmra.mxu0 %v6270
        %v6761 = vpop.f32.mrf.mxu0
        %v6762 = vadd.f32 %v6749, %v6761
        %v6763 = vpop.f32.mrf.mxu0
        %6764 = vdwg.mxu0
        %v6765 = vmax.f32 %v6710, 0.0
        %v6766 = vmax.f32 %v6762, 0.0
        %v6767 = vld [vmem:[%s61] sm:$0x3]
        %v6769 = vperm.slane %v6767, 0
        %v6770 = vperm.slane %v6767, 1
        %v6773 = vmul.f32 %v6765, %v6769
        %v6774 = vmul.f32 %v6766, %v6770
        %v6775 = vld [vmem:[%s63] sm:$0x3]
        %v6777 = vperm.slane %v6775, 0
        %v6778 = vperm.slane %v6775, 1
        %v6781 = vadd.f32 %v6773, %v6777
        %v6782 = vadd.f32 %v6774, %v6778
        %v6783 = vpack.c.bf16 %v6781, %v6781
        %v6784 = vpack.c.bf16 %v6782, %v6782
        %v6785 = vld [vmem:[%s65] sm:$0xf]
        %v6786 = vld [vmem:[%s65 + $0x4] sm:$0xf]
        %v6787 = vld [vmem:[%s65 + $0x8] sm:$0xf]
        %v6788 = vld [vmem:[%s65 + $0xc] sm:$0xf]
        %v6789 = vld [vmem:[%s65 + $0x10] sm:$0xf]
        %v6790 = vld [vmem:[%s65 + $0x14] sm:$0xf]
        %v6791 = vld [vmem:[%s65 + $0x18] sm:$0xf]
        %v6792 = vld [vmem:[%s65 + $0x1c] sm:$0xf]
        %v6793 = vld [vmem:[%s65 + $0x20] sm:$0xf]
        %v6794 = vld [vmem:[%s65 + $0x24] sm:$0xf]
        %v6795 = vld [vmem:[%s65 + $0x28] sm:$0xf]
        %v6796 = vld [vmem:[%s65 + $0x2c] sm:$0xf]
        %v6797 = vld [vmem:[%s65 + $0x30] sm:$0xf]
        %v6798 = vld [vmem:[%s65 + $0x34] sm:$0xf]
        %v6799 = vld [vmem:[%s65 + $0x38] sm:$0xf]
        %v6800 = vld [vmem:[%s65 + $0x3c] sm:$0xf]
        %v6801 = vld [vmem:[%s65 + $0x40] sm:$0xf]
        %v6802 = vld [vmem:[%s65 + $0x44] sm:$0xf]
        %v6803 = vld [vmem:[%s65 + $0x48] sm:$0xf]
        %v6804 = vld [vmem:[%s65 + $0x4c] sm:$0xf]
        %v6805 = vld [vmem:[%s65 + $0x50] sm:$0xf]
        %v6806 = vld [vmem:[%s65 + $0x54] sm:$0xf]
        %v6807 = vld [vmem:[%s65 + $0x58] sm:$0xf]
        %v6808 = vld [vmem:[%s65 + $0x5c] sm:$0xf]
        %v6809 = vld [vmem:[%s65 + $0x60] sm:$0xf]
        %v6810 = vld [vmem:[%s65 + $0x64] sm:$0xf]
        %v6811 = vld [vmem:[%s65 + $0x68] sm:$0xf]
        %v6812 = vld [vmem:[%s65 + $0x6c] sm:$0xf]
        %v6813 = vld [vmem:[%s65 + $0x70] sm:$0xf]
        %v6814 = vld [vmem:[%s65 + $0x74] sm:$0xf]
        %v6815 = vld [vmem:[%s65 + $0x78] sm:$0xf]
        %v6816 = vld [vmem:[%s65 + $0x7c] sm:$0xf]
        %v6817 = vld [vmem:[%s67] sm:$0x1]
        %v6850 = vunpack.c.l.b16 %v6785
        %v6851 = vunpack.c.l.b16 %v6786
        %v6852 = vunpack.c.l.b16 %v6787
        %v6853 = vunpack.c.l.b16 %v6788
        %v6854 = vunpack.c.l.b16 %v6789
        %v6855 = vunpack.c.l.b16 %v6790
        %v6856 = vunpack.c.l.b16 %v6791
        %v6857 = vunpack.c.l.b16 %v6792
        %v6858 = vunpack.c.l.b16 %v6793
        %v6859 = vunpack.c.l.b16 %v6794
        %v6860 = vunpack.c.l.b16 %v6795
        %v6861 = vunpack.c.l.b16 %v6796
        %v6862 = vunpack.c.l.b16 %v6797
        %v6863 = vunpack.c.l.b16 %v6798
        %v6864 = vunpack.c.l.b16 %v6799
        %v6865 = vunpack.c.l.b16 %v6800
        %v6866 = vunpack.c.l.b16 %v6801
        %v6867 = vunpack.c.l.b16 %v6802
        %v6868 = vunpack.c.l.b16 %v6803
        %v6869 = vunpack.c.l.b16 %v6804
        %v6870 = vunpack.c.l.b16 %v6805
        %v6871 = vunpack.c.l.b16 %v6806
        %v6872 = vunpack.c.l.b16 %v6807
        %v6873 = vunpack.c.l.b16 %v6808
        %v6874 = vunpack.c.l.b16 %v6809
        %v6875 = vunpack.c.l.b16 %v6810
        %v6876 = vunpack.c.l.b16 %v6811
        %v6877 = vunpack.c.l.b16 %v6812
        %v6878 = vunpack.c.l.b16 %v6813
        %v6879 = vunpack.c.l.b16 %v6814
        %v6880 = vunpack.c.l.b16 %v6815
        %v6881 = vunpack.c.l.b16 %v6816
        %v6882 = vpack.c.b16 %v6851, %v6850
        %v6883 = vpack.c.b16 %v6853, %v6852
        %v6884 = vpack.c.b16 %v6855, %v6854
        %v6885 = vpack.c.b16 %v6857, %v6856
        %v6886 = vpack.c.b16 %v6859, %v6858
        %v6887 = vpack.c.b16 %v6861, %v6860
        %v6888 = vpack.c.b16 %v6863, %v6862
        %v6889 = vpack.c.b16 %v6865, %v6864
        %v6890 = vpack.c.b16 %v6867, %v6866
        %v6891 = vpack.c.b16 %v6869, %v6868
        %v6892 = vpack.c.b16 %v6871, %v6870
        %v6893 = vpack.c.b16 %v6873, %v6872
        %v6894 = vpack.c.b16 %v6875, %v6874
        %v6895 = vpack.c.b16 %v6877, %v6876
        %v6896 = vpack.c.b16 %v6879, %v6878
        %v6897 = vpack.c.b16 %v6881, %v6880
        %6914 = vmatpush.bf16.msra.mxu0 %v6889
        %6915 = vmatpush.bf16.msra.mxu0 %v6888
        %6916 = vmatpush.bf16.msra.mxu0 %v6887
        %6917 = vmatpush.bf16.msra.mxu0 %v6886
        %6918 = vmatpush.bf16.msra.mxu0 %v6885
        %6919 = vmatpush.bf16.msra.mxu0 %v6884
        %6920 = vmatpush.bf16.msra.mxu0 %v6883
        %6921 = vmatpush.bf16.msra.mxu0 %v6882
        %6922 = vmatmul.bf16.gmra.mxu0 %v6783
        %v6923 = vpop.f32.mrf.mxu0
        %v6924 = vadd.f32 %v6817, %v6923
        %v6925 = vpop.f32.mrf.mxu0
        %6926 = vdwg.mxu0
        %6927 = vmatpush.bf16.msra.mxu0 %v6897
        %6928 = vmatpush.bf16.msra.mxu0 %v6896
        %6929 = vmatpush.bf16.msra.mxu0 %v6895
        %6930 = vmatpush.bf16.msra.mxu0 %v6894
        %6931 = vmatpush.bf16.msra.mxu0 %v6893
        %6932 = vmatpush.bf16.msra.mxu0 %v6892
        %6933 = vmatpush.bf16.msra.mxu0 %v6891
        %6934 = vmatpush.bf16.msra.mxu0 %v6890
        %6935 = vmatmul.bf16.gmra.mxu0 %v6784
        %v6936 = vpop.f32.mrf.mxu0
        %v6937 = vadd.f32 %v6924, %v6936
        %v6938 = vpop.f32.mrf.mxu0
        %6939 = vdwg.mxu0
        %vm6940 = vcmask 57344
        %v6941 = vsel %vm6940, %v6937, -inf
        %6942 = vmax.xlane.f32.xlu0 %v6941
        %v6943 = vpop.xlane.xlu0 %6942
        %v6944 = vsub.f32 %v6937, %v6943
        %v6945 = vmul.f32 %v6944, 1.442695
        %v6946 = vpow.pop %v6945
        %v6947 = vsel %vm6940, %v6946, 0.0
        %6948 = vadd.xlane.f32.xlu0 %v6947
        %v6949 = vpop.xlane.xlu0 %6948
        %v6950 = vlog2.pop %v6949
        %v6951 = vmul.f32 %v6950, 0.6931472
        %v6952 = vsub.f32 %v6944, %v6951
        %6953 = vst.msk [vmem:[%s1101] sm:$0x1] %vm6940, %v6952
        %s6954 = sand.u32 %s813, 1
        %s6955 = scalar_lea.sflag [#allocation4], %s6954
        %s6956 = sand.u32 %s813, 1
        %s6957 = scalar_lea.vmem [#allocation10], %s6956
        // Predicated region
        $region173: #{_lambda_.1} parent=155 // pred_check
          %p6958 = pneg %p823
        $region174: #{_lambda_.1} parent=155 // pred_check_branch
          %6960 = sbr.rel (%p6958) target = $region176
        $region175: #{_lambda_.1} parent=155 // pred_region
          %6962 = vsyncadd %s6955, 0
          %s6963 = scalar_lea.hbm %s69, %s86
          %s6965 = sshll.u32 %s6957, 4
          %s6966 = int_to_ptr.vmem [resolvable:$true] %s6965
          %s6967 = sshll.u32 %s6963, 4
          %s6968 = int_to_ptr.hbm [resolvable:$true] %s6967
          %6970 = dma.vmem_to_hbm [thread:$0]  %s6966, 16, %s6968, %s6955
        $region176: #{_lambda_.1} parent=155 // pred_fallthru
          _
      $region156: #{_lambda_.1} parent=5 // pred_fallthru
        _
      %p6971 = scmp.le.s32.totalorder 2, %s81
      // Predicated region
      $region177: #{_lambda_.1} parent=5 // pred_check
        %p6972 = pneg %p6971
      $region178: #{_lambda_.1} parent=5 // pred_check_branch
        %6974 = sbr.rel (%p6972) target = $region180
      $region179: #{_lambda_.1} parent=5 // pred_region
        %s6975 = ssub.s32 %s81, 2
        // Predicated region
        $region181: #{_lambda_.1} parent=179 // pred_check
          %p6976 = pneg %p829
        $region182: #{_lambda_.1} parent=179 // pred_check_branch
          %6978 = sbr.rel (%p6976) target = $region184
        $region183: #{_lambda_.1} parent=179 // pred_region
          %s6979 = sand.u32 %s814, 1
          %s6980 = scalar_lea.sflag [#allocation4], %s6979
          %s6981 = sand.u32 %s814, 1
          %s6982 = scalar_lea.vmem [#allocation10], %s6981
          %6984 = dma.done %s6980, 16
        $region184: #{_lambda_.1} parent=179 // pred_fallthru
          _
      $region180: #{_lambda_.1} parent=5 // pred_fallthru
        _
    $region6: #{_lambda_.1} parent=1 // loop_footer
      %s85 = sadd.s32 1, %s81
    $region7: #{_lambda_.1} parent=1 // loop_footer_branch
      %80 = sbr.rel target = $region3
    $region8: #{_lambda_.1} parent=1 // loop_exit
      _
    %6985 = vsyncpa [#allocation3], 1
    %s6986 = scalar_lea.sflag [#allocation3], 1
    %6987 = vsyncpa %s6986, 1
    %6988 = vsyncpa [#allocation6], 1
    %6989 = vsyncpa [#allocation9], 1
    %6990 = vsyncpa [#allocation4], 1
    %s6991 = scalar_lea.sflag [#allocation4], 1
    %6992 = vsyncpa %s6991, 1

</llo_original>
